<compile_context>
chip_gen: v5e
topology: v5e:2x2
jax: 0.10.0
libtpu: 0.0.40
codegen_flags: <defaults>
</compile_context>

<pallas_src>
import functools
import math

import jax
import jax.numpy as jnp
import numpy as np
from jax.experimental import pallas as pl
from jax.experimental.pallas import tpu as pltpu


# -----------------------------------------------------------------------------
# Tiled linear kernel:  out = x @ w_t + b    (w_t is the pre-transposed weight)
# bf16 MXU operands, f32 VMEM accumulator, init/finalize via pl.when.
# -----------------------------------------------------------------------------

def _linear_kernel(x_ref, w_ref, b_ref, o_ref, acc_ref):
    @pl.when(pl.program_id(2) == 0)
    def _init():
        acc_ref[...] = jnp.zeros_like(acc_ref)

    acc_ref[...] += jnp.dot(x_ref[...], w_ref[...],
                            preferred_element_type=jnp.float32)

    @pl.when(pl.program_id(2) == pl.num_programs(2) - 1)
    def _finalize():
        o_ref[...] = (acc_ref[...] + b_ref[...]).astype(o_ref.dtype)


def _pick_tile(dim, candidates=(512, 256, 128)):
    for c in candidates:
        if c <= dim and dim % c == 0:
            return c
    return dim                      # full dim is always a legal block


def linear_tiled(x, w_t, b, out_dtype=jnp.bfloat16):
    """x: (M, K), w_t: (K, N) pre-transposed weight, b: (N,)."""
    M, K = x.shape
    K2, N = w_t.shape
    assert K == K2
    x = x.astype(jnp.bfloat16)
    w_t = w_t.astype(jnp.bfloat16)
    b2 = b.reshape(1, N).astype(jnp.float32)

    tm, tn, tk = _pick_tile(M), _pick_tile(N), _pick_tile(K)
    grid = (M // tm, N // tn, K // tk)

    # bf16 input tiles + f32 bias/out/acc, double-buffered; clamp at 32 MiB so
    # the request is safe on v7x (64 MiB physical VMEM) as well as v5e/v6e.
    out_bytes = jnp.dtype(out_dtype).itemsize
    vmem = (2 * (2 * tm * tk + 2 * tk * tn + 4 * tn + out_bytes * tm * tn)
            + 4 * tm * tn + (4 << 20))
    vmem = int(min(max(vmem, 8 << 20), 32 << 20))

    return pl.pallas_call(
        _linear_kernel,
        out_shape=jax.ShapeDtypeStruct((M, N), out_dtype),
        grid=grid,
        in_specs=[
            pl.BlockSpec((tm, tk), lambda i, j, k: (i, k)),
            pl.BlockSpec((tk, tn), lambda i, j, k: (k, j)),
            pl.BlockSpec((1, tn), lambda i, j, k: (0, j)),
        ],
        out_specs=pl.BlockSpec((tm, tn), lambda i, j, k: (i, j)),
        scratch_shapes=[pltpu.VMEM((tm, tn), jnp.float32)],
        compiler_params=pltpu.CompilerParams(
            dimension_semantics=("parallel", "parallel", "arbitrary"),
            vmem_limit_bytes=vmem),
    )(x, w_t, b2)


# -----------------------------------------------------------------------------
# Fused relative attention kernel.  One grid step = (batch b, head-group g):
#   pos projection (fused) + content/pos scores + relative shift (XLU rolls)
#   + mask + softmax + AV, for the 128-lane feature slab of that head group.
# -----------------------------------------------------------------------------

def _rel_attn_kernel(mask_ref, q_ref, k_ref, v_ref, pos_ref, wp_ref,
                     u_ref, vb_ref, o_ref, *, d_head, heads_per_block, scale):
    f32 = jnp.float32
    bf16 = jnp.bfloat16
    T = q_ref.shape[1]

    # Fused positional projection for this head group's feature slab:
    #   p = pos_embedding @ Wp^T[:, slab]     (pos_proj has no bias)
    p_grp = jnp.dot(pos_ref[0], wp_ref[...],
                    preferred_element_type=f32).astype(bf16)        # (T, lanes)

    q_grp = q_ref[0].astype(f32)                                     # (T, lanes)
    # Fold 1/sqrt(d_model) into the queries (O(T*lanes) instead of O(T^2)).
    qu = ((q_grp + u_ref[...].astype(f32)) * scale).astype(bf16)
    qv = ((q_grp + vb_ref[...].astype(f32)) * scale).astype(bf16)
    k_grp = q_grp  # placeholder removed below
    k_grp = k_ref[0]                                                 # bf16
    v_grp = v_ref[0]                                                 # bf16

    mask = mask_ref[0]                         # (1, T) or (T, T); nonzero=masked
    row = jax.lax.broadcasted_iota(jnp.int32, (T, T), 0)
    col = jax.lax.broadcasted_iota(jnp.int32, (T, T), 1)

    nt = (((1,), (1,)), ((), ()))              # A @ B^T without an explicit .T
    ctx_parts = []
    for h in range(heads_per_block):
        lo, hi = h * d_head, (h + 1) * d_head
        content = jax.lax.dot_general(qu[:, lo:hi], k_grp[:, lo:hi], nt,
                                      preferred_element_type=f32)    # (T, T)
        pos_raw = jax.lax.dot_general(qv[:, lo:hi], p_grp[:, lo:hi], nt,
                                      preferred_element_type=f32)    # (T, T)

        # ---- Transformer-XL relative shift, via XLU rolls (no matmuls) ------
        #   shifted[i, j] = raw[i, (j - i - 1) mod T]   if j <= i
        #                 = 0                           if j == i + 1
        #                 = raw[i + 1, j - i - 2]       if j >= i + 2
        # Per-row right-roll by (i + 1): strided roll (amount i) + static roll 1
        # (split keeps every roll amount strictly < T).
        b1 = pltpu.roll(pos_raw, shift=0, axis=1, stride=1, stride_axis=0)
        b1 = pltpu.roll(b1, shift=1, axis=1)      # b1[i, j] = raw[i, (j-i-1)%T]
        b2 = pltpu.roll(b1, shift=T - 1, axis=0)  # b2[i]    = b1[(i+1) % T]
        pos_shift = jnp.where(col <= row, b1,
                              jnp.where(col == row + 1, f32(0.0), b2))
        # ----------------------------------------------------------------------

        score = content + pos_shift
        score = jnp.where(mask != 0, f32(-1e9), score)               # masked_fill
        score = score - jnp.max(score, axis=-1, keepdims=True)
        e = jnp.exp(score)
        attn = e * pl.reciprocal(jnp.sum(e, axis=-1, keepdims=True), approx=True)
        # TODO(synk): nn.Dropout(p=0.1) on `attn` omitted (train-mode RNG;
        # identity at eval time).

        ctx_parts.append(jnp.dot(attn.astype(bf16), v_grp[:, lo:hi],
                                 preferred_element_type=f32))        # (T, dh)

    # Single lane-dense (T, lanes) store for the whole head group.
    o_ref[0] = jnp.concatenate(ctx_parts, axis=-1).astype(o_ref.dtype)


def rel_attention(qkv, pos_emb, wp_t, mask_i32, u_flat, v_flat, scale,
                  num_heads, d_head):
    B, T, threeD = qkv.shape
    D = num_heads * d_head
    assert threeD == 3 * D
    Mq = mask_i32.shape[1]                     # 1 or T (both PyTorch mask shapes)

    # Group heads so each grid step owns a 128-lane feature slab (pairs for
    # d_head=64); fall back to all heads if d_head doesn't tile 128 cleanly.
    if d_head % 128 == 0:
        hpb = 1
    elif 128 % d_head == 0 and D % 128 == 0:
        hpb = 128 // d_head
    else:
        hpb = num_heads
    assert num_heads % hpb == 0
    lanes = hpb * d_head
    kv_off = D // lanes                        # block offset of K / V inside qkv

    kernel = functools.partial(_rel_attn_kernel, d_head=d_head,
                               heads_per_block=hpb, scale=scale)

    # Per-step blocks (bf16 slabs + i32 mask), double-buffered, plus headroom
    # for the (T,T) f32 temporaries; clamped at 32 MiB (v7x-safe).
    blk = (4 * Mq * T + 3 * 2 * T * lanes + 2 * T * D + 2 * D * lanes
           + 2 * 4 * lanes + 2 * T * lanes)
    vmem = int(min(max(2 * blk + 16 * T * T * 4 + (2 << 20), 8 << 20), 32 << 20))

    return pl.pallas_call(
        kernel,
        out_shape=jax.ShapeDtypeStruct((B, T, D), jnp.bfloat16),
        grid=(B, num_heads // hpb),
        in_specs=[
            pl.BlockSpec((1, Mq, T), lambda b, g: (b, 0, 0)),              # mask
            pl.BlockSpec((1, T, lanes), lambda b, g: (b, 0, g)),           # Q slab
            pl.BlockSpec((1, T, lanes), lambda b, g: (b, 0, kv_off + g)),  # K slab
            pl.BlockSpec((1, T, lanes), lambda b, g: (b, 0, 2 * kv_off + g)),  # V
            pl.BlockSpec((1, T, D), lambda b, g: (b, 0, 0)),               # pos_emb
            pl.BlockSpec((D, lanes), lambda b, g: (0, g)),                 # Wp^T
            pl.BlockSpec((1, lanes), lambda b, g: (0, g)),                 # u_bias
            pl.BlockSpec((1, lanes), lambda b, g: (0, g)),                 # v_bias
        ],
        out_specs=pl.BlockSpec((1, T, lanes), lambda b, g: (b, 0, g)),     # lane-dense
        compiler_params=pltpu.CompilerParams(
            dimension_semantics=("parallel", "parallel"),
            vmem_limit_bytes=vmem),
    )(mask_i32, qkv, qkv, qkv, pos_emb, wp_t, u_flat, v_flat)


# -----------------------------------------------------------------------------
# Parameter preparation (once, outside the per-call path) + forward pass.
# -----------------------------------------------------------------------------

def prepare_params(params):
    """One-time weight prep: PyTorch (out,in) layout -> kernel-ready layout.
    Fuses Q/K/V weights, pre-transposes everything, casts MXU operands to bf16."""
    bf16 = jnp.bfloat16
    H, dh = params["u_bias"].shape
    D = H * dh
    return {
        "w_qkv_t": jnp.concatenate([params["Wq"].T, params["Wk"].T,
                                    params["Wv"].T], axis=1).astype(bf16),
        "b_qkv": jnp.concatenate([params["bq"], params["bk"],
                                  params["bv"]]).astype(jnp.float32),
        "wq_t": params["Wq"].T.astype(bf16),
        "wk_t": params["Wk"].T.astype(bf16),
        "wv_t": params["Wv"].T.astype(bf16),
        "bq": params["bq"].astype(jnp.float32),
        "bk": params["bk"].astype(jnp.float32),
        "bv": params["bv"].astype(jnp.float32),
        "wp_t": params["Wp"].T.astype(bf16),
        "wo_t": params["Wo"].T.astype(bf16),
        "bo": params["bo"].astype(jnp.float32),
        "u_flat": params["u_bias"].reshape(1, D).astype(jnp.float32),
        "v_flat": params["v_bias"].reshape(1, D).astype(jnp.float32),
    }


def relative_mha_forward(prep, query, key, value, pos_embedding, mask=None, *,
                         num_heads):
    B, T, D = query.shape
    d_head = D // num_heads
    scale = 1.0 / math.sqrt(D)                 # PyTorch divides by sqrt(d_model)
    M = B * T

    if (query is key) and (query is value):
        # Self-attention fast path (Conformer usage): one fused (D -> 3D) matmul.
        qkv = linear_tiled(query.reshape(M, D), prep["w_qkv_t"], prep["b_qkv"])
    else:
        q = linear_tiled(query.reshape(M, D), prep["wq_t"], prep["bq"])
        k = linear_tiled(key.reshape(M, D), prep["wk_t"], prep["bk"])
        v = linear_tiled(value.reshape(M, D), prep["wv_t"], prep["bv"])
        qkv = jnp.concatenate([q, k, v], axis=-1)
    qkv = qkv.reshape(B, T, 3 * D)             # bf16, feature-major

    if mask is None:
        mask_i32 = jnp.zeros((B, 1, T), jnp.int32)
    else:
        mask_i32 = mask.astype(jnp.int32)      # (B, 1, T) or (B, T, T)

    # Attention (pos projection fused inside) -> (B, T, D) bf16, no transposes.
    ctx = rel_attention(qkv, pos_embedding.astype(jnp.bfloat16), prep["wp_t"],
                        mask_i32, prep["u_flat"], prep["v_flat"], scale,
                        num_heads, d_head)

    out = linear_tiled(ctx.reshape(M, D), prep["wo_t"], prep["bo"],
                       out_dtype=jnp.float32)
    return out.reshape(B, T, D)


def self_attention_forward(prep, x, pos_embedding, mask, *, num_heads):
    return relative_mha_forward(prep, x, x, x, pos_embedding, mask,
                                num_heads=num_heads)


# -----------------------------------------------------------------------------
# Pure-JAX reference (exact f32 port of the PyTorch module, eval mode).
# -----------------------------------------------------------------------------

def relative_shift(pos_score):
    B, H, T1, T2 = pos_score.shape
    zeros = jnp.zeros((B, H, T1, 1), pos_score.dtype)
    padded = jnp.concatenate([zeros, pos_score], axis=-1)
    padded = padded.reshape(B, H, T2 + 1, T1)
    return padded[:, :, 1:].reshape(B, H, T1, T2)


def reference_forward(params, query, key, value, pos_embedding, mask):
    P = jax.lax.Precision.HIGHEST
    B, T, D = query.shape
    H, dh = params["u_bias"].shape

    def lin(x, w, b=None):
        y = jnp.einsum("btd,ed->bte", x, w, precision=P)
        return y if b is None else y + b

    q = lin(query, params["Wq"], params["bq"]).reshape(B, T, H, dh)
    k = lin(key, params["Wk"], params["bk"]).reshape(B, T, H, dh).transpose(0, 2, 1, 3)
    v = lin(value, params["Wv"], params["bv"]).reshape(B, T, H, dh).transpose(0, 2, 1, 3)
    p = lin(pos_embedding, params["Wp"]).reshape(B, T, H, dh)

    content = jnp.einsum("bihd,bhjd->bhij", q + params["u_bias"], k, precision=P)
    pos_sc = jnp.einsum("bihd,bjhd->bhij", q + params["v_bias"], p, precision=P)
    pos_sc = relative_shift(pos_sc)
    score = (content + pos_sc) / math.sqrt(D)
    score = jnp.where(mask[:, None, :, :], -1e9, score)
    attn = jax.nn.softmax(score, axis=-1)
    ctx = jnp.einsum("bhij,bhjd->bhid", attn, v, precision=P)
    ctx = ctx.transpose(0, 2, 1, 3).reshape(B, T, D)
    return lin(ctx, params["Wo"], params["bo"])


# -----------------------------------------------------------------------------
# Main
# -----------------------------------------------------------------------------

if __name__ == "__main__":
    B, T, D, H = 2, 128, 256, 4
    dh = D // H

    root = jax.random.PRNGKey(0)
    kp, kx = jax.random.split(root)
    pkeys = jax.random.split(kp, 11)
    xkeys = jax.random.split(kx, 2)

    def xavier(k, shape):
        fan_out, fan_in = shape
        lim = math.sqrt(6.0 / (fan_in + fan_out))
        return jax.random.uniform(k, shape, jnp.float32, -lim, lim)

    params = {
        "Wq": xavier(pkeys[0], (D, D)),
        "Wk": xavier(pkeys[1], (D, D)),
        "Wv": xavier(pkeys[2], (D, D)),
        "Wp": xavier(pkeys[3], (D, D)),            # pos_proj has no bias
        "Wo": xavier(pkeys[4], (D, D)),
        "bq": 0.02 * jax.random.normal(pkeys[5], (D,), jnp.float32),
        "bk": 0.02 * jax.random.normal(pkeys[6], (D,), jnp.float32),
        "bv": 0.02 * jax.random.normal(pkeys[7], (D,), jnp.float32),
        "bo": 0.02 * jax.random.normal(pkeys[8], (D,), jnp.float32),
        "u_bias": xavier(pkeys[9], (H, dh)),
        "v_bias": xavier(pkeys[10], (H, dh)),
    }

    x = jax.random.normal(xkeys[0], (B, T, D), jnp.float32)
    pos_emb = jax.random.normal(xkeys[1], (B, T, D), jnp.float32)

    # mask: (B, 1, T) bool -- True means "masked out" (masked_fill semantics).
    lengths = jnp.array([T, T - 37])
    mask = jnp.arange(T)[None, None, :] >= lengths[:, None, None]

    prep = prepare_params(params)                  # one-time weight prep
    fwd = jax.jit(functools.partial(self_attention_forward, num_heads=H))

    out = fwd(prep, x, pos_emb, mask)
    out = jax.block_until_ready(out)

    ref = reference_forward(params, x, x, x, pos_emb, mask)
    # bf16 MXU operands + f32 accumulation vs f32 HIGHEST-precision reference.
    np.testing.assert_allclose(np.asarray(out), np.asarray(ref),
                               rtol=1e-2, atol=1e-2)

    print("KERNEL_OK")
</pallas_src>

<mosaic_0001>
module attributes {stable_mosaic.version = 11 : i64} {
  func.func @_linear_kernel(%arg0: i32, %arg1: i32, %arg2: i32, %arg3: memref<256x256xbf16, #tpu.memory_space<vmem>>, %arg4: memref<256x256xbf16, #tpu.memory_space<vmem>>, %arg5: memref<1x256xf32, #tpu.memory_space<vmem>>, %arg6: memref<256x256xbf16, #tpu.memory_space<vmem>>, %arg7: memref<256x256xf32, #tpu.memory_space<vmem>>) attributes {dimension_semantics = [#tpu.dimension_semantics<parallel>, #tpu.dimension_semantics<parallel>, #tpu.dimension_semantics<arbitrary>], iteration_bounds = array<i64: 1, 3, 1>, scalar_prefetch = 0 : i64, scratch_operands = 1 : i64, tpu.core_type = #tpu.core_type<tc>, window_params = [{transform_indices = @transform_0, window_bounds = array<i64: 256, 256>}, {transform_indices = @transform_1, window_bounds = array<i64: 256, 256>}, {transform_indices = @transform_2, window_bounds = array<i64: 1, 256>}, {transform_indices = @transform_3, window_bounds = array<i64: 256, 256>}]} {
    %c0_i32 = arith.constant 0 : i32
    %0 = arith.cmpi eq, %arg2, %c0_i32 : i32
    %1 = arith.extui %0 : i1 to i32
    %c0_i32_0 = arith.constant 0 : i32
    %2 = arith.cmpi ne, %1, %c0_i32_0 : i32
    scf.if %2 {
      %cst_10 = arith.constant 0.000000e+00 : f32
      %12 = vector.broadcast %cst_10 : f32 to vector<256x256xf32>
      %c0_11 = arith.constant 0 : index
      %c0_12 = arith.constant 0 : index
      %13 = vector.load %arg7[%c0_11, %c0_12] : memref<256x256xf32, #tpu.memory_space<vmem>>, vector<256x256xf32>
      tpu.vector_store %arg7[%c0_11, %c0_12], %12 {strides = array<i32>} : memref<256x256xf32, #tpu.memory_space<vmem>>, vector<256x256xf32>,
    } else {
    }
    %c0 = arith.constant 0 : index
    %c0_1 = arith.constant 0 : index
    %3 = vector.load %arg7[%c0, %c0_1] : memref<256x256xf32, #tpu.memory_space<vmem>>, vector<256x256xf32>
    %c0_2 = arith.constant 0 : index
    %c0_3 = arith.constant 0 : index
    %4 = vector.load %arg3[%c0_2, %c0_3] : memref<256x256xbf16, #tpu.memory_space<vmem>>, vector<256x256xbf16>
    %c0_4 = arith.constant 0 : index
    %c0_5 = arith.constant 0 : index
    %5 = vector.load %arg4[%c0_4, %c0_5] : memref<256x256xbf16, #tpu.memory_space<vmem>>, vector<256x256xbf16>
    %cst = arith.constant dense<0.000000e+00> : vector<256x256xf32>
    %6 = tpu.matmul %4, %5, %cst {dimension_numbers = #tpu.dot_dimension_numbers<[1], [0], [0], [1], [0, 0, 1, 1], [], []>} : vector<256x256xbf16>, vector<256x256xbf16>, vector<256x256xf32> -> vector<256x256xf32>
    %7 = arith.addf %3, %6 : vector<256x256xf32>
    %c0_6 = arith.constant 0 : index
    %c0_7 = arith.constant 0 : index
    %8 = vector.load %arg7[%c0_6, %c0_7] : memref<256x256xf32, #tpu.memory_space<vmem>>, vector<256x256xf32>
    tpu.vector_store %arg7[%c0_6, %c0_7], %7 {strides = array<i32>} : memref<256x256xf32, #tpu.memory_space<vmem>>, vector<256x256xf32>,
    %c0_i32_8 = arith.constant 0 : i32
    %9 = arith.cmpi eq, %arg2, %c0_i32_8 : i32
    %10 = arith.extui %9 : i1 to i32
    %c0_i32_9 = arith.constant 0 : i32
    %11 = arith.cmpi ne, %10, %c0_i32_9 : i32
    scf.if %11 {
      %c0_10 = arith.constant 0 : index
      %c0_11 = arith.constant 0 : index
      %12 = vector.load %arg7[%c0_10, %c0_11] : memref<256x256xf32, #tpu.memory_space<vmem>>, vector<256x256xf32>
      %c0_12 = arith.constant 0 : index
      %c0_13 = arith.constant 0 : index
      %13 = vector.load %arg5[%c0_12, %c0_13] : memref<1x256xf32, #tpu.memory_space<vmem>>, vector<1x256xf32>
      %14 = vector.broadcast %13 : vector<1x256xf32> to vector<256x256xf32>
      %15 = arith.addf %12, %14 : vector<256x256xf32>
      %16 = arith.truncf %15 : vector<256x256xf32> to vector<256x256xbf16>
      %c0_14 = arith.constant 0 : index
      %c0_15 = arith.constant 0 : index
      %17 = vector.load %arg6[%c0_14, %c0_15] : memref<256x256xbf16, #tpu.memory_space<vmem>>, vector<256x256xbf16>
      tpu.vector_store %arg6[%c0_14, %c0_15], %16 {strides = array<i32>} : memref<256x256xbf16, #tpu.memory_space<vmem>>, vector<256x256xbf16>,
    } else {
    }
    return
  }
  func.func @transform_0(%arg0: i32, %arg1: i32, %arg2: i32) -> (i32, i32) {
    %c0_i32 = arith.constant 0 : i32
    return %arg0, %arg2 : i32, i32
  }
  func.func @transform_1(%arg0: i32, %arg1: i32, %arg2: i32) -> (i32, i32) {
    %c0_i32 = arith.constant 0 : i32
    return %arg2, %arg1 : i32, i32
  }
  func.func @transform_2(%arg0: i32, %arg1: i32, %arg2: i32) -> (i32, i32) {
    %c0_i32 = arith.constant 0 : i32
    %c0_i32_0 = arith.constant 0 : i32
    return %c0_i32, %arg1 : i32, i32
  }
  func.func @transform_3(%arg0: i32, %arg1: i32, %arg2: i32) -> (i32, i32) {
    %c0_i32 = arith.constant 0 : i32
    return %arg0, %arg1 : i32, i32
  }
}

module attributes {stable_mosaic.version = 11 : i64} {
  func.func @_linear_kernel(%arg0: i32, %arg1: i32, %arg2: i32, %arg3: memref<256x256xbf16, #tpu.memory_space<vmem>>, %arg4: memref<256x256xbf16, #tpu.memory_space<vmem>>, %arg5: memref<1x256xf32, #tpu.memory_space<vmem>>, %arg6: memref<256x256xf32, #tpu.memory_space<vmem>>, %arg7: memref<256x256xf32, #tpu.memory_space<vmem>>) attributes {dimension_semantics = [#tpu.dimension_semantics<parallel>, #tpu.dimension_semantics<parallel>, #tpu.dimension_semantics<arbitrary>], iteration_bounds = array<i64: 1, 1, 1>, scalar_prefetch = 0 : i64, scratch_operands = 1 : i64, tpu.core_type = #tpu.core_type<tc>, window_params = [{transform_indices = @transform_0, window_bounds = array<i64: 256, 256>}, {transform_indices = @transform_1, window_bounds = array<i64: 256, 256>}, {transform_indices = @transform_2, window_bounds = array<i64: 1, 256>}, {transform_indices = @transform_3, window_bounds = array<i64: 256, 256>}]} {
    %c0_i32 = arith.constant 0 : i32
    %0 = arith.cmpi eq, %arg2, %c0_i32 : i32
    %1 = arith.extui %0 : i1 to i32
    %c0_i32_0 = arith.constant 0 : i32
    %2 = arith.cmpi ne, %1, %c0_i32_0 : i32
    scf.if %2 {
      %cst_10 = arith.constant 0.000000e+00 : f32
      %12 = vector.broadcast %cst_10 : f32 to vector<256x256xf32>
      %c0_11 = arith.constant 0 : index
      %c0_12 = arith.constant 0 : index
      %13 = vector.load %arg7[%c0_11, %c0_12] : memref<256x256xf32, #tpu.memory_space<vmem>>, vector<256x256xf32>
      tpu.vector_store %arg7[%c0_11, %c0_12], %12 {strides = array<i32>} : memref<256x256xf32, #tpu.memory_space<vmem>>, vector<256x256xf32>,
    } else {
    }
    %c0 = arith.constant 0 : index
    %c0_1 = arith.constant 0 : index
    %3 = vector.load %arg7[%c0, %c0_1] : memref<256x256xf32, #tpu.memory_space<vmem>>, vector<256x256xf32>
    %c0_2 = arith.constant 0 : index
    %c0_3 = arith.constant 0 : index
    %4 = vector.load %arg3[%c0_2, %c0_3] : memref<256x256xbf16, #tpu.memory_space<vmem>>, vector<256x256xbf16>
    %c0_4 = arith.constant 0 : index
    %c0_5 = arith.constant 0 : index
    %5 = vector.load %arg4[%c0_4, %c0_5] : memref<256x256xbf16, #tpu.memory_space<vmem>>, vector<256x256xbf16>
    %cst = arith.constant dense<0.000000e+00> : vector<256x256xf32>
    %6 = tpu.matmul %4, %5, %cst {dimension_numbers = #tpu.dot_dimension_numbers<[1], [0], [0], [1], [0, 0, 1, 1], [], []>} : vector<256x256xbf16>, vector<256x256xbf16>, vector<256x256xf32> -> vector<256x256xf32>
    %7 = arith.addf %3, %6 : vector<256x256xf32>
    %c0_6 = arith.constant 0 : index
    %c0_7 = arith.constant 0 : index
    %8 = vector.load %arg7[%c0_6, %c0_7] : memref<256x256xf32, #tpu.memory_space<vmem>>, vector<256x256xf32>
    tpu.vector_store %arg7[%c0_6, %c0_7], %7 {strides = array<i32>} : memref<256x256xf32, #tpu.memory_space<vmem>>, vector<256x256xf32>,
    %c0_i32_8 = arith.constant 0 : i32
    %9 = arith.cmpi eq, %arg2, %c0_i32_8 : i32
    %10 = arith.extui %9 : i1 to i32
    %c0_i32_9 = arith.constant 0 : i32
    %11 = arith.cmpi ne, %10, %c0_i32_9 : i32
    scf.if %11 {
      %c0_10 = arith.constant 0 : index
      %c0_11 = arith.constant 0 : index
      %12 = vector.load %arg7[%c0_10, %c0_11] : memref<256x256xf32, #tpu.memory_space<vmem>>, vector<256x256xf32>
      %c0_12 = arith.constant 0 : index
      %c0_13 = arith.constant 0 : index
      %13 = vector.load %arg5[%c0_12, %c0_13] : memref<1x256xf32, #tpu.memory_space<vmem>>, vector<1x256xf32>
      %14 = vector.broadcast %13 : vector<1x256xf32> to vector<256x256xf32>
      %15 = arith.addf %12, %14 : vector<256x256xf32>
      %c0_14 = arith.constant 0 : index
      %c0_15 = arith.constant 0 : index
      %16 = vector.load %arg6[%c0_14, %c0_15] : memref<256x256xf32, #tpu.memory_space<vmem>>, vector<256x256xf32>
      tpu.vector_store %arg6[%c0_14, %c0_15], %15 {strides = array<i32>} : memref<256x256xf32, #tpu.memory_space<vmem>>, vector<256x256xf32>,
    } else {
    }
    return
  }
  func.func @transform_0(%arg0: i32, %arg1: i32, %arg2: i32) -> (i32, i32) {
    %c0_i32 = arith.constant 0 : i32
    return %arg0, %arg2 : i32, i32
  }
  func.func @transform_1(%arg0: i32, %arg1: i32, %arg2: i32) -> (i32, i32) {
    %c0_i32 = arith.constant 0 : i32
    return %arg2, %arg1 : i32, i32
  }
  func.func @transform_2(%arg0: i32, %arg1: i32, %arg2: i32) -> (i32, i32) {
    %c0_i32 = arith.constant 0 : i32
    %c0_i32_0 = arith.constant 0 : i32
    return %c0_i32, %arg1 : i32, i32
  }
  func.func @transform_3(%arg0: i32, %arg1: i32, %arg2: i32) -> (i32, i32) {
    %c0_i32 = arith.constant 0 : i32
    return %arg0, %arg1 : i32, i32
  }
}

module attributes {stable_mosaic.version = 11 : i64} {
  func.func @_rel_attn_kernel(%arg0: i32, %arg1: i32, %arg2: memref<1x1x128xi32, #tpu.memory_space<vmem>>, %arg3: memref<1x128x128xbf16, #tpu.memory_space<vmem>>, %arg4: memref<1x128x128xbf16, #tpu.memory_space<vmem>>, %arg5: memref<1x128x128xbf16, #tpu.memory_space<vmem>>, %arg6: memref<1x128x256xbf16, #tpu.memory_space<vmem>>, %arg7: memref<256x128xbf16, #tpu.memory_space<vmem>>, %arg8: memref<1x128xf32, #tpu.memory_space<vmem>>, %arg9: memref<1x128xf32, #tpu.memory_space<vmem>>, %arg10: memref<1x128x128xbf16, #tpu.memory_space<vmem>>) attributes {dimension_semantics = [#tpu.dimension_semantics<parallel>, #tpu.dimension_semantics<parallel>], iteration_bounds = array<i64: 2, 2>, scalar_prefetch = 0 : i64, scratch_operands = 0 : i64, tpu.core_type = #tpu.core_type<tc>, window_params = [{transform_indices = @transform_0, window_bounds = array<i64: 1, 1, 128>}, {transform_indices = @transform_1, window_bounds = array<i64: 1, 128, 128>}, {transform_indices = @transform_2, window_bounds = array<i64: 1, 128, 128>}, {transform_indices = @transform_3, window_bounds = array<i64: 1, 128, 128>}, {transform_indices = @transform_4, window_bounds = array<i64: 1, 128, 256>}, {transform_indices = @transform_5, window_bounds = array<i64: 256, 128>}, {transform_indices = @transform_6, window_bounds = array<i64: 1, 128>}, {transform_indices = @transform_7, window_bounds = array<i64: 1, 128>}, {transform_indices = @transform_8, window_bounds = array<i64: 1, 128, 128>}]} {
    %c0 = arith.constant 0 : index
    %c0_0 = arith.constant 0 : index
    %c0_1 = arith.constant 0 : index
    %0 = vector.load %arg6[%c0, %c0_0, %c0_1] : memref<1x128x256xbf16, #tpu.memory_space<vmem>>, vector<1x128x256xbf16>
    %1 = vector.shape_cast %0 : vector<1x128x256xbf16> to vector<128x256xbf16>
    %c0_2 = arith.constant 0 : index
    %c0_3 = arith.constant 0 : index
    %2 = vector.load %arg7[%c0_2, %c0_3] : memref<256x128xbf16, #tpu.memory_space<vmem>>, vector<256x128xbf16>
    %cst = arith.constant dense<0.000000e+00> : vector<128x128xf32>
    %3 = tpu.matmul %1, %2, %cst {dimension_numbers = #tpu.dot_dimension_numbers<[1], [0], [0], [1], [0, 0, 1, 1], [], []>} : vector<128x256xbf16>, vector<256x128xbf16>, vector<128x128xf32> -> vector<128x128xf32>
    %4 = arith.truncf %3 : vector<128x128xf32> to vector<128x128xbf16>
    %c0_4 = arith.constant 0 : index
    %c0_5 = arith.constant 0 : index
    %c0_6 = arith.constant 0 : index
    %5 = vector.load %arg3[%c0_4, %c0_5, %c0_6] : memref<1x128x128xbf16, #tpu.memory_space<vmem>>, vector<1x128x128xbf16>
    %6 = vector.shape_cast %5 : vector<1x128x128xbf16> to vector<128x128xbf16>
    %7 = arith.extf %6 : vector<128x128xbf16> to vector<128x128xf32>
    %c0_7 = arith.constant 0 : index
    %c0_8 = arith.constant 0 : index
    %8 = vector.load %arg8[%c0_7, %c0_8] : memref<1x128xf32, #tpu.memory_space<vmem>>, vector<1x128xf32>
    %9 = vector.broadcast %8 : vector<1x128xf32> to vector<128x128xf32>
    %10 = arith.addf %7, %9 : vector<128x128xf32>
    %cst_9 = arith.constant 6.250000e-02 : f32
    %11 = vector.broadcast %cst_9 : f32 to vector<128x128xf32>
    %12 = arith.mulf %10, %11 : vector<128x128xf32>
    %13 = arith.truncf %12 : vector<128x128xf32> to vector<128x128xbf16>
    %c0_10 = arith.constant 0 : index
    %c0_11 = arith.constant 0 : index
    %14 = vector.load %arg9[%c0_10, %c0_11] : memref<1x128xf32, #tpu.memory_space<vmem>>, vector<1x128xf32>
    %15 = vector.broadcast %14 : vector<1x128xf32> to vector<128x128xf32>
    %16 = arith.addf %7, %15 : vector<128x128xf32>
    %cst_12 = arith.constant 6.250000e-02 : f32
    %17 = vector.broadcast %cst_12 : f32 to vector<128x128xf32>
    %18 = arith.mulf %16, %17 : vector<128x128xf32>
    %19 = arith.truncf %18 : vector<128x128xf32> to vector<128x128xbf16>
    %c0_13 = arith.constant 0 : index
    %c0_14 = arith.constant 0 : index
    %c0_15 = arith.constant 0 : index
    %20 = vector.load %arg4[%c0_13, %c0_14, %c0_15] : memref<1x128x128xbf16, #tpu.memory_space<vmem>>, vector<1x128x128xbf16>
    %21 = vector.shape_cast %20 : vector<1x128x128xbf16> to vector<128x128xbf16>
    %c0_16 = arith.constant 0 : index
    %c0_17 = arith.constant 0 : index
    %c0_18 = arith.constant 0 : index
    %22 = vector.load %arg5[%c0_16, %c0_17, %c0_18] : memref<1x128x128xbf16, #tpu.memory_space<vmem>>, vector<1x128x128xbf16>
    %23 = vector.shape_cast %22 : vector<1x128x128xbf16> to vector<128x128xbf16>
    %c0_19 = arith.constant 0 : index
    %c0_20 = arith.constant 0 : index
    %c0_21 = arith.constant 0 : index
    %24 = vector.load %arg2[%c0_19, %c0_20, %c0_21] : memref<1x1x128xi32, #tpu.memory_space<vmem>>, vector<1x1x128xi32>
    %25 = vector.shape_cast %24 : vector<1x1x128xi32> to vector<1x128xi32>
    %26 = tpu.iota {dimensions = array<i32: 0>} : vector<128x128xi32>
    %27 = tpu.iota {dimensions = array<i32: 1>} : vector<128x128xi32>
    %28 = vector.extract_strided_slice %13 {offsets = [0, 0], sizes = [128, 64], strides = [1, 1]} : vector<128x128xbf16> to vector<128x64xbf16>
    %29 = vector.extract_strided_slice %21 {offsets = [0, 0], sizes = [128, 64], strides = [1, 1]} : vector<128x128xbf16> to vector<128x64xbf16>
    %cst_22 = arith.constant dense<0.000000e+00> : vector<128x128xf32>
    %30 = tpu.matmul %28, %29, %cst_22 {dimension_numbers = #tpu.dot_dimension_numbers<[1], [1], [0], [0], [0, 0, 1, 0], [], []>} : vector<128x64xbf16>, vector<128x64xbf16>, vector<128x128xf32> -> vector<128x128xf32>
    %31 = vector.extract_strided_slice %19 {offsets = [0, 0], sizes = [128, 64], strides = [1, 1]} : vector<128x128xbf16> to vector<128x64xbf16>
    %32 = vector.extract_strided_slice %4 {offsets = [0, 0], sizes = [128, 64], strides = [1, 1]} : vector<128x128xbf16> to vector<128x64xbf16>
    %cst_23 = arith.constant dense<0.000000e+00> : vector<128x128xf32>
    %33 = tpu.matmul %31, %32, %cst_23 {dimension_numbers = #tpu.dot_dimension_numbers<[1], [1], [0], [0], [0, 0, 1, 0], [], []>} : vector<128x64xbf16>, vector<128x64xbf16>, vector<128x128xf32> -> vector<128x128xf32>
    %c0_i32 = arith.constant 0 : i32
    %34 = tpu.dynamic_rotate %33 by %c0_i32 dim 1 {stride = 1 : si32, stride_dimension = 0 : si32} : vector<128x128xf32>, i32 -> vector<128x128xf32>
    %c1_i32 = arith.constant 1 : i32
    %35 = tpu.dynamic_rotate %34 by %c1_i32 dim 1 : vector<128x128xf32>, i32 -> vector<128x128xf32>
    %c127_i32 = arith.constant 127 : i32
    %36 = tpu.dynamic_rotate %35 by %c127_i32 dim 0 : vector<128x128xf32>, i32 -> vector<128x128xf32>
    %37 = arith.cmpi sle, %27, %26 : vector<128x128xi32>
    %c1_i32_24 = arith.constant 1 : i32
    %38 = vector.broadcast %c1_i32_24 : i32 to vector<128x128xi32>
    %39 = arith.addi %26, %38 : vector<128x128xi32>
    %40 = arith.cmpi eq, %27, %39 : vector<128x128xi32>
    %cst_25 = arith.constant 0.000000e+00 : f32
    %41 = vector.broadcast %cst_25 : f32 to vector<128x128xf32>
    %42 = arith.select %40, %41, %36 : vector<128x128xi1>, vector<128x128xf32>
    %43 = arith.select %37, %35, %42 : vector<128x128xi1>, vector<128x128xf32>
    %44 = arith.addf %30, %43 : vector<128x128xf32>
    %c0_i32_26 = arith.constant 0 : i32
    %45 = vector.broadcast %c0_i32_26 : i32 to vector<1x128xi32>
    %46 = arith.cmpi ne, %25, %45 : vector<1x128xi32>
    %cst_27 = arith.constant -1.000000e+09 : f32
    %47 = vector.shape_cast %46 : vector<1x128xi1> to vector<1x128xi1>
    %48 = vector.broadcast %47 : vector<1x128xi1> to vector<128x128xi1>
    %49 = vector.broadcast %cst_27 : f32 to vector<128x128xf32>
    %50 = arith.select %48, %49, %44 : vector<128x128xi1>, vector<128x128xf32>
    %cst_28 = arith.constant dense<0xFF800000> : vector<128xf32>
    %51 = vector.multi_reduction <maximumf>, %50, %cst_28 [1] : vector<128x128xf32> to vector<128xf32>
    %52 = vector.shape_cast %51 : vector<128xf32> to vector<128x1xf32>
    %53 = vector.broadcast %52 : vector<128x1xf32> to vector<128x128xf32>
    %54 = arith.subf %50, %53 : vector<128x128xf32>
    %55 = math.exp %54 : vector<128x128xf32>
    %cst_29 = arith.constant dense<0.000000e+00> : vector<128xf32>
    %56 = vector.multi_reduction <add>, %55, %cst_29 [1] : vector<128x128xf32> to vector<128xf32>
    %57 = vector.shape_cast %56 : vector<128xf32> to vector<128x1xf32>
    %58 = tpu.reciprocal %57 {approx = true} : vector<128x1xf32> -> vector<128x1xf32>
    %59 = vector.broadcast %58 : vector<128x1xf32> to vector<128x128xf32>
    %60 = arith.mulf %55, %59 : vector<128x128xf32>
    %61 = arith.truncf %60 : vector<128x128xf32> to vector<128x128xbf16>
    %62 = vector.extract_strided_slice %23 {offsets = [0, 0], sizes = [128, 64], strides = [1, 1]} : vector<128x128xbf16> to vector<128x64xbf16>
    %cst_30 = arith.constant dense<0.000000e+00> : vector<128x64xf32>
    %63 = tpu.matmul %61, %62, %cst_30 {dimension_numbers = #tpu.dot_dimension_numbers<[1], [0], [0], [1], [0, 0, 1, 1], [], []>} : vector<128x128xbf16>, vector<128x64xbf16>, vector<128x64xf32> -> vector<128x64xf32>
    %64 = vector.extract_strided_slice %13 {offsets = [0, 64], sizes = [128, 64], strides = [1, 1]} : vector<128x128xbf16> to vector<128x64xbf16>
    %65 = vector.extract_strided_slice %21 {offsets = [0, 64], sizes = [128, 64], strides = [1, 1]} : vector<128x128xbf16> to vector<128x64xbf16>
    %cst_31 = arith.constant dense<0.000000e+00> : vector<128x128xf32>
    %66 = tpu.matmul %64, %65, %cst_31 {dimension_numbers = #tpu.dot_dimension_numbers<[1], [1], [0], [0], [0, 0, 1, 0], [], []>} : vector<128x64xbf16>, vector<128x64xbf16>, vector<128x128xf32> -> vector<128x128xf32>
    %67 = vector.extract_strided_slice %19 {offsets = [0, 64], sizes = [128, 64], strides = [1, 1]} : vector<128x128xbf16> to vector<128x64xbf16>
    %68 = vector.extract_strided_slice %4 {offsets = [0, 64], sizes = [128, 64], strides = [1, 1]} : vector<128x128xbf16> to vector<128x64xbf16>
    %cst_32 = arith.constant dense<0.000000e+00> : vector<128x128xf32>
    %69 = tpu.matmul %67, %68, %cst_32 {dimension_numbers = #tpu.dot_dimension_numbers<[1], [1], [0], [0], [0, 0, 1, 0], [], []>} : vector<128x64xbf16>, vector<128x64xbf16>, vector<128x128xf32> -> vector<128x128xf32>
    %c0_i32_33 = arith.constant 0 : i32
    %70 = tpu.dynamic_rotate %69 by %c0_i32_33 dim 1 {stride = 1 : si32, stride_dimension = 0 : si32} : vector<128x128xf32>, i32 -> vector<128x128xf32>
    %c1_i32_34 = arith.constant 1 : i32
    %71 = tpu.dynamic_rotate %70 by %c1_i32_34 dim 1 : vector<128x128xf32>, i32 -> vector<128x128xf32>
    %c127_i32_35 = arith.constant 127 : i32
    %72 = tpu.dynamic_rotate %71 by %c127_i32_35 dim 0 : vector<128x128xf32>, i32 -> vector<128x128xf32>
    %73 = arith.cmpi sle, %27, %26 : vector<128x128xi32>
    %c1_i32_36 = arith.constant 1 : i32
    %74 = vector.broadcast %c1_i32_36 : i32 to vector<128x128xi32>
    %75 = arith.addi %26, %74 : vector<128x128xi32>
    %76 = arith.cmpi eq, %27, %75 : vector<128x128xi32>
    %cst_37 = arith.constant 0.000000e+00 : f32
    %77 = vector.broadcast %cst_37 : f32 to vector<128x128xf32>
    %78 = arith.select %76, %77, %72 : vector<128x128xi1>, vector<128x128xf32>
    %79 = arith.select %73, %71, %78 : vector<128x128xi1>, vector<128x128xf32>
    %80 = arith.addf %66, %79 : vector<128x128xf32>
    %c0_i32_38 = arith.constant 0 : i32
    %81 = vector.broadcast %c0_i32_38 : i32 to vector<1x128xi32>
    %82 = arith.cmpi ne, %25, %81 : vector<1x128xi32>
    %cst_39 = arith.constant -1.000000e+09 : f32
    %83 = vector.shape_cast %82 : vector<1x128xi1> to vector<1x128xi1>
    %84 = vector.broadcast %83 : vector<1x128xi1> to vector<128x128xi1>
    %85 = vector.broadcast %cst_39 : f32 to vector<128x128xf32>
    %86 = arith.select %84, %85, %80 : vector<128x128xi1>, vector<128x128xf32>
    %cst_40 = arith.constant dense<0xFF800000> : vector<128xf32>
    %87 = vector.multi_reduction <maximumf>, %86, %cst_40 [1] : vector<128x128xf32> to vector<128xf32>
    %88 = vector.shape_cast %87 : vector<128xf32> to vector<128x1xf32>
    %89 = vector.broadcast %88 : vector<128x1xf32> to vector<128x128xf32>
    %90 = arith.subf %86, %89 : vector<128x128xf32>
    %91 = math.exp %90 : vector<128x128xf32>
    %cst_41 = arith.constant dense<0.000000e+00> : vector<128xf32>
    %92 = vector.multi_reduction <add>, %91, %cst_41 [1] : vector<128x128xf32> to vector<128xf32>
    %93 = vector.shape_cast %92 : vector<128xf32> to vector<128x1xf32>
    %94 = tpu.reciprocal %93 {approx = true} : vector<128x1xf32> -> vector<128x1xf32>
    %95 = vector.broadcast %94 : vector<128x1xf32> to vector<128x128xf32>
    %96 = arith.mulf %91, %95 : vector<128x128xf32>
    %97 = arith.truncf %96 : vector<128x128xf32> to vector<128x128xbf16>
    %98 = vector.extract_strided_slice %23 {offsets = [0, 64], sizes = [128, 64], strides = [1, 1]} : vector<128x128xbf16> to vector<128x64xbf16>
    %cst_42 = arith.constant dense<0.000000e+00> : vector<128x64xf32>
    %99 = tpu.matmul %97, %98, %cst_42 {dimension_numbers = #tpu.dot_dimension_numbers<[1], [0], [0], [1], [0, 0, 1, 1], [], []>} : vector<128x128xbf16>, vector<128x64xbf16>, vector<128x64xf32> -> vector<128x64xf32>
    %100 = tpu.concatenate %63, %99 in 1 : vector<128x64xf32>, vector<128x64xf32> -> vector<128x128xf32>
    %101 = arith.truncf %100 : vector<128x128xf32> to vector<128x128xbf16>
    %c0_43 = arith.constant 0 : index
    %c0_44 = arith.constant 0 : index
    %c0_45 = arith.constant 0 : index
    %102 = vector.load %arg10[%c0_43, %c0_44, %c0_45] : memref<1x128x128xbf16, #tpu.memory_space<vmem>>, vector<1x128x128xbf16>
    %103 = vector.shape_cast %102 : vector<1x128x128xbf16> to vector<128x128xbf16>
    %104 = vector.shape_cast %101 : vector<128x128xbf16> to vector<1x128x128xbf16>
    tpu.vector_store %arg10[%c0_43, %c0_44, %c0_45], %104 {strides = array<i32>} : memref<1x128x128xbf16, #tpu.memory_space<vmem>>, vector<1x128x128xbf16>,
    return
  }
  func.func @transform_0(%arg0: i32, %arg1: i32) -> (i32, i32, i32) {
    %c0_i32 = arith.constant 0 : i32
    %c0_i32_0 = arith.constant 0 : i32
    %c0_i32_1 = arith.constant 0 : i32
    return %arg0, %c0_i32, %c0_i32_0 : i32, i32, i32
  }
  func.func @transform_1(%arg0: i32, %arg1: i32) -> (i32, i32, i32) {
    %c0_i32 = arith.constant 0 : i32
    %c0_i32_0 = arith.constant 0 : i32
    return %arg0, %c0_i32, %arg1 : i32, i32, i32
  }
  func.func @transform_2(%arg0: i32, %arg1: i32) -> (i32, i32, i32) {
    %c2_i32 = arith.constant 2 : i32
    %0 = arith.addi %c2_i32, %arg1 : i32
    %c0_i32 = arith.constant 0 : i32
    %c0_i32_0 = arith.constant 0 : i32
    return %arg0, %c0_i32, %0 : i32, i32, i32
  }
  func.func @transform_3(%arg0: i32, %arg1: i32) -> (i32, i32, i32) {
    %c4_i32 = arith.constant 4 : i32
    %0 = arith.addi %c4_i32, %arg1 : i32
    %c0_i32 = arith.constant 0 : i32
    %c0_i32_0 = arith.constant 0 : i32
    return %arg0, %c0_i32, %0 : i32, i32, i32
  }
  func.func @transform_4(%arg0: i32, %arg1: i32) -> (i32, i32, i32) {
    %c0_i32 = arith.constant 0 : i32
    %c0_i32_0 = arith.constant 0 : i32
    %c0_i32_1 = arith.constant 0 : i32
    return %arg0, %c0_i32, %c0_i32_0 : i32, i32, i32
  }
  func.func @transform_5(%arg0: i32, %arg1: i32) -> (i32, i32) {
    %c0_i32 = arith.constant 0 : i32
    %c0_i32_0 = arith.constant 0 : i32
    return %c0_i32, %arg1 : i32, i32
  }
  func.func @transform_6(%arg0: i32, %arg1: i32) -> (i32, i32) {
    %c0_i32 = arith.constant 0 : i32
    %c0_i32_0 = arith.constant 0 : i32
    return %c0_i32, %arg1 : i32, i32
  }
  func.func @transform_7(%arg0: i32, %arg1: i32) -> (i32, i32) {
    %c0_i32 = arith.constant 0 : i32
    %c0_i32_0 = arith.constant 0 : i32
    return %c0_i32, %arg1 : i32, i32
  }
  func.func @transform_8(%arg0: i32, %arg1: i32) -> (i32, i32, i32) {
    %c0_i32 = arith.constant 0 : i32
    %c0_i32_0 = arith.constant 0 : i32
    return %arg0, %c0_i32, %arg1 : i32, i32, i32
  }
}

</mosaic_0001>

<llo_original>
// kernel: self_attention_forward.5
$region0: #{self_attention_forward.5}
  #allocation0 [shape = 'u32[]', space=smem, size = 0x4, offset = 0x4, fixed_abs, tag = 'smem constant byte address 0x4 - core index']
  #allocation1 [shape = 'u32[72,128]{1,0:T(1,128)}', space=vmem, size = 0x9000, scoped, tag = 'internal scratch']
  #allocation2 [shape = 'f32[256,256]{1,0:T(8,128)}', space=vmem, size = 0x40000, scoped, tag = 'scratch operand']
  %s0 = inlined_call_operand.vmem [shape: bf16[256,256], index: 0, kind: input, shape index: {}]
  %s1 = inlined_call_operand.vmem [shape: bf16[256,256], index: 1, kind: input, shape index: {}]
  %s2 = inlined_call_operand.vmem [shape: f32[1,256], index: 2, kind: input, shape index: {}]
  %s3 = inlined_call_operand.hbm [shape: f32[256,256], index: 3, kind: output, shape index: {}]
  %s4 = sld [smem:[#allocation0]]
  $region30: #{self_attention_forward.5} parent=0
    _
  %s6 = ssub.s32 1, %s4
  %s7 = scalar_select 0, %s6, %s4
  $region1: #{self_attention_forward.5} parent=0
    #allocation3 [shape = 'u8[262144]{0}', space=vmem, size = 0x40000, scoped, tag = 'output window, operand 0, single buffered']
    #allocation4 [shape = 's32[1]{0}', space=sflag, size = 0x4, scoped, tag = 'scoped memory for self_attention_forward.5']
    %8 = vsyncpa [#allocation4], 0
    // Predicated region
    $region2: #{self_attention_forward.5} parent=1 // pred_check
      _
    $region3: #{self_attention_forward.5} parent=1 // pred_check_branch
      %10 = sbr.rel (0) target = $region5
    $region4: #{self_attention_forward.5} parent=1 // pred_region
      _
    $region5: #{self_attention_forward.5} parent=1 // pred_fallthru
      _
    // Predicated region
    $region6: #{self_attention_forward.5} parent=1 // pred_check
      _
    $region7: #{self_attention_forward.5} parent=1 // pred_check_branch
      %12 = sbr.rel (0) target = $region9
    $region8: #{self_attention_forward.5} parent=1 // pred_region
      _
    $region9: #{self_attention_forward.5} parent=1 // pred_fallthru
      _
    // Predicated region
    $region10: #{self_attention_forward.5} parent=1 // pred_check
      _
    $region11: #{self_attention_forward.5} parent=1 // pred_check_branch
      %14 = sbr.rel (0) target = $region13
    $region12: #{self_attention_forward.5} parent=1 // pred_region
      _
    $region13: #{self_attention_forward.5} parent=1 // pred_fallthru
      _
    %p15 = scmp.eq.s32.totalorder 0, 0
    // Predicated region
    $region14: #{self_attention_forward.5} parent=1 // pred_check
      %p16 = pneg %p15
    $region15: #{self_attention_forward.5} parent=1 // pred_check_branch
      %18 = sbr.rel (%p16) target = $region17
    $region16: #{self_attention_forward.5} parent=1 // pred_region
      %19 = vst [vmem:[#allocation2] sm:$0xff] 0.0
      %20 = vst [vmem:[#allocation2 + $0x8] sm:$0xff] 0.0
      %21 = vst [vmem:[#allocation2 + $0x10] sm:$0xff] 0.0
      %22 = vst [vmem:[#allocation2 + $0x18] sm:$0xff] 0.0
      %23 = vst [vmem:[#allocation2 + $0x20] sm:$0xff] 0.0
      %24 = vst [vmem:[#allocation2 + $0x28] sm:$0xff] 0.0
      %25 = vst [vmem:[#allocation2 + $0x30] sm:$0xff] 0.0
      %26 = vst [vmem:[#allocation2 + $0x38] sm:$0xff] 0.0
      %27 = vst [vmem:[#allocation2 + $0x40] sm:$0xff] 0.0
      %28 = vst [vmem:[#allocation2 + $0x48] sm:$0xff] 0.0
      %29 = vst [vmem:[#allocation2 + $0x50] sm:$0xff] 0.0
      %30 = vst [vmem:[#allocation2 + $0x58] sm:$0xff] 0.0
      %31 = vst [vmem:[#allocation2 + $0x60] sm:$0xff] 0.0
      %32 = vst [vmem:[#allocation2 + $0x68] sm:$0xff] 0.0
      %33 = vst [vmem:[#allocation2 + $0x70] sm:$0xff] 0.0
      %34 = vst [vmem:[#allocation2 + $0x78] sm:$0xff] 0.0
      %35 = vst [vmem:[#allocation2 + $0x80] sm:$0xff] 0.0
      %36 = vst [vmem:[#allocation2 + $0x88] sm:$0xff] 0.0
      %37 = vst [vmem:[#allocation2 + $0x90] sm:$0xff] 0.0
      %38 = vst [vmem:[#allocation2 + $0x98] sm:$0xff] 0.0
      %39 = vst [vmem:[#allocation2 + $0xa0] sm:$0xff] 0.0
      %40 = vst [vmem:[#allocation2 + $0xa8] sm:$0xff] 0.0
      %41 = vst [vmem:[#allocation2 + $0xb0] sm:$0xff] 0.0
      %42 = vst [vmem:[#allocation2 + $0xb8] sm:$0xff] 0.0
      %43 = vst [vmem:[#allocation2 + $0xc0] sm:$0xff] 0.0
      %44 = vst [vmem:[#allocation2 + $0xc8] sm:$0xff] 0.0
      %45 = vst [vmem:[#allocation2 + $0xd0] sm:$0xff] 0.0
      %46 = vst [vmem:[#allocation2 + $0xd8] sm:$0xff] 0.0
      %47 = vst [vmem:[#allocation2 + $0xe0] sm:$0xff] 0.0
      %48 = vst [vmem:[#allocation2 + $0xe8] sm:$0xff] 0.0
      %49 = vst [vmem:[#allocation2 + $0xf0] sm:$0xff] 0.0
      %50 = vst [vmem:[#allocation2 + $0xf8] sm:$0xff] 0.0
      %51 = vst [vmem:[#allocation2 + $0x100] sm:$0xff] 0.0
      %52 = vst [vmem:[#allocation2 + $0x108] sm:$0xff] 0.0
      %53 = vst [vmem:[#allocation2 + $0x110] sm:$0xff] 0.0
      %54 = vst [vmem:[#allocation2 + $0x118] sm:$0xff] 0.0
      %55 = vst [vmem:[#allocation2 + $0x120] sm:$0xff] 0.0
      %56 = vst [vmem:[#allocation2 + $0x128] sm:$0xff] 0.0
      %57 = vst [vmem:[#allocation2 + $0x130] sm:$0xff] 0.0
      %58 = vst [vmem:[#allocation2 + $0x138] sm:$0xff] 0.0
      %59 = vst [vmem:[#allocation2 + $0x140] sm:$0xff] 0.0
      %60 = vst [vmem:[#allocation2 + $0x148] sm:$0xff] 0.0
      %61 = vst [vmem:[#allocation2 + $0x150] sm:$0xff] 0.0
      %62 = vst [vmem:[#allocation2 + $0x158] sm:$0xff] 0.0
      %63 = vst [vmem:[#allocation2 + $0x160] sm:$0xff] 0.0
      %64 = vst [vmem:[#allocation2 + $0x168] sm:$0xff] 0.0
      %65 = vst [vmem:[#allocation2 + $0x170] sm:$0xff] 0.0
      %66 = vst [vmem:[#allocation2 + $0x178] sm:$0xff] 0.0
      %67 = vst [vmem:[#allocation2 + $0x180] sm:$0xff] 0.0
      %68 = vst [vmem:[#allocation2 + $0x188] sm:$0xff] 0.0
      %69 = vst [vmem:[#allocation2 + $0x190] sm:$0xff] 0.0
      %70 = vst [vmem:[#allocation2 + $0x198] sm:$0xff] 0.0
      %71 = vst [vmem:[#allocation2 + $0x1a0] sm:$0xff] 0.0
      %72 = vst [vmem:[#allocation2 + $0x1a8] sm:$0xff] 0.0
      %73 = vst [vmem:[#allocation2 + $0x1b0] sm:$0xff] 0.0
      %74 = vst [vmem:[#allocation2 + $0x1b8] sm:$0xff] 0.0
      %75 = vst [vmem:[#allocation2 + $0x1c0] sm:$0xff] 0.0
      %76 = vst [vmem:[#allocation2 + $0x1c8] sm:$0xff] 0.0
      %77 = vst [vmem:[#allocation2 + $0x1d0] sm:$0xff] 0.0
      %78 = vst [vmem:[#allocation2 + $0x1d8] sm:$0xff] 0.0
      %79 = vst [vmem:[#allocation2 + $0x1e0] sm:$0xff] 0.0
      %80 = vst [vmem:[#allocation2 + $0x1e8] sm:$0xff] 0.0
      %81 = vst [vmem:[#allocation2 + $0x1f0] sm:$0xff] 0.0
      %82 = vst [vmem:[#allocation2 + $0x1f8] sm:$0xff] 0.0
    $region17: #{self_attention_forward.5} parent=1 // pred_fallthru
      _
    %v83 = vld [vmem:[#allocation2] sm:$0xff]
    %v84 = vld [vmem:[#allocation2 + $0x8] sm:$0xff]
    %v85 = vld [vmem:[#allocation2 + $0x10] sm:$0xff]
    %v86 = vld [vmem:[#allocation2 + $0x18] sm:$0xff]
    %v87 = vld [vmem:[#allocation2 + $0x20] sm:$0xff]
    %v88 = vld [vmem:[#allocation2 + $0x28] sm:$0xff]
    %v89 = vld [vmem:[#allocation2 + $0x30] sm:$0xff]
    %v90 = vld [vmem:[#allocation2 + $0x38] sm:$0xff]
    %v91 = vld [vmem:[#allocation2 + $0x40] sm:$0xff]
    %v92 = vld [vmem:[#allocation2 + $0x48] sm:$0xff]
    %v93 = vld [vmem:[#allocation2 + $0x50] sm:$0xff]
    %v94 = vld [vmem:[#allocation2 + $0x58] sm:$0xff]
    %v95 = vld [vmem:[#allocation2 + $0x60] sm:$0xff]
    %v96 = vld [vmem:[#allocation2 + $0x68] sm:$0xff]
    %v97 = vld [vmem:[#allocation2 + $0x70] sm:$0xff]
    %v98 = vld [vmem:[#allocation2 + $0x78] sm:$0xff]
    %v99 = vld [vmem:[#allocation2 + $0x80] sm:$0xff]
    %v100 = vld [vmem:[#allocation2 + $0x88] sm:$0xff]
    %v101 = vld [vmem:[#allocation2 + $0x90] sm:$0xff]
    %v102 = vld [vmem:[#allocation2 + $0x98] sm:$0xff]
    %v103 = vld [vmem:[#allocation2 + $0xa0] sm:$0xff]
    %v104 = vld [vmem:[#allocation2 + $0xa8] sm:$0xff]
    %v105 = vld [vmem:[#allocation2 + $0xb0] sm:$0xff]
    %v106 = vld [vmem:[#allocation2 + $0xb8] sm:$0xff]
    %v107 = vld [vmem:[#allocation2 + $0xc0] sm:$0xff]
    %v108 = vld [vmem:[#allocation2 + $0xc8] sm:$0xff]
    %v109 = vld [vmem:[#allocation2 + $0xd0] sm:$0xff]
    %v110 = vld [vmem:[#allocation2 + $0xd8] sm:$0xff]
    %v111 = vld [vmem:[#allocation2 + $0xe0] sm:$0xff]
    %v112 = vld [vmem:[#allocation2 + $0xe8] sm:$0xff]
    %v113 = vld [vmem:[#allocation2 + $0xf0] sm:$0xff]
    %v114 = vld [vmem:[#allocation2 + $0xf8] sm:$0xff]
    %v115 = vld [vmem:[#allocation2 + $0x100] sm:$0xff]
    %v116 = vld [vmem:[#allocation2 + $0x108] sm:$0xff]
    %v117 = vld [vmem:[#allocation2 + $0x110] sm:$0xff]
    %v118 = vld [vmem:[#allocation2 + $0x118] sm:$0xff]
    %v119 = vld [vmem:[#allocation2 + $0x120] sm:$0xff]
    %v120 = vld [vmem:[#allocation2 + $0x128] sm:$0xff]
    %v121 = vld [vmem:[#allocation2 + $0x130] sm:$0xff]
    %v122 = vld [vmem:[#allocation2 + $0x138] sm:$0xff]
    %v123 = vld [vmem:[#allocation2 + $0x140] sm:$0xff]
    %v124 = vld [vmem:[#allocation2 + $0x148] sm:$0xff]
    %v125 = vld [vmem:[#allocation2 + $0x150] sm:$0xff]
    %v126 = vld [vmem:[#allocation2 + $0x158] sm:$0xff]
    %v127 = vld [vmem:[#allocation2 + $0x160] sm:$0xff]
    %v128 = vld [vmem:[#allocation2 + $0x168] sm:$0xff]
    %v129 = vld [vmem:[#allocation2 + $0x170] sm:$0xff]
    %v130 = vld [vmem:[#allocation2 + $0x178] sm:$0xff]
    %v131 = vld [vmem:[#allocation2 + $0x180] sm:$0xff]
    %v132 = vld [vmem:[#allocation2 + $0x188] sm:$0xff]
    %v133 = vld [vmem:[#allocation2 + $0x190] sm:$0xff]
    %v134 = vld [vmem:[#allocation2 + $0x198] sm:$0xff]
    %v135 = vld [vmem:[#allocation2 + $0x1a0] sm:$0xff]
    %v136 = vld [vmem:[#allocation2 + $0x1a8] sm:$0xff]
    %v137 = vld [vmem:[#allocation2 + $0x1b0] sm:$0xff]
    %v138 = vld [vmem:[#allocation2 + $0x1b8] sm:$0xff]
    %v139 = vld [vmem:[#allocation2 + $0x1c0] sm:$0xff]
    %v140 = vld [vmem:[#allocation2 + $0x1c8] sm:$0xff]
    %v141 = vld [vmem:[#allocation2 + $0x1d0] sm:$0xff]
    %v142 = vld [vmem:[#allocation2 + $0x1d8] sm:$0xff]
    %v143 = vld [vmem:[#allocation2 + $0x1e0] sm:$0xff]
    %v144 = vld [vmem:[#allocation2 + $0x1e8] sm:$0xff]
    %v145 = vld [vmem:[#allocation2 + $0x1f0] sm:$0xff]
    %v146 = vld [vmem:[#allocation2 + $0x1f8] sm:$0xff]
    %v147 = vld [vmem:[%s0] sm:$0xff]
    %v148 = vld [vmem:[%s0 + $0x8] sm:$0xff]
    %v149 = vld [vmem:[%s0 + $0x10] sm:$0xff]
    %v150 = vld [vmem:[%s0 + $0x18] sm:$0xff]
    %v151 = vld [vmem:[%s0 + $0x20] sm:$0xff]
    %v152 = vld [vmem:[%s0 + $0x28] sm:$0xff]
    %v153 = vld [vmem:[%s0 + $0x30] sm:$0xff]
    %v154 = vld [vmem:[%s0 + $0x38] sm:$0xff]
    %v155 = vld [vmem:[%s0 + $0x40] sm:$0xff]
    %v156 = vld [vmem:[%s0 + $0x48] sm:$0xff]
    %v157 = vld [vmem:[%s0 + $0x50] sm:$0xff]
    %v158 = vld [vmem:[%s0 + $0x58] sm:$0xff]
    %v159 = vld [vmem:[%s0 + $0x60] sm:$0xff]
    %v160 = vld [vmem:[%s0 + $0x68] sm:$0xff]
    %v161 = vld [vmem:[%s0 + $0x70] sm:$0xff]
    %v162 = vld [vmem:[%s0 + $0x78] sm:$0xff]
    %v163 = vld [vmem:[%s0 + $0x80] sm:$0xff]
    %v164 = vld [vmem:[%s0 + $0x88] sm:$0xff]
    %v165 = vld [vmem:[%s0 + $0x90] sm:$0xff]
    %v166 = vld [vmem:[%s0 + $0x98] sm:$0xff]
    %v167 = vld [vmem:[%s0 + $0xa0] sm:$0xff]
    %v168 = vld [vmem:[%s0 + $0xa8] sm:$0xff]
    %v169 = vld [vmem:[%s0 + $0xb0] sm:$0xff]
    %v170 = vld [vmem:[%s0 + $0xb8] sm:$0xff]
    %v171 = vld [vmem:[%s0 + $0xc0] sm:$0xff]
    %v172 = vld [vmem:[%s0 + $0xc8] sm:$0xff]
    %v173 = vld [vmem:[%s0 + $0xd0] sm:$0xff]
    %v174 = vld [vmem:[%s0 + $0xd8] sm:$0xff]
    %v175 = vld [vmem:[%s0 + $0xe0] sm:$0xff]
    %v176 = vld [vmem:[%s0 + $0xe8] sm:$0xff]
    %v177 = vld [vmem:[%s0 + $0xf0] sm:$0xff]
    %v178 = vld [vmem:[%s0 + $0xf8] sm:$0xff]
    %v179 = vld [vmem:[%s1] sm:$0xff]
    %v180 = vld [vmem:[%s1 + $0x8] sm:$0xff]
    %v181 = vld [vmem:[%s1 + $0x10] sm:$0xff]
    %v182 = vld [vmem:[%s1 + $0x18] sm:$0xff]
    %v183 = vld [vmem:[%s1 + $0x20] sm:$0xff]
    %v184 = vld [vmem:[%s1 + $0x28] sm:$0xff]
    %v185 = vld [vmem:[%s1 + $0x30] sm:$0xff]
    %v186 = vld [vmem:[%s1 + $0x38] sm:$0xff]
    %v187 = vld [vmem:[%s1 + $0x40] sm:$0xff]
    %v188 = vld [vmem:[%s1 + $0x48] sm:$0xff]
    %v189 = vld [vmem:[%s1 + $0x50] sm:$0xff]
    %v190 = vld [vmem:[%s1 + $0x58] sm:$0xff]
    %v191 = vld [vmem:[%s1 + $0x60] sm:$0xff]
    %v192 = vld [vmem:[%s1 + $0x68] sm:$0xff]
    %v193 = vld [vmem:[%s1 + $0x70] sm:$0xff]
    %v194 = vld [vmem:[%s1 + $0x78] sm:$0xff]
    %v195 = vld [vmem:[%s1 + $0x80] sm:$0xff]
    %v196 = vld [vmem:[%s1 + $0x88] sm:$0xff]
    %v197 = vld [vmem:[%s1 + $0x90] sm:$0xff]
    %v198 = vld [vmem:[%s1 + $0x98] sm:$0xff]
    %v199 = vld [vmem:[%s1 + $0xa0] sm:$0xff]
    %v200 = vld [vmem:[%s1 + $0xa8] sm:$0xff]
    %v201 = vld [vmem:[%s1 + $0xb0] sm:$0xff]
    %v202 = vld [vmem:[%s1 + $0xb8] sm:$0xff]
    %v203 = vld [vmem:[%s1 + $0xc0] sm:$0xff]
    %v204 = vld [vmem:[%s1 + $0xc8] sm:$0xff]
    %v205 = vld [vmem:[%s1 + $0xd0] sm:$0xff]
    %v206 = vld [vmem:[%s1 + $0xd8] sm:$0xff]
    %v207 = vld [vmem:[%s1 + $0xe0] sm:$0xff]
    %v208 = vld [vmem:[%s1 + $0xe8] sm:$0xff]
    %v209 = vld [vmem:[%s1 + $0xf0] sm:$0xff]
    %v210 = vld [vmem:[%s1 + $0xf8] sm:$0xff]
    %v243 = vunpack.c.l.b16 %v147
    %v244 = vunpack.c.h.b16 %v147
    %v245 = vunpack.c.l.b16 %v148
    %v246 = vunpack.c.h.b16 %v148
    %v247 = vunpack.c.l.b16 %v149
    %v248 = vunpack.c.h.b16 %v149
    %v249 = vunpack.c.l.b16 %v150
    %v250 = vunpack.c.h.b16 %v150
    %v251 = vunpack.c.l.b16 %v151
    %v252 = vunpack.c.h.b16 %v151
    %v253 = vunpack.c.l.b16 %v152
    %v254 = vunpack.c.h.b16 %v152
    %v255 = vunpack.c.l.b16 %v153
    %v256 = vunpack.c.h.b16 %v153
    %v257 = vunpack.c.l.b16 %v154
    %v258 = vunpack.c.h.b16 %v154
    %v259 = vunpack.c.l.b16 %v155
    %v260 = vunpack.c.h.b16 %v155
    %v261 = vunpack.c.l.b16 %v156
    %v262 = vunpack.c.h.b16 %v156
    %v263 = vunpack.c.l.b16 %v157
    %v264 = vunpack.c.h.b16 %v157
    %v265 = vunpack.c.l.b16 %v158
    %v266 = vunpack.c.h.b16 %v158
    %v267 = vunpack.c.l.b16 %v159
    %v268 = vunpack.c.h.b16 %v159
    %v269 = vunpack.c.l.b16 %v160
    %v270 = vunpack.c.h.b16 %v160
    %v271 = vunpack.c.l.b16 %v161
    %v272 = vunpack.c.h.b16 %v161
    %v273 = vunpack.c.l.b16 %v162
    %v274 = vunpack.c.h.b16 %v162
    %v275 = vunpack.c.l.b16 %v163
    %v276 = vunpack.c.h.b16 %v163
    %v277 = vunpack.c.l.b16 %v164
    %v278 = vunpack.c.h.b16 %v164
    %v279 = vunpack.c.l.b16 %v165
    %v280 = vunpack.c.h.b16 %v165
    %v281 = vunpack.c.l.b16 %v166
    %v282 = vunpack.c.h.b16 %v166
    %v283 = vunpack.c.l.b16 %v167
    %v284 = vunpack.c.h.b16 %v167
    %v285 = vunpack.c.l.b16 %v168
    %v286 = vunpack.c.h.b16 %v168
    %v287 = vunpack.c.l.b16 %v169
    %v288 = vunpack.c.h.b16 %v169
    %v289 = vunpack.c.l.b16 %v170
    %v290 = vunpack.c.h.b16 %v170
    %v291 = vunpack.c.l.b16 %v171
    %v292 = vunpack.c.h.b16 %v171
    %v293 = vunpack.c.l.b16 %v172
    %v294 = vunpack.c.h.b16 %v172
    %v295 = vunpack.c.l.b16 %v173
    %v296 = vunpack.c.h.b16 %v173
    %v297 = vunpack.c.l.b16 %v174
    %v298 = vunpack.c.h.b16 %v174
    %v299 = vunpack.c.l.b16 %v175
    %v300 = vunpack.c.h.b16 %v175
    %v301 = vunpack.c.l.b16 %v176
    %v302 = vunpack.c.h.b16 %v176
    %v303 = vunpack.c.l.b16 %v177
    %v304 = vunpack.c.h.b16 %v177
    %v305 = vunpack.c.l.b16 %v178
    %v306 = vunpack.c.h.b16 %v178
    %v307 = vpack.c.b16 %v245, %v243
    %v308 = vpack.c.b16 %v246, %v244
    %v309 = vpack.c.b16 %v249, %v247
    %v310 = vpack.c.b16 %v250, %v248
    %v311 = vpack.c.b16 %v253, %v251
    %v312 = vpack.c.b16 %v254, %v252
    %v313 = vpack.c.b16 %v257, %v255
    %v314 = vpack.c.b16 %v258, %v256
    %v315 = vpack.c.b16 %v261, %v259
    %v316 = vpack.c.b16 %v262, %v260
    %v317 = vpack.c.b16 %v265, %v263
    %v318 = vpack.c.b16 %v266, %v264
    %v319 = vpack.c.b16 %v269, %v267
    %v320 = vpack.c.b16 %v270, %v268
    %v321 = vpack.c.b16 %v273, %v271
    %v322 = vpack.c.b16 %v274, %v272
    %v323 = vpack.c.b16 %v277, %v275
    %v324 = vpack.c.b16 %v278, %v276
    %v325 = vpack.c.b16 %v281, %v279
    %v326 = vpack.c.b16 %v282, %v280
    %v327 = vpack.c.b16 %v285, %v283
    %v328 = vpack.c.b16 %v286, %v284
    %v329 = vpack.c.b16 %v289, %v287
    %v330 = vpack.c.b16 %v290, %v288
    %v331 = vpack.c.b16 %v293, %v291
    %v332 = vpack.c.b16 %v294, %v292
    %v333 = vpack.c.b16 %v297, %v295
    %v334 = vpack.c.b16 %v298, %v296
    %v335 = vpack.c.b16 %v301, %v299
    %v336 = vpack.c.b16 %v302, %v300
    %v337 = vpack.c.b16 %v305, %v303
    %v338 = vpack.c.b16 %v306, %v304
    %v403 = vunpack.c.l.b16 %v179
    %v404 = vunpack.c.h.b16 %v179
    %v405 = vunpack.c.l.b16 %v180
    %v406 = vunpack.c.h.b16 %v180
    %v407 = vunpack.c.l.b16 %v181
    %v408 = vunpack.c.h.b16 %v181
    %v409 = vunpack.c.l.b16 %v182
    %v410 = vunpack.c.h.b16 %v182
    %v411 = vunpack.c.l.b16 %v183
    %v412 = vunpack.c.h.b16 %v183
    %v413 = vunpack.c.l.b16 %v184
    %v414 = vunpack.c.h.b16 %v184
    %v415 = vunpack.c.l.b16 %v185
    %v416 = vunpack.c.h.b16 %v185
    %v417 = vunpack.c.l.b16 %v186
    %v418 = vunpack.c.h.b16 %v186
    %v419 = vunpack.c.l.b16 %v187
    %v420 = vunpack.c.h.b16 %v187
    %v421 = vunpack.c.l.b16 %v188
    %v422 = vunpack.c.h.b16 %v188
    %v423 = vunpack.c.l.b16 %v189
    %v424 = vunpack.c.h.b16 %v189
    %v425 = vunpack.c.l.b16 %v190
    %v426 = vunpack.c.h.b16 %v190
    %v427 = vunpack.c.l.b16 %v191
    %v428 = vunpack.c.h.b16 %v191
    %v429 = vunpack.c.l.b16 %v192
    %v430 = vunpack.c.h.b16 %v192
    %v431 = vunpack.c.l.b16 %v193
    %v432 = vunpack.c.h.b16 %v193
    %v433 = vunpack.c.l.b16 %v194
    %v434 = vunpack.c.h.b16 %v194
    %v435 = vunpack.c.l.b16 %v195
    %v436 = vunpack.c.h.b16 %v195
    %v437 = vunpack.c.l.b16 %v196
    %v438 = vunpack.c.h.b16 %v196
    %v439 = vunpack.c.l.b16 %v197
    %v440 = vunpack.c.h.b16 %v197
    %v441 = vunpack.c.l.b16 %v198
    %v442 = vunpack.c.h.b16 %v198
    %v443 = vunpack.c.l.b16 %v199
    %v444 = vunpack.c.h.b16 %v199
    %v445 = vunpack.c.l.b16 %v200
    %v446 = vunpack.c.h.b16 %v200
    %v447 = vunpack.c.l.b16 %v201
    %v448 = vunpack.c.h.b16 %v201
    %v449 = vunpack.c.l.b16 %v202
    %v450 = vunpack.c.h.b16 %v202
    %v451 = vunpack.c.l.b16 %v203
    %v452 = vunpack.c.h.b16 %v203
    %v453 = vunpack.c.l.b16 %v204
    %v454 = vunpack.c.h.b16 %v204
    %v455 = vunpack.c.l.b16 %v205
    %v456 = vunpack.c.h.b16 %v205
    %v457 = vunpack.c.l.b16 %v206
    %v458 = vunpack.c.h.b16 %v206
    %v459 = vunpack.c.l.b16 %v207
    %v460 = vunpack.c.h.b16 %v207
    %v461 = vunpack.c.l.b16 %v208
    %v462 = vunpack.c.h.b16 %v208
    %v463 = vunpack.c.l.b16 %v209
    %v464 = vunpack.c.h.b16 %v209
    %v465 = vunpack.c.l.b16 %v210
    %v466 = vunpack.c.h.b16 %v210
    %v467 = vpack.c.b16 %v405, %v403
    %v468 = vpack.c.b16 %v406, %v404
    %v469 = vpack.c.b16 %v409, %v407
    %v470 = vpack.c.b16 %v410, %v408
    %v471 = vpack.c.b16 %v413, %v411
    %v472 = vpack.c.b16 %v414, %v412
    %v473 = vpack.c.b16 %v417, %v415
    %v474 = vpack.c.b16 %v418, %v416
    %v475 = vpack.c.b16 %v421, %v419
    %v476 = vpack.c.b16 %v422, %v420
    %v477 = vpack.c.b16 %v425, %v423
    %v478 = vpack.c.b16 %v426, %v424
    %v479 = vpack.c.b16 %v429, %v427
    %v480 = vpack.c.b16 %v430, %v428
    %v481 = vpack.c.b16 %v433, %v431
    %v482 = vpack.c.b16 %v434, %v432
    %v483 = vpack.c.b16 %v437, %v435
    %v484 = vpack.c.b16 %v438, %v436
    %v485 = vpack.c.b16 %v441, %v439
    %v486 = vpack.c.b16 %v442, %v440
    %v487 = vpack.c.b16 %v445, %v443
    %v488 = vpack.c.b16 %v446, %v444
    %v489 = vpack.c.b16 %v449, %v447
    %v490 = vpack.c.b16 %v450, %v448
    %v491 = vpack.c.b16 %v453, %v451
    %v492 = vpack.c.b16 %v454, %v452
    %v493 = vpack.c.b16 %v457, %v455
    %v494 = vpack.c.b16 %v458, %v456
    %v495 = vpack.c.b16 %v461, %v459
    %v496 = vpack.c.b16 %v462, %v460
    %v497 = vpack.c.b16 %v465, %v463
    %v498 = vpack.c.b16 %v466, %v464
    %531 = vmatpush.bf16.msra.mxu0 %v481
    %532 = vmatpush.bf16.msra.mxu0 %v479
    %533 = vmatpush.bf16.msra.mxu0 %v477
    %534 = vmatpush.bf16.msra.mxu0 %v475
    %535 = vmatpush.bf16.msra.mxu0 %v473
    %536 = vmatpush.bf16.msra.mxu0 %v471
    %537 = vmatpush.bf16.msra.mxu0 %v469
    %538 = vmatpush.bf16.msra.mxu0 %v467
    %539 = vmatmul.bf16.gmra.mxu0 %v307
    %v540 = vpop.f32.mrf.mxu0
    %v541 = vadd.f32 0.0, %v540
    %v542 = vpop.f32.mrf.mxu0
    %v543 = vadd.f32 0.0, %v542
    %544 = vmatmul.bf16.gmra.mxu0 %v309
    %v545 = vpop.f32.mrf.mxu0
    %v546 = vadd.f32 0.0, %v545
    %v547 = vpop.f32.mrf.mxu0
    %v548 = vadd.f32 0.0, %v547
    %549 = vmatmul.bf16.gmra.mxu0 %v311
    %v550 = vpop.f32.mrf.mxu0
    %v551 = vadd.f32 0.0, %v550
    %v552 = vpop.f32.mrf.mxu0
    %v553 = vadd.f32 0.0, %v552
    %554 = vmatmul.bf16.gmra.mxu0 %v313
    %v555 = vpop.f32.mrf.mxu0
    %v556 = vadd.f32 0.0, %v555
    %v557 = vpop.f32.mrf.mxu0
    %v558 = vadd.f32 0.0, %v557
    %559 = vmatmul.bf16.gmra.mxu0 %v315
    %v560 = vpop.f32.mrf.mxu0
    %v561 = vadd.f32 0.0, %v560
    %v562 = vpop.f32.mrf.mxu0
    %v563 = vadd.f32 0.0, %v562
    %564 = vmatmul.bf16.gmra.mxu0 %v317
    %v565 = vpop.f32.mrf.mxu0
    %v566 = vadd.f32 0.0, %v565
    %v567 = vpop.f32.mrf.mxu0
    %v568 = vadd.f32 0.0, %v567
    %569 = vmatmul.bf16.gmra.mxu0 %v319
    %v570 = vpop.f32.mrf.mxu0
    %v571 = vadd.f32 0.0, %v570
    %v572 = vpop.f32.mrf.mxu0
    %v573 = vadd.f32 0.0, %v572
    %574 = vmatmul.bf16.gmra.mxu0 %v321
    %v575 = vpop.f32.mrf.mxu0
    %v576 = vadd.f32 0.0, %v575
    %v577 = vpop.f32.mrf.mxu0
    %v578 = vadd.f32 0.0, %v577
    %579 = vmatmul.bf16.gmra.mxu0 %v323
    %v580 = vpop.f32.mrf.mxu0
    %v581 = vadd.f32 0.0, %v580
    %v582 = vpop.f32.mrf.mxu0
    %v583 = vadd.f32 0.0, %v582
    %584 = vmatmul.bf16.gmra.mxu0 %v325
    %v585 = vpop.f32.mrf.mxu0
    %v586 = vadd.f32 0.0, %v585
    %v587 = vpop.f32.mrf.mxu0
    %v588 = vadd.f32 0.0, %v587
    %589 = vmatmul.bf16.gmra.mxu0 %v327
    %v590 = vpop.f32.mrf.mxu0
    %v591 = vadd.f32 0.0, %v590
    %v592 = vpop.f32.mrf.mxu0
    %v593 = vadd.f32 0.0, %v592
    %594 = vmatmul.bf16.gmra.mxu0 %v329
    %v595 = vpop.f32.mrf.mxu0
    %v596 = vadd.f32 0.0, %v595
    %v597 = vpop.f32.mrf.mxu0
    %v598 = vadd.f32 0.0, %v597
    %599 = vmatmul.bf16.gmra.mxu0 %v331
    %v600 = vpop.f32.mrf.mxu0
    %v601 = vadd.f32 0.0, %v600
    %v602 = vpop.f32.mrf.mxu0
    %v603 = vadd.f32 0.0, %v602
    %604 = vmatmul.bf16.gmra.mxu0 %v333
    %v605 = vpop.f32.mrf.mxu0
    %v606 = vadd.f32 0.0, %v605
    %v607 = vpop.f32.mrf.mxu0
    %v608 = vadd.f32 0.0, %v607
    %609 = vmatmul.bf16.gmra.mxu0 %v335
    %v610 = vpop.f32.mrf.mxu0
    %v611 = vadd.f32 0.0, %v610
    %v612 = vpop.f32.mrf.mxu0
    %v613 = vadd.f32 0.0, %v612
    %614 = vmatmul.bf16.gmra.mxu0 %v337
    %v615 = vpop.f32.mrf.mxu0
    %v616 = vadd.f32 0.0, %v615
    %v617 = vpop.f32.mrf.mxu0
    %v618 = vadd.f32 0.0, %v617
    %619 = vdwg.mxu0
    %620 = vmatpush.bf16.msra.mxu0 %v497
    %621 = vmatpush.bf16.msra.mxu0 %v495
    %622 = vmatpush.bf16.msra.mxu0 %v493
    %623 = vmatpush.bf16.msra.mxu0 %v491
    %624 = vmatpush.bf16.msra.mxu0 %v489
    %625 = vmatpush.bf16.msra.mxu0 %v487
    %626 = vmatpush.bf16.msra.mxu0 %v485
    %627 = vmatpush.bf16.msra.mxu0 %v483
    %628 = vmatmul.bf16.gmra.mxu0 %v308
    %v629 = vpop.f32.mrf.mxu0
    %v630 = vadd.f32 %v541, %v629
    %v631 = vpop.f32.mrf.mxu0
    %v632 = vadd.f32 %v543, %v631
    %633 = vmatmul.bf16.gmra.mxu0 %v310
    %v634 = vpop.f32.mrf.mxu0
    %v635 = vadd.f32 %v546, %v634
    %v636 = vpop.f32.mrf.mxu0
    %v637 = vadd.f32 %v548, %v636
    %638 = vmatmul.bf16.gmra.mxu0 %v312
    %v639 = vpop.f32.mrf.mxu0
    %v640 = vadd.f32 %v551, %v639
    %v641 = vpop.f32.mrf.mxu0
    %v642 = vadd.f32 %v553, %v641
    %643 = vmatmul.bf16.gmra.mxu0 %v314
    %v644 = vpop.f32.mrf.mxu0
    %v645 = vadd.f32 %v556, %v644
    %v646 = vpop.f32.mrf.mxu0
    %v647 = vadd.f32 %v558, %v646
    %648 = vmatmul.bf16.gmra.mxu0 %v316
    %v649 = vpop.f32.mrf.mxu0
    %v650 = vadd.f32 %v561, %v649
    %v651 = vpop.f32.mrf.mxu0
    %v652 = vadd.f32 %v563, %v651
    %653 = vmatmul.bf16.gmra.mxu0 %v318
    %v654 = vpop.f32.mrf.mxu0
    %v655 = vadd.f32 %v566, %v654
    %v656 = vpop.f32.mrf.mxu0
    %v657 = vadd.f32 %v568, %v656
    %658 = vmatmul.bf16.gmra.mxu0 %v320
    %v659 = vpop.f32.mrf.mxu0
    %v660 = vadd.f32 %v571, %v659
    %v661 = vpop.f32.mrf.mxu0
    %v662 = vadd.f32 %v573, %v661
    %663 = vmatmul.bf16.gmra.mxu0 %v322
    %v664 = vpop.f32.mrf.mxu0
    %v665 = vadd.f32 %v576, %v664
    %v666 = vpop.f32.mrf.mxu0
    %v667 = vadd.f32 %v578, %v666
    %668 = vmatmul.bf16.gmra.mxu0 %v324
    %v669 = vpop.f32.mrf.mxu0
    %v670 = vadd.f32 %v581, %v669
    %v671 = vpop.f32.mrf.mxu0
    %v672 = vadd.f32 %v583, %v671
    %673 = vmatmul.bf16.gmra.mxu0 %v326
    %v674 = vpop.f32.mrf.mxu0
    %v675 = vadd.f32 %v586, %v674
    %v676 = vpop.f32.mrf.mxu0
    %v677 = vadd.f32 %v588, %v676
    %678 = vmatmul.bf16.gmra.mxu0 %v328
    %v679 = vpop.f32.mrf.mxu0
    %v680 = vadd.f32 %v591, %v679
    %v681 = vpop.f32.mrf.mxu0
    %v682 = vadd.f32 %v593, %v681
    %683 = vmatmul.bf16.gmra.mxu0 %v330
    %v684 = vpop.f32.mrf.mxu0
    %v685 = vadd.f32 %v596, %v684
    %v686 = vpop.f32.mrf.mxu0
    %v687 = vadd.f32 %v598, %v686
    %688 = vmatmul.bf16.gmra.mxu0 %v332
    %v689 = vpop.f32.mrf.mxu0
    %v690 = vadd.f32 %v601, %v689
    %v691 = vpop.f32.mrf.mxu0
    %v692 = vadd.f32 %v603, %v691
    %693 = vmatmul.bf16.gmra.mxu0 %v334
    %v694 = vpop.f32.mrf.mxu0
    %v695 = vadd.f32 %v606, %v694
    %v696 = vpop.f32.mrf.mxu0
    %v697 = vadd.f32 %v608, %v696
    %698 = vmatmul.bf16.gmra.mxu0 %v336
    %v699 = vpop.f32.mrf.mxu0
    %v700 = vadd.f32 %v611, %v699
    %v701 = vpop.f32.mrf.mxu0
    %v702 = vadd.f32 %v613, %v701
    %703 = vmatmul.bf16.gmra.mxu0 %v338
    %v704 = vpop.f32.mrf.mxu0
    %v705 = vadd.f32 %v616, %v704
    %v706 = vpop.f32.mrf.mxu0
    %v707 = vadd.f32 %v618, %v706
    %708 = vdwg.mxu0
    %709 = vmatpush.bf16.msra.mxu0 %v482
    %710 = vmatpush.bf16.msra.mxu0 %v480
    %711 = vmatpush.bf16.msra.mxu0 %v478
    %712 = vmatpush.bf16.msra.mxu0 %v476
    %713 = vmatpush.bf16.msra.mxu0 %v474
    %714 = vmatpush.bf16.msra.mxu0 %v472
    %715 = vmatpush.bf16.msra.mxu0 %v470
    %716 = vmatpush.bf16.msra.mxu0 %v468
    %717 = vmatmul.bf16.gmra.mxu0 %v307
    %v718 = vpop.f32.mrf.mxu0
    %v719 = vadd.f32 0.0, %v718
    %v720 = vpop.f32.mrf.mxu0
    %v721 = vadd.f32 0.0, %v720
    %722 = vmatmul.bf16.gmra.mxu0 %v309
    %v723 = vpop.f32.mrf.mxu0
    %v724 = vadd.f32 0.0, %v723
    %v725 = vpop.f32.mrf.mxu0
    %v726 = vadd.f32 0.0, %v725
    %727 = vmatmul.bf16.gmra.mxu0 %v311
    %v728 = vpop.f32.mrf.mxu0
    %v729 = vadd.f32 0.0, %v728
    %v730 = vpop.f32.mrf.mxu0
    %v731 = vadd.f32 0.0, %v730
    %732 = vmatmul.bf16.gmra.mxu0 %v313
    %v733 = vpop.f32.mrf.mxu0
    %v734 = vadd.f32 0.0, %v733
    %v735 = vpop.f32.mrf.mxu0
    %v736 = vadd.f32 0.0, %v735
    %737 = vmatmul.bf16.gmra.mxu0 %v315
    %v738 = vpop.f32.mrf.mxu0
    %v739 = vadd.f32 0.0, %v738
    %v740 = vpop.f32.mrf.mxu0
    %v741 = vadd.f32 0.0, %v740
    %742 = vmatmul.bf16.gmra.mxu0 %v317
    %v743 = vpop.f32.mrf.mxu0
    %v744 = vadd.f32 0.0, %v743
    %v745 = vpop.f32.mrf.mxu0
    %v746 = vadd.f32 0.0, %v745
    %747 = vmatmul.bf16.gmra.mxu0 %v319
    %v748 = vpop.f32.mrf.mxu0
    %v749 = vadd.f32 0.0, %v748
    %v750 = vpop.f32.mrf.mxu0
    %v751 = vadd.f32 0.0, %v750
    %752 = vmatmul.bf16.gmra.mxu0 %v321
    %v753 = vpop.f32.mrf.mxu0
    %v754 = vadd.f32 0.0, %v753
    %v755 = vpop.f32.mrf.mxu0
    %v756 = vadd.f32 0.0, %v755
    %757 = vmatmul.bf16.gmra.mxu0 %v323
    %v758 = vpop.f32.mrf.mxu0
    %v759 = vadd.f32 0.0, %v758
    %v760 = vpop.f32.mrf.mxu0
    %v761 = vadd.f32 0.0, %v760
    %762 = vmatmul.bf16.gmra.mxu0 %v325
    %v763 = vpop.f32.mrf.mxu0
    %v764 = vadd.f32 0.0, %v763
    %v765 = vpop.f32.mrf.mxu0
    %v766 = vadd.f32 0.0, %v765
    %767 = vmatmul.bf16.gmra.mxu0 %v327
    %v768 = vpop.f32.mrf.mxu0
    %v769 = vadd.f32 0.0, %v768
    %v770 = vpop.f32.mrf.mxu0
    %v771 = vadd.f32 0.0, %v770
    %772 = vmatmul.bf16.gmra.mxu0 %v329
    %v773 = vpop.f32.mrf.mxu0
    %v774 = vadd.f32 0.0, %v773
    %v775 = vpop.f32.mrf.mxu0
    %v776 = vadd.f32 0.0, %v775
    %777 = vmatmul.bf16.gmra.mxu0 %v331
    %v778 = vpop.f32.mrf.mxu0
    %v779 = vadd.f32 0.0, %v778
    %v780 = vpop.f32.mrf.mxu0
    %v781 = vadd.f32 0.0, %v780
    %782 = vmatmul.bf16.gmra.mxu0 %v333
    %v783 = vpop.f32.mrf.mxu0
    %v784 = vadd.f32 0.0, %v783
    %v785 = vpop.f32.mrf.mxu0
    %v786 = vadd.f32 0.0, %v785
    %787 = vmatmul.bf16.gmra.mxu0 %v335
    %v788 = vpop.f32.mrf.mxu0
    %v789 = vadd.f32 0.0, %v788
    %v790 = vpop.f32.mrf.mxu0
    %v791 = vadd.f32 0.0, %v790
    %792 = vmatmul.bf16.gmra.mxu0 %v337
    %v793 = vpop.f32.mrf.mxu0
    %v794 = vadd.f32 0.0, %v793
    %v795 = vpop.f32.mrf.mxu0
    %v796 = vadd.f32 0.0, %v795
    %797 = vdwg.mxu0
    %798 = vmatpush.bf16.msra.mxu0 %v498
    %799 = vmatpush.bf16.msra.mxu0 %v496
    %800 = vmatpush.bf16.msra.mxu0 %v494
    %801 = vmatpush.bf16.msra.mxu0 %v492
    %802 = vmatpush.bf16.msra.mxu0 %v490
    %803 = vmatpush.bf16.msra.mxu0 %v488
    %804 = vmatpush.bf16.msra.mxu0 %v486
    %805 = vmatpush.bf16.msra.mxu0 %v484
    %806 = vmatmul.bf16.gmra.mxu0 %v308
    %v807 = vpop.f32.mrf.mxu0
    %v808 = vadd.f32 %v719, %v807
    %v809 = vpop.f32.mrf.mxu0
    %v810 = vadd.f32 %v721, %v809
    %811 = vmatmul.bf16.gmra.mxu0 %v310
    %v812 = vpop.f32.mrf.mxu0
    %v813 = vadd.f32 %v724, %v812
    %v814 = vpop.f32.mrf.mxu0
    %v815 = vadd.f32 %v726, %v814
    %816 = vmatmul.bf16.gmra.mxu0 %v312
    %v817 = vpop.f32.mrf.mxu0
    %v818 = vadd.f32 %v729, %v817
    %v819 = vpop.f32.mrf.mxu0
    %v820 = vadd.f32 %v731, %v819
    %821 = vmatmul.bf16.gmra.mxu0 %v314
    %v822 = vpop.f32.mrf.mxu0
    %v823 = vadd.f32 %v734, %v822
    %v824 = vpop.f32.mrf.mxu0
    %v825 = vadd.f32 %v736, %v824
    %826 = vmatmul.bf16.gmra.mxu0 %v316
    %v827 = vpop.f32.mrf.mxu0
    %v828 = vadd.f32 %v739, %v827
    %v829 = vpop.f32.mrf.mxu0
    %v830 = vadd.f32 %v741, %v829
    %831 = vmatmul.bf16.gmra.mxu0 %v318
    %v832 = vpop.f32.mrf.mxu0
    %v833 = vadd.f32 %v744, %v832
    %v834 = vpop.f32.mrf.mxu0
    %v835 = vadd.f32 %v746, %v834
    %836 = vmatmul.bf16.gmra.mxu0 %v320
    %v837 = vpop.f32.mrf.mxu0
    %v838 = vadd.f32 %v749, %v837
    %v839 = vpop.f32.mrf.mxu0
    %v840 = vadd.f32 %v751, %v839
    %841 = vmatmul.bf16.gmra.mxu0 %v322
    %v842 = vpop.f32.mrf.mxu0
    %v843 = vadd.f32 %v754, %v842
    %v844 = vpop.f32.mrf.mxu0
    %v845 = vadd.f32 %v756, %v844
    %846 = vmatmul.bf16.gmra.mxu0 %v324
    %v847 = vpop.f32.mrf.mxu0
    %v848 = vadd.f32 %v759, %v847
    %v849 = vpop.f32.mrf.mxu0
    %v850 = vadd.f32 %v761, %v849
    %851 = vmatmul.bf16.gmra.mxu0 %v326
    %v852 = vpop.f32.mrf.mxu0
    %v853 = vadd.f32 %v764, %v852
    %v854 = vpop.f32.mrf.mxu0
    %v855 = vadd.f32 %v766, %v854
    %856 = vmatmul.bf16.gmra.mxu0 %v328
    %v857 = vpop.f32.mrf.mxu0
    %v858 = vadd.f32 %v769, %v857
    %v859 = vpop.f32.mrf.mxu0
    %v860 = vadd.f32 %v771, %v859
    %861 = vmatmul.bf16.gmra.mxu0 %v330
    %v862 = vpop.f32.mrf.mxu0
    %v863 = vadd.f32 %v774, %v862
    %v864 = vpop.f32.mrf.mxu0
    %v865 = vadd.f32 %v776, %v864
    %866 = vmatmul.bf16.gmra.mxu0 %v332
    %v867 = vpop.f32.mrf.mxu0
    %v868 = vadd.f32 %v779, %v867
    %v869 = vpop.f32.mrf.mxu0
    %v870 = vadd.f32 %v781, %v869
    %871 = vmatmul.bf16.gmra.mxu0 %v334
    %v872 = vpop.f32.mrf.mxu0
    %v873 = vadd.f32 %v784, %v872
    %v874 = vpop.f32.mrf.mxu0
    %v875 = vadd.f32 %v786, %v874
    %876 = vmatmul.bf16.gmra.mxu0 %v336
    %v877 = vpop.f32.mrf.mxu0
    %v878 = vadd.f32 %v789, %v877
    %v879 = vpop.f32.mrf.mxu0
    %v880 = vadd.f32 %v791, %v879
    %881 = vmatmul.bf16.gmra.mxu0 %v338
    %v882 = vpop.f32.mrf.mxu0
    %v883 = vadd.f32 %v794, %v882
    %v884 = vpop.f32.mrf.mxu0
    %v885 = vadd.f32 %v796, %v884
    %886 = vdwg.mxu0
    %v887 = vadd.f32 %v83, %v630
    %v888 = vadd.f32 %v84, %v808
    %v889 = vadd.f32 %v85, %v632
    %v890 = vadd.f32 %v86, %v810
    %v891 = vadd.f32 %v87, %v635
    %v892 = vadd.f32 %v88, %v813
    %v893 = vadd.f32 %v89, %v637
    %v894 = vadd.f32 %v90, %v815
    %v895 = vadd.f32 %v91, %v640
    %v896 = vadd.f32 %v92, %v818
    %v897 = vadd.f32 %v93, %v642
    %v898 = vadd.f32 %v94, %v820
    %v899 = vadd.f32 %v95, %v645
    %v900 = vadd.f32 %v96, %v823
    %v901 = vadd.f32 %v97, %v647
    %v902 = vadd.f32 %v98, %v825
    %v903 = vadd.f32 %v99, %v650
    %v904 = vadd.f32 %v100, %v828
    %v905 = vadd.f32 %v101, %v652
    %v906 = vadd.f32 %v102, %v830
    %v907 = vadd.f32 %v103, %v655
    %v908 = vadd.f32 %v104, %v833
    %v909 = vadd.f32 %v105, %v657
    %v910 = vadd.f32 %v106, %v835
    %v911 = vadd.f32 %v107, %v660
    %v912 = vadd.f32 %v108, %v838
    %v913 = vadd.f32 %v109, %v662
    %v914 = vadd.f32 %v110, %v840
    %v915 = vadd.f32 %v111, %v665
    %v916 = vadd.f32 %v112, %v843
    %v917 = vadd.f32 %v113, %v667
    %v918 = vadd.f32 %v114, %v845
    %v919 = vadd.f32 %v115, %v670
    %v920 = vadd.f32 %v116, %v848
    %v921 = vadd.f32 %v117, %v672
    %v922 = vadd.f32 %v118, %v850
    %v923 = vadd.f32 %v119, %v675
    %v924 = vadd.f32 %v120, %v853
    %v925 = vadd.f32 %v121, %v677
    %v926 = vadd.f32 %v122, %v855
    %v927 = vadd.f32 %v123, %v680
    %v928 = vadd.f32 %v124, %v858
    %v929 = vadd.f32 %v125, %v682
    %v930 = vadd.f32 %v126, %v860
    %v931 = vadd.f32 %v127, %v685
    %v932 = vadd.f32 %v128, %v863
    %v933 = vadd.f32 %v129, %v687
    %v934 = vadd.f32 %v130, %v865
    %v935 = vadd.f32 %v131, %v690
    %v936 = vadd.f32 %v132, %v868
    %v937 = vadd.f32 %v133, %v692
    %v938 = vadd.f32 %v134, %v870
    %v939 = vadd.f32 %v135, %v695
    %v940 = vadd.f32 %v136, %v873
    %v941 = vadd.f32 %v137, %v697
    %v942 = vadd.f32 %v138, %v875
    %v943 = vadd.f32 %v139, %v700
    %v944 = vadd.f32 %v140, %v878
    %v945 = vadd.f32 %v141, %v702
    %v946 = vadd.f32 %v142, %v880
    %v947 = vadd.f32 %v143, %v705
    %v948 = vadd.f32 %v144, %v883
    %v949 = vadd.f32 %v145, %v707
    %v950 = vadd.f32 %v146, %v885
    %951 = vst [vmem:[#allocation2] sm:$0xff] %v887
    %952 = vst [vmem:[#allocation2 + $0x8] sm:$0xff] %v888
    %953 = vst [vmem:[#allocation2 + $0x10] sm:$0xff] %v889
    %954 = vst [vmem:[#allocation2 + $0x18] sm:$0xff] %v890
    %955 = vst [vmem:[#allocation2 + $0x20] sm:$0xff] %v891
    %956 = vst [vmem:[#allocation2 + $0x28] sm:$0xff] %v892
    %957 = vst [vmem:[#allocation2 + $0x30] sm:$0xff] %v893
    %958 = vst [vmem:[#allocation2 + $0x38] sm:$0xff] %v894
    %959 = vst [vmem:[#allocation2 + $0x40] sm:$0xff] %v895
    %960 = vst [vmem:[#allocation2 + $0x48] sm:$0xff] %v896
    %961 = vst [vmem:[#allocation2 + $0x50] sm:$0xff] %v897
    %962 = vst [vmem:[#allocation2 + $0x58] sm:$0xff] %v898
    %963 = vst [vmem:[#allocation2 + $0x60] sm:$0xff] %v899
    %964 = vst [vmem:[#allocation2 + $0x68] sm:$0xff] %v900
    %965 = vst [vmem:[#allocation2 + $0x70] sm:$0xff] %v901
    %966 = vst [vmem:[#allocation2 + $0x78] sm:$0xff] %v902
    %967 = vst [vmem:[#allocation2 + $0x80] sm:$0xff] %v903
    %968 = vst [vmem:[#allocation2 + $0x88] sm:$0xff] %v904
    %969 = vst [vmem:[#allocation2 + $0x90] sm:$0xff] %v905
    %970 = vst [vmem:[#allocation2 + $0x98] sm:$0xff] %v906
    %971 = vst [vmem:[#allocation2 + $0xa0] sm:$0xff] %v907
    %972 = vst [vmem:[#allocation2 + $0xa8] sm:$0xff] %v908
    %973 = vst [vmem:[#allocation2 + $0xb0] sm:$0xff] %v909
    %974 = vst [vmem:[#allocation2 + $0xb8] sm:$0xff] %v910
    %975 = vst [vmem:[#allocation2 + $0xc0] sm:$0xff] %v911
    %976 = vst [vmem:[#allocation2 + $0xc8] sm:$0xff] %v912
    %977 = vst [vmem:[#allocation2 + $0xd0] sm:$0xff] %v913
    %978 = vst [vmem:[#allocation2 + $0xd8] sm:$0xff] %v914
    %979 = vst [vmem:[#allocation2 + $0xe0] sm:$0xff] %v915
    %980 = vst [vmem:[#allocation2 + $0xe8] sm:$0xff] %v916
    %981 = vst [vmem:[#allocation2 + $0xf0] sm:$0xff] %v917
    %982 = vst [vmem:[#allocation2 + $0xf8] sm:$0xff] %v918
    %983 = vst [vmem:[#allocation2 + $0x100] sm:$0xff] %v919
    %984 = vst [vmem:[#allocation2 + $0x108] sm:$0xff] %v920
    %985 = vst [vmem:[#allocation2 + $0x110] sm:$0xff] %v921
    %986 = vst [vmem:[#allocation2 + $0x118] sm:$0xff] %v922
    %987 = vst [vmem:[#allocation2 + $0x120] sm:$0xff] %v923
    %988 = vst [vmem:[#allocation2 + $0x128] sm:$0xff] %v924
    %989 = vst [vmem:[#allocation2 + $0x130] sm:$0xff] %v925
    %990 = vst [vmem:[#allocation2 + $0x138] sm:$0xff] %v926
    %991 = vst [vmem:[#allocation2 + $0x140] sm:$0xff] %v927
    %992 = vst [vmem:[#allocation2 + $0x148] sm:$0xff] %v928
    %993 = vst [vmem:[#allocation2 + $0x150] sm:$0xff] %v929
    %994 = vst [vmem:[#allocation2 + $0x158] sm:$0xff] %v930
    %995 = vst [vmem:[#allocation2 + $0x160] sm:$0xff] %v931
    %996 = vst [vmem:[#allocation2 + $0x168] sm:$0xff] %v932
    %997 = vst [vmem:[#allocation2 + $0x170] sm:$0xff] %v933
    %998 = vst [vmem:[#allocation2 + $0x178] sm:$0xff] %v934
    %999 = vst [vmem:[#allocation2 + $0x180] sm:$0xff] %v935
    %1000 = vst [vmem:[#allocation2 + $0x188] sm:$0xff] %v936
    %1001 = vst [vmem:[#allocation2 + $0x190] sm:$0xff] %v937
    %1002 = vst [vmem:[#allocation2 + $0x198] sm:$0xff] %v938
    %1003 = vst [vmem:[#allocation2 + $0x1a0] sm:$0xff] %v939
    %1004 = vst [vmem:[#allocation2 + $0x1a8] sm:$0xff] %v940
    %1005 = vst [vmem:[#allocation2 + $0x1b0] sm:$0xff] %v941
    %1006 = vst [vmem:[#allocation2 + $0x1b8] sm:$0xff] %v942
    %1007 = vst [vmem:[#allocation2 + $0x1c0] sm:$0xff] %v943
    %1008 = vst [vmem:[#allocation2 + $0x1c8] sm:$0xff] %v944
    %1009 = vst [vmem:[#allocation2 + $0x1d0] sm:$0xff] %v945
    %1010 = vst [vmem:[#allocation2 + $0x1d8] sm:$0xff] %v946
    %1011 = vst [vmem:[#allocation2 + $0x1e0] sm:$0xff] %v947
    %1012 = vst [vmem:[#allocation2 + $0x1e8] sm:$0xff] %v948
    %1013 = vst [vmem:[#allocation2 + $0x1f0] sm:$0xff] %v949
    %1014 = vst [vmem:[#allocation2 + $0x1f8] sm:$0xff] %v950
    // Predicated region
    $region18: #{self_attention_forward.5} parent=1 // pred_check
      %p1015 = pneg %p15
    $region19: #{self_attention_forward.5} parent=1 // pred_check_branch
      %1017 = sbr.rel (%p1015) target = $region21
    $region20: #{self_attention_forward.5} parent=1 // pred_region
      %v1018 = vld [vmem:[#allocation2] sm:$0xff]
      %v1019 = vld [vmem:[#allocation2 + $0x8] sm:$0xff]
      %v1020 = vld [vmem:[#allocation2 + $0x10] sm:$0xff]
      %v1021 = vld [vmem:[#allocation2 + $0x18] sm:$0xff]
      %v1022 = vld [vmem:[#allocation2 + $0x20] sm:$0xff]
      %v1023 = vld [vmem:[#allocation2 + $0x28] sm:$0xff]
      %v1024 = vld [vmem:[#allocation2 + $0x30] sm:$0xff]
      %v1025 = vld [vmem:[#allocation2 + $0x38] sm:$0xff]
      %v1026 = vld [vmem:[#allocation2 + $0x40] sm:$0xff]
      %v1027 = vld [vmem:[#allocation2 + $0x48] sm:$0xff]
      %v1028 = vld [vmem:[#allocation2 + $0x50] sm:$0xff]
      %v1029 = vld [vmem:[#allocation2 + $0x58] sm:$0xff]
      %v1030 = vld [vmem:[#allocation2 + $0x60] sm:$0xff]
      %v1031 = vld [vmem:[#allocation2 + $0x68] sm:$0xff]
      %v1032 = vld [vmem:[#allocation2 + $0x70] sm:$0xff]
      %v1033 = vld [vmem:[#allocation2 + $0x78] sm:$0xff]
      %v1034 = vld [vmem:[#allocation2 + $0x80] sm:$0xff]
      %v1035 = vld [vmem:[#allocation2 + $0x88] sm:$0xff]
      %v1036 = vld [vmem:[#allocation2 + $0x90] sm:$0xff]
      %v1037 = vld [vmem:[#allocation2 + $0x98] sm:$0xff]
      %v1038 = vld [vmem:[#allocation2 + $0xa0] sm:$0xff]
      %v1039 = vld [vmem:[#allocation2 + $0xa8] sm:$0xff]
      %v1040 = vld [vmem:[#allocation2 + $0xb0] sm:$0xff]
      %v1041 = vld [vmem:[#allocation2 + $0xb8] sm:$0xff]
      %v1042 = vld [vmem:[#allocation2 + $0xc0] sm:$0xff]
      %v1043 = vld [vmem:[#allocation2 + $0xc8] sm:$0xff]
      %v1044 = vld [vmem:[#allocation2 + $0xd0] sm:$0xff]
      %v1045 = vld [vmem:[#allocation2 + $0xd8] sm:$0xff]
      %v1046 = vld [vmem:[#allocation2 + $0xe0] sm:$0xff]
      %v1047 = vld [vmem:[#allocation2 + $0xe8] sm:$0xff]
      %v1048 = vld [vmem:[#allocation2 + $0xf0] sm:$0xff]
      %v1049 = vld [vmem:[#allocation2 + $0xf8] sm:$0xff]
      %v1050 = vld [vmem:[#allocation2 + $0x100] sm:$0xff]
      %v1051 = vld [vmem:[#allocation2 + $0x108] sm:$0xff]
      %v1052 = vld [vmem:[#allocation2 + $0x110] sm:$0xff]
      %v1053 = vld [vmem:[#allocation2 + $0x118] sm:$0xff]
      %v1054 = vld [vmem:[#allocation2 + $0x120] sm:$0xff]
      %v1055 = vld [vmem:[#allocation2 + $0x128] sm:$0xff]
      %v1056 = vld [vmem:[#allocation2 + $0x130] sm:$0xff]
      %v1057 = vld [vmem:[#allocation2 + $0x138] sm:$0xff]
      %v1058 = vld [vmem:[#allocation2 + $0x140] sm:$0xff]
      %v1059 = vld [vmem:[#allocation2 + $0x148] sm:$0xff]
      %v1060 = vld [vmem:[#allocation2 + $0x150] sm:$0xff]
      %v1061 = vld [vmem:[#allocation2 + $0x158] sm:$0xff]
      %v1062 = vld [vmem:[#allocation2 + $0x160] sm:$0xff]
      %v1063 = vld [vmem:[#allocation2 + $0x168] sm:$0xff]
      %v1064 = vld [vmem:[#allocation2 + $0x170] sm:$0xff]
      %v1065 = vld [vmem:[#allocation2 + $0x178] sm:$0xff]
      %v1066 = vld [vmem:[#allocation2 + $0x180] sm:$0xff]
      %v1067 = vld [vmem:[#allocation2 + $0x188] sm:$0xff]
      %v1068 = vld [vmem:[#allocation2 + $0x190] sm:$0xff]
      %v1069 = vld [vmem:[#allocation2 + $0x198] sm:$0xff]
      %v1070 = vld [vmem:[#allocation2 + $0x1a0] sm:$0xff]
      %v1071 = vld [vmem:[#allocation2 + $0x1a8] sm:$0xff]
      %v1072 = vld [vmem:[#allocation2 + $0x1b0] sm:$0xff]
      %v1073 = vld [vmem:[#allocation2 + $0x1b8] sm:$0xff]
      %v1074 = vld [vmem:[#allocation2 + $0x1c0] sm:$0xff]
      %v1075 = vld [vmem:[#allocation2 + $0x1c8] sm:$0xff]
      %v1076 = vld [vmem:[#allocation2 + $0x1d0] sm:$0xff]
      %v1077 = vld [vmem:[#allocation2 + $0x1d8] sm:$0xff]
      %v1078 = vld [vmem:[#allocation2 + $0x1e0] sm:$0xff]
      %v1079 = vld [vmem:[#allocation2 + $0x1e8] sm:$0xff]
      %v1080 = vld [vmem:[#allocation2 + $0x1f0] sm:$0xff]
      %v1081 = vld [vmem:[#allocation2 + $0x1f8] sm:$0xff]
      %v1082 = vld [vmem:[%s2] sm:$0x3]
      %v1084 = vperm.slane %v1082, 0
      %v1085 = vperm.slane %v1082, 1
      %v1088 = vadd.f32 %v1018, %v1084
      %v1089 = vadd.f32 %v1019, %v1085
      %v1090 = vadd.f32 %v1020, %v1084
      %v1091 = vadd.f32 %v1021, %v1085
      %v1092 = vadd.f32 %v1022, %v1084
      %v1093 = vadd.f32 %v1023, %v1085
      %v1094 = vadd.f32 %v1024, %v1084
      %v1095 = vadd.f32 %v1025, %v1085
      %v1096 = vadd.f32 %v1026, %v1084
      %v1097 = vadd.f32 %v1027, %v1085
      %v1098 = vadd.f32 %v1028, %v1084
      %v1099 = vadd.f32 %v1029, %v1085
      %v1100 = vadd.f32 %v1030, %v1084
      %v1101 = vadd.f32 %v1031, %v1085
      %v1102 = vadd.f32 %v1032, %v1084
      %v1103 = vadd.f32 %v1033, %v1085
      %v1104 = vadd.f32 %v1034, %v1084
      %v1105 = vadd.f32 %v1035, %v1085
      %v1106 = vadd.f32 %v1036, %v1084
      %v1107 = vadd.f32 %v1037, %v1085
      %v1108 = vadd.f32 %v1038, %v1084
      %v1109 = vadd.f32 %v1039, %v1085
      %v1110 = vadd.f32 %v1040, %v1084
      %v1111 = vadd.f32 %v1041, %v1085
      %v1112 = vadd.f32 %v1042, %v1084
      %v1113 = vadd.f32 %v1043, %v1085
      %v1114 = vadd.f32 %v1044, %v1084
      %v1115 = vadd.f32 %v1045, %v1085
      %v1116 = vadd.f32 %v1046, %v1084
      %v1117 = vadd.f32 %v1047, %v1085
      %v1118 = vadd.f32 %v1048, %v1084
      %v1119 = vadd.f32 %v1049, %v1085
      %v1120 = vadd.f32 %v1050, %v1084
      %v1121 = vadd.f32 %v1051, %v1085
      %v1122 = vadd.f32 %v1052, %v1084
      %v1123 = vadd.f32 %v1053, %v1085
      %v1124 = vadd.f32 %v1054, %v1084
      %v1125 = vadd.f32 %v1055, %v1085
      %v1126 = vadd.f32 %v1056, %v1084
      %v1127 = vadd.f32 %v1057, %v1085
      %v1128 = vadd.f32 %v1058, %v1084
      %v1129 = vadd.f32 %v1059, %v1085
      %v1130 = vadd.f32 %v1060, %v1084
      %v1131 = vadd.f32 %v1061, %v1085
      %v1132 = vadd.f32 %v1062, %v1084
      %v1133 = vadd.f32 %v1063, %v1085
      %v1134 = vadd.f32 %v1064, %v1084
      %v1135 = vadd.f32 %v1065, %v1085
      %v1136 = vadd.f32 %v1066, %v1084
      %v1137 = vadd.f32 %v1067, %v1085
      %v1138 = vadd.f32 %v1068, %v1084
      %v1139 = vadd.f32 %v1069, %v1085
      %v1140 = vadd.f32 %v1070, %v1084
      %v1141 = vadd.f32 %v1071, %v1085
      %v1142 = vadd.f32 %v1072, %v1084
      %v1143 = vadd.f32 %v1073, %v1085
      %v1144 = vadd.f32 %v1074, %v1084
      %v1145 = vadd.f32 %v1075, %v1085
      %v1146 = vadd.f32 %v1076, %v1084
      %v1147 = vadd.f32 %v1077, %v1085
      %v1148 = vadd.f32 %v1078, %v1084
      %v1149 = vadd.f32 %v1079, %v1085
      %v1150 = vadd.f32 %v1080, %v1084
      %v1151 = vadd.f32 %v1081, %v1085
      %1152 = vst [vmem:[#allocation3] sm:$0xff] %v1088
      %1153 = vst [vmem:[#allocation3 + $0x8] sm:$0xff] %v1089
      %1154 = vst [vmem:[#allocation3 + $0x10] sm:$0xff] %v1090
      %1155 = vst [vmem:[#allocation3 + $0x18] sm:$0xff] %v1091
      %1156 = vst [vmem:[#allocation3 + $0x20] sm:$0xff] %v1092
      %1157 = vst [vmem:[#allocation3 + $0x28] sm:$0xff] %v1093
      %1158 = vst [vmem:[#allocation3 + $0x30] sm:$0xff] %v1094
      %1159 = vst [vmem:[#allocation3 + $0x38] sm:$0xff] %v1095
      %1160 = vst [vmem:[#allocation3 + $0x40] sm:$0xff] %v1096
      %1161 = vst [vmem:[#allocation3 + $0x48] sm:$0xff] %v1097
      %1162 = vst [vmem:[#allocation3 + $0x50] sm:$0xff] %v1098
      %1163 = vst [vmem:[#allocation3 + $0x58] sm:$0xff] %v1099
      %1164 = vst [vmem:[#allocation3 + $0x60] sm:$0xff] %v1100
      %1165 = vst [vmem:[#allocation3 + $0x68] sm:$0xff] %v1101
      %1166 = vst [vmem:[#allocation3 + $0x70] sm:$0xff] %v1102
      %1167 = vst [vmem:[#allocation3 + $0x78] sm:$0xff] %v1103
      %1168 = vst [vmem:[#allocation3 + $0x80] sm:$0xff] %v1104
      %1169 = vst [vmem:[#allocation3 + $0x88] sm:$0xff] %v1105
      %1170 = vst [vmem:[#allocation3 + $0x90] sm:$0xff] %v1106
      %1171 = vst [vmem:[#allocation3 + $0x98] sm:$0xff] %v1107
      %1172 = vst [vmem:[#allocation3 + $0xa0] sm:$0xff] %v1108
      %1173 = vst [vmem:[#allocation3 + $0xa8] sm:$0xff] %v1109
      %1174 = vst [vmem:[#allocation3 + $0xb0] sm:$0xff] %v1110
      %1175 = vst [vmem:[#allocation3 + $0xb8] sm:$0xff] %v1111
      %1176 = vst [vmem:[#allocation3 + $0xc0] sm:$0xff] %v1112
      %1177 = vst [vmem:[#allocation3 + $0xc8] sm:$0xff] %v1113
      %1178 = vst [vmem:[#allocation3 + $0xd0] sm:$0xff] %v1114
      %1179 = vst [vmem:[#allocation3 + $0xd8] sm:$0xff] %v1115
      %1180 = vst [vmem:[#allocation3 + $0xe0] sm:$0xff] %v1116
      %1181 = vst [vmem:[#allocation3 + $0xe8] sm:$0xff] %v1117
      %1182 = vst [vmem:[#allocation3 + $0xf0] sm:$0xff] %v1118
      %1183 = vst [vmem:[#allocation3 + $0xf8] sm:$0xff] %v1119
      %1184 = vst [vmem:[#allocation3 + $0x100] sm:$0xff] %v1120
      %1185 = vst [vmem:[#allocation3 + $0x108] sm:$0xff] %v1121
      %1186 = vst [vmem:[#allocation3 + $0x110] sm:$0xff] %v1122
      %1187 = vst [vmem:[#allocation3 + $0x118] sm:$0xff] %v1123
      %1188 = vst [vmem:[#allocation3 + $0x120] sm:$0xff] %v1124
      %1189 = vst [vmem:[#allocation3 + $0x128] sm:$0xff] %v1125
      %1190 = vst [vmem:[#allocation3 + $0x130] sm:$0xff] %v1126
      %1191 = vst [vmem:[#allocation3 + $0x138] sm:$0xff] %v1127
      %1192 = vst [vmem:[#allocation3 + $0x140] sm:$0xff] %v1128
      %1193 = vst [vmem:[#allocation3 + $0x148] sm:$0xff] %v1129
      %1194 = vst [vmem:[#allocation3 + $0x150] sm:$0xff] %v1130
      %1195 = vst [vmem:[#allocation3 + $0x158] sm:$0xff] %v1131
      %1196 = vst [vmem:[#allocation3 + $0x160] sm:$0xff] %v1132
      %1197 = vst [vmem:[#allocation3 + $0x168] sm:$0xff] %v1133
      %1198 = vst [vmem:[#allocation3 + $0x170] sm:$0xff] %v1134
      %1199 = vst [vmem:[#allocation3 + $0x178] sm:$0xff] %v1135
      %1200 = vst [vmem:[#allocation3 + $0x180] sm:$0xff] %v1136
      %1201 = vst [vmem:[#allocation3 + $0x188] sm:$0xff] %v1137
      %1202 = vst [vmem:[#allocation3 + $0x190] sm:$0xff] %v1138
      %1203 = vst [vmem:[#allocation3 + $0x198] sm:$0xff] %v1139
      %1204 = vst [vmem:[#allocation3 + $0x1a0] sm:$0xff] %v1140
      %1205 = vst [vmem:[#allocation3 + $0x1a8] sm:$0xff] %v1141
      %1206 = vst [vmem:[#allocation3 + $0x1b0] sm:$0xff] %v1142
      %1207 = vst [vmem:[#allocation3 + $0x1b8] sm:$0xff] %v1143
      %1208 = vst [vmem:[#allocation3 + $0x1c0] sm:$0xff] %v1144
      %1209 = vst [vmem:[#allocation3 + $0x1c8] sm:$0xff] %v1145
      %1210 = vst [vmem:[#allocation3 + $0x1d0] sm:$0xff] %v1146
      %1211 = vst [vmem:[#allocation3 + $0x1d8] sm:$0xff] %v1147
      %1212 = vst [vmem:[#allocation3 + $0x1e0] sm:$0xff] %v1148
      %1213 = vst [vmem:[#allocation3 + $0x1e8] sm:$0xff] %v1149
      %1214 = vst [vmem:[#allocation3 + $0x1f0] sm:$0xff] %v1150
      %1215 = vst [vmem:[#allocation3 + $0x1f8] sm:$0xff] %v1151
    $region21: #{self_attention_forward.5} parent=1 // pred_fallthru
      _
    // Predicated region
    $region22: #{self_attention_forward.5} parent=1 // pred_check
      _
    $region23: #{self_attention_forward.5} parent=1 // pred_check_branch
      %1217 = sbr.rel (0) target = $region25
    $region24: #{self_attention_forward.5} parent=1 // pred_region
      %1219 = vsyncadd [#allocation4], 0
      %s1220 = sshll.u32 [#allocation3], 4
      %s1221 = int_to_ptr.vmem [resolvable:$true] %s1220
      %s1222 = sshll.u32 %s3, 4
      %s1223 = int_to_ptr.hbm [resolvable:$true] %s1222
      %1228 = dma.vmem_to_hbm [thread:$0]  %s1221, 8192, %s1223, [#allocation4], 256, 256, 16
    $region25: #{self_attention_forward.5} parent=1 // pred_fallthru
      _
    // Predicated region
    $region26: #{self_attention_forward.5} parent=1 // pred_check
      _
    $region27: #{self_attention_forward.5} parent=1 // pred_check_branch
      %1230 = sbr.rel (0) target = $region29
    $region28: #{self_attention_forward.5} parent=1 // pred_region
      %1232 = dma.done [#allocation4], 8192
    $region29: #{self_attention_forward.5} parent=1 // pred_fallthru
      _
    %1233 = vsyncpa [#allocation4], 1

// kernel: self_attention_forward.3
$region0: #{self_attention_forward.3}
  #allocation0 [shape = 'u32[]', space=smem, size = 0x4, offset = 0x4, fixed_abs, tag = 'smem constant byte address 0x4 - core index']
  #allocation1 [shape = 'u32[72,128]{1,0:T(1,128)}', space=vmem, size = 0x9000, scoped, tag = 'internal scratch']
  #allocation2 [shape = 'f32[256,256]{1,0:T(8,128)}', space=vmem, size = 0x40000, scoped, tag = 'scratch operand']
  %s0 = inlined_call_operand.vmem [shape: bf16[256,256], index: 0, kind: input, shape index: {}]
  %s1 = inlined_call_operand.hbm [shape: bf16[256,768], index: 1, kind: input, shape index: {}]
  %s2 = inlined_call_operand.vmem [shape: f32[1,768], index: 2, kind: input, shape index: {}]
  %s3 = inlined_call_operand.vmem [shape: bf16[256,768], index: 3, kind: output, shape index: {}]
  %s4 = sld [smem:[#allocation0]]
  $region91: #{self_attention_forward.3} parent=0
    _
  %s6 = ssub.s32 1, %s4
  %s7 = scalar_select 0, %s6, %s4
  $region1: #{self_attention_forward.3} parent=0
    #allocation3 [shape = 'u8[262144]{0}', space=vmem, size = 0x40000, scoped, tag = 'input window, operand 1']
    #allocation4 [shape = 's32[2]{0}', space=sflag, size = 0x8, scoped, tag = 'scoped memory for self_attention_forward.3']
    #allocation5 [shape = 'u8[262144]{0}', space=vmem, size = 0x40000, scoped, tag = 'output window, operand 0']
    %8 = vsyncpa [#allocation4], 0
    %s9 = scalar_lea.sflag [#allocation4], 1
    %10 = vsyncpa %s9, 0
    loop: start=0, step=1, limit=5
    $region2: #{self_attention_forward.3} parent=1 // loop_pre_header
      _
    $region3: #{self_attention_forward.3} parent=1 // loop_header
      %s12 = sphi 0, %s16
      %p13 = scmp.ge.s32.totalorder %s12, 5
      %s19 = sphi 0, %s38
      %s20 = sphi 0, %s34
      %s21 = sphi 0, %s30
      %s22 = sphi 0, %s19
      %s23 = sphi 0, %s20
      %s24 = sphi 0, %s21
      %s25 = sphi 0, %s22
      %s26 = sphi 0, %s23
      %s27 = sphi 0, %s24
      %s43 = sphi 0, %s45
      %s46 = sphi 0, %s43
      %s47 = sphi 0, %s46
      %s63 = sphi 0, %s47
      %s71 = sphi 0, %s73
      %s74 = sphi 0, %s71
      %s75 = sphi 0, %s74
      %s91 = sphi 0, %s75
      %s97 = sphi 0, %s99
      %s100 = sphi 0, %s97
      %s101 = sphi 0, %s100
      %s117 = sphi 0, %s101
      %s125 = sphi 0, %s127
      %s128 = sphi 0, %s125
      %s129 = sphi 0, %s128
      %s145 = sphi 0, %s129
    $region4: #{self_attention_forward.3} parent=1 // loop_header_branch
      %15 = sbr.rel (%p13) target = $region8
    $region5: #{self_attention_forward.3} parent=1 // loop_body
      %s17 = ssub.s32 %s12, 1
      %s18 = ssub.s32 %s12, 2
      %s28 = sadd.s32 1, %s21
      %p29 = scmp.ge.s32.totalorder %s28, 1
      %s30 = scalar_select %p29, 0, %s28
      %s31 = sadd.s32 1, %s20
      %s32 = scalar_select %p29, %s31, %s20
      %p33 = scmp.ge.s32.totalorder %s32, 3
      %s34 = scalar_select %p33, 0, %s32
      %s35 = sadd.s32 1, %s19
      %s36 = scalar_select %p33, %s35, %s19
      %p37 = scmp.ge.s32.totalorder %s36, 1
      %s38 = scalar_select %p37, 0, %s36
      %s39 = ssub.s32 %s19, %s38
      %s40 = ssub.s32 %s21, %s30
      %s41 = sor.u32 %s39, %s40
      %p42 = scmp.eq.s32.totalorder %s41, 0
      %s44 = sadd.s32 %s43, 1
      %s45 = scalar_select %p42, %s43, %s44
      %p48 = pneg %p42
      %p49 = scmp.eq.s32.totalorder %s12, 2
      %p50 = por %p48, %p49
      %p51 = scmp.ne.s32.totalorder %s43, %s46
      %p52 = scmp.eq.s32.totalorder %s12, 0
      %p53 = por %p51, %p52
      %p54 = scmp.ne.s32.totalorder %s43, %s46
      %p55 = scmp.eq.s32.totalorder %s17, 2
      %p56 = por %p54, %p55
      %p57 = scmp.ne.s32.totalorder %s46, %s47
      %p58 = scmp.eq.s32.totalorder %s17, 0
      %p59 = por %p57, %p58
      %p60 = scmp.ne.s32.totalorder %s46, %s47
      %p61 = scmp.eq.s32.totalorder %s18, 2
      %p62 = por %p60, %p61
      %p64 = scmp.ne.s32.totalorder %s47, %s63
      %p65 = scmp.eq.s32.totalorder %s18, 0
      %p66 = por %p64, %p65
      %s67 = ssub.s32 %s21, %s30
      %s68 = ssub.s32 %s20, %s34
      %s69 = sor.u32 %s67, %s68
      %p70 = scmp.eq.s32.totalorder %s69, 0
      %s72 = sadd.s32 %s71, 1
      %s73 = scalar_select %p70, %s71, %s72
      %p76 = pneg %p70
      %p77 = scmp.eq.s32.totalorder %s12, 2
      %p78 = por %p76, %p77
      %p79 = scmp.ne.s32.totalorder %s71, %s74
      %p80 = scmp.eq.s32.totalorder %s12, 0
      %p81 = por %p79, %p80
      %p82 = scmp.ne.s32.totalorder %s71, %s74
      %p83 = scmp.eq.s32.totalorder %s17, 2
      %p84 = por %p82, %p83
      %p85 = scmp.ne.s32.totalorder %s74, %s75
      %p86 = scmp.eq.s32.totalorder %s17, 0
      %p87 = por %p85, %p86
      %p88 = scmp.ne.s32.totalorder %s74, %s75
      %p89 = scmp.eq.s32.totalorder %s18, 2
      %p90 = por %p88, %p89
      %p92 = scmp.ne.s32.totalorder %s75, %s91
      %p93 = scmp.eq.s32.totalorder %s18, 0
      %p94 = por %p92, %p93
      %s95 = ssub.s32 %s20, %s34
      %p96 = scmp.eq.s32.totalorder %s95, 0
      %s98 = sadd.s32 %s97, 1
      %s99 = scalar_select %p96, %s97, %s98
      %p102 = pneg %p96
      %p103 = scmp.eq.s32.totalorder %s12, 2
      %p104 = por %p102, %p103
      %p105 = scmp.ne.s32.totalorder %s97, %s100
      %p106 = scmp.eq.s32.totalorder %s12, 0
      %p107 = por %p105, %p106
      %p108 = scmp.ne.s32.totalorder %s97, %s100
      %p109 = scmp.eq.s32.totalorder %s17, 2
      %p110 = por %p108, %p109
      %p111 = scmp.ne.s32.totalorder %s100, %s101
      %p112 = scmp.eq.s32.totalorder %s17, 0
      %p113 = por %p111, %p112
      %p114 = scmp.ne.s32.totalorder %s100, %s101
      %p115 = scmp.eq.s32.totalorder %s18, 2
      %p116 = por %p114, %p115
      %p118 = scmp.ne.s32.totalorder %s101, %s117
      %p119 = scmp.eq.s32.totalorder %s18, 0
      %p120 = por %p118, %p119
      %s121 = ssub.s32 %s19, %s38
      %s122 = ssub.s32 %s20, %s34
      %s123 = sor.u32 %s121, %s122
      %p124 = scmp.eq.s32.totalorder %s123, 0
      %s126 = sadd.s32 %s125, 1
      %s127 = scalar_select %p124, %s125, %s126
      %p130 = pneg %p124
      %p131 = scmp.eq.s32.totalorder %s12, 2
      %p132 = por %p130, %p131
      %p133 = scmp.ne.s32.totalorder %s125, %s128
      %p134 = scmp.eq.s32.totalorder %s12, 0
      %p135 = por %p133, %p134
      %p136 = scmp.ne.s32.totalorder %s125, %s128
      %p137 = scmp.eq.s32.totalorder %s17, 2
      %p138 = por %p136, %p137
      %p139 = scmp.ne.s32.totalorder %s128, %s129
      %p140 = scmp.eq.s32.totalorder %s17, 0
      %p141 = por %p139, %p140
      %p142 = scmp.ne.s32.totalorder %s128, %s129
      %p143 = scmp.eq.s32.totalorder %s18, 2
      %p144 = por %p142, %p143
      %p146 = scmp.ne.s32.totalorder %s129, %s145
      %p147 = scmp.eq.s32.totalorder %s18, 0
      %p148 = por %p146, %p147
      %p149 = scmp.le.s32.totalorder 1, %s12
      %p150 = scmp.lt.s32.totalorder %s12, 4
      %p151 = pnand %p149, %p150
      %p152 = pneg %p151
      // Predicated region
      $region9: #{self_attention_forward.3} parent=5 // pred_check
        _
      $region10: #{self_attention_forward.3} parent=5 // pred_check_branch
        %154 = sbr.rel (%p151) target = $region12
      $region11: #{self_attention_forward.3} parent=5 // pred_region
        %s155 = ssub.s32 %s12, 1
        // Predicated region
        $region13: #{self_attention_forward.3} parent=11 // pred_check
          %p156 = pneg %p59
        $region14: #{self_attention_forward.3} parent=11 // pred_check_branch
          %158 = sbr.rel (%p156) target = $region16
        $region15: #{self_attention_forward.3} parent=11 // pred_region
          %s159 = smul.u32 32, %s22
          %s160 = smul.u32 2, %s24
          %p161 = scmp.lt.s32.totalorder %s159, 31
          %s162 = scalar_select %p161, %s159, 31
          %p163 = scmp.lt.s32.totalorder %s160, 1
          %s164 = scalar_select %p163, %s160, 1
          %s165 = smul.addr %s162, 2
          %s166 = sadd.s32 %s164, %s165
          %s167 = smul.addr %s166, 4
          %s168 = scalar_lea.vmem %s0, %s167
          %s169 = smul.u32 32, %s22
          %s170 = smul.u32 2, %s24
        $region16: #{self_attention_forward.3} parent=11 // pred_fallthru
          _
      $region12: #{self_attention_forward.3} parent=5 // pred_fallthru
        _
      %p171 = scmp.lt.s32.totalorder %s12, 3
      // Predicated region
      $region17: #{self_attention_forward.3} parent=5 // pred_check
        %p172 = pneg %p171
      $region18: #{self_attention_forward.3} parent=5 // pred_check_branch
        %174 = sbr.rel (%p172) target = $region20
      $region19: #{self_attention_forward.3} parent=5 // pred_region
        // Predicated region
        $region21: #{self_attention_forward.3} parent=19 // pred_check
          %p175 = pneg %p81
        $region22: #{self_attention_forward.3} parent=19 // pred_check_branch
          %177 = sbr.rel (%p175) target = $region24
        $region23: #{self_attention_forward.3} parent=19 // pred_region
          %s178 = sand.u32 %s71, 1
          %s179 = scalar_lea.sflag [#allocation4], %s178
          %s180 = sand.u32 %s71, 1
          %s181 = smul.addr %s180, 256
          %s182 = scalar_lea.vmem [#allocation3], %s181
          %s183 = smul.u32 32, %s21
          %s184 = smul.u32 2, %s20
          %186 = vsyncadd %s179, 0
          %s187 = smul.addr %s183, 6
          %s188 = sadd.s32 %s184, %s187
          %s189 = smul.addr %s188, 4
          %s190 = scalar_lea.hbm %s1, %s189
          %s191 = sshll.u32 %s190, 4
          %s192 = int_to_ptr.hbm [resolvable:$true] %s191
          %s193 = sshll.u32 %s182, 4
          %s194 = int_to_ptr.vmem [resolvable:$true] %s193
          %199 = dma.hbm_to_vmem [thread:$0]  %s192, 4096, %s194, %s179, 384, 128, 8
        $region24: #{self_attention_forward.3} parent=19 // pred_fallthru
          _
        // Predicated region
        $region25: #{self_attention_forward.3} parent=19 // pred_check
          %p200 = pneg %p107
        $region26: #{self_attention_forward.3} parent=19 // pred_check_branch
          %202 = sbr.rel (%p200) target = $region28
        $region27: #{self_attention_forward.3} parent=19 // pred_region
          %s203 = smul.u32 2, %s20
          %p204 = scmp.lt.s32.totalorder %s203, 5
          %s205 = scalar_select %p204, %s203, 5
          %s206 = scalar_lea.vmem %s2, %s205
          %s207 = smul.u32 2, %s20
        $region28: #{self_attention_forward.3} parent=19 // pred_fallthru
          _
      $region20: #{self_attention_forward.3} parent=5 // pred_fallthru
        _
      %p208 = scmp.le.s32.totalorder 1, %s12
      %p209 = scmp.lt.s32.totalorder %s12, 4
      %p210 = pnand %p208, %p209
      %p211 = pneg %p210
      // Predicated region
      $region29: #{self_attention_forward.3} parent=5 // pred_check
        _
      $region30: #{self_attention_forward.3} parent=5 // pred_check_branch
        %213 = sbr.rel (%p210) target = $region32
      $region31: #{self_attention_forward.3} parent=5 // pred_region
        %s214 = ssub.s32 %s12, 1
        %s215 = sand.u32 %s74, 1
        %s216 = scalar_lea.sflag [#allocation4], %s215
        %s217 = sand.u32 %s74, 1
        %s218 = smul.addr %s217, 256
        %s219 = scalar_lea.vmem [#allocation3], %s218
        // Predicated region
        $region33: #{self_attention_forward.3} parent=31 // pred_check
          %p220 = pneg %p87
        $region34: #{self_attention_forward.3} parent=31 // pred_check_branch
          %222 = sbr.rel (%p220) target = $region36
        $region35: #{self_attention_forward.3} parent=31 // pred_region
          %224 = dma.done %s216, 4096
        $region36: #{self_attention_forward.3} parent=31 // pred_fallthru
          _
        %s225 = smul.u32 32, %s22
        %s226 = smul.u32 2, %s24
        %p227 = scmp.lt.s32.totalorder %s225, 31
        %s228 = scalar_select %p227, %s225, 31
        %p229 = scmp.lt.s32.totalorder %s226, 1
        %s230 = scalar_select %p229, %s226, 1
        %s231 = smul.addr %s228, 2
        %s232 = sadd.s32 %s230, %s231
        %s233 = smul.addr %s232, 4
        %s234 = scalar_lea.vmem %s0, %s233
        %p235 = pneg %p59
        %p236 = pneg %p56
        %s237 = sand.u32 %s74, 1
        %s238 = scalar_lea.sflag [#allocation4], %s237
        %s239 = sand.u32 %s74, 1
        %s240 = smul.addr %s239, 256
        %s241 = scalar_lea.vmem [#allocation3], %s240
        %p242 = pneg %p87
        %p243 = pneg %p84
        %s244 = smul.u32 2, %s23
        %p245 = scmp.lt.s32.totalorder %s244, 5
        %s246 = scalar_select %p245, %s244, 5
        %s247 = scalar_lea.vmem %s2, %s246
        %p248 = pneg %p113
        %p249 = pneg %p110
        %p250 = pneg %p141
        %p251 = pneg %p138
        %s252 = sand.u32 %s128, 1
        %s253 = sand.u32 %s128, 1
        %s254 = smul.addr %s253, 256
        %s255 = scalar_lea.vmem [#allocation5], %s254
        %s256 = smul.u32 32, %s22
        %s257 = smul.u32 2, %s24
        %p258 = scmp.lt.s32.totalorder %s256, 31
        %s259 = scalar_select %p258, %s256, 31
        %p260 = scmp.lt.s32.totalorder %s257, 1
        %s261 = scalar_select %p260, %s257, 1
        %s262 = smul.addr %s259, 2
        %s263 = sadd.s32 %s261, %s262
        %s264 = smul.addr %s263, 4
        %s265 = scalar_lea.vmem %s0, %s264
        %s266 = smul.u32 32, %s22
        %s267 = smul.u32 2, %s24
        %s268 = smul.u32 32, %s24
        %s269 = smul.u32 2, %s23
        %s270 = smul.u32 2, %s23
        %p271 = scmp.lt.s32.totalorder %s270, 5
        %s272 = scalar_select %p271, %s270, 5
        %s273 = scalar_lea.vmem %s2, %s272
        %s274 = smul.u32 2, %s23
        %s275 = smul.u32 32, %s22
        %s276 = smul.u32 2, %s23
        %p277 = scmp.eq.s32.totalorder %s24, 0
        // Predicated region
        $region37: #{self_attention_forward.3} parent=31 // pred_check
          %p278 = pneg %p277
        $region38: #{self_attention_forward.3} parent=31 // pred_check_branch
          %280 = sbr.rel (%p278) target = $region40
        $region39: #{self_attention_forward.3} parent=31 // pred_region
          %281 = vst [vmem:[#allocation2] sm:$0xff] 0.0
          %282 = vst [vmem:[#allocation2 + $0x8] sm:$0xff] 0.0
          %283 = vst [vmem:[#allocation2 + $0x10] sm:$0xff] 0.0
          %284 = vst [vmem:[#allocation2 + $0x18] sm:$0xff] 0.0
          %285 = vst [vmem:[#allocation2 + $0x20] sm:$0xff] 0.0
          %286 = vst [vmem:[#allocation2 + $0x28] sm:$0xff] 0.0
          %287 = vst [vmem:[#allocation2 + $0x30] sm:$0xff] 0.0
          %288 = vst [vmem:[#allocation2 + $0x38] sm:$0xff] 0.0
          %289 = vst [vmem:[#allocation2 + $0x40] sm:$0xff] 0.0
          %290 = vst [vmem:[#allocation2 + $0x48] sm:$0xff] 0.0
          %291 = vst [vmem:[#allocation2 + $0x50] sm:$0xff] 0.0
          %292 = vst [vmem:[#allocation2 + $0x58] sm:$0xff] 0.0
          %293 = vst [vmem:[#allocation2 + $0x60] sm:$0xff] 0.0
          %294 = vst [vmem:[#allocation2 + $0x68] sm:$0xff] 0.0
          %295 = vst [vmem:[#allocation2 + $0x70] sm:$0xff] 0.0
          %296 = vst [vmem:[#allocation2 + $0x78] sm:$0xff] 0.0
          %297 = vst [vmem:[#allocation2 + $0x80] sm:$0xff] 0.0
          %298 = vst [vmem:[#allocation2 + $0x88] sm:$0xff] 0.0
          %299 = vst [vmem:[#allocation2 + $0x90] sm:$0xff] 0.0
          %300 = vst [vmem:[#allocation2 + $0x98] sm:$0xff] 0.0
          %301 = vst [vmem:[#allocation2 + $0xa0] sm:$0xff] 0.0
          %302 = vst [vmem:[#allocation2 + $0xa8] sm:$0xff] 0.0
          %303 = vst [vmem:[#allocation2 + $0xb0] sm:$0xff] 0.0
          %304 = vst [vmem:[#allocation2 + $0xb8] sm:$0xff] 0.0
          %305 = vst [vmem:[#allocation2 + $0xc0] sm:$0xff] 0.0
          %306 = vst [vmem:[#allocation2 + $0xc8] sm:$0xff] 0.0
          %307 = vst [vmem:[#allocation2 + $0xd0] sm:$0xff] 0.0
          %308 = vst [vmem:[#allocation2 + $0xd8] sm:$0xff] 0.0
          %309 = vst [vmem:[#allocation2 + $0xe0] sm:$0xff] 0.0
          %310 = vst [vmem:[#allocation2 + $0xe8] sm:$0xff] 0.0
          %311 = vst [vmem:[#allocation2 + $0xf0] sm:$0xff] 0.0
          %312 = vst [vmem:[#allocation2 + $0xf8] sm:$0xff] 0.0
          %313 = vst [vmem:[#allocation2 + $0x100] sm:$0xff] 0.0
          %314 = vst [vmem:[#allocation2 + $0x108] sm:$0xff] 0.0
          %315 = vst [vmem:[#allocation2 + $0x110] sm:$0xff] 0.0
          %316 = vst [vmem:[#allocation2 + $0x118] sm:$0xff] 0.0
          %317 = vst [vmem:[#allocation2 + $0x120] sm:$0xff] 0.0
          %318 = vst [vmem:[#allocation2 + $0x128] sm:$0xff] 0.0
          %319 = vst [vmem:[#allocation2 + $0x130] sm:$0xff] 0.0
          %320 = vst [vmem:[#allocation2 + $0x138] sm:$0xff] 0.0
          %321 = vst [vmem:[#allocation2 + $0x140] sm:$0xff] 0.0
          %322 = vst [vmem:[#allocation2 + $0x148] sm:$0xff] 0.0
          %323 = vst [vmem:[#allocation2 + $0x150] sm:$0xff] 0.0
          %324 = vst [vmem:[#allocation2 + $0x158] sm:$0xff] 0.0
          %325 = vst [vmem:[#allocation2 + $0x160] sm:$0xff] 0.0
          %326 = vst [vmem:[#allocation2 + $0x168] sm:$0xff] 0.0
          %327 = vst [vmem:[#allocation2 + $0x170] sm:$0xff] 0.0
          %328 = vst [vmem:[#allocation2 + $0x178] sm:$0xff] 0.0
          %329 = vst [vmem:[#allocation2 + $0x180] sm:$0xff] 0.0
          %330 = vst [vmem:[#allocation2 + $0x188] sm:$0xff] 0.0
          %331 = vst [vmem:[#allocation2 + $0x190] sm:$0xff] 0.0
          %332 = vst [vmem:[#allocation2 + $0x198] sm:$0xff] 0.0
          %333 = vst [vmem:[#allocation2 + $0x1a0] sm:$0xff] 0.0
          %334 = vst [vmem:[#allocation2 + $0x1a8] sm:$0xff] 0.0
          %335 = vst [vmem:[#allocation2 + $0x1b0] sm:$0xff] 0.0
          %336 = vst [vmem:[#allocation2 + $0x1b8] sm:$0xff] 0.0
          %337 = vst [vmem:[#allocation2 + $0x1c0] sm:$0xff] 0.0
          %338 = vst [vmem:[#allocation2 + $0x1c8] sm:$0xff] 0.0
          %339 = vst [vmem:[#allocation2 + $0x1d0] sm:$0xff] 0.0
          %340 = vst [vmem:[#allocation2 + $0x1d8] sm:$0xff] 0.0
          %341 = vst [vmem:[#allocation2 + $0x1e0] sm:$0xff] 0.0
          %342 = vst [vmem:[#allocation2 + $0x1e8] sm:$0xff] 0.0
          %343 = vst [vmem:[#allocation2 + $0x1f0] sm:$0xff] 0.0
          %344 = vst [vmem:[#allocation2 + $0x1f8] sm:$0xff] 0.0
        $region40: #{self_attention_forward.3} parent=31 // pred_fallthru
          _
        %v345 = vld [vmem:[#allocation2] sm:$0xff]
        %v346 = vld [vmem:[#allocation2 + $0x8] sm:$0xff]
        %v347 = vld [vmem:[#allocation2 + $0x10] sm:$0xff]
        %v348 = vld [vmem:[#allocation2 + $0x18] sm:$0xff]
        %v349 = vld [vmem:[#allocation2 + $0x20] sm:$0xff]
        %v350 = vld [vmem:[#allocation2 + $0x28] sm:$0xff]
        %v351 = vld [vmem:[#allocation2 + $0x30] sm:$0xff]
        %v352 = vld [vmem:[#allocation2 + $0x38] sm:$0xff]
        %v353 = vld [vmem:[#allocation2 + $0x40] sm:$0xff]
        %v354 = vld [vmem:[#allocation2 + $0x48] sm:$0xff]
        %v355 = vld [vmem:[#allocation2 + $0x50] sm:$0xff]
        %v356 = vld [vmem:[#allocation2 + $0x58] sm:$0xff]
        %v357 = vld [vmem:[#allocation2 + $0x60] sm:$0xff]
        %v358 = vld [vmem:[#allocation2 + $0x68] sm:$0xff]
        %v359 = vld [vmem:[#allocation2 + $0x70] sm:$0xff]
        %v360 = vld [vmem:[#allocation2 + $0x78] sm:$0xff]
        %v361 = vld [vmem:[#allocation2 + $0x80] sm:$0xff]
        %v362 = vld [vmem:[#allocation2 + $0x88] sm:$0xff]
        %v363 = vld [vmem:[#allocation2 + $0x90] sm:$0xff]
        %v364 = vld [vmem:[#allocation2 + $0x98] sm:$0xff]
        %v365 = vld [vmem:[#allocation2 + $0xa0] sm:$0xff]
        %v366 = vld [vmem:[#allocation2 + $0xa8] sm:$0xff]
        %v367 = vld [vmem:[#allocation2 + $0xb0] sm:$0xff]
        %v368 = vld [vmem:[#allocation2 + $0xb8] sm:$0xff]
        %v369 = vld [vmem:[#allocation2 + $0xc0] sm:$0xff]
        %v370 = vld [vmem:[#allocation2 + $0xc8] sm:$0xff]
        %v371 = vld [vmem:[#allocation2 + $0xd0] sm:$0xff]
        %v372 = vld [vmem:[#allocation2 + $0xd8] sm:$0xff]
        %v373 = vld [vmem:[#allocation2 + $0xe0] sm:$0xff]
        %v374 = vld [vmem:[#allocation2 + $0xe8] sm:$0xff]
        %v375 = vld [vmem:[#allocation2 + $0xf0] sm:$0xff]
        %v376 = vld [vmem:[#allocation2 + $0xf8] sm:$0xff]
        %v377 = vld [vmem:[#allocation2 + $0x100] sm:$0xff]
        %v378 = vld [vmem:[#allocation2 + $0x108] sm:$0xff]
        %v379 = vld [vmem:[#allocation2 + $0x110] sm:$0xff]
        %v380 = vld [vmem:[#allocation2 + $0x118] sm:$0xff]
        %v381 = vld [vmem:[#allocation2 + $0x120] sm:$0xff]
        %v382 = vld [vmem:[#allocation2 + $0x128] sm:$0xff]
        %v383 = vld [vmem:[#allocation2 + $0x130] sm:$0xff]
        %v384 = vld [vmem:[#allocation2 + $0x138] sm:$0xff]
        %v385 = vld [vmem:[#allocation2 + $0x140] sm:$0xff]
        %v386 = vld [vmem:[#allocation2 + $0x148] sm:$0xff]
        %v387 = vld [vmem:[#allocation2 + $0x150] sm:$0xff]
        %v388 = vld [vmem:[#allocation2 + $0x158] sm:$0xff]
        %v389 = vld [vmem:[#allocation2 + $0x160] sm:$0xff]
        %v390 = vld [vmem:[#allocation2 + $0x168] sm:$0xff]
        %v391 = vld [vmem:[#allocation2 + $0x170] sm:$0xff]
        %v392 = vld [vmem:[#allocation2 + $0x178] sm:$0xff]
        %v393 = vld [vmem:[#allocation2 + $0x180] sm:$0xff]
        %v394 = vld [vmem:[#allocation2 + $0x188] sm:$0xff]
        %v395 = vld [vmem:[#allocation2 + $0x190] sm:$0xff]
        %v396 = vld [vmem:[#allocation2 + $0x198] sm:$0xff]
        %v397 = vld [vmem:[#allocation2 + $0x1a0] sm:$0xff]
        %v398 = vld [vmem:[#allocation2 + $0x1a8] sm:$0xff]
        %v399 = vld [vmem:[#allocation2 + $0x1b0] sm:$0xff]
        %v400 = vld [vmem:[#allocation2 + $0x1b8] sm:$0xff]
        %v401 = vld [vmem:[#allocation2 + $0x1c0] sm:$0xff]
        %v402 = vld [vmem:[#allocation2 + $0x1c8] sm:$0xff]
        %v403 = vld [vmem:[#allocation2 + $0x1d0] sm:$0xff]
        %v404 = vld [vmem:[#allocation2 + $0x1d8] sm:$0xff]
        %v405 = vld [vmem:[#allocation2 + $0x1e0] sm:$0xff]
        %v406 = vld [vmem:[#allocation2 + $0x1e8] sm:$0xff]
        %v407 = vld [vmem:[#allocation2 + $0x1f0] sm:$0xff]
        %v408 = vld [vmem:[#allocation2 + $0x1f8] sm:$0xff]
        %v409 = vld [vmem:[%s265] sm:$0xff]
        %v410 = vld [vmem:[%s265 + $0x8] sm:$0xff]
        %v411 = vld [vmem:[%s265 + $0x10] sm:$0xff]
        %v412 = vld [vmem:[%s265 + $0x18] sm:$0xff]
        %v413 = vld [vmem:[%s265 + $0x20] sm:$0xff]
        %v414 = vld [vmem:[%s265 + $0x28] sm:$0xff]
        %v415 = vld [vmem:[%s265 + $0x30] sm:$0xff]
        %v416 = vld [vmem:[%s265 + $0x38] sm:$0xff]
        %v417 = vld [vmem:[%s265 + $0x40] sm:$0xff]
        %v418 = vld [vmem:[%s265 + $0x48] sm:$0xff]
        %v419 = vld [vmem:[%s265 + $0x50] sm:$0xff]
        %v420 = vld [vmem:[%s265 + $0x58] sm:$0xff]
        %v421 = vld [vmem:[%s265 + $0x60] sm:$0xff]
        %v422 = vld [vmem:[%s265 + $0x68] sm:$0xff]
        %v423 = vld [vmem:[%s265 + $0x70] sm:$0xff]
        %v424 = vld [vmem:[%s265 + $0x78] sm:$0xff]
        %v425 = vld [vmem:[%s265 + $0x80] sm:$0xff]
        %v426 = vld [vmem:[%s265 + $0x88] sm:$0xff]
        %v427 = vld [vmem:[%s265 + $0x90] sm:$0xff]
        %v428 = vld [vmem:[%s265 + $0x98] sm:$0xff]
        %v429 = vld [vmem:[%s265 + $0xa0] sm:$0xff]
        %v430 = vld [vmem:[%s265 + $0xa8] sm:$0xff]
        %v431 = vld [vmem:[%s265 + $0xb0] sm:$0xff]
        %v432 = vld [vmem:[%s265 + $0xb8] sm:$0xff]
        %v433 = vld [vmem:[%s265 + $0xc0] sm:$0xff]
        %v434 = vld [vmem:[%s265 + $0xc8] sm:$0xff]
        %v435 = vld [vmem:[%s265 + $0xd0] sm:$0xff]
        %v436 = vld [vmem:[%s265 + $0xd8] sm:$0xff]
        %v437 = vld [vmem:[%s265 + $0xe0] sm:$0xff]
        %v438 = vld [vmem:[%s265 + $0xe8] sm:$0xff]
        %v439 = vld [vmem:[%s265 + $0xf0] sm:$0xff]
        %v440 = vld [vmem:[%s265 + $0xf8] sm:$0xff]
        %v441 = vld [vmem:[%s219] sm:$0xff]
        %v442 = vld [vmem:[%s219 + $0x8] sm:$0xff]
        %v443 = vld [vmem:[%s219 + $0x10] sm:$0xff]
        %v444 = vld [vmem:[%s219 + $0x18] sm:$0xff]
        %v445 = vld [vmem:[%s219 + $0x20] sm:$0xff]
        %v446 = vld [vmem:[%s219 + $0x28] sm:$0xff]
        %v447 = vld [vmem:[%s219 + $0x30] sm:$0xff]
        %v448 = vld [vmem:[%s219 + $0x38] sm:$0xff]
        %v449 = vld [vmem:[%s219 + $0x40] sm:$0xff]
        %v450 = vld [vmem:[%s219 + $0x48] sm:$0xff]
        %v451 = vld [vmem:[%s219 + $0x50] sm:$0xff]
        %v452 = vld [vmem:[%s219 + $0x58] sm:$0xff]
        %v453 = vld [vmem:[%s219 + $0x60] sm:$0xff]
        %v454 = vld [vmem:[%s219 + $0x68] sm:$0xff]
        %v455 = vld [vmem:[%s219 + $0x70] sm:$0xff]
        %v456 = vld [vmem:[%s219 + $0x78] sm:$0xff]
        %v457 = vld [vmem:[%s219 + $0x80] sm:$0xff]
        %v458 = vld [vmem:[%s219 + $0x88] sm:$0xff]
        %v459 = vld [vmem:[%s219 + $0x90] sm:$0xff]
        %v460 = vld [vmem:[%s219 + $0x98] sm:$0xff]
        %v461 = vld [vmem:[%s219 + $0xa0] sm:$0xff]
        %v462 = vld [vmem:[%s219 + $0xa8] sm:$0xff]
        %v463 = vld [vmem:[%s219 + $0xb0] sm:$0xff]
        %v464 = vld [vmem:[%s219 + $0xb8] sm:$0xff]
        %v465 = vld [vmem:[%s219 + $0xc0] sm:$0xff]
        %v466 = vld [vmem:[%s219 + $0xc8] sm:$0xff]
        %v467 = vld [vmem:[%s219 + $0xd0] sm:$0xff]
        %v468 = vld [vmem:[%s219 + $0xd8] sm:$0xff]
        %v469 = vld [vmem:[%s219 + $0xe0] sm:$0xff]
        %v470 = vld [vmem:[%s219 + $0xe8] sm:$0xff]
        %v471 = vld [vmem:[%s219 + $0xf0] sm:$0xff]
        %v472 = vld [vmem:[%s219 + $0xf8] sm:$0xff]
        %v505 = vunpack.c.l.b16 %v409
        %v506 = vunpack.c.h.b16 %v409
        %v507 = vunpack.c.l.b16 %v410
        %v508 = vunpack.c.h.b16 %v410
        %v509 = vunpack.c.l.b16 %v411
        %v510 = vunpack.c.h.b16 %v411
        %v511 = vunpack.c.l.b16 %v412
        %v512 = vunpack.c.h.b16 %v412
        %v513 = vunpack.c.l.b16 %v413
        %v514 = vunpack.c.h.b16 %v413
        %v515 = vunpack.c.l.b16 %v414
        %v516 = vunpack.c.h.b16 %v414
        %v517 = vunpack.c.l.b16 %v415
        %v518 = vunpack.c.h.b16 %v415
        %v519 = vunpack.c.l.b16 %v416
        %v520 = vunpack.c.h.b16 %v416
        %v521 = vunpack.c.l.b16 %v417
        %v522 = vunpack.c.h.b16 %v417
        %v523 = vunpack.c.l.b16 %v418
        %v524 = vunpack.c.h.b16 %v418
        %v525 = vunpack.c.l.b16 %v419
        %v526 = vunpack.c.h.b16 %v419
        %v527 = vunpack.c.l.b16 %v420
        %v528 = vunpack.c.h.b16 %v420
        %v529 = vunpack.c.l.b16 %v421
        %v530 = vunpack.c.h.b16 %v421
        %v531 = vunpack.c.l.b16 %v422
        %v532 = vunpack.c.h.b16 %v422
        %v533 = vunpack.c.l.b16 %v423
        %v534 = vunpack.c.h.b16 %v423
        %v535 = vunpack.c.l.b16 %v424
        %v536 = vunpack.c.h.b16 %v424
        %v537 = vunpack.c.l.b16 %v425
        %v538 = vunpack.c.h.b16 %v425
        %v539 = vunpack.c.l.b16 %v426
        %v540 = vunpack.c.h.b16 %v426
        %v541 = vunpack.c.l.b16 %v427
        %v542 = vunpack.c.h.b16 %v427
        %v543 = vunpack.c.l.b16 %v428
        %v544 = vunpack.c.h.b16 %v428
        %v545 = vunpack.c.l.b16 %v429
        %v546 = vunpack.c.h.b16 %v429
        %v547 = vunpack.c.l.b16 %v430
        %v548 = vunpack.c.h.b16 %v430
        %v549 = vunpack.c.l.b16 %v431
        %v550 = vunpack.c.h.b16 %v431
        %v551 = vunpack.c.l.b16 %v432
        %v552 = vunpack.c.h.b16 %v432
        %v553 = vunpack.c.l.b16 %v433
        %v554 = vunpack.c.h.b16 %v433
        %v555 = vunpack.c.l.b16 %v434
        %v556 = vunpack.c.h.b16 %v434
        %v557 = vunpack.c.l.b16 %v435
        %v558 = vunpack.c.h.b16 %v435
        %v559 = vunpack.c.l.b16 %v436
        %v560 = vunpack.c.h.b16 %v436
        %v561 = vunpack.c.l.b16 %v437
        %v562 = vunpack.c.h.b16 %v437
        %v563 = vunpack.c.l.b16 %v438
        %v564 = vunpack.c.h.b16 %v438
        %v565 = vunpack.c.l.b16 %v439
        %v566 = vunpack.c.h.b16 %v439
        %v567 = vunpack.c.l.b16 %v440
        %v568 = vunpack.c.h.b16 %v440
        %v569 = vpack.c.b16 %v507, %v505
        %v570 = vpack.c.b16 %v508, %v506
        %v571 = vpack.c.b16 %v511, %v509
        %v572 = vpack.c.b16 %v512, %v510
        %v573 = vpack.c.b16 %v515, %v513
        %v574 = vpack.c.b16 %v516, %v514
        %v575 = vpack.c.b16 %v519, %v517
        %v576 = vpack.c.b16 %v520, %v518
        %v577 = vpack.c.b16 %v523, %v521
        %v578 = vpack.c.b16 %v524, %v522
        %v579 = vpack.c.b16 %v527, %v525
        %v580 = vpack.c.b16 %v528, %v526
        %v581 = vpack.c.b16 %v531, %v529
        %v582 = vpack.c.b16 %v532, %v530
        %v583 = vpack.c.b16 %v535, %v533
        %v584 = vpack.c.b16 %v536, %v534
        %v585 = vpack.c.b16 %v539, %v537
        %v586 = vpack.c.b16 %v540, %v538
        %v587 = vpack.c.b16 %v543, %v541
        %v588 = vpack.c.b16 %v544, %v542
        %v589 = vpack.c.b16 %v547, %v545
        %v590 = vpack.c.b16 %v548, %v546
        %v591 = vpack.c.b16 %v551, %v549
        %v592 = vpack.c.b16 %v552, %v550
        %v593 = vpack.c.b16 %v555, %v553
        %v594 = vpack.c.b16 %v556, %v554
        %v595 = vpack.c.b16 %v559, %v557
        %v596 = vpack.c.b16 %v560, %v558
        %v597 = vpack.c.b16 %v563, %v561
        %v598 = vpack.c.b16 %v564, %v562
        %v599 = vpack.c.b16 %v567, %v565
        %v600 = vpack.c.b16 %v568, %v566
        %v665 = vunpack.c.l.b16 %v441
        %v666 = vunpack.c.h.b16 %v441
        %v667 = vunpack.c.l.b16 %v442
        %v668 = vunpack.c.h.b16 %v442
        %v669 = vunpack.c.l.b16 %v443
        %v670 = vunpack.c.h.b16 %v443
        %v671 = vunpack.c.l.b16 %v444
        %v672 = vunpack.c.h.b16 %v444
        %v673 = vunpack.c.l.b16 %v445
        %v674 = vunpack.c.h.b16 %v445
        %v675 = vunpack.c.l.b16 %v446
        %v676 = vunpack.c.h.b16 %v446
        %v677 = vunpack.c.l.b16 %v447
        %v678 = vunpack.c.h.b16 %v447
        %v679 = vunpack.c.l.b16 %v448
        %v680 = vunpack.c.h.b16 %v448
        %v681 = vunpack.c.l.b16 %v449
        %v682 = vunpack.c.h.b16 %v449
        %v683 = vunpack.c.l.b16 %v450
        %v684 = vunpack.c.h.b16 %v450
        %v685 = vunpack.c.l.b16 %v451
        %v686 = vunpack.c.h.b16 %v451
        %v687 = vunpack.c.l.b16 %v452
        %v688 = vunpack.c.h.b16 %v452
        %v689 = vunpack.c.l.b16 %v453
        %v690 = vunpack.c.h.b16 %v453
        %v691 = vunpack.c.l.b16 %v454
        %v692 = vunpack.c.h.b16 %v454
        %v693 = vunpack.c.l.b16 %v455
        %v694 = vunpack.c.h.b16 %v455
        %v695 = vunpack.c.l.b16 %v456
        %v696 = vunpack.c.h.b16 %v456
        %v697 = vunpack.c.l.b16 %v457
        %v698 = vunpack.c.h.b16 %v457
        %v699 = vunpack.c.l.b16 %v458
        %v700 = vunpack.c.h.b16 %v458
        %v701 = vunpack.c.l.b16 %v459
        %v702 = vunpack.c.h.b16 %v459
        %v703 = vunpack.c.l.b16 %v460
        %v704 = vunpack.c.h.b16 %v460
        %v705 = vunpack.c.l.b16 %v461
        %v706 = vunpack.c.h.b16 %v461
        %v707 = vunpack.c.l.b16 %v462
        %v708 = vunpack.c.h.b16 %v462
        %v709 = vunpack.c.l.b16 %v463
        %v710 = vunpack.c.h.b16 %v463
        %v711 = vunpack.c.l.b16 %v464
        %v712 = vunpack.c.h.b16 %v464
        %v713 = vunpack.c.l.b16 %v465
        %v714 = vunpack.c.h.b16 %v465
        %v715 = vunpack.c.l.b16 %v466
        %v716 = vunpack.c.h.b16 %v466
        %v717 = vunpack.c.l.b16 %v467
        %v718 = vunpack.c.h.b16 %v467
        %v719 = vunpack.c.l.b16 %v468
        %v720 = vunpack.c.h.b16 %v468
        %v721 = vunpack.c.l.b16 %v469
        %v722 = vunpack.c.h.b16 %v469
        %v723 = vunpack.c.l.b16 %v470
        %v724 = vunpack.c.h.b16 %v470
        %v725 = vunpack.c.l.b16 %v471
        %v726 = vunpack.c.h.b16 %v471
        %v727 = vunpack.c.l.b16 %v472
        %v728 = vunpack.c.h.b16 %v472
        %v729 = vpack.c.b16 %v667, %v665
        %v730 = vpack.c.b16 %v668, %v666
        %v731 = vpack.c.b16 %v671, %v669
        %v732 = vpack.c.b16 %v672, %v670
        %v733 = vpack.c.b16 %v675, %v673
        %v734 = vpack.c.b16 %v676, %v674
        %v735 = vpack.c.b16 %v679, %v677
        %v736 = vpack.c.b16 %v680, %v678
        %v737 = vpack.c.b16 %v683, %v681
        %v738 = vpack.c.b16 %v684, %v682
        %v739 = vpack.c.b16 %v687, %v685
        %v740 = vpack.c.b16 %v688, %v686
        %v741 = vpack.c.b16 %v691, %v689
        %v742 = vpack.c.b16 %v692, %v690
        %v743 = vpack.c.b16 %v695, %v693
        %v744 = vpack.c.b16 %v696, %v694
        %v745 = vpack.c.b16 %v699, %v697
        %v746 = vpack.c.b16 %v700, %v698
        %v747 = vpack.c.b16 %v703, %v701
        %v748 = vpack.c.b16 %v704, %v702
        %v749 = vpack.c.b16 %v707, %v705
        %v750 = vpack.c.b16 %v708, %v706
        %v751 = vpack.c.b16 %v711, %v709
        %v752 = vpack.c.b16 %v712, %v710
        %v753 = vpack.c.b16 %v715, %v713
        %v754 = vpack.c.b16 %v716, %v714
        %v755 = vpack.c.b16 %v719, %v717
        %v756 = vpack.c.b16 %v720, %v718
        %v757 = vpack.c.b16 %v723, %v721
        %v758 = vpack.c.b16 %v724, %v722
        %v759 = vpack.c.b16 %v727, %v725
        %v760 = vpack.c.b16 %v728, %v726
        %793 = vmatpush.bf16.msra.mxu0 %v743
        %794 = vmatpush.bf16.msra.mxu0 %v741
        %795 = vmatpush.bf16.msra.mxu0 %v739
        %796 = vmatpush.bf16.msra.mxu0 %v737
        %797 = vmatpush.bf16.msra.mxu0 %v735
        %798 = vmatpush.bf16.msra.mxu0 %v733
        %799 = vmatpush.bf16.msra.mxu0 %v731
        %800 = vmatpush.bf16.msra.mxu0 %v729
        %801 = vmatmul.bf16.gmra.mxu0 %v569
        %v802 = vpop.f32.mrf.mxu0
        %v803 = vadd.f32 0.0, %v802
        %v804 = vpop.f32.mrf.mxu0
        %v805 = vadd.f32 0.0, %v804
        %806 = vmatmul.bf16.gmra.mxu0 %v571
        %v807 = vpop.f32.mrf.mxu0
        %v808 = vadd.f32 0.0, %v807
        %v809 = vpop.f32.mrf.mxu0
        %v810 = vadd.f32 0.0, %v809
        %811 = vmatmul.bf16.gmra.mxu0 %v573
        %v812 = vpop.f32.mrf.mxu0
        %v813 = vadd.f32 0.0, %v812
        %v814 = vpop.f32.mrf.mxu0
        %v815 = vadd.f32 0.0, %v814
        %816 = vmatmul.bf16.gmra.mxu0 %v575
        %v817 = vpop.f32.mrf.mxu0
        %v818 = vadd.f32 0.0, %v817
        %v819 = vpop.f32.mrf.mxu0
        %v820 = vadd.f32 0.0, %v819
        %821 = vmatmul.bf16.gmra.mxu0 %v577
        %v822 = vpop.f32.mrf.mxu0
        %v823 = vadd.f32 0.0, %v822
        %v824 = vpop.f32.mrf.mxu0
        %v825 = vadd.f32 0.0, %v824
        %826 = vmatmul.bf16.gmra.mxu0 %v579
        %v827 = vpop.f32.mrf.mxu0
        %v828 = vadd.f32 0.0, %v827
        %v829 = vpop.f32.mrf.mxu0
        %v830 = vadd.f32 0.0, %v829
        %831 = vmatmul.bf16.gmra.mxu0 %v581
        %v832 = vpop.f32.mrf.mxu0
        %v833 = vadd.f32 0.0, %v832
        %v834 = vpop.f32.mrf.mxu0
        %v835 = vadd.f32 0.0, %v834
        %836 = vmatmul.bf16.gmra.mxu0 %v583
        %v837 = vpop.f32.mrf.mxu0
        %v838 = vadd.f32 0.0, %v837
        %v839 = vpop.f32.mrf.mxu0
        %v840 = vadd.f32 0.0, %v839
        %841 = vmatmul.bf16.gmra.mxu0 %v585
        %v842 = vpop.f32.mrf.mxu0
        %v843 = vadd.f32 0.0, %v842
        %v844 = vpop.f32.mrf.mxu0
        %v845 = vadd.f32 0.0, %v844
        %846 = vmatmul.bf16.gmra.mxu0 %v587
        %v847 = vpop.f32.mrf.mxu0
        %v848 = vadd.f32 0.0, %v847
        %v849 = vpop.f32.mrf.mxu0
        %v850 = vadd.f32 0.0, %v849
        %851 = vmatmul.bf16.gmra.mxu0 %v589
        %v852 = vpop.f32.mrf.mxu0
        %v853 = vadd.f32 0.0, %v852
        %v854 = vpop.f32.mrf.mxu0
        %v855 = vadd.f32 0.0, %v854
        %856 = vmatmul.bf16.gmra.mxu0 %v591
        %v857 = vpop.f32.mrf.mxu0
        %v858 = vadd.f32 0.0, %v857
        %v859 = vpop.f32.mrf.mxu0
        %v860 = vadd.f32 0.0, %v859
        %861 = vmatmul.bf16.gmra.mxu0 %v593
        %v862 = vpop.f32.mrf.mxu0
        %v863 = vadd.f32 0.0, %v862
        %v864 = vpop.f32.mrf.mxu0
        %v865 = vadd.f32 0.0, %v864
        %866 = vmatmul.bf16.gmra.mxu0 %v595
        %v867 = vpop.f32.mrf.mxu0
        %v868 = vadd.f32 0.0, %v867
        %v869 = vpop.f32.mrf.mxu0
        %v870 = vadd.f32 0.0, %v869
        %871 = vmatmul.bf16.gmra.mxu0 %v597
        %v872 = vpop.f32.mrf.mxu0
        %v873 = vadd.f32 0.0, %v872
        %v874 = vpop.f32.mrf.mxu0
        %v875 = vadd.f32 0.0, %v874
        %876 = vmatmul.bf16.gmra.mxu0 %v599
        %v877 = vpop.f32.mrf.mxu0
        %v878 = vadd.f32 0.0, %v877
        %v879 = vpop.f32.mrf.mxu0
        %v880 = vadd.f32 0.0, %v879
        %881 = vdwg.mxu0
        %882 = vmatpush.bf16.msra.mxu0 %v759
        %883 = vmatpush.bf16.msra.mxu0 %v757
        %884 = vmatpush.bf16.msra.mxu0 %v755
        %885 = vmatpush.bf16.msra.mxu0 %v753
        %886 = vmatpush.bf16.msra.mxu0 %v751
        %887 = vmatpush.bf16.msra.mxu0 %v749
        %888 = vmatpush.bf16.msra.mxu0 %v747
        %889 = vmatpush.bf16.msra.mxu0 %v745
        %890 = vmatmul.bf16.gmra.mxu0 %v570
        %v891 = vpop.f32.mrf.mxu0
        %v892 = vadd.f32 %v803, %v891
        %v893 = vpop.f32.mrf.mxu0
        %v894 = vadd.f32 %v805, %v893
        %895 = vmatmul.bf16.gmra.mxu0 %v572
        %v896 = vpop.f32.mrf.mxu0
        %v897 = vadd.f32 %v808, %v896
        %v898 = vpop.f32.mrf.mxu0
        %v899 = vadd.f32 %v810, %v898
        %900 = vmatmul.bf16.gmra.mxu0 %v574
        %v901 = vpop.f32.mrf.mxu0
        %v902 = vadd.f32 %v813, %v901
        %v903 = vpop.f32.mrf.mxu0
        %v904 = vadd.f32 %v815, %v903
        %905 = vmatmul.bf16.gmra.mxu0 %v576
        %v906 = vpop.f32.mrf.mxu0
        %v907 = vadd.f32 %v818, %v906
        %v908 = vpop.f32.mrf.mxu0
        %v909 = vadd.f32 %v820, %v908
        %910 = vmatmul.bf16.gmra.mxu0 %v578
        %v911 = vpop.f32.mrf.mxu0
        %v912 = vadd.f32 %v823, %v911
        %v913 = vpop.f32.mrf.mxu0
        %v914 = vadd.f32 %v825, %v913
        %915 = vmatmul.bf16.gmra.mxu0 %v580
        %v916 = vpop.f32.mrf.mxu0
        %v917 = vadd.f32 %v828, %v916
        %v918 = vpop.f32.mrf.mxu0
        %v919 = vadd.f32 %v830, %v918
        %920 = vmatmul.bf16.gmra.mxu0 %v582
        %v921 = vpop.f32.mrf.mxu0
        %v922 = vadd.f32 %v833, %v921
        %v923 = vpop.f32.mrf.mxu0
        %v924 = vadd.f32 %v835, %v923
        %925 = vmatmul.bf16.gmra.mxu0 %v584
        %v926 = vpop.f32.mrf.mxu0
        %v927 = vadd.f32 %v838, %v926
        %v928 = vpop.f32.mrf.mxu0
        %v929 = vadd.f32 %v840, %v928
        %930 = vmatmul.bf16.gmra.mxu0 %v586
        %v931 = vpop.f32.mrf.mxu0
        %v932 = vadd.f32 %v843, %v931
        %v933 = vpop.f32.mrf.mxu0
        %v934 = vadd.f32 %v845, %v933
        %935 = vmatmul.bf16.gmra.mxu0 %v588
        %v936 = vpop.f32.mrf.mxu0
        %v937 = vadd.f32 %v848, %v936
        %v938 = vpop.f32.mrf.mxu0
        %v939 = vadd.f32 %v850, %v938
        %940 = vmatmul.bf16.gmra.mxu0 %v590
        %v941 = vpop.f32.mrf.mxu0
        %v942 = vadd.f32 %v853, %v941
        %v943 = vpop.f32.mrf.mxu0
        %v944 = vadd.f32 %v855, %v943
        %945 = vmatmul.bf16.gmra.mxu0 %v592
        %v946 = vpop.f32.mrf.mxu0
        %v947 = vadd.f32 %v858, %v946
        %v948 = vpop.f32.mrf.mxu0
        %v949 = vadd.f32 %v860, %v948
        %950 = vmatmul.bf16.gmra.mxu0 %v594
        %v951 = vpop.f32.mrf.mxu0
        %v952 = vadd.f32 %v863, %v951
        %v953 = vpop.f32.mrf.mxu0
        %v954 = vadd.f32 %v865, %v953
        %955 = vmatmul.bf16.gmra.mxu0 %v596
        %v956 = vpop.f32.mrf.mxu0
        %v957 = vadd.f32 %v868, %v956
        %v958 = vpop.f32.mrf.mxu0
        %v959 = vadd.f32 %v870, %v958
        %960 = vmatmul.bf16.gmra.mxu0 %v598
        %v961 = vpop.f32.mrf.mxu0
        %v962 = vadd.f32 %v873, %v961
        %v963 = vpop.f32.mrf.mxu0
        %v964 = vadd.f32 %v875, %v963
        %965 = vmatmul.bf16.gmra.mxu0 %v600
        %v966 = vpop.f32.mrf.mxu0
        %v967 = vadd.f32 %v878, %v966
        %v968 = vpop.f32.mrf.mxu0
        %v969 = vadd.f32 %v880, %v968
        %970 = vdwg.mxu0
        %971 = vmatpush.bf16.msra.mxu0 %v744
        %972 = vmatpush.bf16.msra.mxu0 %v742
        %973 = vmatpush.bf16.msra.mxu0 %v740
        %974 = vmatpush.bf16.msra.mxu0 %v738
        %975 = vmatpush.bf16.msra.mxu0 %v736
        %976 = vmatpush.bf16.msra.mxu0 %v734
        %977 = vmatpush.bf16.msra.mxu0 %v732
        %978 = vmatpush.bf16.msra.mxu0 %v730
        %979 = vmatmul.bf16.gmra.mxu0 %v569
        %v980 = vpop.f32.mrf.mxu0
        %v981 = vadd.f32 0.0, %v980
        %v982 = vpop.f32.mrf.mxu0
        %v983 = vadd.f32 0.0, %v982
        %984 = vmatmul.bf16.gmra.mxu0 %v571
        %v985 = vpop.f32.mrf.mxu0
        %v986 = vadd.f32 0.0, %v985
        %v987 = vpop.f32.mrf.mxu0
        %v988 = vadd.f32 0.0, %v987
        %989 = vmatmul.bf16.gmra.mxu0 %v573
        %v990 = vpop.f32.mrf.mxu0
        %v991 = vadd.f32 0.0, %v990
        %v992 = vpop.f32.mrf.mxu0
        %v993 = vadd.f32 0.0, %v992
        %994 = vmatmul.bf16.gmra.mxu0 %v575
        %v995 = vpop.f32.mrf.mxu0
        %v996 = vadd.f32 0.0, %v995
        %v997 = vpop.f32.mrf.mxu0
        %v998 = vadd.f32 0.0, %v997
        %999 = vmatmul.bf16.gmra.mxu0 %v577
        %v1000 = vpop.f32.mrf.mxu0
        %v1001 = vadd.f32 0.0, %v1000
        %v1002 = vpop.f32.mrf.mxu0
        %v1003 = vadd.f32 0.0, %v1002
        %1004 = vmatmul.bf16.gmra.mxu0 %v579
        %v1005 = vpop.f32.mrf.mxu0
        %v1006 = vadd.f32 0.0, %v1005
        %v1007 = vpop.f32.mrf.mxu0
        %v1008 = vadd.f32 0.0, %v1007
        %1009 = vmatmul.bf16.gmra.mxu0 %v581
        %v1010 = vpop.f32.mrf.mxu0
        %v1011 = vadd.f32 0.0, %v1010
        %v1012 = vpop.f32.mrf.mxu0
        %v1013 = vadd.f32 0.0, %v1012
        %1014 = vmatmul.bf16.gmra.mxu0 %v583
        %v1015 = vpop.f32.mrf.mxu0
        %v1016 = vadd.f32 0.0, %v1015
        %v1017 = vpop.f32.mrf.mxu0
        %v1018 = vadd.f32 0.0, %v1017
        %1019 = vmatmul.bf16.gmra.mxu0 %v585
        %v1020 = vpop.f32.mrf.mxu0
        %v1021 = vadd.f32 0.0, %v1020
        %v1022 = vpop.f32.mrf.mxu0
        %v1023 = vadd.f32 0.0, %v1022
        %1024 = vmatmul.bf16.gmra.mxu0 %v587
        %v1025 = vpop.f32.mrf.mxu0
        %v1026 = vadd.f32 0.0, %v1025
        %v1027 = vpop.f32.mrf.mxu0
        %v1028 = vadd.f32 0.0, %v1027
        %1029 = vmatmul.bf16.gmra.mxu0 %v589
        %v1030 = vpop.f32.mrf.mxu0
        %v1031 = vadd.f32 0.0, %v1030
        %v1032 = vpop.f32.mrf.mxu0
        %v1033 = vadd.f32 0.0, %v1032
        %1034 = vmatmul.bf16.gmra.mxu0 %v591
        %v1035 = vpop.f32.mrf.mxu0
        %v1036 = vadd.f32 0.0, %v1035
        %v1037 = vpop.f32.mrf.mxu0
        %v1038 = vadd.f32 0.0, %v1037
        %1039 = vmatmul.bf16.gmra.mxu0 %v593
        %v1040 = vpop.f32.mrf.mxu0
        %v1041 = vadd.f32 0.0, %v1040
        %v1042 = vpop.f32.mrf.mxu0
        %v1043 = vadd.f32 0.0, %v1042
        %1044 = vmatmul.bf16.gmra.mxu0 %v595
        %v1045 = vpop.f32.mrf.mxu0
        %v1046 = vadd.f32 0.0, %v1045
        %v1047 = vpop.f32.mrf.mxu0
        %v1048 = vadd.f32 0.0, %v1047
        %1049 = vmatmul.bf16.gmra.mxu0 %v597
        %v1050 = vpop.f32.mrf.mxu0
        %v1051 = vadd.f32 0.0, %v1050
        %v1052 = vpop.f32.mrf.mxu0
        %v1053 = vadd.f32 0.0, %v1052
        %1054 = vmatmul.bf16.gmra.mxu0 %v599
        %v1055 = vpop.f32.mrf.mxu0
        %v1056 = vadd.f32 0.0, %v1055
        %v1057 = vpop.f32.mrf.mxu0
        %v1058 = vadd.f32 0.0, %v1057
        %1059 = vdwg.mxu0
        %1060 = vmatpush.bf16.msra.mxu0 %v760
        %1061 = vmatpush.bf16.msra.mxu0 %v758
        %1062 = vmatpush.bf16.msra.mxu0 %v756
        %1063 = vmatpush.bf16.msra.mxu0 %v754
        %1064 = vmatpush.bf16.msra.mxu0 %v752
        %1065 = vmatpush.bf16.msra.mxu0 %v750
        %1066 = vmatpush.bf16.msra.mxu0 %v748
        %1067 = vmatpush.bf16.msra.mxu0 %v746
        %1068 = vmatmul.bf16.gmra.mxu0 %v570
        %v1069 = vpop.f32.mrf.mxu0
        %v1070 = vadd.f32 %v981, %v1069
        %v1071 = vpop.f32.mrf.mxu0
        %v1072 = vadd.f32 %v983, %v1071
        %1073 = vmatmul.bf16.gmra.mxu0 %v572
        %v1074 = vpop.f32.mrf.mxu0
        %v1075 = vadd.f32 %v986, %v1074
        %v1076 = vpop.f32.mrf.mxu0
        %v1077 = vadd.f32 %v988, %v1076
        %1078 = vmatmul.bf16.gmra.mxu0 %v574
        %v1079 = vpop.f32.mrf.mxu0
        %v1080 = vadd.f32 %v991, %v1079
        %v1081 = vpop.f32.mrf.mxu0
        %v1082 = vadd.f32 %v993, %v1081
        %1083 = vmatmul.bf16.gmra.mxu0 %v576
        %v1084 = vpop.f32.mrf.mxu0
        %v1085 = vadd.f32 %v996, %v1084
        %v1086 = vpop.f32.mrf.mxu0
        %v1087 = vadd.f32 %v998, %v1086
        %1088 = vmatmul.bf16.gmra.mxu0 %v578
        %v1089 = vpop.f32.mrf.mxu0
        %v1090 = vadd.f32 %v1001, %v1089
        %v1091 = vpop.f32.mrf.mxu0
        %v1092 = vadd.f32 %v1003, %v1091
        %1093 = vmatmul.bf16.gmra.mxu0 %v580
        %v1094 = vpop.f32.mrf.mxu0
        %v1095 = vadd.f32 %v1006, %v1094
        %v1096 = vpop.f32.mrf.mxu0
        %v1097 = vadd.f32 %v1008, %v1096
        %1098 = vmatmul.bf16.gmra.mxu0 %v582
        %v1099 = vpop.f32.mrf.mxu0
        %v1100 = vadd.f32 %v1011, %v1099
        %v1101 = vpop.f32.mrf.mxu0
        %v1102 = vadd.f32 %v1013, %v1101
        %1103 = vmatmul.bf16.gmra.mxu0 %v584
        %v1104 = vpop.f32.mrf.mxu0
        %v1105 = vadd.f32 %v1016, %v1104
        %v1106 = vpop.f32.mrf.mxu0
        %v1107 = vadd.f32 %v1018, %v1106
        %1108 = vmatmul.bf16.gmra.mxu0 %v586
        %v1109 = vpop.f32.mrf.mxu0
        %v1110 = vadd.f32 %v1021, %v1109
        %v1111 = vpop.f32.mrf.mxu0
        %v1112 = vadd.f32 %v1023, %v1111
        %1113 = vmatmul.bf16.gmra.mxu0 %v588
        %v1114 = vpop.f32.mrf.mxu0
        %v1115 = vadd.f32 %v1026, %v1114
        %v1116 = vpop.f32.mrf.mxu0
        %v1117 = vadd.f32 %v1028, %v1116
        %1118 = vmatmul.bf16.gmra.mxu0 %v590
        %v1119 = vpop.f32.mrf.mxu0
        %v1120 = vadd.f32 %v1031, %v1119
        %v1121 = vpop.f32.mrf.mxu0
        %v1122 = vadd.f32 %v1033, %v1121
        %1123 = vmatmul.bf16.gmra.mxu0 %v592
        %v1124 = vpop.f32.mrf.mxu0
        %v1125 = vadd.f32 %v1036, %v1124
        %v1126 = vpop.f32.mrf.mxu0
        %v1127 = vadd.f32 %v1038, %v1126
        %1128 = vmatmul.bf16.gmra.mxu0 %v594
        %v1129 = vpop.f32.mrf.mxu0
        %v1130 = vadd.f32 %v1041, %v1129
        %v1131 = vpop.f32.mrf.mxu0
        %v1132 = vadd.f32 %v1043, %v1131
        %1133 = vmatmul.bf16.gmra.mxu0 %v596
        %v1134 = vpop.f32.mrf.mxu0
        %v1135 = vadd.f32 %v1046, %v1134
        %v1136 = vpop.f32.mrf.mxu0
        %v1137 = vadd.f32 %v1048, %v1136
        %1138 = vmatmul.bf16.gmra.mxu0 %v598
        %v1139 = vpop.f32.mrf.mxu0
        %v1140 = vadd.f32 %v1051, %v1139
        %v1141 = vpop.f32.mrf.mxu0
        %v1142 = vadd.f32 %v1053, %v1141
        %1143 = vmatmul.bf16.gmra.mxu0 %v600
        %v1144 = vpop.f32.mrf.mxu0
        %v1145 = vadd.f32 %v1056, %v1144
        %v1146 = vpop.f32.mrf.mxu0
        %v1147 = vadd.f32 %v1058, %v1146
        %1148 = vdwg.mxu0
        %v1149 = vadd.f32 %v345, %v892
        %v1150 = vadd.f32 %v346, %v1070
        %v1151 = vadd.f32 %v347, %v894
        %v1152 = vadd.f32 %v348, %v1072
        %v1153 = vadd.f32 %v349, %v897
        %v1154 = vadd.f32 %v350, %v1075
        %v1155 = vadd.f32 %v351, %v899
        %v1156 = vadd.f32 %v352, %v1077
        %v1157 = vadd.f32 %v353, %v902
        %v1158 = vadd.f32 %v354, %v1080
        %v1159 = vadd.f32 %v355, %v904
        %v1160 = vadd.f32 %v356, %v1082
        %v1161 = vadd.f32 %v357, %v907
        %v1162 = vadd.f32 %v358, %v1085
        %v1163 = vadd.f32 %v359, %v909
        %v1164 = vadd.f32 %v360, %v1087
        %v1165 = vadd.f32 %v361, %v912
        %v1166 = vadd.f32 %v362, %v1090
        %v1167 = vadd.f32 %v363, %v914
        %v1168 = vadd.f32 %v364, %v1092
        %v1169 = vadd.f32 %v365, %v917
        %v1170 = vadd.f32 %v366, %v1095
        %v1171 = vadd.f32 %v367, %v919
        %v1172 = vadd.f32 %v368, %v1097
        %v1173 = vadd.f32 %v369, %v922
        %v1174 = vadd.f32 %v370, %v1100
        %v1175 = vadd.f32 %v371, %v924
        %v1176 = vadd.f32 %v372, %v1102
        %v1177 = vadd.f32 %v373, %v927
        %v1178 = vadd.f32 %v374, %v1105
        %v1179 = vadd.f32 %v375, %v929
        %v1180 = vadd.f32 %v376, %v1107
        %v1181 = vadd.f32 %v377, %v932
        %v1182 = vadd.f32 %v378, %v1110
        %v1183 = vadd.f32 %v379, %v934
        %v1184 = vadd.f32 %v380, %v1112
        %v1185 = vadd.f32 %v381, %v937
        %v1186 = vadd.f32 %v382, %v1115
        %v1187 = vadd.f32 %v383, %v939
        %v1188 = vadd.f32 %v384, %v1117
        %v1189 = vadd.f32 %v385, %v942
        %v1190 = vadd.f32 %v386, %v1120
        %v1191 = vadd.f32 %v387, %v944
        %v1192 = vadd.f32 %v388, %v1122
        %v1193 = vadd.f32 %v389, %v947
        %v1194 = vadd.f32 %v390, %v1125
        %v1195 = vadd.f32 %v391, %v949
        %v1196 = vadd.f32 %v392, %v1127
        %v1197 = vadd.f32 %v393, %v952
        %v1198 = vadd.f32 %v394, %v1130
        %v1199 = vadd.f32 %v395, %v954
        %v1200 = vadd.f32 %v396, %v1132
        %v1201 = vadd.f32 %v397, %v957
        %v1202 = vadd.f32 %v398, %v1135
        %v1203 = vadd.f32 %v399, %v959
        %v1204 = vadd.f32 %v400, %v1137
        %v1205 = vadd.f32 %v401, %v962
        %v1206 = vadd.f32 %v402, %v1140
        %v1207 = vadd.f32 %v403, %v964
        %v1208 = vadd.f32 %v404, %v1142
        %v1209 = vadd.f32 %v405, %v967
        %v1210 = vadd.f32 %v406, %v1145
        %v1211 = vadd.f32 %v407, %v969
        %v1212 = vadd.f32 %v408, %v1147
        %1213 = vst [vmem:[#allocation2] sm:$0xff] %v1149
        %1214 = vst [vmem:[#allocation2 + $0x8] sm:$0xff] %v1150
        %1215 = vst [vmem:[#allocation2 + $0x10] sm:$0xff] %v1151
        %1216 = vst [vmem:[#allocation2 + $0x18] sm:$0xff] %v1152
        %1217 = vst [vmem:[#allocation2 + $0x20] sm:$0xff] %v1153
        %1218 = vst [vmem:[#allocation2 + $0x28] sm:$0xff] %v1154
        %1219 = vst [vmem:[#allocation2 + $0x30] sm:$0xff] %v1155
        %1220 = vst [vmem:[#allocation2 + $0x38] sm:$0xff] %v1156
        %1221 = vst [vmem:[#allocation2 + $0x40] sm:$0xff] %v1157
        %1222 = vst [vmem:[#allocation2 + $0x48] sm:$0xff] %v1158
        %1223 = vst [vmem:[#allocation2 + $0x50] sm:$0xff] %v1159
        %1224 = vst [vmem:[#allocation2 + $0x58] sm:$0xff] %v1160
        %1225 = vst [vmem:[#allocation2 + $0x60] sm:$0xff] %v1161
        %1226 = vst [vmem:[#allocation2 + $0x68] sm:$0xff] %v1162
        %1227 = vst [vmem:[#allocation2 + $0x70] sm:$0xff] %v1163
        %1228 = vst [vmem:[#allocation2 + $0x78] sm:$0xff] %v1164
        %1229 = vst [vmem:[#allocation2 + $0x80] sm:$0xff] %v1165
        %1230 = vst [vmem:[#allocation2 + $0x88] sm:$0xff] %v1166
        %1231 = vst [vmem:[#allocation2 + $0x90] sm:$0xff] %v1167
        %1232 = vst [vmem:[#allocation2 + $0x98] sm:$0xff] %v1168
        %1233 = vst [vmem:[#allocation2 + $0xa0] sm:$0xff] %v1169
        %1234 = vst [vmem:[#allocation2 + $0xa8] sm:$0xff] %v1170
        %1235 = vst [vmem:[#allocation2 + $0xb0] sm:$0xff] %v1171
        %1236 = vst [vmem:[#allocation2 + $0xb8] sm:$0xff] %v1172
        %1237 = vst [vmem:[#allocation2 + $0xc0] sm:$0xff] %v1173
        %1238 = vst [vmem:[#allocation2 + $0xc8] sm:$0xff] %v1174
        %1239 = vst [vmem:[#allocation2 + $0xd0] sm:$0xff] %v1175
        %1240 = vst [vmem:[#allocation2 + $0xd8] sm:$0xff] %v1176
        %1241 = vst [vmem:[#allocation2 + $0xe0] sm:$0xff] %v1177
        %1242 = vst [vmem:[#allocation2 + $0xe8] sm:$0xff] %v1178
        %1243 = vst [vmem:[#allocation2 + $0xf0] sm:$0xff] %v1179
        %1244 = vst [vmem:[#allocation2 + $0xf8] sm:$0xff] %v1180
        %1245 = vst [vmem:[#allocation2 + $0x100] sm:$0xff] %v1181
        %1246 = vst [vmem:[#allocation2 + $0x108] sm:$0xff] %v1182
        %1247 = vst [vmem:[#allocation2 + $0x110] sm:$0xff] %v1183
        %1248 = vst [vmem:[#allocation2 + $0x118] sm:$0xff] %v1184
        %1249 = vst [vmem:[#allocation2 + $0x120] sm:$0xff] %v1185
        %1250 = vst [vmem:[#allocation2 + $0x128] sm:$0xff] %v1186
        %1251 = vst [vmem:[#allocation2 + $0x130] sm:$0xff] %v1187
        %1252 = vst [vmem:[#allocation2 + $0x138] sm:$0xff] %v1188
        %1253 = vst [vmem:[#allocation2 + $0x140] sm:$0xff] %v1189
        %1254 = vst [vmem:[#allocation2 + $0x148] sm:$0xff] %v1190
        %1255 = vst [vmem:[#allocation2 + $0x150] sm:$0xff] %v1191
        %1256 = vst [vmem:[#allocation2 + $0x158] sm:$0xff] %v1192
        %1257 = vst [vmem:[#allocation2 + $0x160] sm:$0xff] %v1193
        %1258 = vst [vmem:[#allocation2 + $0x168] sm:$0xff] %v1194
        %1259 = vst [vmem:[#allocation2 + $0x170] sm:$0xff] %v1195
        %1260 = vst [vmem:[#allocation2 + $0x178] sm:$0xff] %v1196
        %1261 = vst [vmem:[#allocation2 + $0x180] sm:$0xff] %v1197
        %1262 = vst [vmem:[#allocation2 + $0x188] sm:$0xff] %v1198
        %1263 = vst [vmem:[#allocation2 + $0x190] sm:$0xff] %v1199
        %1264 = vst [vmem:[#allocation2 + $0x198] sm:$0xff] %v1200
        %1265 = vst [vmem:[#allocation2 + $0x1a0] sm:$0xff] %v1201
        %1266 = vst [vmem:[#allocation2 + $0x1a8] sm:$0xff] %v1202
        %1267 = vst [vmem:[#allocation2 + $0x1b0] sm:$0xff] %v1203
        %1268 = vst [vmem:[#allocation2 + $0x1b8] sm:$0xff] %v1204
        %1269 = vst [vmem:[#allocation2 + $0x1c0] sm:$0xff] %v1205
        %1270 = vst [vmem:[#allocation2 + $0x1c8] sm:$0xff] %v1206
        %1271 = vst [vmem:[#allocation2 + $0x1d0] sm:$0xff] %v1207
        %1272 = vst [vmem:[#allocation2 + $0x1d8] sm:$0xff] %v1208
        %1273 = vst [vmem:[#allocation2 + $0x1e0] sm:$0xff] %v1209
        %1274 = vst [vmem:[#allocation2 + $0x1e8] sm:$0xff] %v1210
        %1275 = vst [vmem:[#allocation2 + $0x1f0] sm:$0xff] %v1211
        %1276 = vst [vmem:[#allocation2 + $0x1f8] sm:$0xff] %v1212
        // Predicated region
        $region41: #{self_attention_forward.3} parent=31 // pred_check
          %p1277 = pneg %p277
        $region42: #{self_attention_forward.3} parent=31 // pred_check_branch
          %1279 = sbr.rel (%p1277) target = $region44
        $region43: #{self_attention_forward.3} parent=31 // pred_region
          %v1280 = vld [vmem:[#allocation2] sm:$0xff]
          %v1281 = vld [vmem:[#allocation2 + $0x8] sm:$0xff]
          %v1282 = vld [vmem:[#allocation2 + $0x10] sm:$0xff]
          %v1283 = vld [vmem:[#allocation2 + $0x18] sm:$0xff]
          %v1284 = vld [vmem:[#allocation2 + $0x20] sm:$0xff]
          %v1285 = vld [vmem:[#allocation2 + $0x28] sm:$0xff]
          %v1286 = vld [vmem:[#allocation2 + $0x30] sm:$0xff]
          %v1287 = vld [vmem:[#allocation2 + $0x38] sm:$0xff]
          %v1288 = vld [vmem:[#allocation2 + $0x40] sm:$0xff]
          %v1289 = vld [vmem:[#allocation2 + $0x48] sm:$0xff]
          %v1290 = vld [vmem:[#allocation2 + $0x50] sm:$0xff]
          %v1291 = vld [vmem:[#allocation2 + $0x58] sm:$0xff]
          %v1292 = vld [vmem:[#allocation2 + $0x60] sm:$0xff]
          %v1293 = vld [vmem:[#allocation2 + $0x68] sm:$0xff]
          %v1294 = vld [vmem:[#allocation2 + $0x70] sm:$0xff]
          %v1295 = vld [vmem:[#allocation2 + $0x78] sm:$0xff]
          %v1296 = vld [vmem:[#allocation2 + $0x80] sm:$0xff]
          %v1297 = vld [vmem:[#allocation2 + $0x88] sm:$0xff]
          %v1298 = vld [vmem:[#allocation2 + $0x90] sm:$0xff]
          %v1299 = vld [vmem:[#allocation2 + $0x98] sm:$0xff]
          %v1300 = vld [vmem:[#allocation2 + $0xa0] sm:$0xff]
          %v1301 = vld [vmem:[#allocation2 + $0xa8] sm:$0xff]
          %v1302 = vld [vmem:[#allocation2 + $0xb0] sm:$0xff]
          %v1303 = vld [vmem:[#allocation2 + $0xb8] sm:$0xff]
          %v1304 = vld [vmem:[#allocation2 + $0xc0] sm:$0xff]
          %v1305 = vld [vmem:[#allocation2 + $0xc8] sm:$0xff]
          %v1306 = vld [vmem:[#allocation2 + $0xd0] sm:$0xff]
          %v1307 = vld [vmem:[#allocation2 + $0xd8] sm:$0xff]
          %v1308 = vld [vmem:[#allocation2 + $0xe0] sm:$0xff]
          %v1309 = vld [vmem:[#allocation2 + $0xe8] sm:$0xff]
          %v1310 = vld [vmem:[#allocation2 + $0xf0] sm:$0xff]
          %v1311 = vld [vmem:[#allocation2 + $0xf8] sm:$0xff]
          %v1312 = vld [vmem:[#allocation2 + $0x100] sm:$0xff]
          %v1313 = vld [vmem:[#allocation2 + $0x108] sm:$0xff]
          %v1314 = vld [vmem:[#allocation2 + $0x110] sm:$0xff]
          %v1315 = vld [vmem:[#allocation2 + $0x118] sm:$0xff]
          %v1316 = vld [vmem:[#allocation2 + $0x120] sm:$0xff]
          %v1317 = vld [vmem:[#allocation2 + $0x128] sm:$0xff]
          %v1318 = vld [vmem:[#allocation2 + $0x130] sm:$0xff]
          %v1319 = vld [vmem:[#allocation2 + $0x138] sm:$0xff]
          %v1320 = vld [vmem:[#allocation2 + $0x140] sm:$0xff]
          %v1321 = vld [vmem:[#allocation2 + $0x148] sm:$0xff]
          %v1322 = vld [vmem:[#allocation2 + $0x150] sm:$0xff]
          %v1323 = vld [vmem:[#allocation2 + $0x158] sm:$0xff]
          %v1324 = vld [vmem:[#allocation2 + $0x160] sm:$0xff]
          %v1325 = vld [vmem:[#allocation2 + $0x168] sm:$0xff]
          %v1326 = vld [vmem:[#allocation2 + $0x170] sm:$0xff]
          %v1327 = vld [vmem:[#allocation2 + $0x178] sm:$0xff]
          %v1328 = vld [vmem:[#allocation2 + $0x180] sm:$0xff]
          %v1329 = vld [vmem:[#allocation2 + $0x188] sm:$0xff]
          %v1330 = vld [vmem:[#allocation2 + $0x190] sm:$0xff]
          %v1331 = vld [vmem:[#allocation2 + $0x198] sm:$0xff]
          %v1332 = vld [vmem:[#allocation2 + $0x1a0] sm:$0xff]
          %v1333 = vld [vmem:[#allocation2 + $0x1a8] sm:$0xff]
          %v1334 = vld [vmem:[#allocation2 + $0x1b0] sm:$0xff]
          %v1335 = vld [vmem:[#allocation2 + $0x1b8] sm:$0xff]
          %v1336 = vld [vmem:[#allocation2 + $0x1c0] sm:$0xff]
          %v1337 = vld [vmem:[#allocation2 + $0x1c8] sm:$0xff]
          %v1338 = vld [vmem:[#allocation2 + $0x1d0] sm:$0xff]
          %v1339 = vld [vmem:[#allocation2 + $0x1d8] sm:$0xff]
          %v1340 = vld [vmem:[#allocation2 + $0x1e0] sm:$0xff]
          %v1341 = vld [vmem:[#allocation2 + $0x1e8] sm:$0xff]
          %v1342 = vld [vmem:[#allocation2 + $0x1f0] sm:$0xff]
          %v1343 = vld [vmem:[#allocation2 + $0x1f8] sm:$0xff]
          %v1344 = vld [vmem:[%s273] sm:$0x3]
          %v1346 = vperm.slane %v1344, 0
          %v1347 = vperm.slane %v1344, 1
          %v1350 = vadd.f32 %v1280, %v1346
          %v1351 = vadd.f32 %v1281, %v1347
          %v1352 = vadd.f32 %v1282, %v1346
          %v1353 = vadd.f32 %v1283, %v1347
          %v1354 = vadd.f32 %v1284, %v1346
          %v1355 = vadd.f32 %v1285, %v1347
          %v1356 = vadd.f32 %v1286, %v1346
          %v1357 = vadd.f32 %v1287, %v1347
          %v1358 = vadd.f32 %v1288, %v1346
          %v1359 = vadd.f32 %v1289, %v1347
          %v1360 = vadd.f32 %v1290, %v1346
          %v1361 = vadd.f32 %v1291, %v1347
          %v1362 = vadd.f32 %v1292, %v1346
          %v1363 = vadd.f32 %v1293, %v1347
          %v1364 = vadd.f32 %v1294, %v1346
          %v1365 = vadd.f32 %v1295, %v1347
          %v1366 = vadd.f32 %v1296, %v1346
          %v1367 = vadd.f32 %v1297, %v1347
          %v1368 = vadd.f32 %v1298, %v1346
          %v1369 = vadd.f32 %v1299, %v1347
          %v1370 = vadd.f32 %v1300, %v1346
          %v1371 = vadd.f32 %v1301, %v1347
          %v1372 = vadd.f32 %v1302, %v1346
          %v1373 = vadd.f32 %v1303, %v1347
          %v1374 = vadd.f32 %v1304, %v1346
          %v1375 = vadd.f32 %v1305, %v1347
          %v1376 = vadd.f32 %v1306, %v1346
          %v1377 = vadd.f32 %v1307, %v1347
          %v1378 = vadd.f32 %v1308, %v1346
          %v1379 = vadd.f32 %v1309, %v1347
          %v1380 = vadd.f32 %v1310, %v1346
          %v1381 = vadd.f32 %v1311, %v1347
          %v1382 = vadd.f32 %v1312, %v1346
          %v1383 = vadd.f32 %v1313, %v1347
          %v1384 = vadd.f32 %v1314, %v1346
          %v1385 = vadd.f32 %v1315, %v1347
          %v1386 = vadd.f32 %v1316, %v1346
          %v1387 = vadd.f32 %v1317, %v1347
          %v1388 = vadd.f32 %v1318, %v1346
          %v1389 = vadd.f32 %v1319, %v1347
          %v1390 = vadd.f32 %v1320, %v1346
          %v1391 = vadd.f32 %v1321, %v1347
          %v1392 = vadd.f32 %v1322, %v1346
          %v1393 = vadd.f32 %v1323, %v1347
          %v1394 = vadd.f32 %v1324, %v1346
          %v1395 = vadd.f32 %v1325, %v1347
          %v1396 = vadd.f32 %v1326, %v1346
          %v1397 = vadd.f32 %v1327, %v1347
          %v1398 = vadd.f32 %v1328, %v1346
          %v1399 = vadd.f32 %v1329, %v1347
          %v1400 = vadd.f32 %v1330, %v1346
          %v1401 = vadd.f32 %v1331, %v1347
          %v1402 = vadd.f32 %v1332, %v1346
          %v1403 = vadd.f32 %v1333, %v1347
          %v1404 = vadd.f32 %v1334, %v1346
          %v1405 = vadd.f32 %v1335, %v1347
          %v1406 = vadd.f32 %v1336, %v1346
          %v1407 = vadd.f32 %v1337, %v1347
          %v1408 = vadd.f32 %v1338, %v1346
          %v1409 = vadd.f32 %v1339, %v1347
          %v1410 = vadd.f32 %v1340, %v1346
          %v1411 = vadd.f32 %v1341, %v1347
          %v1412 = vadd.f32 %v1342, %v1346
          %v1413 = vadd.f32 %v1343, %v1347
          %v1414 = vpack.c.bf16 %v1351, %v1350
          %v1415 = vpack.c.bf16 %v1353, %v1352
          %v1416 = vpack.c.bf16 %v1355, %v1354
          %v1417 = vpack.c.bf16 %v1357, %v1356
          %v1418 = vpack.c.bf16 %v1359, %v1358
          %v1419 = vpack.c.bf16 %v1361, %v1360
          %v1420 = vpack.c.bf16 %v1363, %v1362
          %v1421 = vpack.c.bf16 %v1365, %v1364
          %v1422 = vpack.c.bf16 %v1367, %v1366
          %v1423 = vpack.c.bf16 %v1369, %v1368
          %v1424 = vpack.c.bf16 %v1371, %v1370
          %v1425 = vpack.c.bf16 %v1373, %v1372
          %v1426 = vpack.c.bf16 %v1375, %v1374
          %v1427 = vpack.c.bf16 %v1377, %v1376
          %v1428 = vpack.c.bf16 %v1379, %v1378
          %v1429 = vpack.c.bf16 %v1381, %v1380
          %v1430 = vpack.c.bf16 %v1383, %v1382
          %v1431 = vpack.c.bf16 %v1385, %v1384
          %v1432 = vpack.c.bf16 %v1387, %v1386
          %v1433 = vpack.c.bf16 %v1389, %v1388
          %v1434 = vpack.c.bf16 %v1391, %v1390
          %v1435 = vpack.c.bf16 %v1393, %v1392
          %v1436 = vpack.c.bf16 %v1395, %v1394
          %v1437 = vpack.c.bf16 %v1397, %v1396
          %v1438 = vpack.c.bf16 %v1399, %v1398
          %v1439 = vpack.c.bf16 %v1401, %v1400
          %v1440 = vpack.c.bf16 %v1403, %v1402
          %v1441 = vpack.c.bf16 %v1405, %v1404
          %v1442 = vpack.c.bf16 %v1407, %v1406
          %v1443 = vpack.c.bf16 %v1409, %v1408
          %v1444 = vpack.c.bf16 %v1411, %v1410
          %v1445 = vpack.c.bf16 %v1413, %v1412
          %1446 = vst [vmem:[%s255] sm:$0xff] %v1414
          %1447 = vst [vmem:[%s255 + $0x8] sm:$0xff] %v1415
          %1448 = vst [vmem:[%s255 + $0x10] sm:$0xff] %v1416
          %1449 = vst [vmem:[%s255 + $0x18] sm:$0xff] %v1417
          %1450 = vst [vmem:[%s255 + $0x20] sm:$0xff] %v1418
          %1451 = vst [vmem:[%s255 + $0x28] sm:$0xff] %v1419
          %1452 = vst [vmem:[%s255 + $0x30] sm:$0xff] %v1420
          %1453 = vst [vmem:[%s255 + $0x38] sm:$0xff] %v1421
          %1454 = vst [vmem:[%s255 + $0x40] sm:$0xff] %v1422
          %1455 = vst [vmem:[%s255 + $0x48] sm:$0xff] %v1423
          %1456 = vst [vmem:[%s255 + $0x50] sm:$0xff] %v1424
          %1457 = vst [vmem:[%s255 + $0x58] sm:$0xff] %v1425
          %1458 = vst [vmem:[%s255 + $0x60] sm:$0xff] %v1426
          %1459 = vst [vmem:[%s255 + $0x68] sm:$0xff] %v1427
          %1460 = vst [vmem:[%s255 + $0x70] sm:$0xff] %v1428
          %1461 = vst [vmem:[%s255 + $0x78] sm:$0xff] %v1429
          %1462 = vst [vmem:[%s255 + $0x80] sm:$0xff] %v1430
          %1463 = vst [vmem:[%s255 + $0x88] sm:$0xff] %v1431
          %1464 = vst [vmem:[%s255 + $0x90] sm:$0xff] %v1432
          %1465 = vst [vmem:[%s255 + $0x98] sm:$0xff] %v1433
          %1466 = vst [vmem:[%s255 + $0xa0] sm:$0xff] %v1434
          %1467 = vst [vmem:[%s255 + $0xa8] sm:$0xff] %v1435
          %1468 = vst [vmem:[%s255 + $0xb0] sm:$0xff] %v1436
          %1469 = vst [vmem:[%s255 + $0xb8] sm:$0xff] %v1437
          %1470 = vst [vmem:[%s255 + $0xc0] sm:$0xff] %v1438
          %1471 = vst [vmem:[%s255 + $0xc8] sm:$0xff] %v1439
          %1472 = vst [vmem:[%s255 + $0xd0] sm:$0xff] %v1440
          %1473 = vst [vmem:[%s255 + $0xd8] sm:$0xff] %v1441
          %1474 = vst [vmem:[%s255 + $0xe0] sm:$0xff] %v1442
          %1475 = vst [vmem:[%s255 + $0xe8] sm:$0xff] %v1443
          %1476 = vst [vmem:[%s255 + $0xf0] sm:$0xff] %v1444
          %1477 = vst [vmem:[%s255 + $0xf8] sm:$0xff] %v1445
        $region44: #{self_attention_forward.3} parent=31 // pred_fallthru
          _
        %s1478 = sand.u32 %s128, 1
        %s1479 = sand.u32 %s128, 1
        %s1480 = smul.addr %s1479, 256
        %s1481 = scalar_lea.vmem [#allocation5], %s1480
        // Predicated region
        $region45: #{self_attention_forward.3} parent=31 // pred_check
          %p1482 = pneg %p138
        $region46: #{self_attention_forward.3} parent=31 // pred_check_branch
          %1484 = sbr.rel (%p1482) target = $region48
        $region47: #{self_attention_forward.3} parent=31 // pred_region
          %s1485 = smul.u32 32, %s22
          %s1486 = smul.u32 2, %s23
          %s1487 = smul.addr %s1485, 6
          %s1488 = sadd.s32 %s1486, %s1487
          %s1489 = smul.addr %s1488, 4
          %s1490 = scalar_lea.vmem %s3, %s1489
          // Predicated region
          $region49: #{self_attention_forward.3} parent=47 // pred_check
            _
          $region50: #{self_attention_forward.3} parent=47 // pred_check_branch
            %1492 = sbr.rel (0) target = $region52
          $region51: #{self_attention_forward.3} parent=47 // pred_region
            // Predicated region
            $region53: #{self_attention_forward.3} parent=51 // pred_check
              _
            $region54: #{self_attention_forward.3} parent=51 // pred_check_branch
              %1494 = sbr.rel (0) target = $region56
            $region55: #{self_attention_forward.3} parent=51 // pred_region
              // Predicated region
              $region68: #{self_attention_forward.3} parent=55 // pred_check
                _
              $region69: #{self_attention_forward.3} parent=55 // pred_check_branch
                %1572 = sbr.rel (0) target = $region71
              $region70: #{self_attention_forward.3} parent=55 // pred_region
                loop: start=0, step=1, limit=1
                $region72: #{self_attention_forward.3} parent=70 // loop_pre_header
                  _
                $region73: #{self_attention_forward.3} parent=70 // loop_header
                  %s1574 = sphi 0, %s1578
                  %p1575 = scmp.ge.s32.totalorder %s1574, 1
                  %s1579 = sphi %s1481, %s1481
                  %s1580 = sphi %s1490, %s1490
                $region74: #{self_attention_forward.3} parent=70 // loop_header_branch
                  %1577 = sbr.rel (%p1575) target = $region78
                $region75: #{self_attention_forward.3} parent=70 // loop_body
                  %v1581 = vld [vmem:[%s1579] sm:$0xff]
                  %1582 = vst [vmem:[%s1580] sm:$0xff] %v1581
                  %v1583 = vld [vmem:[%s1579 + $0x8] sm:$0xff]
                  %1584 = vst [vmem:[%s1580 + $0x18] sm:$0xff] %v1583
                  %v1585 = vld [vmem:[%s1579 + $0x10] sm:$0xff]
                  %1586 = vst [vmem:[%s1580 + $0x30] sm:$0xff] %v1585
                  %v1587 = vld [vmem:[%s1579 + $0x18] sm:$0xff]
                  %1588 = vst [vmem:[%s1580 + $0x48] sm:$0xff] %v1587
                  %v1589 = vld [vmem:[%s1579 + $0x20] sm:$0xff]
                  %1590 = vst [vmem:[%s1580 + $0x60] sm:$0xff] %v1589
                  %v1591 = vld [vmem:[%s1579 + $0x28] sm:$0xff]
                  %1592 = vst [vmem:[%s1580 + $0x78] sm:$0xff] %v1591
                  %v1593 = vld [vmem:[%s1579 + $0x30] sm:$0xff]
                  %1594 = vst [vmem:[%s1580 + $0x90] sm:$0xff] %v1593
                  %v1595 = vld [vmem:[%s1579 + $0x38] sm:$0xff]
                  %1596 = vst [vmem:[%s1580 + $0xa8] sm:$0xff] %v1595
                  %v1597 = vld [vmem:[%s1579 + $0x40] sm:$0xff]
                  %1598 = vst [vmem:[%s1580 + $0xc0] sm:$0xff] %v1597
                  %v1599 = vld [vmem:[%s1579 + $0x48] sm:$0xff]
                  %1600 = vst [vmem:[%s1580 + $0xd8] sm:$0xff] %v1599
                  %v1601 = vld [vmem:[%s1579 + $0x50] sm:$0xff]
                  %1602 = vst [vmem:[%s1580 + $0xf0] sm:$0xff] %v1601
                  %v1603 = vld [vmem:[%s1579 + $0x58] sm:$0xff]
                  %1604 = vst [vmem:[%s1580 + $0x108] sm:$0xff] %v1603
                  %v1605 = vld [vmem:[%s1579 + $0x60] sm:$0xff]
                  %1606 = vst [vmem:[%s1580 + $0x120] sm:$0xff] %v1605
                  %v1607 = vld [vmem:[%s1579 + $0x68] sm:$0xff]
                  %1608 = vst [vmem:[%s1580 + $0x138] sm:$0xff] %v1607
                  %v1609 = vld [vmem:[%s1579 + $0x70] sm:$0xff]
                  %1610 = vst [vmem:[%s1580 + $0x150] sm:$0xff] %v1609
                  %v1611 = vld [vmem:[%s1579 + $0x78] sm:$0xff]
                  %1612 = vst [vmem:[%s1580 + $0x168] sm:$0xff] %v1611
                  %v1613 = vld [vmem:[%s1579 + $0x80] sm:$0xff]
                  %1614 = vst [vmem:[%s1580 + $0x180] sm:$0xff] %v1613
                  %v1615 = vld [vmem:[%s1579 + $0x88] sm:$0xff]
                  %1616 = vst [vmem:[%s1580 + $0x198] sm:$0xff] %v1615
                  %v1617 = vld [vmem:[%s1579 + $0x90] sm:$0xff]
                  %1618 = vst [vmem:[%s1580 + $0x1b0] sm:$0xff] %v1617
                  %v1619 = vld [vmem:[%s1579 + $0x98] sm:$0xff]
                  %1620 = vst [vmem:[%s1580 + $0x1c8] sm:$0xff] %v1619
                  %v1621 = vld [vmem:[%s1579 + $0xa0] sm:$0xff]
                  %1622 = vst [vmem:[%s1580 + $0x1e0] sm:$0xff] %v1621
                  %v1623 = vld [vmem:[%s1579 + $0xa8] sm:$0xff]
                  %1624 = vst [vmem:[%s1580 + $0x1f8] sm:$0xff] %v1623
                  %v1625 = vld [vmem:[%s1579 + $0xb0] sm:$0xff]
                  %1626 = vst [vmem:[%s1580 + $0x210] sm:$0xff] %v1625
                  %v1627 = vld [vmem:[%s1579 + $0xb8] sm:$0xff]
                  %1628 = vst [vmem:[%s1580 + $0x228] sm:$0xff] %v1627
                  %v1629 = vld [vmem:[%s1579 + $0xc0] sm:$0xff]
                  %1630 = vst [vmem:[%s1580 + $0x240] sm:$0xff] %v1629
                  %v1631 = vld [vmem:[%s1579 + $0xc8] sm:$0xff]
                  %1632 = vst [vmem:[%s1580 + $0x258] sm:$0xff] %v1631
                  %v1633 = vld [vmem:[%s1579 + $0xd0] sm:$0xff]
                  %1634 = vst [vmem:[%s1580 + $0x270] sm:$0xff] %v1633
                  %v1635 = vld [vmem:[%s1579 + $0xd8] sm:$0xff]
                  %1636 = vst [vmem:[%s1580 + $0x288] sm:$0xff] %v1635
                  %v1637 = vld [vmem:[%s1579 + $0xe0] sm:$0xff]
                  %1638 = vst [vmem:[%s1580 + $0x2a0] sm:$0xff] %v1637
                  %v1639 = vld [vmem:[%s1579 + $0xe8] sm:$0xff]
                  %1640 = vst [vmem:[%s1580 + $0x2b8] sm:$0xff] %v1639
                  %v1641 = vld [vmem:[%s1579 + $0xf0] sm:$0xff]
                  %1642 = vst [vmem:[%s1580 + $0x2d0] sm:$0xff] %v1641
                  %v1643 = vld [vmem:[%s1579 + $0xf8] sm:$0xff]
                  %1644 = vst [vmem:[%s1580 + $0x2e8] sm:$0xff] %v1643
                $region76: #{self_attention_forward.3} parent=70 // loop_footer
                  %s1578 = sadd.s32 1, %s1574
                $region77: #{self_attention_forward.3} parent=70 // loop_footer_branch
                  %1573 = sbr.rel target = $region73
                $region78: #{self_attention_forward.3} parent=70 // loop_exit
                  _
              $region71: #{self_attention_forward.3} parent=55 // pred_fallthru
                _
              // Predicated region
              $region79: #{self_attention_forward.3} parent=55 // pred_check
                _
              $region80: #{self_attention_forward.3} parent=55 // pred_check_branch
                %1646 = sbr.rel target = $region82
              $region81: #{self_attention_forward.3} parent=55 // pred_region
                _
              $region82: #{self_attention_forward.3} parent=55 // pred_fallthru
                _
            $region56: #{self_attention_forward.3} parent=51 // pred_fallthru
              _
            // Predicated region
            $region57: #{self_attention_forward.3} parent=51 // pred_check
              _
            $region58: #{self_attention_forward.3} parent=51 // pred_check_branch
              %1496 = sbr.rel target = $region60
            $region59: #{self_attention_forward.3} parent=51 // pred_region
              %s1498 = ssub.s32 256, 1
              loop: start=0, step=1, limit=1
              $region61: #{self_attention_forward.3} parent=59 // loop_pre_header
                _
              $region62: #{self_attention_forward.3} parent=59 // loop_header
                %s1500 = sphi 0, %s1504
                %p1501 = scmp.ge.s32.totalorder %s1500, 1
                %s1505 = sphi %s1481, %s1481
                %s1506 = sphi %s1490, %s1490
              $region63: #{self_attention_forward.3} parent=59 // loop_header_branch
                %1503 = sbr.rel (%p1501) target = $region67
              $region64: #{self_attention_forward.3} parent=59 // loop_body
                %v1507 = vld [vmem:[%s1505] sm:%s1498]
                %1508 = vst [vmem:[%s1506] sm:%s1498] %v1507
                %v1509 = vld [vmem:[%s1505 + $0x8] sm:%s1498]
                %1510 = vst [vmem:[%s1506 + $0x18] sm:%s1498] %v1509
                %v1511 = vld [vmem:[%s1505 + $0x10] sm:%s1498]
                %1512 = vst [vmem:[%s1506 + $0x30] sm:%s1498] %v1511
                %v1513 = vld [vmem:[%s1505 + $0x18] sm:%s1498]
                %1514 = vst [vmem:[%s1506 + $0x48] sm:%s1498] %v1513
                %v1515 = vld [vmem:[%s1505 + $0x20] sm:%s1498]
                %1516 = vst [vmem:[%s1506 + $0x60] sm:%s1498] %v1515
                %v1517 = vld [vmem:[%s1505 + $0x28] sm:%s1498]
                %1518 = vst [vmem:[%s1506 + $0x78] sm:%s1498] %v1517
                %v1519 = vld [vmem:[%s1505 + $0x30] sm:%s1498]
                %1520 = vst [vmem:[%s1506 + $0x90] sm:%s1498] %v1519
                %v1521 = vld [vmem:[%s1505 + $0x38] sm:%s1498]
                %1522 = vst [vmem:[%s1506 + $0xa8] sm:%s1498] %v1521
                %v1523 = vld [vmem:[%s1505 + $0x40] sm:%s1498]
                %1524 = vst [vmem:[%s1506 + $0xc0] sm:%s1498] %v1523
                %v1525 = vld [vmem:[%s1505 + $0x48] sm:%s1498]
                %1526 = vst [vmem:[%s1506 + $0xd8] sm:%s1498] %v1525
                %v1527 = vld [vmem:[%s1505 + $0x50] sm:%s1498]
                %1528 = vst [vmem:[%s1506 + $0xf0] sm:%s1498] %v1527
                %v1529 = vld [vmem:[%s1505 + $0x58] sm:%s1498]
                %1530 = vst [vmem:[%s1506 + $0x108] sm:%s1498] %v1529
                %v1531 = vld [vmem:[%s1505 + $0x60] sm:%s1498]
                %1532 = vst [vmem:[%s1506 + $0x120] sm:%s1498] %v1531
                %v1533 = vld [vmem:[%s1505 + $0x68] sm:%s1498]
                %1534 = vst [vmem:[%s1506 + $0x138] sm:%s1498] %v1533
                %v1535 = vld [vmem:[%s1505 + $0x70] sm:%s1498]
                %1536 = vst [vmem:[%s1506 + $0x150] sm:%s1498] %v1535
                %v1537 = vld [vmem:[%s1505 + $0x78] sm:%s1498]
                %1538 = vst [vmem:[%s1506 + $0x168] sm:%s1498] %v1537
                %v1539 = vld [vmem:[%s1505 + $0x80] sm:%s1498]
                %1540 = vst [vmem:[%s1506 + $0x180] sm:%s1498] %v1539
                %v1541 = vld [vmem:[%s1505 + $0x88] sm:%s1498]
                %1542 = vst [vmem:[%s1506 + $0x198] sm:%s1498] %v1541
                %v1543 = vld [vmem:[%s1505 + $0x90] sm:%s1498]
                %1544 = vst [vmem:[%s1506 + $0x1b0] sm:%s1498] %v1543
                %v1545 = vld [vmem:[%s1505 + $0x98] sm:%s1498]
                %1546 = vst [vmem:[%s1506 + $0x1c8] sm:%s1498] %v1545
                %v1547 = vld [vmem:[%s1505 + $0xa0] sm:%s1498]
                %1548 = vst [vmem:[%s1506 + $0x1e0] sm:%s1498] %v1547
                %v1549 = vld [vmem:[%s1505 + $0xa8] sm:%s1498]
                %1550 = vst [vmem:[%s1506 + $0x1f8] sm:%s1498] %v1549
                %v1551 = vld [vmem:[%s1505 + $0xb0] sm:%s1498]
                %1552 = vst [vmem:[%s1506 + $0x210] sm:%s1498] %v1551
                %v1553 = vld [vmem:[%s1505 + $0xb8] sm:%s1498]
                %1554 = vst [vmem:[%s1506 + $0x228] sm:%s1498] %v1553
                %v1555 = vld [vmem:[%s1505 + $0xc0] sm:%s1498]
                %1556 = vst [vmem:[%s1506 + $0x240] sm:%s1498] %v1555
                %v1557 = vld [vmem:[%s1505 + $0xc8] sm:%s1498]
                %1558 = vst [vmem:[%s1506 + $0x258] sm:%s1498] %v1557
                %v1559 = vld [vmem:[%s1505 + $0xd0] sm:%s1498]
                %1560 = vst [vmem:[%s1506 + $0x270] sm:%s1498] %v1559
                %v1561 = vld [vmem:[%s1505 + $0xd8] sm:%s1498]
                %1562 = vst [vmem:[%s1506 + $0x288] sm:%s1498] %v1561
                %v1563 = vld [vmem:[%s1505 + $0xe0] sm:%s1498]
                %1564 = vst [vmem:[%s1506 + $0x2a0] sm:%s1498] %v1563
                %v1565 = vld [vmem:[%s1505 + $0xe8] sm:%s1498]
                %1566 = vst [vmem:[%s1506 + $0x2b8] sm:%s1498] %v1565
                %v1567 = vld [vmem:[%s1505 + $0xf0] sm:%s1498]
                %1568 = vst [vmem:[%s1506 + $0x2d0] sm:%s1498] %v1567
                %v1569 = vld [vmem:[%s1505 + $0xf8] sm:%s1498]
                %1570 = vst [vmem:[%s1506 + $0x2e8] sm:%s1498] %v1569
              $region65: #{self_attention_forward.3} parent=59 // loop_footer
                %s1504 = sadd.s32 1, %s1500
              $region66: #{self_attention_forward.3} parent=59 // loop_footer_branch
                %1499 = sbr.rel target = $region62
              $region67: #{self_attention_forward.3} parent=59 // loop_exit
                _
            $region60: #{self_attention_forward.3} parent=51 // pred_fallthru
              _
          $region52: #{self_attention_forward.3} parent=47 // pred_fallthru
            _
          %1647 = vnop
        $region48: #{self_attention_forward.3} parent=31 // pred_fallthru
          _
      $region32: #{self_attention_forward.3} parent=5 // pred_fallthru
        _
      %p1648 = scmp.le.s32.totalorder 2, %s12
      // Predicated region
      $region83: #{self_attention_forward.3} parent=5 // pred_check
        %p1649 = pneg %p1648
      $region84: #{self_attention_forward.3} parent=5 // pred_check_branch
        %1651 = sbr.rel (%p1649) target = $region86
      $region85: #{self_attention_forward.3} parent=5 // pred_region
        %s1652 = ssub.s32 %s12, 2
        // Predicated region
        $region87: #{self_attention_forward.3} parent=85 // pred_check
          %p1653 = pneg %p144
        $region88: #{self_attention_forward.3} parent=85 // pred_check_branch
          %1655 = sbr.rel (%p1653) target = $region90
        $region89: #{self_attention_forward.3} parent=85 // pred_region
          %s1656 = sand.u32 %s129, 1
          %s1657 = sand.u32 %s129, 1
          %s1658 = smul.addr %s1657, 256
          %s1659 = scalar_lea.vmem [#allocation5], %s1658
        $region90: #{self_attention_forward.3} parent=85 // pred_fallthru
          _
      $region86: #{self_attention_forward.3} parent=5 // pred_fallthru
        _
    $region6: #{self_attention_forward.3} parent=1 // loop_footer
      %s16 = sadd.s32 1, %s12
    $region7: #{self_attention_forward.3} parent=1 // loop_footer_branch
      %11 = sbr.rel target = $region3
    $region8: #{self_attention_forward.3} parent=1 // loop_exit
      _
    %1660 = vsyncpa [#allocation4], 1
    %s1661 = scalar_lea.sflag [#allocation4], 1
    %1662 = vsyncpa %s1661, 1

// kernel: self_attention_forward.4
$region0: #{self_attention_forward.4}
  #allocation0 [shape = 'u32[]', space=smem, size = 0x4, offset = 0x4, fixed_abs, tag = 'smem constant byte address 0x4 - core index']
  #allocation1 [shape = 'u32[72,128]{1,0:T(1,128)}', space=vmem, size = 0x9000, scoped, tag = 'internal scratch']
  %s0 = inlined_call_operand.vmem [shape: s32[2,1,128], index: 0, kind: input, shape index: {}]
  %s1 = inlined_call_operand.vmem [shape: bf16[2,128,768], index: 1, kind: input, shape index: {}, may-alias: {1,2,3}]
  %s2 = inlined_call_operand.vmem [shape: bf16[2,128,768], index: 2, kind: input, shape index: {}, may-alias: {1,2,3}]
  %s3 = inlined_call_operand.vmem [shape: bf16[2,128,768], index: 3, kind: input, shape index: {}, may-alias: {1,2,3}]
  %s4 = inlined_call_operand.vmem [shape: bf16[2,128,256], index: 4, kind: input, shape index: {}]
  %s5 = inlined_call_operand.vmem [shape: bf16[256,256], index: 5, kind: input, shape index: {}]
  %s6 = inlined_call_operand.vmem [shape: f32[1,256], index: 6, kind: input, shape index: {}]
  %s7 = inlined_call_operand.vmem [shape: f32[1,256], index: 7, kind: input, shape index: {}]
  %s8 = inlined_call_operand.vmem [shape: bf16[2,128,256], index: 8, kind: output, shape index: {}]
  %s9 = sld [smem:[#allocation0]]
  $region266: #{self_attention_forward.4} parent=0
    _
  %s11 = ssub.s32 1, %s9
  %s12 = scalar_select 0, %s11, %s9
  $region1: #{self_attention_forward.4} parent=0
    #allocation2 [shape = 'u8[65536]{0}', space=vmem, size = 0x10000, scoped, tag = 'input window, operand 1']
    #allocation3 [shape = 'u8[65536]{0}', space=vmem, size = 0x10000, scoped, tag = 'input window, operand 2']
    #allocation4 [shape = 'u8[65536]{0}', space=vmem, size = 0x10000, scoped, tag = 'input window, operand 3']
    #allocation5 [shape = 'u8[131072]{0}', space=vmem, size = 0x20000, scoped, tag = 'input window, operand 5']
    #allocation6 [shape = 'u8[65536]{0}', space=vmem, size = 0x10000, scoped, tag = 'output window, operand 0']
    loop: start=0, step=1, limit=6
    $region2: #{self_attention_forward.4} parent=1 // loop_pre_header
      _
    $region3: #{self_attention_forward.4} parent=1 // loop_header
      %s14 = sphi 0, %s18
      %p15 = scmp.ge.s32.totalorder %s14, 6
      %s21 = sphi 0, %s33
      %s22 = sphi 0, %s29
      %s23 = sphi 0, %s21
      %s24 = sphi 0, %s22
      %s25 = sphi 0, %s23
      %s26 = sphi 0, %s24
      %s36 = sphi 0, %s38
      %s39 = sphi 0, %s36
      %s40 = sphi 0, %s39
      %s56 = sphi 0, %s40
      %s64 = sphi 0, %s66
      %s67 = sphi 0, %s64
      %s68 = sphi 0, %s67
      %s84 = sphi 0, %s68
      %s94 = sphi 0, %s96
      %s97 = sphi 0, %s94
      %s98 = sphi 0, %s97
      %s114 = sphi 0, %s98
      %s124 = sphi 0, %s126
      %s127 = sphi 0, %s124
      %s128 = sphi 0, %s127
      %s144 = sphi 0, %s128
      %s150 = sphi 0, %s152
      %s153 = sphi 0, %s150
      %s154 = sphi 0, %s153
      %s170 = sphi 0, %s154
      %s176 = sphi 0, %s178
      %s179 = sphi 0, %s176
      %s180 = sphi 0, %s179
      %s196 = sphi 0, %s180
      %s202 = sphi 0, %s204
      %s205 = sphi 0, %s202
      %s206 = sphi 0, %s205
      %s222 = sphi 0, %s206
      %s228 = sphi 0, %s230
      %s231 = sphi 0, %s228
      %s232 = sphi 0, %s231
      %s248 = sphi 0, %s232
      %s256 = sphi 0, %s258
      %s259 = sphi 0, %s256
      %s260 = sphi 0, %s259
      %s276 = sphi 0, %s260
    $region4: #{self_attention_forward.4} parent=1 // loop_header_branch
      %17 = sbr.rel (%p15) target = $region8
    $region5: #{self_attention_forward.4} parent=1 // loop_body
      %s19 = ssub.s32 %s14, 1
      %s20 = ssub.s32 %s14, 2
      %s27 = sadd.s32 1, %s22
      %p28 = scmp.ge.s32.totalorder %s27, 2
      %s29 = scalar_select %p28, 0, %s27
      %s30 = sadd.s32 1, %s21
      %s31 = scalar_select %p28, %s30, %s21
      %p32 = scmp.ge.s32.totalorder %s31, 2
      %s33 = scalar_select %p32, 0, %s31
      %s34 = ssub.s32 %s21, %s33
      %p35 = scmp.eq.s32.totalorder %s34, 0
      %s37 = sadd.s32 %s36, 1
      %s38 = scalar_select %p35, %s36, %s37
      %p41 = pneg %p35
      %p42 = scmp.eq.s32.totalorder %s14, 3
      %p43 = por %p41, %p42
      %p44 = scmp.ne.s32.totalorder %s36, %s39
      %p45 = scmp.eq.s32.totalorder %s14, 0
      %p46 = por %p44, %p45
      %p47 = scmp.ne.s32.totalorder %s36, %s39
      %p48 = scmp.eq.s32.totalorder %s19, 3
      %p49 = por %p47, %p48
      %p50 = scmp.ne.s32.totalorder %s39, %s40
      %p51 = scmp.eq.s32.totalorder %s19, 0
      %p52 = por %p50, %p51
      %p53 = scmp.ne.s32.totalorder %s39, %s40
      %p54 = scmp.eq.s32.totalorder %s20, 3
      %p55 = por %p53, %p54
      %p57 = scmp.ne.s32.totalorder %s40, %s56
      %p58 = scmp.eq.s32.totalorder %s20, 0
      %p59 = por %p57, %p58
      %s60 = ssub.s32 %s21, %s33
      %s61 = ssub.s32 %s22, %s29
      %s62 = sor.u32 %s60, %s61
      %p63 = scmp.eq.s32.totalorder %s62, 0
      %s65 = sadd.s32 %s64, 1
      %s66 = scalar_select %p63, %s64, %s65
      %p69 = pneg %p63
      %p70 = scmp.eq.s32.totalorder %s14, 3
      %p71 = por %p69, %p70
      %p72 = scmp.ne.s32.totalorder %s64, %s67
      %p73 = scmp.eq.s32.totalorder %s14, 0
      %p74 = por %p72, %p73
      %p75 = scmp.ne.s32.totalorder %s64, %s67
      %p76 = scmp.eq.s32.totalorder %s19, 3
      %p77 = por %p75, %p76
      %p78 = scmp.ne.s32.totalorder %s67, %s68
      %p79 = scmp.eq.s32.totalorder %s19, 0
      %p80 = por %p78, %p79
      %p81 = scmp.ne.s32.totalorder %s67, %s68
      %p82 = scmp.eq.s32.totalorder %s20, 3
      %p83 = por %p81, %p82
      %p85 = scmp.ne.s32.totalorder %s68, %s84
      %p86 = scmp.eq.s32.totalorder %s20, 0
      %p87 = por %p85, %p86
      %s88 = sadd.s32 %s22, 2
      %s89 = sadd.s32 %s29, 2
      %s90 = ssub.s32 %s21, %s33
      %s91 = ssub.s32 %s88, %s89
      %s92 = sor.u32 %s90, %s91
      %p93 = scmp.eq.s32.totalorder %s92, 0
      %s95 = sadd.s32 %s94, 1
      %s96 = scalar_select %p93, %s94, %s95
      %p99 = pneg %p93
      %p100 = scmp.eq.s32.totalorder %s14, 3
      %p101 = por %p99, %p100
      %p102 = scmp.ne.s32.totalorder %s94, %s97
      %p103 = scmp.eq.s32.totalorder %s14, 0
      %p104 = por %p102, %p103
      %p105 = scmp.ne.s32.totalorder %s94, %s97
      %p106 = scmp.eq.s32.totalorder %s19, 3
      %p107 = por %p105, %p106
      %p108 = scmp.ne.s32.totalorder %s97, %s98
      %p109 = scmp.eq.s32.totalorder %s19, 0
      %p110 = por %p108, %p109
      %p111 = scmp.ne.s32.totalorder %s97, %s98
      %p112 = scmp.eq.s32.totalorder %s20, 3
      %p113 = por %p111, %p112
      %p115 = scmp.ne.s32.totalorder %s98, %s114
      %p116 = scmp.eq.s32.totalorder %s20, 0
      %p117 = por %p115, %p116
      %s118 = sadd.s32 %s22, 4
      %s119 = sadd.s32 %s29, 4
      %s120 = ssub.s32 %s21, %s33
      %s121 = ssub.s32 %s118, %s119
      %s122 = sor.u32 %s120, %s121
      %p123 = scmp.eq.s32.totalorder %s122, 0
      %s125 = sadd.s32 %s124, 1
      %s126 = scalar_select %p123, %s124, %s125
      %p129 = pneg %p123
      %p130 = scmp.eq.s32.totalorder %s14, 3
      %p131 = por %p129, %p130
      %p132 = scmp.ne.s32.totalorder %s124, %s127
      %p133 = scmp.eq.s32.totalorder %s14, 0
      %p134 = por %p132, %p133
      %p135 = scmp.ne.s32.totalorder %s124, %s127
      %p136 = scmp.eq.s32.totalorder %s19, 3
      %p137 = por %p135, %p136
      %p138 = scmp.ne.s32.totalorder %s127, %s128
      %p139 = scmp.eq.s32.totalorder %s19, 0
      %p140 = por %p138, %p139
      %p141 = scmp.ne.s32.totalorder %s127, %s128
      %p142 = scmp.eq.s32.totalorder %s20, 3
      %p143 = por %p141, %p142
      %p145 = scmp.ne.s32.totalorder %s128, %s144
      %p146 = scmp.eq.s32.totalorder %s20, 0
      %p147 = por %p145, %p146
      %s148 = ssub.s32 %s21, %s33
      %p149 = scmp.eq.s32.totalorder %s148, 0
      %s151 = sadd.s32 %s150, 1
      %s152 = scalar_select %p149, %s150, %s151
      %p155 = pneg %p149
      %p156 = scmp.eq.s32.totalorder %s14, 3
      %p157 = por %p155, %p156
      %p158 = scmp.ne.s32.totalorder %s150, %s153
      %p159 = scmp.eq.s32.totalorder %s14, 0
      %p160 = por %p158, %p159
      %p161 = scmp.ne.s32.totalorder %s150, %s153
      %p162 = scmp.eq.s32.totalorder %s19, 3
      %p163 = por %p161, %p162
      %p164 = scmp.ne.s32.totalorder %s153, %s154
      %p165 = scmp.eq.s32.totalorder %s19, 0
      %p166 = por %p164, %p165
      %p167 = scmp.ne.s32.totalorder %s153, %s154
      %p168 = scmp.eq.s32.totalorder %s20, 3
      %p169 = por %p167, %p168
      %p171 = scmp.ne.s32.totalorder %s154, %s170
      %p172 = scmp.eq.s32.totalorder %s20, 0
      %p173 = por %p171, %p172
      %s174 = ssub.s32 %s22, %s29
      %p175 = scmp.eq.s32.totalorder %s174, 0
      %s177 = sadd.s32 %s176, 1
      %s178 = scalar_select %p175, %s176, %s177
      %p181 = pneg %p175
      %p182 = scmp.eq.s32.totalorder %s14, 3
      %p183 = por %p181, %p182
      %p184 = scmp.ne.s32.totalorder %s176, %s179
      %p185 = scmp.eq.s32.totalorder %s14, 0
      %p186 = por %p184, %p185
      %p187 = scmp.ne.s32.totalorder %s176, %s179
      %p188 = scmp.eq.s32.totalorder %s19, 3
      %p189 = por %p187, %p188
      %p190 = scmp.ne.s32.totalorder %s179, %s180
      %p191 = scmp.eq.s32.totalorder %s19, 0
      %p192 = por %p190, %p191
      %p193 = scmp.ne.s32.totalorder %s179, %s180
      %p194 = scmp.eq.s32.totalorder %s20, 3
      %p195 = por %p193, %p194
      %p197 = scmp.ne.s32.totalorder %s180, %s196
      %p198 = scmp.eq.s32.totalorder %s20, 0
      %p199 = por %p197, %p198
      %s200 = ssub.s32 %s22, %s29
      %p201 = scmp.eq.s32.totalorder %s200, 0
      %s203 = sadd.s32 %s202, 1
      %s204 = scalar_select %p201, %s202, %s203
      %p207 = pneg %p201
      %p208 = scmp.eq.s32.totalorder %s14, 3
      %p209 = por %p207, %p208
      %p210 = scmp.ne.s32.totalorder %s202, %s205
      %p211 = scmp.eq.s32.totalorder %s14, 0
      %p212 = por %p210, %p211
      %p213 = scmp.ne.s32.totalorder %s202, %s205
      %p214 = scmp.eq.s32.totalorder %s19, 3
      %p215 = por %p213, %p214
      %p216 = scmp.ne.s32.totalorder %s205, %s206
      %p217 = scmp.eq.s32.totalorder %s19, 0
      %p218 = por %p216, %p217
      %p219 = scmp.ne.s32.totalorder %s205, %s206
      %p220 = scmp.eq.s32.totalorder %s20, 3
      %p221 = por %p219, %p220
      %p223 = scmp.ne.s32.totalorder %s206, %s222
      %p224 = scmp.eq.s32.totalorder %s20, 0
      %p225 = por %p223, %p224
      %s226 = ssub.s32 %s22, %s29
      %p227 = scmp.eq.s32.totalorder %s226, 0
      %s229 = sadd.s32 %s228, 1
      %s230 = scalar_select %p227, %s228, %s229
      %p233 = pneg %p227
      %p234 = scmp.eq.s32.totalorder %s14, 3
      %p235 = por %p233, %p234
      %p236 = scmp.ne.s32.totalorder %s228, %s231
      %p237 = scmp.eq.s32.totalorder %s14, 0
      %p238 = por %p236, %p237
      %p239 = scmp.ne.s32.totalorder %s228, %s231
      %p240 = scmp.eq.s32.totalorder %s19, 3
      %p241 = por %p239, %p240
      %p242 = scmp.ne.s32.totalorder %s231, %s232
      %p243 = scmp.eq.s32.totalorder %s19, 0
      %p244 = por %p242, %p243
      %p245 = scmp.ne.s32.totalorder %s231, %s232
      %p246 = scmp.eq.s32.totalorder %s20, 3
      %p247 = por %p245, %p246
      %p249 = scmp.ne.s32.totalorder %s232, %s248
      %p250 = scmp.eq.s32.totalorder %s20, 0
      %p251 = por %p249, %p250
      %s252 = ssub.s32 %s21, %s33
      %s253 = ssub.s32 %s22, %s29
      %s254 = sor.u32 %s252, %s253
      %p255 = scmp.eq.s32.totalorder %s254, 0
      %s257 = sadd.s32 %s256, 1
      %s258 = scalar_select %p255, %s256, %s257
      %p261 = pneg %p255
      %p262 = scmp.eq.s32.totalorder %s14, 3
      %p263 = por %p261, %p262
      %p264 = scmp.ne.s32.totalorder %s256, %s259
      %p265 = scmp.eq.s32.totalorder %s14, 0
      %p266 = por %p264, %p265
      %p267 = scmp.ne.s32.totalorder %s256, %s259
      %p268 = scmp.eq.s32.totalorder %s19, 3
      %p269 = por %p267, %p268
      %p270 = scmp.ne.s32.totalorder %s259, %s260
      %p271 = scmp.eq.s32.totalorder %s19, 0
      %p272 = por %p270, %p271
      %p273 = scmp.ne.s32.totalorder %s259, %s260
      %p274 = scmp.eq.s32.totalorder %s20, 3
      %p275 = por %p273, %p274
      %p277 = scmp.ne.s32.totalorder %s260, %s276
      %p278 = scmp.eq.s32.totalorder %s20, 0
      %p279 = por %p277, %p278
      %p280 = scmp.le.s32.totalorder 1, %s14
      %p281 = scmp.lt.s32.totalorder %s14, 5
      %p282 = pnand %p280, %p281
      %p283 = pneg %p282
      // Predicated region
      $region9: #{self_attention_forward.4} parent=5 // pred_check
        _
      $region10: #{self_attention_forward.4} parent=5 // pred_check_branch
        %285 = sbr.rel (%p282) target = $region12
      $region11: #{self_attention_forward.4} parent=5 // pred_region
        %s286 = ssub.s32 %s14, 1
      $region12: #{self_attention_forward.4} parent=5 // pred_fallthru
        _
      %p287 = scmp.lt.s32.totalorder %s14, 4
      // Predicated region
      $region13: #{self_attention_forward.4} parent=5 // pred_check
        %p288 = pneg %p287
      $region14: #{self_attention_forward.4} parent=5 // pred_check_branch
        %290 = sbr.rel (%p288) target = $region16
      $region15: #{self_attention_forward.4} parent=5 // pred_region
        // Predicated region
        $region17: #{self_attention_forward.4} parent=15 // pred_check
          %p291 = pneg %p46
        $region18: #{self_attention_forward.4} parent=15 // pred_check_branch
          %293 = sbr.rel (%p291) target = $region20
        $region19: #{self_attention_forward.4} parent=15 // pred_region
          %p294 = scmp.lt.s32.totalorder %s21, 1
          %s295 = scalar_select %p294, %s21, 1
          %s296 = scalar_lea.vmem %s0, %s295
        $region20: #{self_attention_forward.4} parent=15 // pred_fallthru
          _
        // Predicated region
        $region21: #{self_attention_forward.4} parent=15 // pred_check
          %p297 = pneg %p74
        $region22: #{self_attention_forward.4} parent=15 // pred_check_branch
          %299 = sbr.rel (%p297) target = $region24
        $region23: #{self_attention_forward.4} parent=15 // pred_region
          %s300 = sand.u32 %s64, 1
          %s301 = sand.u32 %s64, 1
          %s302 = smul.addr %s301, 64
          %s303 = scalar_lea.vmem [#allocation2], %s302
          %s304 = smul.addr %s21, 96
          %s305 = sadd.s32 %s22, %s304
          %s306 = smul.addr %s305, 4
          %s307 = scalar_lea.vmem %s1, %s306
          // Predicated region
          $region25: #{self_attention_forward.4} parent=23 // pred_check
            _
          $region26: #{self_attention_forward.4} parent=23 // pred_check_branch
            %309 = sbr.rel (0) target = $region28
          $region27: #{self_attention_forward.4} parent=23 // pred_region
            // Predicated region
            $region29: #{self_attention_forward.4} parent=27 // pred_check
              _
            $region30: #{self_attention_forward.4} parent=27 // pred_check_branch
              %311 = sbr.rel target = $region32
            $region31: #{self_attention_forward.4} parent=27 // pred_region
              // Predicated region
              $region44: #{self_attention_forward.4} parent=31 // pred_check
                _
              $region45: #{self_attention_forward.4} parent=31 // pred_check_branch
                %357 = sbr.rel (0) target = $region47
              $region46: #{self_attention_forward.4} parent=31 // pred_region
                loop: start=0, step=1, limit=1
                $region48: #{self_attention_forward.4} parent=46 // loop_pre_header
                  _
                $region49: #{self_attention_forward.4} parent=46 // loop_header
                  %s359 = sphi 0, %s363
                  %p360 = scmp.ge.s32.totalorder %s359, 1
                  %s364 = sphi %s307, %s307
                  %s365 = sphi %s303, %s303
                $region50: #{self_attention_forward.4} parent=46 // loop_header_branch
                  %362 = sbr.rel (%p360) target = $region54
                $region51: #{self_attention_forward.4} parent=46 // loop_body
                  _
                $region52: #{self_attention_forward.4} parent=46 // loop_footer
                  %s363 = sadd.s32 1, %s359
                $region53: #{self_attention_forward.4} parent=46 // loop_footer_branch
                  %358 = sbr.rel target = $region49
                $region54: #{self_attention_forward.4} parent=46 // loop_exit
                  _
                %s367 = ssub.s32 16, 1
                loop: start=0, step=1, limit=1
                $region55: #{self_attention_forward.4} parent=46 // loop_pre_header
                  _
                $region56: #{self_attention_forward.4} parent=46 // loop_header
                  %s369 = sphi 0, %s373
                  %p370 = scmp.ge.s32.totalorder %s369, 1
                  %s374 = sphi %s307, %s307
                  %s375 = sphi %s303, %s303
                $region57: #{self_attention_forward.4} parent=46 // loop_header_branch
                  %372 = sbr.rel (%p370) target = $region61
                $region58: #{self_attention_forward.4} parent=46 // loop_body
                  %v376 = vld [vmem:[%s374] sm:%s367]
                  %377 = vst [vmem:[%s375] sm:%s367] %v376
                  %v378 = vld [vmem:[%s374 + $0x18] sm:%s367]
                  %379 = vst [vmem:[%s375 + $0x4] sm:%s367] %v378
                  %v380 = vld [vmem:[%s374 + $0x30] sm:%s367]
                  %381 = vst [vmem:[%s375 + $0x8] sm:%s367] %v380
                  %v382 = vld [vmem:[%s374 + $0x48] sm:%s367]
                  %383 = vst [vmem:[%s375 + $0xc] sm:%s367] %v382
                  %v384 = vld [vmem:[%s374 + $0x60] sm:%s367]
                  %385 = vst [vmem:[%s375 + $0x10] sm:%s367] %v384
                  %v386 = vld [vmem:[%s374 + $0x78] sm:%s367]
                  %387 = vst [vmem:[%s375 + $0x14] sm:%s367] %v386
                  %v388 = vld [vmem:[%s374 + $0x90] sm:%s367]
                  %389 = vst [vmem:[%s375 + $0x18] sm:%s367] %v388
                  %v390 = vld [vmem:[%s374 + $0xa8] sm:%s367]
                  %391 = vst [vmem:[%s375 + $0x1c] sm:%s367] %v390
                  %v392 = vld [vmem:[%s374 + $0xc0] sm:%s367]
                  %393 = vst [vmem:[%s375 + $0x20] sm:%s367] %v392
                  %v394 = vld [vmem:[%s374 + $0xd8] sm:%s367]
                  %395 = vst [vmem:[%s375 + $0x24] sm:%s367] %v394
                  %v396 = vld [vmem:[%s374 + $0xf0] sm:%s367]
                  %397 = vst [vmem:[%s375 + $0x28] sm:%s367] %v396
                  %v398 = vld [vmem:[%s374 + $0x108] sm:%s367]
                  %399 = vst [vmem:[%s375 + $0x2c] sm:%s367] %v398
                  %v400 = vld [vmem:[%s374 + $0x120] sm:%s367]
                  %401 = vst [vmem:[%s375 + $0x30] sm:%s367] %v400
                  %v402 = vld [vmem:[%s374 + $0x138] sm:%s367]
                  %403 = vst [vmem:[%s375 + $0x34] sm:%s367] %v402
                  %v404 = vld [vmem:[%s374 + $0x150] sm:%s367]
                  %405 = vst [vmem:[%s375 + $0x38] sm:%s367] %v404
                  %v406 = vld [vmem:[%s374 + $0x168] sm:%s367]
                  %407 = vst [vmem:[%s375 + $0x3c] sm:%s367] %v406
                $region59: #{self_attention_forward.4} parent=46 // loop_footer
                  %s373 = sadd.s32 1, %s369
                $region60: #{self_attention_forward.4} parent=46 // loop_footer_branch
                  %368 = sbr.rel target = $region56
                $region61: #{self_attention_forward.4} parent=46 // loop_exit
                  _
              $region47: #{self_attention_forward.4} parent=31 // pred_fallthru
                _
            $region32: #{self_attention_forward.4} parent=27 // pred_fallthru
              _
            // Predicated region
            $region33: #{self_attention_forward.4} parent=27 // pred_check
              _
            $region34: #{self_attention_forward.4} parent=27 // pred_check_branch
              %313 = sbr.rel (0) target = $region36
            $region35: #{self_attention_forward.4} parent=27 // pred_region
              %s315 = ssub.s32 16, 1
              loop: start=0, step=1, limit=1
              $region37: #{self_attention_forward.4} parent=35 // loop_pre_header
                _
              $region38: #{self_attention_forward.4} parent=35 // loop_header
                %s317 = sphi 0, %s321
                %p318 = scmp.ge.s32.totalorder %s317, 1
                %s322 = sphi %s307, %s307
                %s323 = sphi %s303, %s303
              $region39: #{self_attention_forward.4} parent=35 // loop_header_branch
                %320 = sbr.rel (%p318) target = $region43
              $region40: #{self_attention_forward.4} parent=35 // loop_body
                %v324 = vld [vmem:[%s322] sm:%s315]
                %325 = vst [vmem:[%s323] sm:%s315] %v324
                %v326 = vld [vmem:[%s322 + $0x18] sm:%s315]
                %327 = vst [vmem:[%s323 + $0x4] sm:%s315] %v326
                %v328 = vld [vmem:[%s322 + $0x30] sm:%s315]
                %329 = vst [vmem:[%s323 + $0x8] sm:%s315] %v328
                %v330 = vld [vmem:[%s322 + $0x48] sm:%s315]
                %331 = vst [vmem:[%s323 + $0xc] sm:%s315] %v330
                %v332 = vld [vmem:[%s322 + $0x60] sm:%s315]
                %333 = vst [vmem:[%s323 + $0x10] sm:%s315] %v332
                %v334 = vld [vmem:[%s322 + $0x78] sm:%s315]
                %335 = vst [vmem:[%s323 + $0x14] sm:%s315] %v334
                %v336 = vld [vmem:[%s322 + $0x90] sm:%s315]
                %337 = vst [vmem:[%s323 + $0x18] sm:%s315] %v336
                %v338 = vld [vmem:[%s322 + $0xa8] sm:%s315]
                %339 = vst [vmem:[%s323 + $0x1c] sm:%s315] %v338
                %v340 = vld [vmem:[%s322 + $0xc0] sm:%s315]
                %341 = vst [vmem:[%s323 + $0x20] sm:%s315] %v340
                %v342 = vld [vmem:[%s322 + $0xd8] sm:%s315]
                %343 = vst [vmem:[%s323 + $0x24] sm:%s315] %v342
                %v344 = vld [vmem:[%s322 + $0xf0] sm:%s315]
                %345 = vst [vmem:[%s323 + $0x28] sm:%s315] %v344
                %v346 = vld [vmem:[%s322 + $0x108] sm:%s315]
                %347 = vst [vmem:[%s323 + $0x2c] sm:%s315] %v346
                %v348 = vld [vmem:[%s322 + $0x120] sm:%s315]
                %349 = vst [vmem:[%s323 + $0x30] sm:%s315] %v348
                %v350 = vld [vmem:[%s322 + $0x138] sm:%s315]
                %351 = vst [vmem:[%s323 + $0x34] sm:%s315] %v350
                %v352 = vld [vmem:[%s322 + $0x150] sm:%s315]
                %353 = vst [vmem:[%s323 + $0x38] sm:%s315] %v352
                %v354 = vld [vmem:[%s322 + $0x168] sm:%s315]
                %355 = vst [vmem:[%s323 + $0x3c] sm:%s315] %v354
              $region41: #{self_attention_forward.4} parent=35 // loop_footer
                %s321 = sadd.s32 1, %s317
              $region42: #{self_attention_forward.4} parent=35 // loop_footer_branch
                %316 = sbr.rel target = $region38
              $region43: #{self_attention_forward.4} parent=35 // loop_exit
                _
            $region36: #{self_attention_forward.4} parent=27 // pred_fallthru
              _
          $region28: #{self_attention_forward.4} parent=23 // pred_fallthru
            _
          %408 = vnop
        $region24: #{self_attention_forward.4} parent=15 // pred_fallthru
          _
        // Predicated region
        $region62: #{self_attention_forward.4} parent=15 // pred_check
          %p409 = pneg %p104
        $region63: #{self_attention_forward.4} parent=15 // pred_check_branch
          %411 = sbr.rel (%p409) target = $region65
        $region64: #{self_attention_forward.4} parent=15 // pred_region
          %s412 = sand.u32 %s94, 1
          %s413 = sand.u32 %s94, 1
          %s414 = smul.addr %s413, 64
          %s415 = scalar_lea.vmem [#allocation3], %s414
          %s416 = sadd.s32 %s22, 2
          %s417 = smul.addr %s21, 96
          %s418 = sadd.s32 %s416, %s417
          %s419 = smul.addr %s418, 4
          %s420 = scalar_lea.vmem %s2, %s419
          // Predicated region
          $region66: #{self_attention_forward.4} parent=64 // pred_check
            _
          $region67: #{self_attention_forward.4} parent=64 // pred_check_branch
            %422 = sbr.rel (0) target = $region69
          $region68: #{self_attention_forward.4} parent=64 // pred_region
            // Predicated region
            $region70: #{self_attention_forward.4} parent=68 // pred_check
              _
            $region71: #{self_attention_forward.4} parent=68 // pred_check_branch
              %424 = sbr.rel target = $region73
            $region72: #{self_attention_forward.4} parent=68 // pred_region
              // Predicated region
              $region85: #{self_attention_forward.4} parent=72 // pred_check
                _
              $region86: #{self_attention_forward.4} parent=72 // pred_check_branch
                %470 = sbr.rel (0) target = $region88
              $region87: #{self_attention_forward.4} parent=72 // pred_region
                loop: start=0, step=1, limit=1
                $region89: #{self_attention_forward.4} parent=87 // loop_pre_header
                  _
                $region90: #{self_attention_forward.4} parent=87 // loop_header
                  %s472 = sphi 0, %s476
                  %p473 = scmp.ge.s32.totalorder %s472, 1
                  %s477 = sphi %s420, %s420
                  %s478 = sphi %s415, %s415
                $region91: #{self_attention_forward.4} parent=87 // loop_header_branch
                  %475 = sbr.rel (%p473) target = $region95
                $region92: #{self_attention_forward.4} parent=87 // loop_body
                  _
                $region93: #{self_attention_forward.4} parent=87 // loop_footer
                  %s476 = sadd.s32 1, %s472
                $region94: #{self_attention_forward.4} parent=87 // loop_footer_branch
                  %471 = sbr.rel target = $region90
                $region95: #{self_attention_forward.4} parent=87 // loop_exit
                  _
                %s480 = ssub.s32 16, 1
                loop: start=0, step=1, limit=1
                $region96: #{self_attention_forward.4} parent=87 // loop_pre_header
                  _
                $region97: #{self_attention_forward.4} parent=87 // loop_header
                  %s482 = sphi 0, %s486
                  %p483 = scmp.ge.s32.totalorder %s482, 1
                  %s487 = sphi %s420, %s420
                  %s488 = sphi %s415, %s415
                $region98: #{self_attention_forward.4} parent=87 // loop_header_branch
                  %485 = sbr.rel (%p483) target = $region102
                $region99: #{self_attention_forward.4} parent=87 // loop_body
                  %v489 = vld [vmem:[%s487] sm:%s480]
                  %490 = vst [vmem:[%s488] sm:%s480] %v489
                  %v491 = vld [vmem:[%s487 + $0x18] sm:%s480]
                  %492 = vst [vmem:[%s488 + $0x4] sm:%s480] %v491
                  %v493 = vld [vmem:[%s487 + $0x30] sm:%s480]
                  %494 = vst [vmem:[%s488 + $0x8] sm:%s480] %v493
                  %v495 = vld [vmem:[%s487 + $0x48] sm:%s480]
                  %496 = vst [vmem:[%s488 + $0xc] sm:%s480] %v495
                  %v497 = vld [vmem:[%s487 + $0x60] sm:%s480]
                  %498 = vst [vmem:[%s488 + $0x10] sm:%s480] %v497
                  %v499 = vld [vmem:[%s487 + $0x78] sm:%s480]
                  %500 = vst [vmem:[%s488 + $0x14] sm:%s480] %v499
                  %v501 = vld [vmem:[%s487 + $0x90] sm:%s480]
                  %502 = vst [vmem:[%s488 + $0x18] sm:%s480] %v501
                  %v503 = vld [vmem:[%s487 + $0xa8] sm:%s480]
                  %504 = vst [vmem:[%s488 + $0x1c] sm:%s480] %v503
                  %v505 = vld [vmem:[%s487 + $0xc0] sm:%s480]
                  %506 = vst [vmem:[%s488 + $0x20] sm:%s480] %v505
                  %v507 = vld [vmem:[%s487 + $0xd8] sm:%s480]
                  %508 = vst [vmem:[%s488 + $0x24] sm:%s480] %v507
                  %v509 = vld [vmem:[%s487 + $0xf0] sm:%s480]
                  %510 = vst [vmem:[%s488 + $0x28] sm:%s480] %v509
                  %v511 = vld [vmem:[%s487 + $0x108] sm:%s480]
                  %512 = vst [vmem:[%s488 + $0x2c] sm:%s480] %v511
                  %v513 = vld [vmem:[%s487 + $0x120] sm:%s480]
                  %514 = vst [vmem:[%s488 + $0x30] sm:%s480] %v513
                  %v515 = vld [vmem:[%s487 + $0x138] sm:%s480]
                  %516 = vst [vmem:[%s488 + $0x34] sm:%s480] %v515
                  %v517 = vld [vmem:[%s487 + $0x150] sm:%s480]
                  %518 = vst [vmem:[%s488 + $0x38] sm:%s480] %v517
                  %v519 = vld [vmem:[%s487 + $0x168] sm:%s480]
                  %520 = vst [vmem:[%s488 + $0x3c] sm:%s480] %v519
                $region100: #{self_attention_forward.4} parent=87 // loop_footer
                  %s486 = sadd.s32 1, %s482
                $region101: #{self_attention_forward.4} parent=87 // loop_footer_branch
                  %481 = sbr.rel target = $region97
                $region102: #{self_attention_forward.4} parent=87 // loop_exit
                  _
              $region88: #{self_attention_forward.4} parent=72 // pred_fallthru
                _
            $region73: #{self_attention_forward.4} parent=68 // pred_fallthru
              _
            // Predicated region
            $region74: #{self_attention_forward.4} parent=68 // pred_check
              _
            $region75: #{self_attention_forward.4} parent=68 // pred_check_branch
              %426 = sbr.rel (0) target = $region77
            $region76: #{self_attention_forward.4} parent=68 // pred_region
              %s428 = ssub.s32 16, 1
              loop: start=0, step=1, limit=1
              $region78: #{self_attention_forward.4} parent=76 // loop_pre_header
                _
              $region79: #{self_attention_forward.4} parent=76 // loop_header
                %s430 = sphi 0, %s434
                %p431 = scmp.ge.s32.totalorder %s430, 1
                %s435 = sphi %s420, %s420
                %s436 = sphi %s415, %s415
              $region80: #{self_attention_forward.4} parent=76 // loop_header_branch
                %433 = sbr.rel (%p431) target = $region84
              $region81: #{self_attention_forward.4} parent=76 // loop_body
                %v437 = vld [vmem:[%s435] sm:%s428]
                %438 = vst [vmem:[%s436] sm:%s428] %v437
                %v439 = vld [vmem:[%s435 + $0x18] sm:%s428]
                %440 = vst [vmem:[%s436 + $0x4] sm:%s428] %v439
                %v441 = vld [vmem:[%s435 + $0x30] sm:%s428]
                %442 = vst [vmem:[%s436 + $0x8] sm:%s428] %v441
                %v443 = vld [vmem:[%s435 + $0x48] sm:%s428]
                %444 = vst [vmem:[%s436 + $0xc] sm:%s428] %v443
                %v445 = vld [vmem:[%s435 + $0x60] sm:%s428]
                %446 = vst [vmem:[%s436 + $0x10] sm:%s428] %v445
                %v447 = vld [vmem:[%s435 + $0x78] sm:%s428]
                %448 = vst [vmem:[%s436 + $0x14] sm:%s428] %v447
                %v449 = vld [vmem:[%s435 + $0x90] sm:%s428]
                %450 = vst [vmem:[%s436 + $0x18] sm:%s428] %v449
                %v451 = vld [vmem:[%s435 + $0xa8] sm:%s428]
                %452 = vst [vmem:[%s436 + $0x1c] sm:%s428] %v451
                %v453 = vld [vmem:[%s435 + $0xc0] sm:%s428]
                %454 = vst [vmem:[%s436 + $0x20] sm:%s428] %v453
                %v455 = vld [vmem:[%s435 + $0xd8] sm:%s428]
                %456 = vst [vmem:[%s436 + $0x24] sm:%s428] %v455
                %v457 = vld [vmem:[%s435 + $0xf0] sm:%s428]
                %458 = vst [vmem:[%s436 + $0x28] sm:%s428] %v457
                %v459 = vld [vmem:[%s435 + $0x108] sm:%s428]
                %460 = vst [vmem:[%s436 + $0x2c] sm:%s428] %v459
                %v461 = vld [vmem:[%s435 + $0x120] sm:%s428]
                %462 = vst [vmem:[%s436 + $0x30] sm:%s428] %v461
                %v463 = vld [vmem:[%s435 + $0x138] sm:%s428]
                %464 = vst [vmem:[%s436 + $0x34] sm:%s428] %v463
                %v465 = vld [vmem:[%s435 + $0x150] sm:%s428]
                %466 = vst [vmem:[%s436 + $0x38] sm:%s428] %v465
                %v467 = vld [vmem:[%s435 + $0x168] sm:%s428]
                %468 = vst [vmem:[%s436 + $0x3c] sm:%s428] %v467
              $region82: #{self_attention_forward.4} parent=76 // loop_footer
                %s434 = sadd.s32 1, %s430
              $region83: #{self_attention_forward.4} parent=76 // loop_footer_branch
                %429 = sbr.rel target = $region79
              $region84: #{self_attention_forward.4} parent=76 // loop_exit
                _
            $region77: #{self_attention_forward.4} parent=68 // pred_fallthru
              _
          $region69: #{self_attention_forward.4} parent=64 // pred_fallthru
            _
          %521 = vnop
        $region65: #{self_attention_forward.4} parent=15 // pred_fallthru
          _
        // Predicated region
        $region103: #{self_attention_forward.4} parent=15 // pred_check
          %p522 = pneg %p134
        $region104: #{self_attention_forward.4} parent=15 // pred_check_branch
          %524 = sbr.rel (%p522) target = $region106
        $region105: #{self_attention_forward.4} parent=15 // pred_region
          %s525 = sand.u32 %s124, 1
          %s526 = sand.u32 %s124, 1
          %s527 = smul.addr %s526, 64
          %s528 = scalar_lea.vmem [#allocation4], %s527
          %s529 = sadd.s32 %s22, 4
          %s530 = smul.addr %s21, 96
          %s531 = sadd.s32 %s529, %s530
          %s532 = smul.addr %s531, 4
          %s533 = scalar_lea.vmem %s3, %s532
          // Predicated region
          $region107: #{self_attention_forward.4} parent=105 // pred_check
            _
          $region108: #{self_attention_forward.4} parent=105 // pred_check_branch
            %535 = sbr.rel (0) target = $region110
          $region109: #{self_attention_forward.4} parent=105 // pred_region
            // Predicated region
            $region111: #{self_attention_forward.4} parent=109 // pred_check
              _
            $region112: #{self_attention_forward.4} parent=109 // pred_check_branch
              %537 = sbr.rel target = $region114
            $region113: #{self_attention_forward.4} parent=109 // pred_region
              // Predicated region
              $region126: #{self_attention_forward.4} parent=113 // pred_check
                _
              $region127: #{self_attention_forward.4} parent=113 // pred_check_branch
                %583 = sbr.rel (0) target = $region129
              $region128: #{self_attention_forward.4} parent=113 // pred_region
                loop: start=0, step=1, limit=1
                $region130: #{self_attention_forward.4} parent=128 // loop_pre_header
                  _
                $region131: #{self_attention_forward.4} parent=128 // loop_header
                  %s585 = sphi 0, %s589
                  %p586 = scmp.ge.s32.totalorder %s585, 1
                  %s590 = sphi %s533, %s533
                  %s591 = sphi %s528, %s528
                $region132: #{self_attention_forward.4} parent=128 // loop_header_branch
                  %588 = sbr.rel (%p586) target = $region136
                $region133: #{self_attention_forward.4} parent=128 // loop_body
                  _
                $region134: #{self_attention_forward.4} parent=128 // loop_footer
                  %s589 = sadd.s32 1, %s585
                $region135: #{self_attention_forward.4} parent=128 // loop_footer_branch
                  %584 = sbr.rel target = $region131
                $region136: #{self_attention_forward.4} parent=128 // loop_exit
                  _
                %s593 = ssub.s32 16, 1
                loop: start=0, step=1, limit=1
                $region137: #{self_attention_forward.4} parent=128 // loop_pre_header
                  _
                $region138: #{self_attention_forward.4} parent=128 // loop_header
                  %s595 = sphi 0, %s599
                  %p596 = scmp.ge.s32.totalorder %s595, 1
                  %s600 = sphi %s533, %s533
                  %s601 = sphi %s528, %s528
                $region139: #{self_attention_forward.4} parent=128 // loop_header_branch
                  %598 = sbr.rel (%p596) target = $region143
                $region140: #{self_attention_forward.4} parent=128 // loop_body
                  %v602 = vld [vmem:[%s600] sm:%s593]
                  %603 = vst [vmem:[%s601] sm:%s593] %v602
                  %v604 = vld [vmem:[%s600 + $0x18] sm:%s593]
                  %605 = vst [vmem:[%s601 + $0x4] sm:%s593] %v604
                  %v606 = vld [vmem:[%s600 + $0x30] sm:%s593]
                  %607 = vst [vmem:[%s601 + $0x8] sm:%s593] %v606
                  %v608 = vld [vmem:[%s600 + $0x48] sm:%s593]
                  %609 = vst [vmem:[%s601 + $0xc] sm:%s593] %v608
                  %v610 = vld [vmem:[%s600 + $0x60] sm:%s593]
                  %611 = vst [vmem:[%s601 + $0x10] sm:%s593] %v610
                  %v612 = vld [vmem:[%s600 + $0x78] sm:%s593]
                  %613 = vst [vmem:[%s601 + $0x14] sm:%s593] %v612
                  %v614 = vld [vmem:[%s600 + $0x90] sm:%s593]
                  %615 = vst [vmem:[%s601 + $0x18] sm:%s593] %v614
                  %v616 = vld [vmem:[%s600 + $0xa8] sm:%s593]
                  %617 = vst [vmem:[%s601 + $0x1c] sm:%s593] %v616
                  %v618 = vld [vmem:[%s600 + $0xc0] sm:%s593]
                  %619 = vst [vmem:[%s601 + $0x20] sm:%s593] %v618
                  %v620 = vld [vmem:[%s600 + $0xd8] sm:%s593]
                  %621 = vst [vmem:[%s601 + $0x24] sm:%s593] %v620
                  %v622 = vld [vmem:[%s600 + $0xf0] sm:%s593]
                  %623 = vst [vmem:[%s601 + $0x28] sm:%s593] %v622
                  %v624 = vld [vmem:[%s600 + $0x108] sm:%s593]
                  %625 = vst [vmem:[%s601 + $0x2c] sm:%s593] %v624
                  %v626 = vld [vmem:[%s600 + $0x120] sm:%s593]
                  %627 = vst [vmem:[%s601 + $0x30] sm:%s593] %v626
                  %v628 = vld [vmem:[%s600 + $0x138] sm:%s593]
                  %629 = vst [vmem:[%s601 + $0x34] sm:%s593] %v628
                  %v630 = vld [vmem:[%s600 + $0x150] sm:%s593]
                  %631 = vst [vmem:[%s601 + $0x38] sm:%s593] %v630
                  %v632 = vld [vmem:[%s600 + $0x168] sm:%s593]
                  %633 = vst [vmem:[%s601 + $0x3c] sm:%s593] %v632
                $region141: #{self_attention_forward.4} parent=128 // loop_footer
                  %s599 = sadd.s32 1, %s595
                $region142: #{self_attention_forward.4} parent=128 // loop_footer_branch
                  %594 = sbr.rel target = $region138
                $region143: #{self_attention_forward.4} parent=128 // loop_exit
                  _
              $region129: #{self_attention_forward.4} parent=113 // pred_fallthru
                _
            $region114: #{self_attention_forward.4} parent=109 // pred_fallthru
              _
            // Predicated region
            $region115: #{self_attention_forward.4} parent=109 // pred_check
              _
            $region116: #{self_attention_forward.4} parent=109 // pred_check_branch
              %539 = sbr.rel (0) target = $region118
            $region117: #{self_attention_forward.4} parent=109 // pred_region
              %s541 = ssub.s32 16, 1
              loop: start=0, step=1, limit=1
              $region119: #{self_attention_forward.4} parent=117 // loop_pre_header
                _
              $region120: #{self_attention_forward.4} parent=117 // loop_header
                %s543 = sphi 0, %s547
                %p544 = scmp.ge.s32.totalorder %s543, 1
                %s548 = sphi %s533, %s533
                %s549 = sphi %s528, %s528
              $region121: #{self_attention_forward.4} parent=117 // loop_header_branch
                %546 = sbr.rel (%p544) target = $region125
              $region122: #{self_attention_forward.4} parent=117 // loop_body
                %v550 = vld [vmem:[%s548] sm:%s541]
                %551 = vst [vmem:[%s549] sm:%s541] %v550
                %v552 = vld [vmem:[%s548 + $0x18] sm:%s541]
                %553 = vst [vmem:[%s549 + $0x4] sm:%s541] %v552
                %v554 = vld [vmem:[%s548 + $0x30] sm:%s541]
                %555 = vst [vmem:[%s549 + $0x8] sm:%s541] %v554
                %v556 = vld [vmem:[%s548 + $0x48] sm:%s541]
                %557 = vst [vmem:[%s549 + $0xc] sm:%s541] %v556
                %v558 = vld [vmem:[%s548 + $0x60] sm:%s541]
                %559 = vst [vmem:[%s549 + $0x10] sm:%s541] %v558
                %v560 = vld [vmem:[%s548 + $0x78] sm:%s541]
                %561 = vst [vmem:[%s549 + $0x14] sm:%s541] %v560
                %v562 = vld [vmem:[%s548 + $0x90] sm:%s541]
                %563 = vst [vmem:[%s549 + $0x18] sm:%s541] %v562
                %v564 = vld [vmem:[%s548 + $0xa8] sm:%s541]
                %565 = vst [vmem:[%s549 + $0x1c] sm:%s541] %v564
                %v566 = vld [vmem:[%s548 + $0xc0] sm:%s541]
                %567 = vst [vmem:[%s549 + $0x20] sm:%s541] %v566
                %v568 = vld [vmem:[%s548 + $0xd8] sm:%s541]
                %569 = vst [vmem:[%s549 + $0x24] sm:%s541] %v568
                %v570 = vld [vmem:[%s548 + $0xf0] sm:%s541]
                %571 = vst [vmem:[%s549 + $0x28] sm:%s541] %v570
                %v572 = vld [vmem:[%s548 + $0x108] sm:%s541]
                %573 = vst [vmem:[%s549 + $0x2c] sm:%s541] %v572
                %v574 = vld [vmem:[%s548 + $0x120] sm:%s541]
                %575 = vst [vmem:[%s549 + $0x30] sm:%s541] %v574
                %v576 = vld [vmem:[%s548 + $0x138] sm:%s541]
                %577 = vst [vmem:[%s549 + $0x34] sm:%s541] %v576
                %v578 = vld [vmem:[%s548 + $0x150] sm:%s541]
                %579 = vst [vmem:[%s549 + $0x38] sm:%s541] %v578
                %v580 = vld [vmem:[%s548 + $0x168] sm:%s541]
                %581 = vst [vmem:[%s549 + $0x3c] sm:%s541] %v580
              $region123: #{self_attention_forward.4} parent=117 // loop_footer
                %s547 = sadd.s32 1, %s543
              $region124: #{self_attention_forward.4} parent=117 // loop_footer_branch
                %542 = sbr.rel target = $region120
              $region125: #{self_attention_forward.4} parent=117 // loop_exit
                _
            $region118: #{self_attention_forward.4} parent=109 // pred_fallthru
              _
          $region110: #{self_attention_forward.4} parent=105 // pred_fallthru
            _
          %634 = vnop
        $region106: #{self_attention_forward.4} parent=15 // pred_fallthru
          _
        // Predicated region
        $region144: #{self_attention_forward.4} parent=15 // pred_check
          %p635 = pneg %p160
        $region145: #{self_attention_forward.4} parent=15 // pred_check_branch
          %637 = sbr.rel (%p635) target = $region147
        $region146: #{self_attention_forward.4} parent=15 // pred_region
          %p638 = scmp.lt.s32.totalorder %s21, 1
          %s639 = scalar_select %p638, %s21, 1
          %s640 = smul.addr %s639, 32
          %s641 = smul.addr %s640, 4
          %s642 = scalar_lea.vmem %s4, %s641
        $region147: #{self_attention_forward.4} parent=15 // pred_fallthru
          _
        // Predicated region
        $region148: #{self_attention_forward.4} parent=15 // pred_check
          %p643 = pneg %p186
        $region149: #{self_attention_forward.4} parent=15 // pred_check_branch
          %645 = sbr.rel (%p643) target = $region151
        $region150: #{self_attention_forward.4} parent=15 // pred_region
          %s646 = sand.u32 %s176, 1
          %s647 = sand.u32 %s176, 1
          %s648 = smul.addr %s647, 128
          %s649 = scalar_lea.vmem [#allocation5], %s648
          %s650 = smul.addr %s22, 4
          %s651 = scalar_lea.vmem %s5, %s650
          // Predicated region
          $region152: #{self_attention_forward.4} parent=150 // pred_check
            _
          $region153: #{self_attention_forward.4} parent=150 // pred_check_branch
            %653 = sbr.rel (0) target = $region155
          $region154: #{self_attention_forward.4} parent=150 // pred_region
            // Predicated region
            $region156: #{self_attention_forward.4} parent=154 // pred_check
              _
            $region157: #{self_attention_forward.4} parent=154 // pred_check_branch
              %655 = sbr.rel target = $region159
            $region158: #{self_attention_forward.4} parent=154 // pred_region
              // Predicated region
              $region171: #{self_attention_forward.4} parent=158 // pred_check
                _
              $region172: #{self_attention_forward.4} parent=158 // pred_check_branch
                %733 = sbr.rel (0) target = $region174
              $region173: #{self_attention_forward.4} parent=158 // pred_region
                loop: start=0, step=1, limit=1
                $region175: #{self_attention_forward.4} parent=173 // loop_pre_header
                  _
                $region176: #{self_attention_forward.4} parent=173 // loop_header
                  %s735 = sphi 0, %s739
                  %p736 = scmp.ge.s32.totalorder %s735, 1
                  %s740 = sphi %s651, %s651
                  %s741 = sphi %s649, %s649
                $region177: #{self_attention_forward.4} parent=173 // loop_header_branch
                  %738 = sbr.rel (%p736) target = $region181
                $region178: #{self_attention_forward.4} parent=173 // loop_body
                  _
                $region179: #{self_attention_forward.4} parent=173 // loop_footer
                  %s739 = sadd.s32 1, %s735
                $region180: #{self_attention_forward.4} parent=173 // loop_footer_branch
                  %734 = sbr.rel target = $region176
                $region181: #{self_attention_forward.4} parent=173 // loop_exit
                  _
                %s743 = ssub.s32 16, 1
                loop: start=0, step=1, limit=1
                $region182: #{self_attention_forward.4} parent=173 // loop_pre_header
                  _
                $region183: #{self_attention_forward.4} parent=173 // loop_header
                  %s745 = sphi 0, %s749
                  %p746 = scmp.ge.s32.totalorder %s745, 1
                  %s750 = sphi %s651, %s651
                  %s751 = sphi %s649, %s649
                $region184: #{self_attention_forward.4} parent=173 // loop_header_branch
                  %748 = sbr.rel (%p746) target = $region188
                $region185: #{self_attention_forward.4} parent=173 // loop_body
                  %v752 = vld [vmem:[%s750] sm:%s743]
                  %753 = vst [vmem:[%s751] sm:%s743] %v752
                  %v754 = vld [vmem:[%s750 + $0x8] sm:%s743]
                  %755 = vst [vmem:[%s751 + $0x4] sm:%s743] %v754
                  %v756 = vld [vmem:[%s750 + $0x10] sm:%s743]
                  %757 = vst [vmem:[%s751 + $0x8] sm:%s743] %v756
                  %v758 = vld [vmem:[%s750 + $0x18] sm:%s743]
                  %759 = vst [vmem:[%s751 + $0xc] sm:%s743] %v758
                  %v760 = vld [vmem:[%s750 + $0x20] sm:%s743]
                  %761 = vst [vmem:[%s751 + $0x10] sm:%s743] %v760
                  %v762 = vld [vmem:[%s750 + $0x28] sm:%s743]
                  %763 = vst [vmem:[%s751 + $0x14] sm:%s743] %v762
                  %v764 = vld [vmem:[%s750 + $0x30] sm:%s743]
                  %765 = vst [vmem:[%s751 + $0x18] sm:%s743] %v764
                  %v766 = vld [vmem:[%s750 + $0x38] sm:%s743]
                  %767 = vst [vmem:[%s751 + $0x1c] sm:%s743] %v766
                  %v768 = vld [vmem:[%s750 + $0x40] sm:%s743]
                  %769 = vst [vmem:[%s751 + $0x20] sm:%s743] %v768
                  %v770 = vld [vmem:[%s750 + $0x48] sm:%s743]
                  %771 = vst [vmem:[%s751 + $0x24] sm:%s743] %v770
                  %v772 = vld [vmem:[%s750 + $0x50] sm:%s743]
                  %773 = vst [vmem:[%s751 + $0x28] sm:%s743] %v772
                  %v774 = vld [vmem:[%s750 + $0x58] sm:%s743]
                  %775 = vst [vmem:[%s751 + $0x2c] sm:%s743] %v774
                  %v776 = vld [vmem:[%s750 + $0x60] sm:%s743]
                  %777 = vst [vmem:[%s751 + $0x30] sm:%s743] %v776
                  %v778 = vld [vmem:[%s750 + $0x68] sm:%s743]
                  %779 = vst [vmem:[%s751 + $0x34] sm:%s743] %v778
                  %v780 = vld [vmem:[%s750 + $0x70] sm:%s743]
                  %781 = vst [vmem:[%s751 + $0x38] sm:%s743] %v780
                  %v782 = vld [vmem:[%s750 + $0x78] sm:%s743]
                  %783 = vst [vmem:[%s751 + $0x3c] sm:%s743] %v782
                  %v784 = vld [vmem:[%s750 + $0x80] sm:%s743]
                  %785 = vst [vmem:[%s751 + $0x40] sm:%s743] %v784
                  %v786 = vld [vmem:[%s750 + $0x88] sm:%s743]
                  %787 = vst [vmem:[%s751 + $0x44] sm:%s743] %v786
                  %v788 = vld [vmem:[%s750 + $0x90] sm:%s743]
                  %789 = vst [vmem:[%s751 + $0x48] sm:%s743] %v788
                  %v790 = vld [vmem:[%s750 + $0x98] sm:%s743]
                  %791 = vst [vmem:[%s751 + $0x4c] sm:%s743] %v790
                  %v792 = vld [vmem:[%s750 + $0xa0] sm:%s743]
                  %793 = vst [vmem:[%s751 + $0x50] sm:%s743] %v792
                  %v794 = vld [vmem:[%s750 + $0xa8] sm:%s743]
                  %795 = vst [vmem:[%s751 + $0x54] sm:%s743] %v794
                  %v796 = vld [vmem:[%s750 + $0xb0] sm:%s743]
                  %797 = vst [vmem:[%s751 + $0x58] sm:%s743] %v796
                  %v798 = vld [vmem:[%s750 + $0xb8] sm:%s743]
                  %799 = vst [vmem:[%s751 + $0x5c] sm:%s743] %v798
                  %v800 = vld [vmem:[%s750 + $0xc0] sm:%s743]
                  %801 = vst [vmem:[%s751 + $0x60] sm:%s743] %v800
                  %v802 = vld [vmem:[%s750 + $0xc8] sm:%s743]
                  %803 = vst [vmem:[%s751 + $0x64] sm:%s743] %v802
                  %v804 = vld [vmem:[%s750 + $0xd0] sm:%s743]
                  %805 = vst [vmem:[%s751 + $0x68] sm:%s743] %v804
                  %v806 = vld [vmem:[%s750 + $0xd8] sm:%s743]
                  %807 = vst [vmem:[%s751 + $0x6c] sm:%s743] %v806
                  %v808 = vld [vmem:[%s750 + $0xe0] sm:%s743]
                  %809 = vst [vmem:[%s751 + $0x70] sm:%s743] %v808
                  %v810 = vld [vmem:[%s750 + $0xe8] sm:%s743]
                  %811 = vst [vmem:[%s751 + $0x74] sm:%s743] %v810
                  %v812 = vld [vmem:[%s750 + $0xf0] sm:%s743]
                  %813 = vst [vmem:[%s751 + $0x78] sm:%s743] %v812
                  %v814 = vld [vmem:[%s750 + $0xf8] sm:%s743]
                  %815 = vst [vmem:[%s751 + $0x7c] sm:%s743] %v814
                $region186: #{self_attention_forward.4} parent=173 // loop_footer
                  %s749 = sadd.s32 1, %s745
                $region187: #{self_attention_forward.4} parent=173 // loop_footer_branch
                  %744 = sbr.rel target = $region183
                $region188: #{self_attention_forward.4} parent=173 // loop_exit
                  _
              $region174: #{self_attention_forward.4} parent=158 // pred_fallthru
                _
            $region159: #{self_attention_forward.4} parent=154 // pred_fallthru
              _
            // Predicated region
            $region160: #{self_attention_forward.4} parent=154 // pred_check
              _
            $region161: #{self_attention_forward.4} parent=154 // pred_check_branch
              %657 = sbr.rel (0) target = $region163
            $region162: #{self_attention_forward.4} parent=154 // pred_region
              %s659 = ssub.s32 16, 1
              loop: start=0, step=1, limit=1
              $region164: #{self_attention_forward.4} parent=162 // loop_pre_header
                _
              $region165: #{self_attention_forward.4} parent=162 // loop_header
                %s661 = sphi 0, %s665
                %p662 = scmp.ge.s32.totalorder %s661, 1
                %s666 = sphi %s651, %s651
                %s667 = sphi %s649, %s649
              $region166: #{self_attention_forward.4} parent=162 // loop_header_branch
                %664 = sbr.rel (%p662) target = $region170
              $region167: #{self_attention_forward.4} parent=162 // loop_body
                %v668 = vld [vmem:[%s666] sm:%s659]
                %669 = vst [vmem:[%s667] sm:%s659] %v668
                %v670 = vld [vmem:[%s666 + $0x8] sm:%s659]
                %671 = vst [vmem:[%s667 + $0x4] sm:%s659] %v670
                %v672 = vld [vmem:[%s666 + $0x10] sm:%s659]
                %673 = vst [vmem:[%s667 + $0x8] sm:%s659] %v672
                %v674 = vld [vmem:[%s666 + $0x18] sm:%s659]
                %675 = vst [vmem:[%s667 + $0xc] sm:%s659] %v674
                %v676 = vld [vmem:[%s666 + $0x20] sm:%s659]
                %677 = vst [vmem:[%s667 + $0x10] sm:%s659] %v676
                %v678 = vld [vmem:[%s666 + $0x28] sm:%s659]
                %679 = vst [vmem:[%s667 + $0x14] sm:%s659] %v678
                %v680 = vld [vmem:[%s666 + $0x30] sm:%s659]
                %681 = vst [vmem:[%s667 + $0x18] sm:%s659] %v680
                %v682 = vld [vmem:[%s666 + $0x38] sm:%s659]
                %683 = vst [vmem:[%s667 + $0x1c] sm:%s659] %v682
                %v684 = vld [vmem:[%s666 + $0x40] sm:%s659]
                %685 = vst [vmem:[%s667 + $0x20] sm:%s659] %v684
                %v686 = vld [vmem:[%s666 + $0x48] sm:%s659]
                %687 = vst [vmem:[%s667 + $0x24] sm:%s659] %v686
                %v688 = vld [vmem:[%s666 + $0x50] sm:%s659]
                %689 = vst [vmem:[%s667 + $0x28] sm:%s659] %v688
                %v690 = vld [vmem:[%s666 + $0x58] sm:%s659]
                %691 = vst [vmem:[%s667 + $0x2c] sm:%s659] %v690
                %v692 = vld [vmem:[%s666 + $0x60] sm:%s659]
                %693 = vst [vmem:[%s667 + $0x30] sm:%s659] %v692
                %v694 = vld [vmem:[%s666 + $0x68] sm:%s659]
                %695 = vst [vmem:[%s667 + $0x34] sm:%s659] %v694
                %v696 = vld [vmem:[%s666 + $0x70] sm:%s659]
                %697 = vst [vmem:[%s667 + $0x38] sm:%s659] %v696
                %v698 = vld [vmem:[%s666 + $0x78] sm:%s659]
                %699 = vst [vmem:[%s667 + $0x3c] sm:%s659] %v698
                %v700 = vld [vmem:[%s666 + $0x80] sm:%s659]
                %701 = vst [vmem:[%s667 + $0x40] sm:%s659] %v700
                %v702 = vld [vmem:[%s666 + $0x88] sm:%s659]
                %703 = vst [vmem:[%s667 + $0x44] sm:%s659] %v702
                %v704 = vld [vmem:[%s666 + $0x90] sm:%s659]
                %705 = vst [vmem:[%s667 + $0x48] sm:%s659] %v704
                %v706 = vld [vmem:[%s666 + $0x98] sm:%s659]
                %707 = vst [vmem:[%s667 + $0x4c] sm:%s659] %v706
                %v708 = vld [vmem:[%s666 + $0xa0] sm:%s659]
                %709 = vst [vmem:[%s667 + $0x50] sm:%s659] %v708
                %v710 = vld [vmem:[%s666 + $0xa8] sm:%s659]
                %711 = vst [vmem:[%s667 + $0x54] sm:%s659] %v710
                %v712 = vld [vmem:[%s666 + $0xb0] sm:%s659]
                %713 = vst [vmem:[%s667 + $0x58] sm:%s659] %v712
                %v714 = vld [vmem:[%s666 + $0xb8] sm:%s659]
                %715 = vst [vmem:[%s667 + $0x5c] sm:%s659] %v714
                %v716 = vld [vmem:[%s666 + $0xc0] sm:%s659]
                %717 = vst [vmem:[%s667 + $0x60] sm:%s659] %v716
                %v718 = vld [vmem:[%s666 + $0xc8] sm:%s659]
                %719 = vst [vmem:[%s667 + $0x64] sm:%s659] %v718
                %v720 = vld [vmem:[%s666 + $0xd0] sm:%s659]
                %721 = vst [vmem:[%s667 + $0x68] sm:%s659] %v720
                %v722 = vld [vmem:[%s666 + $0xd8] sm:%s659]
                %723 = vst [vmem:[%s667 + $0x6c] sm:%s659] %v722
                %v724 = vld [vmem:[%s666 + $0xe0] sm:%s659]
                %725 = vst [vmem:[%s667 + $0x70] sm:%s659] %v724
                %v726 = vld [vmem:[%s666 + $0xe8] sm:%s659]
                %727 = vst [vmem:[%s667 + $0x74] sm:%s659] %v726
                %v728 = vld [vmem:[%s666 + $0xf0] sm:%s659]
                %729 = vst [vmem:[%s667 + $0x78] sm:%s659] %v728
                %v730 = vld [vmem:[%s666 + $0xf8] sm:%s659]
                %731 = vst [vmem:[%s667 + $0x7c] sm:%s659] %v730
              $region168: #{self_attention_forward.4} parent=162 // loop_footer
                %s665 = sadd.s32 1, %s661
              $region169: #{self_attention_forward.4} parent=162 // loop_footer_branch
                %660 = sbr.rel target = $region165
              $region170: #{self_attention_forward.4} parent=162 // loop_exit
                _
            $region163: #{self_attention_forward.4} parent=154 // pred_fallthru
              _
          $region155: #{self_attention_forward.4} parent=150 // pred_fallthru
            _
          %816 = vnop
        $region151: #{self_attention_forward.4} parent=15 // pred_fallthru
          _
        // Predicated region
        $region189: #{self_attention_forward.4} parent=15 // pred_check
          %p817 = pneg %p212
        $region190: #{self_attention_forward.4} parent=15 // pred_check_branch
          %819 = sbr.rel (%p817) target = $region192
        $region191: #{self_attention_forward.4} parent=15 // pred_region
          %p820 = scmp.lt.s32.totalorder %s22, 1
          %s821 = scalar_select %p820, %s22, 1
          %s822 = scalar_lea.vmem %s6, %s821
        $region192: #{self_attention_forward.4} parent=15 // pred_fallthru
          _
        // Predicated region
        $region193: #{self_attention_forward.4} parent=15 // pred_check
          %p823 = pneg %p238
        $region194: #{self_attention_forward.4} parent=15 // pred_check_branch
          %825 = sbr.rel (%p823) target = $region196
        $region195: #{self_attention_forward.4} parent=15 // pred_region
          %p826 = scmp.lt.s32.totalorder %s22, 1
          %s827 = scalar_select %p826, %s22, 1
          %s828 = scalar_lea.vmem %s7, %s827
        $region196: #{self_attention_forward.4} parent=15 // pred_fallthru
          _
      $region16: #{self_attention_forward.4} parent=5 // pred_fallthru
        _
      %p829 = scmp.le.s32.totalorder 1, %s14
      %p830 = scmp.lt.s32.totalorder %s14, 5
      %p831 = pnand %p829, %p830
      %p832 = pneg %p831
      // Predicated region
      $region197: #{self_attention_forward.4} parent=5 // pred_check
        _
      $region198: #{self_attention_forward.4} parent=5 // pred_check_branch
        %834 = sbr.rel (%p831) target = $region200
      $region199: #{self_attention_forward.4} parent=5 // pred_region
        %s835 = ssub.s32 %s14, 1
        %s836 = sand.u32 %s67, 1
        %s837 = sand.u32 %s67, 1
        %s838 = smul.addr %s837, 64
        %s839 = scalar_lea.vmem [#allocation2], %s838
        // Predicated region
        $region201: #{self_attention_forward.4} parent=199 // pred_check
          %p840 = pneg %p80
        $region202: #{self_attention_forward.4} parent=199 // pred_check_branch
          %842 = sbr.rel (%p840) target = $region204
        $region203: #{self_attention_forward.4} parent=199 // pred_region
          _
        $region204: #{self_attention_forward.4} parent=199 // pred_fallthru
          _
        %s843 = sand.u32 %s97, 1
        %s844 = sand.u32 %s97, 1
        %s845 = smul.addr %s844, 64
        %s846 = scalar_lea.vmem [#allocation3], %s845
        // Predicated region
        $region205: #{self_attention_forward.4} parent=199 // pred_check
          %p847 = pneg %p110
        $region206: #{self_attention_forward.4} parent=199 // pred_check_branch
          %849 = sbr.rel (%p847) target = $region208
        $region207: #{self_attention_forward.4} parent=199 // pred_region
          _
        $region208: #{self_attention_forward.4} parent=199 // pred_fallthru
          _
        %s850 = sand.u32 %s127, 1
        %s851 = sand.u32 %s127, 1
        %s852 = smul.addr %s851, 64
        %s853 = scalar_lea.vmem [#allocation4], %s852
        // Predicated region
        $region209: #{self_attention_forward.4} parent=199 // pred_check
          %p854 = pneg %p140
        $region210: #{self_attention_forward.4} parent=199 // pred_check_branch
          %856 = sbr.rel (%p854) target = $region212
        $region211: #{self_attention_forward.4} parent=199 // pred_region
          _
        $region212: #{self_attention_forward.4} parent=199 // pred_fallthru
          _
        %s857 = sand.u32 %s179, 1
        %s858 = sand.u32 %s179, 1
        %s859 = smul.addr %s858, 128
        %s860 = scalar_lea.vmem [#allocation5], %s859
        // Predicated region
        $region213: #{self_attention_forward.4} parent=199 // pred_check
          %p861 = pneg %p192
        $region214: #{self_attention_forward.4} parent=199 // pred_check_branch
          %863 = sbr.rel (%p861) target = $region216
        $region215: #{self_attention_forward.4} parent=199 // pred_region
          _
        $region216: #{self_attention_forward.4} parent=199 // pred_fallthru
          _
        %p864 = scmp.lt.s32.totalorder %s23, 1
        %s865 = scalar_select %p864, %s23, 1
        %s866 = scalar_lea.vmem %s0, %s865
        %p867 = pneg %p52
        %p868 = pneg %p49
        %s869 = sand.u32 %s67, 1
        %s870 = sand.u32 %s67, 1
        %s871 = smul.addr %s870, 64
        %s872 = scalar_lea.vmem [#allocation2], %s871
        %p873 = pneg %p80
        %p874 = pneg %p77
        %s875 = sand.u32 %s97, 1
        %s876 = sand.u32 %s97, 1
        %s877 = smul.addr %s876, 64
        %s878 = scalar_lea.vmem [#allocation3], %s877
        %p879 = pneg %p110
        %p880 = pneg %p107
        %s881 = sand.u32 %s127, 1
        %s882 = sand.u32 %s127, 1
        %s883 = smul.addr %s882, 64
        %s884 = scalar_lea.vmem [#allocation4], %s883
        %p885 = pneg %p140
        %p886 = pneg %p137
        %p887 = scmp.lt.s32.totalorder %s23, 1
        %s888 = scalar_select %p887, %s23, 1
        %s889 = smul.addr %s888, 32
        %s890 = smul.addr %s889, 4
        %s891 = scalar_lea.vmem %s4, %s890
        %p892 = pneg %p166
        %p893 = pneg %p163
        %s894 = sand.u32 %s179, 1
        %s895 = sand.u32 %s179, 1
        %s896 = smul.addr %s895, 128
        %s897 = scalar_lea.vmem [#allocation5], %s896
        %p898 = pneg %p192
        %p899 = pneg %p189
        %p900 = scmp.lt.s32.totalorder %s24, 1
        %s901 = scalar_select %p900, %s24, 1
        %s902 = scalar_lea.vmem %s6, %s901
        %p903 = pneg %p218
        %p904 = pneg %p215
        %p905 = scmp.lt.s32.totalorder %s24, 1
        %s906 = scalar_select %p905, %s24, 1
        %s907 = scalar_lea.vmem %s7, %s906
        %p908 = pneg %p244
        %p909 = pneg %p241
        %p910 = pneg %p272
        %p911 = pneg %p269
        %s912 = sand.u32 %s259, 1
        %s913 = sand.u32 %s259, 1
        %s914 = smul.addr %s913, 64
        %s915 = scalar_lea.vmem [#allocation6], %s914
        %p916 = scmp.lt.s32.totalorder %s23, 1
        %s917 = scalar_select %p916, %s23, 1
        %s918 = scalar_lea.vmem %s0, %s917
        %s919 = sadd.s32 %s24, 2
        %s920 = sadd.s32 %s24, 4
        %p921 = scmp.lt.s32.totalorder %s23, 1
        %s922 = scalar_select %p921, %s23, 1
        %s923 = smul.addr %s922, 32
        %s924 = smul.addr %s923, 4
        %s925 = scalar_lea.vmem %s4, %s924
        %p926 = scmp.lt.s32.totalorder %s24, 1
        %s927 = scalar_select %p926, %s24, 1
        %s928 = scalar_lea.vmem %s6, %s927
        %p929 = scmp.lt.s32.totalorder %s24, 1
        %s930 = scalar_select %p929, %s24, 1
        %s931 = scalar_lea.vmem %s7, %s930
        %v932 = vld [vmem:[%s925] sm:$0xff]
        %v933 = vld [vmem:[%s925 + $0x8] sm:$0xff]
        %v934 = vld [vmem:[%s925 + $0x10] sm:$0xff]
        %v935 = vld [vmem:[%s925 + $0x18] sm:$0xff]
        %v936 = vld [vmem:[%s925 + $0x20] sm:$0xff]
        %v937 = vld [vmem:[%s925 + $0x28] sm:$0xff]
        %v938 = vld [vmem:[%s925 + $0x30] sm:$0xff]
        %v939 = vld [vmem:[%s925 + $0x38] sm:$0xff]
        %v940 = vld [vmem:[%s925 + $0x40] sm:$0xff]
        %v941 = vld [vmem:[%s925 + $0x48] sm:$0xff]
        %v942 = vld [vmem:[%s925 + $0x50] sm:$0xff]
        %v943 = vld [vmem:[%s925 + $0x58] sm:$0xff]
        %v944 = vld [vmem:[%s925 + $0x60] sm:$0xff]
        %v945 = vld [vmem:[%s925 + $0x68] sm:$0xff]
        %v946 = vld [vmem:[%s925 + $0x70] sm:$0xff]
        %v947 = vld [vmem:[%s925 + $0x78] sm:$0xff]
        %v948 = vld [vmem:[%s860] sm:$0xf]
        %v949 = vld [vmem:[%s860 + $0x4] sm:$0xf]
        %v950 = vld [vmem:[%s860 + $0x8] sm:$0xf]
        %v951 = vld [vmem:[%s860 + $0xc] sm:$0xf]
        %v952 = vld [vmem:[%s860 + $0x10] sm:$0xf]
        %v953 = vld [vmem:[%s860 + $0x14] sm:$0xf]
        %v954 = vld [vmem:[%s860 + $0x18] sm:$0xf]
        %v955 = vld [vmem:[%s860 + $0x1c] sm:$0xf]
        %v956 = vld [vmem:[%s860 + $0x20] sm:$0xf]
        %v957 = vld [vmem:[%s860 + $0x24] sm:$0xf]
        %v958 = vld [vmem:[%s860 + $0x28] sm:$0xf]
        %v959 = vld [vmem:[%s860 + $0x2c] sm:$0xf]
        %v960 = vld [vmem:[%s860 + $0x30] sm:$0xf]
        %v961 = vld [vmem:[%s860 + $0x34] sm:$0xf]
        %v962 = vld [vmem:[%s860 + $0x38] sm:$0xf]
        %v963 = vld [vmem:[%s860 + $0x3c] sm:$0xf]
        %v964 = vld [vmem:[%s860 + $0x40] sm:$0xf]
        %v965 = vld [vmem:[%s860 + $0x44] sm:$0xf]
        %v966 = vld [vmem:[%s860 + $0x48] sm:$0xf]
        %v967 = vld [vmem:[%s860 + $0x4c] sm:$0xf]
        %v968 = vld [vmem:[%s860 + $0x50] sm:$0xf]
        %v969 = vld [vmem:[%s860 + $0x54] sm:$0xf]
        %v970 = vld [vmem:[%s860 + $0x58] sm:$0xf]
        %v971 = vld [vmem:[%s860 + $0x5c] sm:$0xf]
        %v972 = vld [vmem:[%s860 + $0x60] sm:$0xf]
        %v973 = vld [vmem:[%s860 + $0x64] sm:$0xf]
        %v974 = vld [vmem:[%s860 + $0x68] sm:$0xf]
        %v975 = vld [vmem:[%s860 + $0x6c] sm:$0xf]
        %v976 = vld [vmem:[%s860 + $0x70] sm:$0xf]
        %v977 = vld [vmem:[%s860 + $0x74] sm:$0xf]
        %v978 = vld [vmem:[%s860 + $0x78] sm:$0xf]
        %v979 = vld [vmem:[%s860 + $0x7c] sm:$0xf]
        %v996 = vunpack.c.l.b16 %v932
        %v997 = vunpack.c.h.b16 %v932
        %v998 = vunpack.c.l.b16 %v933
        %v999 = vunpack.c.h.b16 %v933
        %v1000 = vunpack.c.l.b16 %v934
        %v1001 = vunpack.c.h.b16 %v934
        %v1002 = vunpack.c.l.b16 %v935
        %v1003 = vunpack.c.h.b16 %v935
        %v1004 = vunpack.c.l.b16 %v936
        %v1005 = vunpack.c.h.b16 %v936
        %v1006 = vunpack.c.l.b16 %v937
        %v1007 = vunpack.c.h.b16 %v937
        %v1008 = vunpack.c.l.b16 %v938
        %v1009 = vunpack.c.h.b16 %v938
        %v1010 = vunpack.c.l.b16 %v939
        %v1011 = vunpack.c.h.b16 %v939
        %v1012 = vunpack.c.l.b16 %v940
        %v1013 = vunpack.c.h.b16 %v940
        %v1014 = vunpack.c.l.b16 %v941
        %v1015 = vunpack.c.h.b16 %v941
        %v1016 = vunpack.c.l.b16 %v942
        %v1017 = vunpack.c.h.b16 %v942
        %v1018 = vunpack.c.l.b16 %v943
        %v1019 = vunpack.c.h.b16 %v943
        %v1020 = vunpack.c.l.b16 %v944
        %v1021 = vunpack.c.h.b16 %v944
        %v1022 = vunpack.c.l.b16 %v945
        %v1023 = vunpack.c.h.b16 %v945
        %v1024 = vunpack.c.l.b16 %v946
        %v1025 = vunpack.c.h.b16 %v946
        %v1026 = vunpack.c.l.b16 %v947
        %v1027 = vunpack.c.h.b16 %v947
        %v1028 = vpack.c.b16 %v998, %v996
        %v1029 = vpack.c.b16 %v999, %v997
        %v1030 = vpack.c.b16 %v1002, %v1000
        %v1031 = vpack.c.b16 %v1003, %v1001
        %v1032 = vpack.c.b16 %v1006, %v1004
        %v1033 = vpack.c.b16 %v1007, %v1005
        %v1034 = vpack.c.b16 %v1010, %v1008
        %v1035 = vpack.c.b16 %v1011, %v1009
        %v1036 = vpack.c.b16 %v1014, %v1012
        %v1037 = vpack.c.b16 %v1015, %v1013
        %v1038 = vpack.c.b16 %v1018, %v1016
        %v1039 = vpack.c.b16 %v1019, %v1017
        %v1040 = vpack.c.b16 %v1022, %v1020
        %v1041 = vpack.c.b16 %v1023, %v1021
        %v1042 = vpack.c.b16 %v1026, %v1024
        %v1043 = vpack.c.b16 %v1027, %v1025
        %v1092 = vunpack.c.l.b16 %v948
        %v1093 = vunpack.c.l.b16 %v949
        %v1094 = vunpack.c.l.b16 %v950
        %v1095 = vunpack.c.l.b16 %v951
        %v1096 = vunpack.c.l.b16 %v952
        %v1097 = vunpack.c.l.b16 %v953
        %v1098 = vunpack.c.l.b16 %v954
        %v1099 = vunpack.c.l.b16 %v955
        %v1100 = vunpack.c.l.b16 %v956
        %v1101 = vunpack.c.l.b16 %v957
        %v1102 = vunpack.c.l.b16 %v958
        %v1103 = vunpack.c.l.b16 %v959
        %v1104 = vunpack.c.l.b16 %v960
        %v1105 = vunpack.c.l.b16 %v961
        %v1106 = vunpack.c.l.b16 %v962
        %v1107 = vunpack.c.l.b16 %v963
        %v1108 = vunpack.c.l.b16 %v964
        %v1109 = vunpack.c.l.b16 %v965
        %v1110 = vunpack.c.l.b16 %v966
        %v1111 = vunpack.c.l.b16 %v967
        %v1112 = vunpack.c.l.b16 %v968
        %v1113 = vunpack.c.l.b16 %v969
        %v1114 = vunpack.c.l.b16 %v970
        %v1115 = vunpack.c.l.b16 %v971
        %v1116 = vunpack.c.l.b16 %v972
        %v1117 = vunpack.c.l.b16 %v973
        %v1118 = vunpack.c.l.b16 %v974
        %v1119 = vunpack.c.l.b16 %v975
        %v1120 = vunpack.c.l.b16 %v976
        %v1121 = vunpack.c.l.b16 %v977
        %v1122 = vunpack.c.l.b16 %v978
        %v1123 = vunpack.c.l.b16 %v979
        %v1124 = vpack.c.b16 %v1093, %v1092
        %v1125 = vpack.c.b16 %v1095, %v1094
        %v1126 = vpack.c.b16 %v1097, %v1096
        %v1127 = vpack.c.b16 %v1099, %v1098
        %v1128 = vpack.c.b16 %v1101, %v1100
        %v1129 = vpack.c.b16 %v1103, %v1102
        %v1130 = vpack.c.b16 %v1105, %v1104
        %v1131 = vpack.c.b16 %v1107, %v1106
        %v1132 = vpack.c.b16 %v1109, %v1108
        %v1133 = vpack.c.b16 %v1111, %v1110
        %v1134 = vpack.c.b16 %v1113, %v1112
        %v1135 = vpack.c.b16 %v1115, %v1114
        %v1136 = vpack.c.b16 %v1117, %v1116
        %v1137 = vpack.c.b16 %v1119, %v1118
        %v1138 = vpack.c.b16 %v1121, %v1120
        %v1139 = vpack.c.b16 %v1123, %v1122
        %1156 = vmatpush.bf16.msra.mxu0 %v1131
        %1157 = vmatpush.bf16.msra.mxu0 %v1130
        %1158 = vmatpush.bf16.msra.mxu0 %v1129
        %1159 = vmatpush.bf16.msra.mxu0 %v1128
        %1160 = vmatpush.bf16.msra.mxu0 %v1127
        %1161 = vmatpush.bf16.msra.mxu0 %v1126
        %1162 = vmatpush.bf16.msra.mxu0 %v1125
        %1163 = vmatpush.bf16.msra.mxu0 %v1124
        %1164 = vmatmul.bf16.gmra.mxu0 %v1028
        %v1165 = vpop.f32.mrf.mxu0
        %v1166 = vadd.f32 0.0, %v1165
        %v1167 = vpop.f32.mrf.mxu0
        %v1168 = vadd.f32 0.0, %v1167
        %1169 = vmatmul.bf16.gmra.mxu0 %v1030
        %v1170 = vpop.f32.mrf.mxu0
        %v1171 = vadd.f32 0.0, %v1170
        %v1172 = vpop.f32.mrf.mxu0
        %v1173 = vadd.f32 0.0, %v1172
        %1174 = vmatmul.bf16.gmra.mxu0 %v1032
        %v1175 = vpop.f32.mrf.mxu0
        %v1176 = vadd.f32 0.0, %v1175
        %v1177 = vpop.f32.mrf.mxu0
        %v1178 = vadd.f32 0.0, %v1177
        %1179 = vmatmul.bf16.gmra.mxu0 %v1034
        %v1180 = vpop.f32.mrf.mxu0
        %v1181 = vadd.f32 0.0, %v1180
        %v1182 = vpop.f32.mrf.mxu0
        %v1183 = vadd.f32 0.0, %v1182
        %1184 = vmatmul.bf16.gmra.mxu0 %v1036
        %v1185 = vpop.f32.mrf.mxu0
        %v1186 = vadd.f32 0.0, %v1185
        %v1187 = vpop.f32.mrf.mxu0
        %v1188 = vadd.f32 0.0, %v1187
        %1189 = vmatmul.bf16.gmra.mxu0 %v1038
        %v1190 = vpop.f32.mrf.mxu0
        %v1191 = vadd.f32 0.0, %v1190
        %v1192 = vpop.f32.mrf.mxu0
        %v1193 = vadd.f32 0.0, %v1192
        %1194 = vmatmul.bf16.gmra.mxu0 %v1040
        %v1195 = vpop.f32.mrf.mxu0
        %v1196 = vadd.f32 0.0, %v1195
        %v1197 = vpop.f32.mrf.mxu0
        %v1198 = vadd.f32 0.0, %v1197
        %1199 = vmatmul.bf16.gmra.mxu0 %v1042
        %v1200 = vpop.f32.mrf.mxu0
        %v1201 = vadd.f32 0.0, %v1200
        %v1202 = vpop.f32.mrf.mxu0
        %v1203 = vadd.f32 0.0, %v1202
        %1204 = vdwg.mxu0
        %1205 = vmatpush.bf16.msra.mxu0 %v1139
        %1206 = vmatpush.bf16.msra.mxu0 %v1138
        %1207 = vmatpush.bf16.msra.mxu0 %v1137
        %1208 = vmatpush.bf16.msra.mxu0 %v1136
        %1209 = vmatpush.bf16.msra.mxu0 %v1135
        %1210 = vmatpush.bf16.msra.mxu0 %v1134
        %1211 = vmatpush.bf16.msra.mxu0 %v1133
        %1212 = vmatpush.bf16.msra.mxu0 %v1132
        %1213 = vmatmul.bf16.gmra.mxu0 %v1029
        %v1214 = vpop.f32.mrf.mxu0
        %v1215 = vadd.f32 %v1166, %v1214
        %v1216 = vpop.f32.mrf.mxu0
        %v1217 = vadd.f32 %v1168, %v1216
        %1218 = vmatmul.bf16.gmra.mxu0 %v1031
        %v1219 = vpop.f32.mrf.mxu0
        %v1220 = vadd.f32 %v1171, %v1219
        %v1221 = vpop.f32.mrf.mxu0
        %v1222 = vadd.f32 %v1173, %v1221
        %1223 = vmatmul.bf16.gmra.mxu0 %v1033
        %v1224 = vpop.f32.mrf.mxu0
        %v1225 = vadd.f32 %v1176, %v1224
        %v1226 = vpop.f32.mrf.mxu0
        %v1227 = vadd.f32 %v1178, %v1226
        %1228 = vmatmul.bf16.gmra.mxu0 %v1035
        %v1229 = vpop.f32.mrf.mxu0
        %v1230 = vadd.f32 %v1181, %v1229
        %v1231 = vpop.f32.mrf.mxu0
        %v1232 = vadd.f32 %v1183, %v1231
        %1233 = vmatmul.bf16.gmra.mxu0 %v1037
        %v1234 = vpop.f32.mrf.mxu0
        %v1235 = vadd.f32 %v1186, %v1234
        %v1236 = vpop.f32.mrf.mxu0
        %v1237 = vadd.f32 %v1188, %v1236
        %1238 = vmatmul.bf16.gmra.mxu0 %v1039
        %v1239 = vpop.f32.mrf.mxu0
        %v1240 = vadd.f32 %v1191, %v1239
        %v1241 = vpop.f32.mrf.mxu0
        %v1242 = vadd.f32 %v1193, %v1241
        %1243 = vmatmul.bf16.gmra.mxu0 %v1041
        %v1244 = vpop.f32.mrf.mxu0
        %v1245 = vadd.f32 %v1196, %v1244
        %v1246 = vpop.f32.mrf.mxu0
        %v1247 = vadd.f32 %v1198, %v1246
        %1248 = vmatmul.bf16.gmra.mxu0 %v1043
        %v1249 = vpop.f32.mrf.mxu0
        %v1250 = vadd.f32 %v1201, %v1249
        %v1251 = vpop.f32.mrf.mxu0
        %v1252 = vadd.f32 %v1203, %v1251
        %1253 = vdwg.mxu0
        %v1254 = vpack.c.bf16 %v1215, %v1215
        %v1255 = vpack.c.bf16 %v1217, %v1217
        %v1256 = vpack.c.bf16 %v1220, %v1220
        %v1257 = vpack.c.bf16 %v1222, %v1222
        %v1258 = vpack.c.bf16 %v1225, %v1225
        %v1259 = vpack.c.bf16 %v1227, %v1227
        %v1260 = vpack.c.bf16 %v1230, %v1230
        %v1261 = vpack.c.bf16 %v1232, %v1232
        %v1262 = vpack.c.bf16 %v1235, %v1235
        %v1263 = vpack.c.bf16 %v1237, %v1237
        %v1264 = vpack.c.bf16 %v1240, %v1240
        %v1265 = vpack.c.bf16 %v1242, %v1242
        %v1266 = vpack.c.bf16 %v1245, %v1245
        %v1267 = vpack.c.bf16 %v1247, %v1247
        %v1268 = vpack.c.bf16 %v1250, %v1250
        %v1269 = vpack.c.bf16 %v1252, %v1252
        %v1270 = vld [vmem:[%s839] sm:$0xf]
        %v1271 = vld [vmem:[%s839 + $0x4] sm:$0xf]
        %v1272 = vld [vmem:[%s839 + $0x8] sm:$0xf]
        %v1273 = vld [vmem:[%s839 + $0xc] sm:$0xf]
        %v1274 = vld [vmem:[%s839 + $0x10] sm:$0xf]
        %v1275 = vld [vmem:[%s839 + $0x14] sm:$0xf]
        %v1276 = vld [vmem:[%s839 + $0x18] sm:$0xf]
        %v1277 = vld [vmem:[%s839 + $0x1c] sm:$0xf]
        %v1278 = vld [vmem:[%s839 + $0x20] sm:$0xf]
        %v1279 = vld [vmem:[%s839 + $0x24] sm:$0xf]
        %v1280 = vld [vmem:[%s839 + $0x28] sm:$0xf]
        %v1281 = vld [vmem:[%s839 + $0x2c] sm:$0xf]
        %v1282 = vld [vmem:[%s839 + $0x30] sm:$0xf]
        %v1283 = vld [vmem:[%s839 + $0x34] sm:$0xf]
        %v1284 = vld [vmem:[%s839 + $0x38] sm:$0xf]
        %v1285 = vld [vmem:[%s839 + $0x3c] sm:$0xf]
        %v1286 = vunpack.c.l.bf16 %v1270
        %v1287 = vunpack.c.l.bf16 %v1271
        %v1288 = vunpack.c.l.bf16 %v1272
        %v1289 = vunpack.c.l.bf16 %v1273
        %v1290 = vunpack.c.l.bf16 %v1274
        %v1291 = vunpack.c.l.bf16 %v1275
        %v1292 = vunpack.c.l.bf16 %v1276
        %v1293 = vunpack.c.l.bf16 %v1277
        %v1294 = vunpack.c.l.bf16 %v1278
        %v1295 = vunpack.c.l.bf16 %v1279
        %v1296 = vunpack.c.l.bf16 %v1280
        %v1297 = vunpack.c.l.bf16 %v1281
        %v1298 = vunpack.c.l.bf16 %v1282
        %v1299 = vunpack.c.l.bf16 %v1283
        %v1300 = vunpack.c.l.bf16 %v1284
        %v1301 = vunpack.c.l.bf16 %v1285
        %v1302 = vld [vmem:[%s928] sm:$0x1]
        %v1304 = vperm.slane %v1302, 0
        %v1306 = vadd.f32 %v1286, %v1304
        %v1307 = vadd.f32 %v1287, %v1304
        %v1308 = vadd.f32 %v1288, %v1304
        %v1309 = vadd.f32 %v1289, %v1304
        %v1310 = vadd.f32 %v1290, %v1304
        %v1311 = vadd.f32 %v1291, %v1304
        %v1312 = vadd.f32 %v1292, %v1304
        %v1313 = vadd.f32 %v1293, %v1304
        %v1314 = vadd.f32 %v1294, %v1304
        %v1315 = vadd.f32 %v1295, %v1304
        %v1316 = vadd.f32 %v1296, %v1304
        %v1317 = vadd.f32 %v1297, %v1304
        %v1318 = vadd.f32 %v1298, %v1304
        %v1319 = vadd.f32 %v1299, %v1304
        %v1320 = vadd.f32 %v1300, %v1304
        %v1321 = vadd.f32 %v1301, %v1304
        %v1322 = vmul.f32 %v1306, 0.0625
        %v1323 = vmul.f32 %v1307, 0.0625
        %v1324 = vmul.f32 %v1308, 0.0625
        %v1325 = vmul.f32 %v1309, 0.0625
        %v1326 = vmul.f32 %v1310, 0.0625
        %v1327 = vmul.f32 %v1311, 0.0625
        %v1328 = vmul.f32 %v1312, 0.0625
        %v1329 = vmul.f32 %v1313, 0.0625
        %v1330 = vmul.f32 %v1314, 0.0625
        %v1331 = vmul.f32 %v1315, 0.0625
        %v1332 = vmul.f32 %v1316, 0.0625
        %v1333 = vmul.f32 %v1317, 0.0625
        %v1334 = vmul.f32 %v1318, 0.0625
        %v1335 = vmul.f32 %v1319, 0.0625
        %v1336 = vmul.f32 %v1320, 0.0625
        %v1337 = vmul.f32 %v1321, 0.0625
        %v1338 = vpack.c.bf16 %v1322, %v1322
        %v1339 = vpack.c.bf16 %v1323, %v1323
        %v1340 = vpack.c.bf16 %v1324, %v1324
        %v1341 = vpack.c.bf16 %v1325, %v1325
        %v1342 = vpack.c.bf16 %v1326, %v1326
        %v1343 = vpack.c.bf16 %v1327, %v1327
        %v1344 = vpack.c.bf16 %v1328, %v1328
        %v1345 = vpack.c.bf16 %v1329, %v1329
        %v1346 = vpack.c.bf16 %v1330, %v1330
        %v1347 = vpack.c.bf16 %v1331, %v1331
        %v1348 = vpack.c.bf16 %v1332, %v1332
        %v1349 = vpack.c.bf16 %v1333, %v1333
        %v1350 = vpack.c.bf16 %v1334, %v1334
        %v1351 = vpack.c.bf16 %v1335, %v1335
        %v1352 = vpack.c.bf16 %v1336, %v1336
        %v1353 = vpack.c.bf16 %v1337, %v1337
        %v1354 = vld [vmem:[%s931] sm:$0x1]
        %v1356 = vperm.slane %v1354, 0
        %v1358 = vadd.f32 %v1286, %v1356
        %v1359 = vadd.f32 %v1287, %v1356
        %v1360 = vadd.f32 %v1288, %v1356
        %v1361 = vadd.f32 %v1289, %v1356
        %v1362 = vadd.f32 %v1290, %v1356
        %v1363 = vadd.f32 %v1291, %v1356
        %v1364 = vadd.f32 %v1292, %v1356
        %v1365 = vadd.f32 %v1293, %v1356
        %v1366 = vadd.f32 %v1294, %v1356
        %v1367 = vadd.f32 %v1295, %v1356
        %v1368 = vadd.f32 %v1296, %v1356
        %v1369 = vadd.f32 %v1297, %v1356
        %v1370 = vadd.f32 %v1298, %v1356
        %v1371 = vadd.f32 %v1299, %v1356
        %v1372 = vadd.f32 %v1300, %v1356
        %v1373 = vadd.f32 %v1301, %v1356
        %v1374 = vmul.f32 %v1358, 0.0625
        %v1375 = vmul.f32 %v1359, 0.0625
        %v1376 = vmul.f32 %v1360, 0.0625
        %v1377 = vmul.f32 %v1361, 0.0625
        %v1378 = vmul.f32 %v1362, 0.0625
        %v1379 = vmul.f32 %v1363, 0.0625
        %v1380 = vmul.f32 %v1364, 0.0625
        %v1381 = vmul.f32 %v1365, 0.0625
        %v1382 = vmul.f32 %v1366, 0.0625
        %v1383 = vmul.f32 %v1367, 0.0625
        %v1384 = vmul.f32 %v1368, 0.0625
        %v1385 = vmul.f32 %v1369, 0.0625
        %v1386 = vmul.f32 %v1370, 0.0625
        %v1387 = vmul.f32 %v1371, 0.0625
        %v1388 = vmul.f32 %v1372, 0.0625
        %v1389 = vmul.f32 %v1373, 0.0625
        %v1390 = vpack.c.bf16 %v1374, %v1374
        %v1391 = vpack.c.bf16 %v1375, %v1375
        %v1392 = vpack.c.bf16 %v1376, %v1376
        %v1393 = vpack.c.bf16 %v1377, %v1377
        %v1394 = vpack.c.bf16 %v1378, %v1378
        %v1395 = vpack.c.bf16 %v1379, %v1379
        %v1396 = vpack.c.bf16 %v1380, %v1380
        %v1397 = vpack.c.bf16 %v1381, %v1381
        %v1398 = vpack.c.bf16 %v1382, %v1382
        %v1399 = vpack.c.bf16 %v1383, %v1383
        %v1400 = vpack.c.bf16 %v1384, %v1384
        %v1401 = vpack.c.bf16 %v1385, %v1385
        %v1402 = vpack.c.bf16 %v1386, %v1386
        %v1403 = vpack.c.bf16 %v1387, %v1387
        %v1404 = vpack.c.bf16 %v1388, %v1388
        %v1405 = vpack.c.bf16 %v1389, %v1389
        %v1406 = vld [vmem:[%s846] sm:$0xf]
        %v1407 = vld [vmem:[%s846 + $0x4] sm:$0xf]
        %v1408 = vld [vmem:[%s846 + $0x8] sm:$0xf]
        %v1409 = vld [vmem:[%s846 + $0xc] sm:$0xf]
        %v1410 = vld [vmem:[%s846 + $0x10] sm:$0xf]
        %v1411 = vld [vmem:[%s846 + $0x14] sm:$0xf]
        %v1412 = vld [vmem:[%s846 + $0x18] sm:$0xf]
        %v1413 = vld [vmem:[%s846 + $0x1c] sm:$0xf]
        %v1414 = vld [vmem:[%s846 + $0x20] sm:$0xf]
        %v1415 = vld [vmem:[%s846 + $0x24] sm:$0xf]
        %v1416 = vld [vmem:[%s846 + $0x28] sm:$0xf]
        %v1417 = vld [vmem:[%s846 + $0x2c] sm:$0xf]
        %v1418 = vld [vmem:[%s846 + $0x30] sm:$0xf]
        %v1419 = vld [vmem:[%s846 + $0x34] sm:$0xf]
        %v1420 = vld [vmem:[%s846 + $0x38] sm:$0xf]
        %v1421 = vld [vmem:[%s846 + $0x3c] sm:$0xf]
        %v1422 = vld [vmem:[%s853] sm:$0xf]
        %v1423 = vld [vmem:[%s853 + $0x4] sm:$0xf]
        %v1424 = vld [vmem:[%s853 + $0x8] sm:$0xf]
        %v1425 = vld [vmem:[%s853 + $0xc] sm:$0xf]
        %v1426 = vld [vmem:[%s853 + $0x10] sm:$0xf]
        %v1427 = vld [vmem:[%s853 + $0x14] sm:$0xf]
        %v1428 = vld [vmem:[%s853 + $0x18] sm:$0xf]
        %v1429 = vld [vmem:[%s853 + $0x1c] sm:$0xf]
        %v1430 = vld [vmem:[%s853 + $0x20] sm:$0xf]
        %v1431 = vld [vmem:[%s853 + $0x24] sm:$0xf]
        %v1432 = vld [vmem:[%s853 + $0x28] sm:$0xf]
        %v1433 = vld [vmem:[%s853 + $0x2c] sm:$0xf]
        %v1434 = vld [vmem:[%s853 + $0x30] sm:$0xf]
        %v1435 = vld [vmem:[%s853 + $0x34] sm:$0xf]
        %v1436 = vld [vmem:[%s853 + $0x38] sm:$0xf]
        %v1437 = vld [vmem:[%s853 + $0x3c] sm:$0xf]
        %v1438 = vld [vmem:[%s918] sm:$0x1]
        %v1439 = vlaneseq
        %v1440 = vshrl.u32 %v1439, 7
        %v1441 = vadd.s32 %v1440, 8
        %v1442 = vadd.s32 %v1440, 16
        %v1443 = vadd.s32 %v1440, 24
        %v1444 = vadd.s32 %v1440, 32
        %v1445 = vadd.s32 %v1440, 40
        %v1446 = vadd.s32 %v1440, 48
        %v1447 = vadd.s32 %v1440, 56
        %v1448 = vadd.s32 %v1440, 64
        %v1449 = vadd.s32 %v1440, 72
        %v1450 = vadd.s32 %v1440, 80
        %v1451 = vadd.s32 %v1440, 88
        %v1452 = vadd.s32 %v1440, 96
        %v1453 = vadd.s32 %v1440, 104
        %v1454 = vadd.s32 %v1440, 112
        %v1455 = vadd.s32 %v1440, 120
        %v1456 = vlaneseq
        %v1457 = vand.u32 %v1456, 127
        %v1474 = vunpack.c.l.b16 %v1390
        %v1475 = vunpack.c.l.b16 %v1391
        %v1476 = vunpack.c.l.b16 %v1392
        %v1477 = vunpack.c.l.b16 %v1393
        %v1478 = vunpack.c.l.b16 %v1394
        %v1479 = vunpack.c.l.b16 %v1395
        %v1480 = vunpack.c.l.b16 %v1396
        %v1481 = vunpack.c.l.b16 %v1397
        %v1482 = vunpack.c.l.b16 %v1398
        %v1483 = vunpack.c.l.b16 %v1399
        %v1484 = vunpack.c.l.b16 %v1400
        %v1485 = vunpack.c.l.b16 %v1401
        %v1486 = vunpack.c.l.b16 %v1402
        %v1487 = vunpack.c.l.b16 %v1403
        %v1488 = vunpack.c.l.b16 %v1404
        %v1489 = vunpack.c.l.b16 %v1405
        %v1490 = vpack.c.b16 %v1475, %v1474
        %v1491 = vpack.c.b16 %v1477, %v1476
        %v1492 = vpack.c.b16 %v1479, %v1478
        %v1493 = vpack.c.b16 %v1481, %v1480
        %v1494 = vpack.c.b16 %v1483, %v1482
        %v1495 = vpack.c.b16 %v1485, %v1484
        %v1496 = vpack.c.b16 %v1487, %v1486
        %v1497 = vpack.c.b16 %v1489, %v1488
        %v1514 = vunpack.c.l.b16 %v1254
        %v1515 = vunpack.c.l.b16 %v1255
        %v1516 = vunpack.c.l.b16 %v1256
        %v1517 = vunpack.c.l.b16 %v1257
        %v1518 = vunpack.c.l.b16 %v1258
        %v1519 = vunpack.c.l.b16 %v1259
        %v1520 = vunpack.c.l.b16 %v1260
        %v1521 = vunpack.c.l.b16 %v1261
        %v1522 = vunpack.c.l.b16 %v1262
        %v1523 = vunpack.c.l.b16 %v1263
        %v1524 = vunpack.c.l.b16 %v1264
        %v1525 = vunpack.c.l.b16 %v1265
        %v1526 = vunpack.c.l.b16 %v1266
        %v1527 = vunpack.c.l.b16 %v1267
        %v1528 = vunpack.c.l.b16 %v1268
        %v1529 = vunpack.c.l.b16 %v1269
        %v1530 = vpack.c.b16 %v1515, %v1514
        %v1531 = vpack.c.b16 %v1517, %v1516
        %v1532 = vpack.c.b16 %v1519, %v1518
        %v1533 = vpack.c.b16 %v1521, %v1520
        %v1534 = vpack.c.b16 %v1523, %v1522
        %v1535 = vpack.c.b16 %v1525, %v1524
        %v1536 = vpack.c.b16 %v1527, %v1526
        %v1537 = vpack.c.b16 %v1529, %v1528
        %vm1538 = vcmask 523264
        %v1540 = vsel %vm1538, %v1490, 0
        %v1543 = vsel %vm1538, %v1491, 0
        %v1546 = vsel %vm1538, %v1492, 0
        %v1549 = vsel %vm1538, %v1493, 0
        %v1552 = vsel %vm1538, %v1494, 0
        %v1555 = vsel %vm1538, %v1495, 0
        %v1558 = vsel %vm1538, %v1496, 0
        %v1561 = vsel %vm1538, %v1497, 0
        %v1564 = vsel %vm1538, %v1530, 0
        %v1567 = vsel %vm1538, %v1531, 0
        %v1570 = vsel %vm1538, %v1532, 0
        %v1573 = vsel %vm1538, %v1533, 0
        %v1576 = vsel %vm1538, %v1534, 0
        %v1579 = vsel %vm1538, %v1535, 0
        %v1582 = vsel %vm1538, %v1536, 0
        %v1585 = vsel %vm1538, %v1537, 0
        %1587 = vmatpush.bf16.xpose.msra.mxu0 %v1585
        %1588 = vmatpush.bf16.xpose.msra.mxu0 %v1582
        %1589 = vmatpush.bf16.xpose.msra.mxu0 %v1579
        %1590 = vmatpush.bf16.xpose.msra.mxu0 %v1576
        %1591 = vmatpush.bf16.xpose.msra.mxu0 %v1573
        %1592 = vmatpush.bf16.xpose.msra.mxu0 %v1570
        %1593 = vmatpush.bf16.xpose.msra.mxu0 %v1567
        %1594 = vmatpush.bf16.xpose.msra.mxu0 %v1564
        %1595 = vmatmul.bf16.gmra.mxu0 %v1540
        %v1596 = vpop.f32.mrf.mxu0
        %v1597 = vadd.f32 0.0, %v1596
        %v1598 = vpop.f32.mrf.mxu0
        %v1599 = vadd.f32 0.0, %v1598
        %1600 = vmatmul.bf16.gmra.mxu0 %v1543
        %v1601 = vpop.f32.mrf.mxu0
        %v1602 = vadd.f32 0.0, %v1601
        %v1603 = vpop.f32.mrf.mxu0
        %v1604 = vadd.f32 0.0, %v1603
        %1605 = vmatmul.bf16.gmra.mxu0 %v1546
        %v1606 = vpop.f32.mrf.mxu0
        %v1607 = vadd.f32 0.0, %v1606
        %v1608 = vpop.f32.mrf.mxu0
        %v1609 = vadd.f32 0.0, %v1608
        %1610 = vmatmul.bf16.gmra.mxu0 %v1549
        %v1611 = vpop.f32.mrf.mxu0
        %v1612 = vadd.f32 0.0, %v1611
        %v1613 = vpop.f32.mrf.mxu0
        %v1614 = vadd.f32 0.0, %v1613
        %1615 = vmatmul.bf16.gmra.mxu0 %v1552
        %v1616 = vpop.f32.mrf.mxu0
        %v1617 = vadd.f32 0.0, %v1616
        %v1618 = vpop.f32.mrf.mxu0
        %v1619 = vadd.f32 0.0, %v1618
        %1620 = vmatmul.bf16.gmra.mxu0 %v1555
        %v1621 = vpop.f32.mrf.mxu0
        %v1622 = vadd.f32 0.0, %v1621
        %v1623 = vpop.f32.mrf.mxu0
        %v1624 = vadd.f32 0.0, %v1623
        %1625 = vmatmul.bf16.gmra.mxu0 %v1558
        %v1626 = vpop.f32.mrf.mxu0
        %v1627 = vadd.f32 0.0, %v1626
        %v1628 = vpop.f32.mrf.mxu0
        %v1629 = vadd.f32 0.0, %v1628
        %1630 = vmatmul.bf16.gmra.mxu0 %v1561
        %v1631 = vpop.f32.mrf.mxu0
        %v1632 = vadd.f32 0.0, %v1631
        %v1633 = vpop.f32.mrf.mxu0
        %v1634 = vadd.f32 0.0, %v1633
        %1635 = vdwg.mxu0
        %1637 = vrot.lane.b32.xlu0 %v1597, 256
        %v1638 = vpop.permute.xlu0 %1637
        %s1640 = sor.u32 256, 8
        %1641 = vrot.lane.b32.xlu0 %v1599, %s1640
        %v1642 = vpop.permute.xlu0 %1641
        %s1644 = sor.u32 256, 16
        %1645 = vrot.lane.b32.xlu0 %v1602, %s1644
        %v1646 = vpop.permute.xlu0 %1645
        %s1648 = sor.u32 256, 24
        %1649 = vrot.lane.b32.xlu0 %v1604, %s1648
        %v1650 = vpop.permute.xlu0 %1649
        %s1652 = sor.u32 256, 32
        %1653 = vrot.lane.b32.xlu0 %v1607, %s1652
        %v1654 = vpop.permute.xlu0 %1653
        %s1656 = sor.u32 256, 40
        %1657 = vrot.lane.b32.xlu0 %v1609, %s1656
        %v1658 = vpop.permute.xlu0 %1657
        %s1660 = sor.u32 256, 48
        %1661 = vrot.lane.b32.xlu0 %v1612, %s1660
        %v1662 = vpop.permute.xlu0 %1661
        %s1664 = sor.u32 256, 56
        %1665 = vrot.lane.b32.xlu0 %v1614, %s1664
        %v1666 = vpop.permute.xlu0 %1665
        %s1668 = sor.u32 256, 64
        %1669 = vrot.lane.b32.xlu0 %v1617, %s1668
        %v1670 = vpop.permute.xlu0 %1669
        %s1672 = sor.u32 256, 72
        %1673 = vrot.lane.b32.xlu0 %v1619, %s1672
        %v1674 = vpop.permute.xlu0 %1673
        %s1676 = sor.u32 256, 80
        %1677 = vrot.lane.b32.xlu0 %v1622, %s1676
        %v1678 = vpop.permute.xlu0 %1677
        %s1680 = sor.u32 256, 88
        %1681 = vrot.lane.b32.xlu0 %v1624, %s1680
        %v1682 = vpop.permute.xlu0 %1681
        %s1684 = sor.u32 256, 96
        %1685 = vrot.lane.b32.xlu0 %v1627, %s1684
        %v1686 = vpop.permute.xlu0 %1685
        %s1688 = sor.u32 256, 104
        %1689 = vrot.lane.b32.xlu0 %v1629, %s1688
        %v1690 = vpop.permute.xlu0 %1689
        %s1692 = sor.u32 256, 112
        %1693 = vrot.lane.b32.xlu0 %v1632, %s1692
        %v1694 = vpop.permute.xlu0 %1693
        %s1696 = sor.u32 256, 120
        %1697 = vrot.lane.b32.xlu0 %v1634, %s1696
        %v1698 = vpop.permute.xlu0 %1697
        %1699 = vrot.lane.b32.xlu0 %v1638, 1
        %v1700 = vpop.permute.xlu0 %1699
        %1701 = vrot.lane.b32.xlu0 %v1642, 1
        %v1702 = vpop.permute.xlu0 %1701
        %1703 = vrot.lane.b32.xlu0 %v1646, 1
        %v1704 = vpop.permute.xlu0 %1703
        %1705 = vrot.lane.b32.xlu0 %v1650, 1
        %v1706 = vpop.permute.xlu0 %1705
        %1707 = vrot.lane.b32.xlu0 %v1654, 1
        %v1708 = vpop.permute.xlu0 %1707
        %1709 = vrot.lane.b32.xlu0 %v1658, 1
        %v1710 = vpop.permute.xlu0 %1709
        %1711 = vrot.lane.b32.xlu0 %v1662, 1
        %v1712 = vpop.permute.xlu0 %1711
        %1713 = vrot.lane.b32.xlu0 %v1666, 1
        %v1714 = vpop.permute.xlu0 %1713
        %1715 = vrot.lane.b32.xlu0 %v1670, 1
        %v1716 = vpop.permute.xlu0 %1715
        %1717 = vrot.lane.b32.xlu0 %v1674, 1
        %v1718 = vpop.permute.xlu0 %1717
        %1719 = vrot.lane.b32.xlu0 %v1678, 1
        %v1720 = vpop.permute.xlu0 %1719
        %1721 = vrot.lane.b32.xlu0 %v1682, 1
        %v1722 = vpop.permute.xlu0 %1721
        %1723 = vrot.lane.b32.xlu0 %v1686, 1
        %v1724 = vpop.permute.xlu0 %1723
        %1725 = vrot.lane.b32.xlu0 %v1690, 1
        %v1726 = vpop.permute.xlu0 %1725
        %1727 = vrot.lane.b32.xlu0 %v1694, 1
        %v1728 = vpop.permute.xlu0 %1727
        %1729 = vrot.lane.b32.xlu0 %v1698, 1
        %v1730 = vpop.permute.xlu0 %1729
        %v1731 = vrot.slane %v1700, 1
        %v1732 = vrot.slane %v1702, 1
        %v1733 = vrot.slane %v1704, 1
        %v1734 = vrot.slane %v1706, 1
        %v1735 = vrot.slane %v1708, 1
        %v1736 = vrot.slane %v1710, 1
        %v1737 = vrot.slane %v1712, 1
        %v1738 = vrot.slane %v1714, 1
        %v1739 = vrot.slane %v1716, 1
        %v1740 = vrot.slane %v1718, 1
        %v1741 = vrot.slane %v1720, 1
        %v1742 = vrot.slane %v1722, 1
        %v1743 = vrot.slane %v1724, 1
        %v1744 = vrot.slane %v1726, 1
        %v1745 = vrot.slane %v1728, 1
        %v1746 = vrot.slane %v1730, 1
        %vm1747 = vcmp.lt.s32.totalorder %v1440, 7
        %v1748 = vsel %vm1747, %v1745, %v1746
        %v1749 = vsel %vm1747, %v1744, %v1745
        %v1750 = vsel %vm1747, %v1743, %v1744
        %v1751 = vsel %vm1747, %v1742, %v1743
        %v1752 = vsel %vm1747, %v1741, %v1742
        %v1753 = vsel %vm1747, %v1740, %v1741
        %v1754 = vsel %vm1747, %v1739, %v1740
        %v1755 = vsel %vm1747, %v1738, %v1739
        %v1756 = vsel %vm1747, %v1737, %v1738
        %v1757 = vsel %vm1747, %v1736, %v1737
        %v1758 = vsel %vm1747, %v1735, %v1736
        %v1759 = vsel %vm1747, %v1734, %v1735
        %v1760 = vsel %vm1747, %v1733, %v1734
        %v1761 = vsel %vm1747, %v1732, %v1733
        %v1762 = vsel %vm1747, %v1731, %v1732
        %v1763 = vsel %vm1747, %v1746, %v1731
        %vm1764 = vcmp.le.s32.totalorder %v1457, %v1440
        %vm1765 = vcmp.le.s32.totalorder %v1457, %v1441
        %vm1766 = vcmp.le.s32.totalorder %v1457, %v1442
        %vm1767 = vcmp.le.s32.totalorder %v1457, %v1443
        %vm1768 = vcmp.le.s32.totalorder %v1457, %v1444
        %vm1769 = vcmp.le.s32.totalorder %v1457, %v1445
        %vm1770 = vcmp.le.s32.totalorder %v1457, %v1446
        %vm1771 = vcmp.le.s32.totalorder %v1457, %v1447
        %vm1772 = vcmp.le.s32.totalorder %v1457, %v1448
        %vm1773 = vcmp.le.s32.totalorder %v1457, %v1449
        %vm1774 = vcmp.le.s32.totalorder %v1457, %v1450
        %vm1775 = vcmp.le.s32.totalorder %v1457, %v1451
        %vm1776 = vcmp.le.s32.totalorder %v1457, %v1452
        %vm1777 = vcmp.le.s32.totalorder %v1457, %v1453
        %vm1778 = vcmp.le.s32.totalorder %v1457, %v1454
        %vm1779 = vcmp.le.s32.totalorder %v1457, %v1455
        %v1780 = vadd.s32 %v1440, 1
        %v1781 = vadd.s32 %v1441, 1
        %v1782 = vadd.s32 %v1442, 1
        %v1783 = vadd.s32 %v1443, 1
        %v1784 = vadd.s32 %v1444, 1
        %v1785 = vadd.s32 %v1445, 1
        %v1786 = vadd.s32 %v1446, 1
        %v1787 = vadd.s32 %v1447, 1
        %v1788 = vadd.s32 %v1448, 1
        %v1789 = vadd.s32 %v1449, 1
        %v1790 = vadd.s32 %v1450, 1
        %v1791 = vadd.s32 %v1451, 1
        %v1792 = vadd.s32 %v1452, 1
        %v1793 = vadd.s32 %v1453, 1
        %v1794 = vadd.s32 %v1454, 1
        %v1795 = vadd.s32 %v1455, 1
        %vm1796 = vcmp.eq.s32.totalorder %v1457, %v1780
        %vm1797 = vcmp.eq.s32.totalorder %v1457, %v1781
        %vm1798 = vcmp.eq.s32.totalorder %v1457, %v1782
        %vm1799 = vcmp.eq.s32.totalorder %v1457, %v1783
        %vm1800 = vcmp.eq.s32.totalorder %v1457, %v1784
        %vm1801 = vcmp.eq.s32.totalorder %v1457, %v1785
        %vm1802 = vcmp.eq.s32.totalorder %v1457, %v1786
        %vm1803 = vcmp.eq.s32.totalorder %v1457, %v1787
        %vm1804 = vcmp.eq.s32.totalorder %v1457, %v1788
        %vm1805 = vcmp.eq.s32.totalorder %v1457, %v1789
        %vm1806 = vcmp.eq.s32.totalorder %v1457, %v1790
        %vm1807 = vcmp.eq.s32.totalorder %v1457, %v1791
        %vm1808 = vcmp.eq.s32.totalorder %v1457, %v1792
        %vm1809 = vcmp.eq.s32.totalorder %v1457, %v1793
        %vm1810 = vcmp.eq.s32.totalorder %v1457, %v1794
        %vm1811 = vcmp.eq.s32.totalorder %v1457, %v1795
        %v1812 = vsel %vm1796, 0.0, %v1762
        %v1813 = vsel %vm1797, 0.0, %v1761
        %v1814 = vsel %vm1798, 0.0, %v1760
        %v1815 = vsel %vm1799, 0.0, %v1759
        %v1816 = vsel %vm1800, 0.0, %v1758
        %v1817 = vsel %vm1801, 0.0, %v1757
        %v1818 = vsel %vm1802, 0.0, %v1756
        %v1819 = vsel %vm1803, 0.0, %v1755
        %v1820 = vsel %vm1804, 0.0, %v1754
        %v1821 = vsel %vm1805, 0.0, %v1753
        %v1822 = vsel %vm1806, 0.0, %v1752
        %v1823 = vsel %vm1807, 0.0, %v1751
        %v1824 = vsel %vm1808, 0.0, %v1750
        %v1825 = vsel %vm1809, 0.0, %v1749
        %v1826 = vsel %vm1810, 0.0, %v1748
        %v1827 = vsel %vm1811, 0.0, %v1763
        %v1828 = vsel %vm1764, %v1700, %v1812
        %v1829 = vsel %vm1765, %v1702, %v1813
        %v1830 = vsel %vm1766, %v1704, %v1814
        %v1831 = vsel %vm1767, %v1706, %v1815
        %v1832 = vsel %vm1768, %v1708, %v1816
        %v1833 = vsel %vm1769, %v1710, %v1817
        %v1834 = vsel %vm1770, %v1712, %v1818
        %v1835 = vsel %vm1771, %v1714, %v1819
        %v1836 = vsel %vm1772, %v1716, %v1820
        %v1837 = vsel %vm1773, %v1718, %v1821
        %v1838 = vsel %vm1774, %v1720, %v1822
        %v1839 = vsel %vm1775, %v1722, %v1823
        %v1840 = vsel %vm1776, %v1724, %v1824
        %v1841 = vsel %vm1777, %v1726, %v1825
        %v1842 = vsel %vm1778, %v1728, %v1826
        %v1843 = vsel %vm1779, %v1730, %v1827
        %v1860 = vunpack.c.l.b16 %v1338
        %v1861 = vunpack.c.l.b16 %v1339
        %v1862 = vunpack.c.l.b16 %v1340
        %v1863 = vunpack.c.l.b16 %v1341
        %v1864 = vunpack.c.l.b16 %v1342
        %v1865 = vunpack.c.l.b16 %v1343
        %v1866 = vunpack.c.l.b16 %v1344
        %v1867 = vunpack.c.l.b16 %v1345
        %v1868 = vunpack.c.l.b16 %v1346
        %v1869 = vunpack.c.l.b16 %v1347
        %v1870 = vunpack.c.l.b16 %v1348
        %v1871 = vunpack.c.l.b16 %v1349
        %v1872 = vunpack.c.l.b16 %v1350
        %v1873 = vunpack.c.l.b16 %v1351
        %v1874 = vunpack.c.l.b16 %v1352
        %v1875 = vunpack.c.l.b16 %v1353
        %v1876 = vpack.c.b16 %v1861, %v1860
        %v1877 = vpack.c.b16 %v1863, %v1862
        %v1878 = vpack.c.b16 %v1865, %v1864
        %v1879 = vpack.c.b16 %v1867, %v1866
        %v1880 = vpack.c.b16 %v1869, %v1868
        %v1881 = vpack.c.b16 %v1871, %v1870
        %v1882 = vpack.c.b16 %v1873, %v1872
        %v1883 = vpack.c.b16 %v1875, %v1874
        %v1900 = vunpack.c.l.b16 %v1406
        %v1901 = vunpack.c.l.b16 %v1407
        %v1902 = vunpack.c.l.b16 %v1408
        %v1903 = vunpack.c.l.b16 %v1409
        %v1904 = vunpack.c.l.b16 %v1410
        %v1905 = vunpack.c.l.b16 %v1411
        %v1906 = vunpack.c.l.b16 %v1412
        %v1907 = vunpack.c.l.b16 %v1413
        %v1908 = vunpack.c.l.b16 %v1414
        %v1909 = vunpack.c.l.b16 %v1415
        %v1910 = vunpack.c.l.b16 %v1416
        %v1911 = vunpack.c.l.b16 %v1417
        %v1912 = vunpack.c.l.b16 %v1418
        %v1913 = vunpack.c.l.b16 %v1419
        %v1914 = vunpack.c.l.b16 %v1420
        %v1915 = vunpack.c.l.b16 %v1421
        %v1916 = vpack.c.b16 %v1901, %v1900
        %v1917 = vpack.c.b16 %v1903, %v1902
        %v1918 = vpack.c.b16 %v1905, %v1904
        %v1919 = vpack.c.b16 %v1907, %v1906
        %v1920 = vpack.c.b16 %v1909, %v1908
        %v1921 = vpack.c.b16 %v1911, %v1910
        %v1922 = vpack.c.b16 %v1913, %v1912
        %v1923 = vpack.c.b16 %v1915, %v1914
        %v1925 = vsel %vm1538, %v1876, 0
        %v1928 = vsel %vm1538, %v1877, 0
        %v1931 = vsel %vm1538, %v1878, 0
        %v1934 = vsel %vm1538, %v1879, 0
        %v1937 = vsel %vm1538, %v1880, 0
        %v1940 = vsel %vm1538, %v1881, 0
        %v1943 = vsel %vm1538, %v1882, 0
        %v1946 = vsel %vm1538, %v1883, 0
        %v1949 = vsel %vm1538, %v1916, 0
        %v1952 = vsel %vm1538, %v1917, 0
        %v1955 = vsel %vm1538, %v1918, 0
        %v1958 = vsel %vm1538, %v1919, 0
        %v1961 = vsel %vm1538, %v1920, 0
        %v1964 = vsel %vm1538, %v1921, 0
        %v1967 = vsel %vm1538, %v1922, 0
        %v1970 = vsel %vm1538, %v1923, 0
        %1972 = vmatpush.bf16.xpose.msra.mxu0 %v1970
        %1973 = vmatpush.bf16.xpose.msra.mxu0 %v1967
        %1974 = vmatpush.bf16.xpose.msra.mxu0 %v1964
        %1975 = vmatpush.bf16.xpose.msra.mxu0 %v1961
        %1976 = vmatpush.bf16.xpose.msra.mxu0 %v1958
        %1977 = vmatpush.bf16.xpose.msra.mxu0 %v1955
        %1978 = vmatpush.bf16.xpose.msra.mxu0 %v1952
        %1979 = vmatpush.bf16.xpose.msra.mxu0 %v1949
        %1980 = vmatmul.bf16.gmra.mxu0 %v1925
        %v1981 = vpop.f32.mrf.mxu0
        %v1982 = vadd.f32 %v1828, %v1981
        %v1983 = vpop.f32.mrf.mxu0
        %v1984 = vadd.f32 %v1829, %v1983
        %1985 = vmatmul.bf16.gmra.mxu0 %v1928
        %v1986 = vpop.f32.mrf.mxu0
        %v1987 = vadd.f32 %v1830, %v1986
        %v1988 = vpop.f32.mrf.mxu0
        %v1989 = vadd.f32 %v1831, %v1988
        %1990 = vmatmul.bf16.gmra.mxu0 %v1931
        %v1991 = vpop.f32.mrf.mxu0
        %v1992 = vadd.f32 %v1832, %v1991
        %v1993 = vpop.f32.mrf.mxu0
        %v1994 = vadd.f32 %v1833, %v1993
        %1995 = vmatmul.bf16.gmra.mxu0 %v1934
        %v1996 = vpop.f32.mrf.mxu0
        %v1997 = vadd.f32 %v1834, %v1996
        %v1998 = vpop.f32.mrf.mxu0
        %v1999 = vadd.f32 %v1835, %v1998
        %2000 = vmatmul.bf16.gmra.mxu0 %v1937
        %v2001 = vpop.f32.mrf.mxu0
        %v2002 = vadd.f32 %v1836, %v2001
        %v2003 = vpop.f32.mrf.mxu0
        %v2004 = vadd.f32 %v1837, %v2003
        %2005 = vmatmul.bf16.gmra.mxu0 %v1940
        %v2006 = vpop.f32.mrf.mxu0
        %v2007 = vadd.f32 %v1838, %v2006
        %v2008 = vpop.f32.mrf.mxu0
        %v2009 = vadd.f32 %v1839, %v2008
        %2010 = vmatmul.bf16.gmra.mxu0 %v1943
        %v2011 = vpop.f32.mrf.mxu0
        %v2012 = vadd.f32 %v1840, %v2011
        %v2013 = vpop.f32.mrf.mxu0
        %v2014 = vadd.f32 %v1841, %v2013
        %2015 = vmatmul.bf16.gmra.mxu0 %v1946
        %v2016 = vpop.f32.mrf.mxu0
        %v2017 = vadd.f32 %v1842, %v2016
        %v2018 = vpop.f32.mrf.mxu0
        %v2019 = vadd.f32 %v1843, %v2018
        %2020 = vdwg.mxu0
        %vm2021 = vcmp.ne.s32.totalorder %v1438, 0
        %v2022 = vsel %vm2021, 1, 0
        %v2023 = vperm.slane %v2022, 0
        %vm2024 = vcmp.eq.s32.totalorder %v2023, 1
        %v2025 = vsel %vm2024, -1e+09, %v1982
        %v2026 = vsel %vm2024, -1e+09, %v1984
        %v2027 = vsel %vm2024, -1e+09, %v1987
        %v2028 = vsel %vm2024, -1e+09, %v1989
        %v2029 = vsel %vm2024, -1e+09, %v1992
        %v2030 = vsel %vm2024, -1e+09, %v1994
        %v2031 = vsel %vm2024, -1e+09, %v1997
        %v2032 = vsel %vm2024, -1e+09, %v1999
        %v2033 = vsel %vm2024, -1e+09, %v2002
        %v2034 = vsel %vm2024, -1e+09, %v2004
        %v2035 = vsel %vm2024, -1e+09, %v2007
        %v2036 = vsel %vm2024, -1e+09, %v2009
        %v2037 = vsel %vm2024, -1e+09, %v2012
        %v2038 = vsel %vm2024, -1e+09, %v2014
        %v2039 = vsel %vm2024, -1e+09, %v2017
        %v2040 = vsel %vm2024, -1e+09, %v2019
        %2041 = vmax.xlane.f32.xlu0 %v2025
        %v2042 = vpop.xlane.xlu0 %2041
        %2043 = vmax.xlane.f32.xlu0 %v2026
        %v2044 = vpop.xlane.xlu0 %2043
        %2045 = vmax.xlane.f32.xlu0 %v2027
        %v2046 = vpop.xlane.xlu0 %2045
        %2047 = vmax.xlane.f32.xlu0 %v2028
        %v2048 = vpop.xlane.xlu0 %2047
        %2049 = vmax.xlane.f32.xlu0 %v2029
        %v2050 = vpop.xlane.xlu0 %2049
        %2051 = vmax.xlane.f32.xlu0 %v2030
        %v2052 = vpop.xlane.xlu0 %2051
        %2053 = vmax.xlane.f32.xlu0 %v2031
        %v2054 = vpop.xlane.xlu0 %2053
        %2055 = vmax.xlane.f32.xlu0 %v2032
        %v2056 = vpop.xlane.xlu0 %2055
        %2057 = vmax.xlane.f32.xlu0 %v2033
        %v2058 = vpop.xlane.xlu0 %2057
        %2059 = vmax.xlane.f32.xlu0 %v2034
        %v2060 = vpop.xlane.xlu0 %2059
        %2061 = vmax.xlane.f32.xlu0 %v2035
        %v2062 = vpop.xlane.xlu0 %2061
        %2063 = vmax.xlane.f32.xlu0 %v2036
        %v2064 = vpop.xlane.xlu0 %2063
        %2065 = vmax.xlane.f32.xlu0 %v2037
        %v2066 = vpop.xlane.xlu0 %2065
        %2067 = vmax.xlane.f32.xlu0 %v2038
        %v2068 = vpop.xlane.xlu0 %2067
        %2069 = vmax.xlane.f32.xlu0 %v2039
        %v2070 = vpop.xlane.xlu0 %2069
        %2071 = vmax.xlane.f32.xlu0 %v2040
        %v2072 = vpop.xlane.xlu0 %2071
        %v2073 = vsub.f32 %v2025, %v2042
        %v2074 = vsub.f32 %v2026, %v2044
        %v2075 = vsub.f32 %v2027, %v2046
        %v2076 = vsub.f32 %v2028, %v2048
        %v2077 = vsub.f32 %v2029, %v2050
        %v2078 = vsub.f32 %v2030, %v2052
        %v2079 = vsub.f32 %v2031, %v2054
        %v2080 = vsub.f32 %v2032, %v2056
        %v2081 = vsub.f32 %v2033, %v2058
        %v2082 = vsub.f32 %v2034, %v2060
        %v2083 = vsub.f32 %v2035, %v2062
        %v2084 = vsub.f32 %v2036, %v2064
        %v2085 = vsub.f32 %v2037, %v2066
        %v2086 = vsub.f32 %v2038, %v2068
        %v2087 = vsub.f32 %v2039, %v2070
        %v2088 = vsub.f32 %v2040, %v2072
        %v2089 = vmul.f32 %v2073, 1.442695
        %v2090 = vpow.pop %v2089
        %v2091 = vmul.f32 %v2074, 1.442695
        %v2092 = vpow.pop %v2091
        %v2093 = vmul.f32 %v2075, 1.442695
        %v2094 = vpow.pop %v2093
        %v2095 = vmul.f32 %v2076, 1.442695
        %v2096 = vpow.pop %v2095
        %v2097 = vmul.f32 %v2077, 1.442695
        %v2098 = vpow.pop %v2097
        %v2099 = vmul.f32 %v2078, 1.442695
        %v2100 = vpow.pop %v2099
        %v2101 = vmul.f32 %v2079, 1.442695
        %v2102 = vpow.pop %v2101
        %v2103 = vmul.f32 %v2080, 1.442695
        %v2104 = vpow.pop %v2103
        %v2105 = vmul.f32 %v2081, 1.442695
        %v2106 = vpow.pop %v2105
        %v2107 = vmul.f32 %v2082, 1.442695
        %v2108 = vpow.pop %v2107
        %v2109 = vmul.f32 %v2083, 1.442695
        %v2110 = vpow.pop %v2109
        %v2111 = vmul.f32 %v2084, 1.442695
        %v2112 = vpow.pop %v2111
        %v2113 = vmul.f32 %v2085, 1.442695
        %v2114 = vpow.pop %v2113
        %v2115 = vmul.f32 %v2086, 1.442695
        %v2116 = vpow.pop %v2115
        %v2117 = vmul.f32 %v2087, 1.442695
        %v2118 = vpow.pop %v2117
        %v2119 = vmul.f32 %v2088, 1.442695
        %v2120 = vpow.pop %v2119
        %2121 = vadd.xlane.f32.xlu0 %v2090
        %v2122 = vpop.xlane.xlu0 %2121
        %2123 = vadd.xlane.f32.xlu0 %v2092
        %v2124 = vpop.xlane.xlu0 %2123
        %2125 = vadd.xlane.f32.xlu0 %v2094
        %v2126 = vpop.xlane.xlu0 %2125
        %2127 = vadd.xlane.f32.xlu0 %v2096
        %v2128 = vpop.xlane.xlu0 %2127
        %2129 = vadd.xlane.f32.xlu0 %v2098
        %v2130 = vpop.xlane.xlu0 %2129
        %2131 = vadd.xlane.f32.xlu0 %v2100
        %v2132 = vpop.xlane.xlu0 %2131
        %2133 = vadd.xlane.f32.xlu0 %v2102
        %v2134 = vpop.xlane.xlu0 %2133
        %2135 = vadd.xlane.f32.xlu0 %v2104
        %v2136 = vpop.xlane.xlu0 %2135
        %2137 = vadd.xlane.f32.xlu0 %v2106
        %v2138 = vpop.xlane.xlu0 %2137
        %2139 = vadd.xlane.f32.xlu0 %v2108
        %v2140 = vpop.xlane.xlu0 %2139
        %2141 = vadd.xlane.f32.xlu0 %v2110
        %v2142 = vpop.xlane.xlu0 %2141
        %2143 = vadd.xlane.f32.xlu0 %v2112
        %v2144 = vpop.xlane.xlu0 %2143
        %2145 = vadd.xlane.f32.xlu0 %v2114
        %v2146 = vpop.xlane.xlu0 %2145
        %2147 = vadd.xlane.f32.xlu0 %v2116
        %v2148 = vpop.xlane.xlu0 %2147
        %2149 = vadd.xlane.f32.xlu0 %v2118
        %v2150 = vpop.xlane.xlu0 %2149
        %2151 = vadd.xlane.f32.xlu0 %v2120
        %v2152 = vpop.xlane.xlu0 %2151
        %v2153 = vrcp.pop %v2122
        %v2154 = vrcp.pop %v2124
        %v2155 = vrcp.pop %v2126
        %v2156 = vrcp.pop %v2128
        %v2157 = vrcp.pop %v2130
        %v2158 = vrcp.pop %v2132
        %v2159 = vrcp.pop %v2134
        %v2160 = vrcp.pop %v2136
        %v2161 = vrcp.pop %v2138
        %v2162 = vrcp.pop %v2140
        %v2163 = vrcp.pop %v2142
        %v2164 = vrcp.pop %v2144
        %v2165 = vrcp.pop %v2146
        %v2166 = vrcp.pop %v2148
        %v2167 = vrcp.pop %v2150
        %v2168 = vrcp.pop %v2152
        %v2169 = vmul.f32 %v2090, %v2153
        %v2170 = vmul.f32 %v2092, %v2154
        %v2171 = vmul.f32 %v2094, %v2155
        %v2172 = vmul.f32 %v2096, %v2156
        %v2173 = vmul.f32 %v2098, %v2157
        %v2174 = vmul.f32 %v2100, %v2158
        %v2175 = vmul.f32 %v2102, %v2159
        %v2176 = vmul.f32 %v2104, %v2160
        %v2177 = vmul.f32 %v2106, %v2161
        %v2178 = vmul.f32 %v2108, %v2162
        %v2179 = vmul.f32 %v2110, %v2163
        %v2180 = vmul.f32 %v2112, %v2164
        %v2181 = vmul.f32 %v2114, %v2165
        %v2182 = vmul.f32 %v2116, %v2166
        %v2183 = vmul.f32 %v2118, %v2167
        %v2184 = vmul.f32 %v2120, %v2168
        %v2185 = vpack.c.bf16 %v2170, %v2169
        %v2186 = vpack.c.bf16 %v2172, %v2171
        %v2187 = vpack.c.bf16 %v2174, %v2173
        %v2188 = vpack.c.bf16 %v2176, %v2175
        %v2189 = vpack.c.bf16 %v2178, %v2177
        %v2190 = vpack.c.bf16 %v2180, %v2179
        %v2191 = vpack.c.bf16 %v2182, %v2181
        %v2192 = vpack.c.bf16 %v2184, %v2183
        %v2209 = vunpack.c.l.b16 %v1422
        %v2210 = vunpack.c.l.b16 %v1423
        %v2211 = vunpack.c.l.b16 %v1424
        %v2212 = vunpack.c.l.b16 %v1425
        %v2213 = vunpack.c.l.b16 %v1426
        %v2214 = vunpack.c.l.b16 %v1427
        %v2215 = vunpack.c.l.b16 %v1428
        %v2216 = vunpack.c.l.b16 %v1429
        %v2217 = vunpack.c.l.b16 %v1430
        %v2218 = vunpack.c.l.b16 %v1431
        %v2219 = vunpack.c.l.b16 %v1432
        %v2220 = vunpack.c.l.b16 %v1433
        %v2221 = vunpack.c.l.b16 %v1434
        %v2222 = vunpack.c.l.b16 %v1435
        %v2223 = vunpack.c.l.b16 %v1436
        %v2224 = vunpack.c.l.b16 %v1437
        %v2225 = vpack.c.b16 %v2210, %v2209
        %v2226 = vpack.c.b16 %v2212, %v2211
        %v2227 = vpack.c.b16 %v2214, %v2213
        %v2228 = vpack.c.b16 %v2216, %v2215
        %v2229 = vpack.c.b16 %v2218, %v2217
        %v2230 = vpack.c.b16 %v2220, %v2219
        %v2231 = vpack.c.b16 %v2222, %v2221
        %v2232 = vpack.c.b16 %v2224, %v2223
        %2241 = vmatpush.bf16.msra.mxu0 %v2232
        %2242 = vmatpush.bf16.msra.mxu0 %v2231
        %2243 = vmatpush.bf16.msra.mxu0 %v2230
        %2244 = vmatpush.bf16.msra.mxu0 %v2229
        %2245 = vmatpush.bf16.msra.mxu0 %v2228
        %2246 = vmatpush.bf16.msra.mxu0 %v2227
        %2247 = vmatpush.bf16.msra.mxu0 %v2226
        %2248 = vmatpush.bf16.msra.mxu0 %v2225
        %2249 = vmatmul.bf16.gmra.mxu0 %v2185
        %v2250 = vpop.f32.mrf.mxu0
        %v2251 = vadd.f32 0.0, %v2250
        %v2252 = vpop.f32.mrf.mxu0
        %v2253 = vadd.f32 0.0, %v2252
        %2254 = vmatmul.bf16.gmra.mxu0 %v2186
        %v2255 = vpop.f32.mrf.mxu0
        %v2256 = vadd.f32 0.0, %v2255
        %v2257 = vpop.f32.mrf.mxu0
        %v2258 = vadd.f32 0.0, %v2257
        %2259 = vmatmul.bf16.gmra.mxu0 %v2187
        %v2260 = vpop.f32.mrf.mxu0
        %v2261 = vadd.f32 0.0, %v2260
        %v2262 = vpop.f32.mrf.mxu0
        %v2263 = vadd.f32 0.0, %v2262
        %2264 = vmatmul.bf16.gmra.mxu0 %v2188
        %v2265 = vpop.f32.mrf.mxu0
        %v2266 = vadd.f32 0.0, %v2265
        %v2267 = vpop.f32.mrf.mxu0
        %v2268 = vadd.f32 0.0, %v2267
        %2269 = vmatmul.bf16.gmra.mxu0 %v2189
        %v2270 = vpop.f32.mrf.mxu0
        %v2271 = vadd.f32 0.0, %v2270
        %v2272 = vpop.f32.mrf.mxu0
        %v2273 = vadd.f32 0.0, %v2272
        %2274 = vmatmul.bf16.gmra.mxu0 %v2190
        %v2275 = vpop.f32.mrf.mxu0
        %v2276 = vadd.f32 0.0, %v2275
        %v2277 = vpop.f32.mrf.mxu0
        %v2278 = vadd.f32 0.0, %v2277
        %2279 = vmatmul.bf16.gmra.mxu0 %v2191
        %v2280 = vpop.f32.mrf.mxu0
        %v2281 = vadd.f32 0.0, %v2280
        %v2282 = vpop.f32.mrf.mxu0
        %v2283 = vadd.f32 0.0, %v2282
        %2284 = vmatmul.bf16.gmra.mxu0 %v2192
        %v2285 = vpop.f32.mrf.mxu0
        %v2286 = vadd.f32 0.0, %v2285
        %v2287 = vpop.f32.mrf.mxu0
        %v2288 = vadd.f32 0.0, %v2287
        %2289 = vdwg.mxu0
        %2290 = vrot.lane.b32.xlu0 %v1490, 64
        %v2291 = vpop.permute.xlu0 %2290
        %2292 = vrot.lane.b32.xlu0 %v1491, 64
        %v2293 = vpop.permute.xlu0 %2292
        %2294 = vrot.lane.b32.xlu0 %v1492, 64
        %v2295 = vpop.permute.xlu0 %2294
        %2296 = vrot.lane.b32.xlu0 %v1493, 64
        %v2297 = vpop.permute.xlu0 %2296
        %2298 = vrot.lane.b32.xlu0 %v1494, 64
        %v2299 = vpop.permute.xlu0 %2298
        %2300 = vrot.lane.b32.xlu0 %v1495, 64
        %v2301 = vpop.permute.xlu0 %2300
        %2302 = vrot.lane.b32.xlu0 %v1496, 64
        %v2303 = vpop.permute.xlu0 %2302
        %2304 = vrot.lane.b32.xlu0 %v1497, 64
        %v2305 = vpop.permute.xlu0 %2304
        %2306 = vrot.lane.b32.xlu0 %v1530, 64
        %v2307 = vpop.permute.xlu0 %2306
        %2308 = vrot.lane.b32.xlu0 %v1531, 64
        %v2309 = vpop.permute.xlu0 %2308
        %2310 = vrot.lane.b32.xlu0 %v1532, 64
        %v2311 = vpop.permute.xlu0 %2310
        %2312 = vrot.lane.b32.xlu0 %v1533, 64
        %v2313 = vpop.permute.xlu0 %2312
        %2314 = vrot.lane.b32.xlu0 %v1534, 64
        %v2315 = vpop.permute.xlu0 %2314
        %2316 = vrot.lane.b32.xlu0 %v1535, 64
        %v2317 = vpop.permute.xlu0 %2316
        %2318 = vrot.lane.b32.xlu0 %v1536, 64
        %v2319 = vpop.permute.xlu0 %2318
        %2320 = vrot.lane.b32.xlu0 %v1537, 64
        %v2321 = vpop.permute.xlu0 %2320
        %v2323 = vsel %vm1538, %v2291, 0
        %v2326 = vsel %vm1538, %v2293, 0
        %v2329 = vsel %vm1538, %v2295, 0
        %v2332 = vsel %vm1538, %v2297, 0
        %v2335 = vsel %vm1538, %v2299, 0
        %v2338 = vsel %vm1538, %v2301, 0
        %v2341 = vsel %vm1538, %v2303, 0
        %v2344 = vsel %vm1538, %v2305, 0
        %v2347 = vsel %vm1538, %v2307, 0
        %v2350 = vsel %vm1538, %v2309, 0
        %v2353 = vsel %vm1538, %v2311, 0
        %v2356 = vsel %vm1538, %v2313, 0
        %v2359 = vsel %vm1538, %v2315, 0
        %v2362 = vsel %vm1538, %v2317, 0
        %v2365 = vsel %vm1538, %v2319, 0
        %v2368 = vsel %vm1538, %v2321, 0
        %2370 = vmatpush.bf16.xpose.msra.mxu0 %v2368
        %2371 = vmatpush.bf16.xpose.msra.mxu0 %v2365
        %2372 = vmatpush.bf16.xpose.msra.mxu0 %v2362
        %2373 = vmatpush.bf16.xpose.msra.mxu0 %v2359
        %2374 = vmatpush.bf16.xpose.msra.mxu0 %v2356
        %2375 = vmatpush.bf16.xpose.msra.mxu0 %v2353
        %2376 = vmatpush.bf16.xpose.msra.mxu0 %v2350
        %2377 = vmatpush.bf16.xpose.msra.mxu0 %v2347
        %2378 = vmatmul.bf16.gmra.mxu0 %v2323
        %v2379 = vpop.f32.mrf.mxu0
        %v2380 = vadd.f32 0.0, %v2379
        %v2381 = vpop.f32.mrf.mxu0
        %v2382 = vadd.f32 0.0, %v2381
        %2383 = vmatmul.bf16.gmra.mxu0 %v2326
        %v2384 = vpop.f32.mrf.mxu0
        %v2385 = vadd.f32 0.0, %v2384
        %v2386 = vpop.f32.mrf.mxu0
        %v2387 = vadd.f32 0.0, %v2386
        %2388 = vmatmul.bf16.gmra.mxu0 %v2329
        %v2389 = vpop.f32.mrf.mxu0
        %v2390 = vadd.f32 0.0, %v2389
        %v2391 = vpop.f32.mrf.mxu0
        %v2392 = vadd.f32 0.0, %v2391
        %2393 = vmatmul.bf16.gmra.mxu0 %v2332
        %v2394 = vpop.f32.mrf.mxu0
        %v2395 = vadd.f32 0.0, %v2394
        %v2396 = vpop.f32.mrf.mxu0
        %v2397 = vadd.f32 0.0, %v2396
        %2398 = vmatmul.bf16.gmra.mxu0 %v2335
        %v2399 = vpop.f32.mrf.mxu0
        %v2400 = vadd.f32 0.0, %v2399
        %v2401 = vpop.f32.mrf.mxu0
        %v2402 = vadd.f32 0.0, %v2401
        %2403 = vmatmul.bf16.gmra.mxu0 %v2338
        %v2404 = vpop.f32.mrf.mxu0
        %v2405 = vadd.f32 0.0, %v2404
        %v2406 = vpop.f32.mrf.mxu0
        %v2407 = vadd.f32 0.0, %v2406
        %2408 = vmatmul.bf16.gmra.mxu0 %v2341
        %v2409 = vpop.f32.mrf.mxu0
        %v2410 = vadd.f32 0.0, %v2409
        %v2411 = vpop.f32.mrf.mxu0
        %v2412 = vadd.f32 0.0, %v2411
        %2413 = vmatmul.bf16.gmra.mxu0 %v2344
        %v2414 = vpop.f32.mrf.mxu0
        %v2415 = vadd.f32 0.0, %v2414
        %v2416 = vpop.f32.mrf.mxu0
        %v2417 = vadd.f32 0.0, %v2416
        %2418 = vdwg.mxu0
        %2420 = vrot.lane.b32.xlu0 %v2380, 256
        %v2421 = vpop.permute.xlu0 %2420
        %s2423 = sor.u32 256, 8
        %2424 = vrot.lane.b32.xlu0 %v2382, %s2423
        %v2425 = vpop.permute.xlu0 %2424
        %s2427 = sor.u32 256, 16
        %2428 = vrot.lane.b32.xlu0 %v2385, %s2427
        %v2429 = vpop.permute.xlu0 %2428
        %s2431 = sor.u32 256, 24
        %2432 = vrot.lane.b32.xlu0 %v2387, %s2431
        %v2433 = vpop.permute.xlu0 %2432
        %s2435 = sor.u32 256, 32
        %2436 = vrot.lane.b32.xlu0 %v2390, %s2435
        %v2437 = vpop.permute.xlu0 %2436
        %s2439 = sor.u32 256, 40
        %2440 = vrot.lane.b32.xlu0 %v2392, %s2439
        %v2441 = vpop.permute.xlu0 %2440
        %s2443 = sor.u32 256, 48
        %2444 = vrot.lane.b32.xlu0 %v2395, %s2443
        %v2445 = vpop.permute.xlu0 %2444
        %s2447 = sor.u32 256, 56
        %2448 = vrot.lane.b32.xlu0 %v2397, %s2447
        %v2449 = vpop.permute.xlu0 %2448
        %s2451 = sor.u32 256, 64
        %2452 = vrot.lane.b32.xlu0 %v2400, %s2451
        %v2453 = vpop.permute.xlu0 %2452
        %s2455 = sor.u32 256, 72
        %2456 = vrot.lane.b32.xlu0 %v2402, %s2455
        %v2457 = vpop.permute.xlu0 %2456
        %s2459 = sor.u32 256, 80
        %2460 = vrot.lane.b32.xlu0 %v2405, %s2459
        %v2461 = vpop.permute.xlu0 %2460
        %s2463 = sor.u32 256, 88
        %2464 = vrot.lane.b32.xlu0 %v2407, %s2463
        %v2465 = vpop.permute.xlu0 %2464
        %s2467 = sor.u32 256, 96
        %2468 = vrot.lane.b32.xlu0 %v2410, %s2467
        %v2469 = vpop.permute.xlu0 %2468
        %s2471 = sor.u32 256, 104
        %2472 = vrot.lane.b32.xlu0 %v2412, %s2471
        %v2473 = vpop.permute.xlu0 %2472
        %s2475 = sor.u32 256, 112
        %2476 = vrot.lane.b32.xlu0 %v2415, %s2475
        %v2477 = vpop.permute.xlu0 %2476
        %s2479 = sor.u32 256, 120
        %2480 = vrot.lane.b32.xlu0 %v2417, %s2479
        %v2481 = vpop.permute.xlu0 %2480
        %2482 = vrot.lane.b32.xlu0 %v2421, 1
        %v2483 = vpop.permute.xlu0 %2482
        %2484 = vrot.lane.b32.xlu0 %v2425, 1
        %v2485 = vpop.permute.xlu0 %2484
        %2486 = vrot.lane.b32.xlu0 %v2429, 1
        %v2487 = vpop.permute.xlu0 %2486
        %2488 = vrot.lane.b32.xlu0 %v2433, 1
        %v2489 = vpop.permute.xlu0 %2488
        %2490 = vrot.lane.b32.xlu0 %v2437, 1
        %v2491 = vpop.permute.xlu0 %2490
        %2492 = vrot.lane.b32.xlu0 %v2441, 1
        %v2493 = vpop.permute.xlu0 %2492
        %2494 = vrot.lane.b32.xlu0 %v2445, 1
        %v2495 = vpop.permute.xlu0 %2494
        %2496 = vrot.lane.b32.xlu0 %v2449, 1
        %v2497 = vpop.permute.xlu0 %2496
        %2498 = vrot.lane.b32.xlu0 %v2453, 1
        %v2499 = vpop.permute.xlu0 %2498
        %2500 = vrot.lane.b32.xlu0 %v2457, 1
        %v2501 = vpop.permute.xlu0 %2500
        %2502 = vrot.lane.b32.xlu0 %v2461, 1
        %v2503 = vpop.permute.xlu0 %2502
        %2504 = vrot.lane.b32.xlu0 %v2465, 1
        %v2505 = vpop.permute.xlu0 %2504
        %2506 = vrot.lane.b32.xlu0 %v2469, 1
        %v2507 = vpop.permute.xlu0 %2506
        %2508 = vrot.lane.b32.xlu0 %v2473, 1
        %v2509 = vpop.permute.xlu0 %2508
        %2510 = vrot.lane.b32.xlu0 %v2477, 1
        %v2511 = vpop.permute.xlu0 %2510
        %2512 = vrot.lane.b32.xlu0 %v2481, 1
        %v2513 = vpop.permute.xlu0 %2512
        %v2514 = vrot.slane %v2483, 1
        %v2515 = vrot.slane %v2485, 1
        %v2516 = vrot.slane %v2487, 1
        %v2517 = vrot.slane %v2489, 1
        %v2518 = vrot.slane %v2491, 1
        %v2519 = vrot.slane %v2493, 1
        %v2520 = vrot.slane %v2495, 1
        %v2521 = vrot.slane %v2497, 1
        %v2522 = vrot.slane %v2499, 1
        %v2523 = vrot.slane %v2501, 1
        %v2524 = vrot.slane %v2503, 1
        %v2525 = vrot.slane %v2505, 1
        %v2526 = vrot.slane %v2507, 1
        %v2527 = vrot.slane %v2509, 1
        %v2528 = vrot.slane %v2511, 1
        %v2529 = vrot.slane %v2513, 1
        %v2530 = vsel %vm1747, %v2528, %v2529
        %v2531 = vsel %vm1747, %v2527, %v2528
        %v2532 = vsel %vm1747, %v2526, %v2527
        %v2533 = vsel %vm1747, %v2525, %v2526
        %v2534 = vsel %vm1747, %v2524, %v2525
        %v2535 = vsel %vm1747, %v2523, %v2524
        %v2536 = vsel %vm1747, %v2522, %v2523
        %v2537 = vsel %vm1747, %v2521, %v2522
        %v2538 = vsel %vm1747, %v2520, %v2521
        %v2539 = vsel %vm1747, %v2519, %v2520
        %v2540 = vsel %vm1747, %v2518, %v2519
        %v2541 = vsel %vm1747, %v2517, %v2518
        %v2542 = vsel %vm1747, %v2516, %v2517
        %v2543 = vsel %vm1747, %v2515, %v2516
        %v2544 = vsel %vm1747, %v2514, %v2515
        %v2545 = vsel %vm1747, %v2529, %v2514
        %v2546 = vsel %vm1796, 0.0, %v2544
        %v2547 = vsel %vm1797, 0.0, %v2543
        %v2548 = vsel %vm1798, 0.0, %v2542
        %v2549 = vsel %vm1799, 0.0, %v2541
        %v2550 = vsel %vm1800, 0.0, %v2540
        %v2551 = vsel %vm1801, 0.0, %v2539
        %v2552 = vsel %vm1802, 0.0, %v2538
        %v2553 = vsel %vm1803, 0.0, %v2537
        %v2554 = vsel %vm1804, 0.0, %v2536
        %v2555 = vsel %vm1805, 0.0, %v2535
        %v2556 = vsel %vm1806, 0.0, %v2534
        %v2557 = vsel %vm1807, 0.0, %v2533
        %v2558 = vsel %vm1808, 0.0, %v2532
        %v2559 = vsel %vm1809, 0.0, %v2531
        %v2560 = vsel %vm1810, 0.0, %v2530
        %v2561 = vsel %vm1811, 0.0, %v2545
        %v2562 = vsel %vm1764, %v2483, %v2546
        %v2563 = vsel %vm1765, %v2485, %v2547
        %v2564 = vsel %vm1766, %v2487, %v2548
        %v2565 = vsel %vm1767, %v2489, %v2549
        %v2566 = vsel %vm1768, %v2491, %v2550
        %v2567 = vsel %vm1769, %v2493, %v2551
        %v2568 = vsel %vm1770, %v2495, %v2552
        %v2569 = vsel %vm1771, %v2497, %v2553
        %v2570 = vsel %vm1772, %v2499, %v2554
        %v2571 = vsel %vm1773, %v2501, %v2555
        %v2572 = vsel %vm1774, %v2503, %v2556
        %v2573 = vsel %vm1775, %v2505, %v2557
        %v2574 = vsel %vm1776, %v2507, %v2558
        %v2575 = vsel %vm1777, %v2509, %v2559
        %v2576 = vsel %vm1778, %v2511, %v2560
        %v2577 = vsel %vm1779, %v2513, %v2561
        %2578 = vrot.lane.b32.xlu0 %v1876, 64
        %v2579 = vpop.permute.xlu0 %2578
        %2580 = vrot.lane.b32.xlu0 %v1877, 64
        %v2581 = vpop.permute.xlu0 %2580
        %2582 = vrot.lane.b32.xlu0 %v1878, 64
        %v2583 = vpop.permute.xlu0 %2582
        %2584 = vrot.lane.b32.xlu0 %v1879, 64
        %v2585 = vpop.permute.xlu0 %2584
        %2586 = vrot.lane.b32.xlu0 %v1880, 64
        %v2587 = vpop.permute.xlu0 %2586
        %2588 = vrot.lane.b32.xlu0 %v1881, 64
        %v2589 = vpop.permute.xlu0 %2588
        %2590 = vrot.lane.b32.xlu0 %v1882, 64
        %v2591 = vpop.permute.xlu0 %2590
        %2592 = vrot.lane.b32.xlu0 %v1883, 64
        %v2593 = vpop.permute.xlu0 %2592
        %2594 = vrot.lane.b32.xlu0 %v1916, 64
        %v2595 = vpop.permute.xlu0 %2594
        %2596 = vrot.lane.b32.xlu0 %v1917, 64
        %v2597 = vpop.permute.xlu0 %2596
        %2598 = vrot.lane.b32.xlu0 %v1918, 64
        %v2599 = vpop.permute.xlu0 %2598
        %2600 = vrot.lane.b32.xlu0 %v1919, 64
        %v2601 = vpop.permute.xlu0 %2600
        %2602 = vrot.lane.b32.xlu0 %v1920, 64
        %v2603 = vpop.permute.xlu0 %2602
        %2604 = vrot.lane.b32.xlu0 %v1921, 64
        %v2605 = vpop.permute.xlu0 %2604
        %2606 = vrot.lane.b32.xlu0 %v1922, 64
        %v2607 = vpop.permute.xlu0 %2606
        %2608 = vrot.lane.b32.xlu0 %v1923, 64
        %v2609 = vpop.permute.xlu0 %2608
        %v2611 = vsel %vm1538, %v2579, 0
        %v2614 = vsel %vm1538, %v2581, 0
        %v2617 = vsel %vm1538, %v2583, 0
        %v2620 = vsel %vm1538, %v2585, 0
        %v2623 = vsel %vm1538, %v2587, 0
        %v2626 = vsel %vm1538, %v2589, 0
        %v2629 = vsel %vm1538, %v2591, 0
        %v2632 = vsel %vm1538, %v2593, 0
        %v2635 = vsel %vm1538, %v2595, 0
        %v2638 = vsel %vm1538, %v2597, 0
        %v2641 = vsel %vm1538, %v2599, 0
        %v2644 = vsel %vm1538, %v2601, 0
        %v2647 = vsel %vm1538, %v2603, 0
        %v2650 = vsel %vm1538, %v2605, 0
        %v2653 = vsel %vm1538, %v2607, 0
        %v2656 = vsel %vm1538, %v2609, 0
        %2658 = vmatpush.bf16.xpose.msra.mxu0 %v2656
        %2659 = vmatpush.bf16.xpose.msra.mxu0 %v2653
        %2660 = vmatpush.bf16.xpose.msra.mxu0 %v2650
        %2661 = vmatpush.bf16.xpose.msra.mxu0 %v2647
        %2662 = vmatpush.bf16.xpose.msra.mxu0 %v2644
        %2663 = vmatpush.bf16.xpose.msra.mxu0 %v2641
        %2664 = vmatpush.bf16.xpose.msra.mxu0 %v2638
        %2665 = vmatpush.bf16.xpose.msra.mxu0 %v2635
        %2666 = vmatmul.bf16.gmra.mxu0 %v2611
        %v2667 = vpop.f32.mrf.mxu0
        %v2668 = vadd.f32 %v2562, %v2667
        %v2669 = vpop.f32.mrf.mxu0
        %v2670 = vadd.f32 %v2563, %v2669
        %2671 = vmatmul.bf16.gmra.mxu0 %v2614
        %v2672 = vpop.f32.mrf.mxu0
        %v2673 = vadd.f32 %v2564, %v2672
        %v2674 = vpop.f32.mrf.mxu0
        %v2675 = vadd.f32 %v2565, %v2674
        %2676 = vmatmul.bf16.gmra.mxu0 %v2617
        %v2677 = vpop.f32.mrf.mxu0
        %v2678 = vadd.f32 %v2566, %v2677
        %v2679 = vpop.f32.mrf.mxu0
        %v2680 = vadd.f32 %v2567, %v2679
        %2681 = vmatmul.bf16.gmra.mxu0 %v2620
        %v2682 = vpop.f32.mrf.mxu0
        %v2683 = vadd.f32 %v2568, %v2682
        %v2684 = vpop.f32.mrf.mxu0
        %v2685 = vadd.f32 %v2569, %v2684
        %2686 = vmatmul.bf16.gmra.mxu0 %v2623
        %v2687 = vpop.f32.mrf.mxu0
        %v2688 = vadd.f32 %v2570, %v2687
        %v2689 = vpop.f32.mrf.mxu0
        %v2690 = vadd.f32 %v2571, %v2689
        %2691 = vmatmul.bf16.gmra.mxu0 %v2626
        %v2692 = vpop.f32.mrf.mxu0
        %v2693 = vadd.f32 %v2572, %v2692
        %v2694 = vpop.f32.mrf.mxu0
        %v2695 = vadd.f32 %v2573, %v2694
        %2696 = vmatmul.bf16.gmra.mxu0 %v2629
        %v2697 = vpop.f32.mrf.mxu0
        %v2698 = vadd.f32 %v2574, %v2697
        %v2699 = vpop.f32.mrf.mxu0
        %v2700 = vadd.f32 %v2575, %v2699
        %2701 = vmatmul.bf16.gmra.mxu0 %v2632
        %v2702 = vpop.f32.mrf.mxu0
        %v2703 = vadd.f32 %v2576, %v2702
        %v2704 = vpop.f32.mrf.mxu0
        %v2705 = vadd.f32 %v2577, %v2704
        %2706 = vdwg.mxu0
        %v2707 = vsel %vm2024, -1e+09, %v2668
        %v2708 = vsel %vm2024, -1e+09, %v2670
        %v2709 = vsel %vm2024, -1e+09, %v2673
        %v2710 = vsel %vm2024, -1e+09, %v2675
        %v2711 = vsel %vm2024, -1e+09, %v2678
        %v2712 = vsel %vm2024, -1e+09, %v2680
        %v2713 = vsel %vm2024, -1e+09, %v2683
        %v2714 = vsel %vm2024, -1e+09, %v2685
        %v2715 = vsel %vm2024, -1e+09, %v2688
        %v2716 = vsel %vm2024, -1e+09, %v2690
        %v2717 = vsel %vm2024, -1e+09, %v2693
        %v2718 = vsel %vm2024, -1e+09, %v2695
        %v2719 = vsel %vm2024, -1e+09, %v2698
        %v2720 = vsel %vm2024, -1e+09, %v2700
        %v2721 = vsel %vm2024, -1e+09, %v2703
        %v2722 = vsel %vm2024, -1e+09, %v2705
        %2723 = vmax.xlane.f32.xlu0 %v2707
        %v2724 = vpop.xlane.xlu0 %2723
        %2725 = vmax.xlane.f32.xlu0 %v2708
        %v2726 = vpop.xlane.xlu0 %2725
        %2727 = vmax.xlane.f32.xlu0 %v2709
        %v2728 = vpop.xlane.xlu0 %2727
        %2729 = vmax.xlane.f32.xlu0 %v2710
        %v2730 = vpop.xlane.xlu0 %2729
        %2731 = vmax.xlane.f32.xlu0 %v2711
        %v2732 = vpop.xlane.xlu0 %2731
        %2733 = vmax.xlane.f32.xlu0 %v2712
        %v2734 = vpop.xlane.xlu0 %2733
        %2735 = vmax.xlane.f32.xlu0 %v2713
        %v2736 = vpop.xlane.xlu0 %2735
        %2737 = vmax.xlane.f32.xlu0 %v2714
        %v2738 = vpop.xlane.xlu0 %2737
        %2739 = vmax.xlane.f32.xlu0 %v2715
        %v2740 = vpop.xlane.xlu0 %2739
        %2741 = vmax.xlane.f32.xlu0 %v2716
        %v2742 = vpop.xlane.xlu0 %2741
        %2743 = vmax.xlane.f32.xlu0 %v2717
        %v2744 = vpop.xlane.xlu0 %2743
        %2745 = vmax.xlane.f32.xlu0 %v2718
        %v2746 = vpop.xlane.xlu0 %2745
        %2747 = vmax.xlane.f32.xlu0 %v2719
        %v2748 = vpop.xlane.xlu0 %2747
        %2749 = vmax.xlane.f32.xlu0 %v2720
        %v2750 = vpop.xlane.xlu0 %2749
        %2751 = vmax.xlane.f32.xlu0 %v2721
        %v2752 = vpop.xlane.xlu0 %2751
        %2753 = vmax.xlane.f32.xlu0 %v2722
        %v2754 = vpop.xlane.xlu0 %2753
        %v2755 = vsub.f32 %v2707, %v2724
        %v2756 = vsub.f32 %v2708, %v2726
        %v2757 = vsub.f32 %v2709, %v2728
        %v2758 = vsub.f32 %v2710, %v2730
        %v2759 = vsub.f32 %v2711, %v2732
        %v2760 = vsub.f32 %v2712, %v2734
        %v2761 = vsub.f32 %v2713, %v2736
        %v2762 = vsub.f32 %v2714, %v2738
        %v2763 = vsub.f32 %v2715, %v2740
        %v2764 = vsub.f32 %v2716, %v2742
        %v2765 = vsub.f32 %v2717, %v2744
        %v2766 = vsub.f32 %v2718, %v2746
        %v2767 = vsub.f32 %v2719, %v2748
        %v2768 = vsub.f32 %v2720, %v2750
        %v2769 = vsub.f32 %v2721, %v2752
        %v2770 = vsub.f32 %v2722, %v2754
        %v2771 = vmul.f32 %v2755, 1.442695
        %v2772 = vpow.pop %v2771
        %v2773 = vmul.f32 %v2756, 1.442695
        %v2774 = vpow.pop %v2773
        %v2775 = vmul.f32 %v2757, 1.442695
        %v2776 = vpow.pop %v2775
        %v2777 = vmul.f32 %v2758, 1.442695
        %v2778 = vpow.pop %v2777
        %v2779 = vmul.f32 %v2759, 1.442695
        %v2780 = vpow.pop %v2779
        %v2781 = vmul.f32 %v2760, 1.442695
        %v2782 = vpow.pop %v2781
        %v2783 = vmul.f32 %v2761, 1.442695
        %v2784 = vpow.pop %v2783
        %v2785 = vmul.f32 %v2762, 1.442695
        %v2786 = vpow.pop %v2785
        %v2787 = vmul.f32 %v2763, 1.442695
        %v2788 = vpow.pop %v2787
        %v2789 = vmul.f32 %v2764, 1.442695
        %v2790 = vpow.pop %v2789
        %v2791 = vmul.f32 %v2765, 1.442695
        %v2792 = vpow.pop %v2791
        %v2793 = vmul.f32 %v2766, 1.442695
        %v2794 = vpow.pop %v2793
        %v2795 = vmul.f32 %v2767, 1.442695
        %v2796 = vpow.pop %v2795
        %v2797 = vmul.f32 %v2768, 1.442695
        %v2798 = vpow.pop %v2797
        %v2799 = vmul.f32 %v2769, 1.442695
        %v2800 = vpow.pop %v2799
        %v2801 = vmul.f32 %v2770, 1.442695
        %v2802 = vpow.pop %v2801
        %2803 = vadd.xlane.f32.xlu0 %v2772
        %v2804 = vpop.xlane.xlu0 %2803
        %2805 = vadd.xlane.f32.xlu0 %v2774
        %v2806 = vpop.xlane.xlu0 %2805
        %2807 = vadd.xlane.f32.xlu0 %v2776
        %v2808 = vpop.xlane.xlu0 %2807
        %2809 = vadd.xlane.f32.xlu0 %v2778
        %v2810 = vpop.xlane.xlu0 %2809
        %2811 = vadd.xlane.f32.xlu0 %v2780
        %v2812 = vpop.xlane.xlu0 %2811
        %2813 = vadd.xlane.f32.xlu0 %v2782
        %v2814 = vpop.xlane.xlu0 %2813
        %2815 = vadd.xlane.f32.xlu0 %v2784
        %v2816 = vpop.xlane.xlu0 %2815
        %2817 = vadd.xlane.f32.xlu0 %v2786
        %v2818 = vpop.xlane.xlu0 %2817
        %2819 = vadd.xlane.f32.xlu0 %v2788
        %v2820 = vpop.xlane.xlu0 %2819
        %2821 = vadd.xlane.f32.xlu0 %v2790
        %v2822 = vpop.xlane.xlu0 %2821
        %2823 = vadd.xlane.f32.xlu0 %v2792
        %v2824 = vpop.xlane.xlu0 %2823
        %2825 = vadd.xlane.f32.xlu0 %v2794
        %v2826 = vpop.xlane.xlu0 %2825
        %2827 = vadd.xlane.f32.xlu0 %v2796
        %v2828 = vpop.xlane.xlu0 %2827
        %2829 = vadd.xlane.f32.xlu0 %v2798
        %v2830 = vpop.xlane.xlu0 %2829
        %2831 = vadd.xlane.f32.xlu0 %v2800
        %v2832 = vpop.xlane.xlu0 %2831
        %2833 = vadd.xlane.f32.xlu0 %v2802
        %v2834 = vpop.xlane.xlu0 %2833
        %v2835 = vrcp.pop %v2804
        %v2836 = vrcp.pop %v2806
        %v2837 = vrcp.pop %v2808
        %v2838 = vrcp.pop %v2810
        %v2839 = vrcp.pop %v2812
        %v2840 = vrcp.pop %v2814
        %v2841 = vrcp.pop %v2816
        %v2842 = vrcp.pop %v2818
        %v2843 = vrcp.pop %v2820
        %v2844 = vrcp.pop %v2822
        %v2845 = vrcp.pop %v2824
        %v2846 = vrcp.pop %v2826
        %v2847 = vrcp.pop %v2828
        %v2848 = vrcp.pop %v2830
        %v2849 = vrcp.pop %v2832
        %v2850 = vrcp.pop %v2834
        %v2851 = vmul.f32 %v2772, %v2835
        %v2852 = vmul.f32 %v2774, %v2836
        %v2853 = vmul.f32 %v2776, %v2837
        %v2854 = vmul.f32 %v2778, %v2838
        %v2855 = vmul.f32 %v2780, %v2839
        %v2856 = vmul.f32 %v2782, %v2840
        %v2857 = vmul.f32 %v2784, %v2841
        %v2858 = vmul.f32 %v2786, %v2842
        %v2859 = vmul.f32 %v2788, %v2843
        %v2860 = vmul.f32 %v2790, %v2844
        %v2861 = vmul.f32 %v2792, %v2845
        %v2862 = vmul.f32 %v2794, %v2846
        %v2863 = vmul.f32 %v2796, %v2847
        %v2864 = vmul.f32 %v2798, %v2848
        %v2865 = vmul.f32 %v2800, %v2849
        %v2866 = vmul.f32 %v2802, %v2850
        %v2867 = vpack.c.bf16 %v2852, %v2851
        %v2868 = vpack.c.bf16 %v2854, %v2853
        %v2869 = vpack.c.bf16 %v2856, %v2855
        %v2870 = vpack.c.bf16 %v2858, %v2857
        %v2871 = vpack.c.bf16 %v2860, %v2859
        %v2872 = vpack.c.bf16 %v2862, %v2861
        %v2873 = vpack.c.bf16 %v2864, %v2863
        %v2874 = vpack.c.bf16 %v2866, %v2865
        %2875 = vrot.lane.b32.xlu0 %v2225, 64
        %v2876 = vpop.permute.xlu0 %2875
        %2877 = vrot.lane.b32.xlu0 %v2226, 64
        %v2878 = vpop.permute.xlu0 %2877
        %2879 = vrot.lane.b32.xlu0 %v2227, 64
        %v2880 = vpop.permute.xlu0 %2879
        %2881 = vrot.lane.b32.xlu0 %v2228, 64
        %v2882 = vpop.permute.xlu0 %2881
        %2883 = vrot.lane.b32.xlu0 %v2229, 64
        %v2884 = vpop.permute.xlu0 %2883
        %2885 = vrot.lane.b32.xlu0 %v2230, 64
        %v2886 = vpop.permute.xlu0 %2885
        %2887 = vrot.lane.b32.xlu0 %v2231, 64
        %v2888 = vpop.permute.xlu0 %2887
        %2889 = vrot.lane.b32.xlu0 %v2232, 64
        %v2890 = vpop.permute.xlu0 %2889
        %2899 = vmatpush.bf16.msra.mxu0 %v2890
        %2900 = vmatpush.bf16.msra.mxu0 %v2888
        %2901 = vmatpush.bf16.msra.mxu0 %v2886
        %2902 = vmatpush.bf16.msra.mxu0 %v2884
        %2903 = vmatpush.bf16.msra.mxu0 %v2882
        %2904 = vmatpush.bf16.msra.mxu0 %v2880
        %2905 = vmatpush.bf16.msra.mxu0 %v2878
        %2906 = vmatpush.bf16.msra.mxu0 %v2876
        %2907 = vmatmul.bf16.gmra.mxu0 %v2867
        %v2908 = vpop.f32.mrf.mxu0
        %v2909 = vadd.f32 0.0, %v2908
        %v2910 = vpop.f32.mrf.mxu0
        %v2911 = vadd.f32 0.0, %v2910
        %2912 = vmatmul.bf16.gmra.mxu0 %v2868
        %v2913 = vpop.f32.mrf.mxu0
        %v2914 = vadd.f32 0.0, %v2913
        %v2915 = vpop.f32.mrf.mxu0
        %v2916 = vadd.f32 0.0, %v2915
        %2917 = vmatmul.bf16.gmra.mxu0 %v2869
        %v2918 = vpop.f32.mrf.mxu0
        %v2919 = vadd.f32 0.0, %v2918
        %v2920 = vpop.f32.mrf.mxu0
        %v2921 = vadd.f32 0.0, %v2920
        %2922 = vmatmul.bf16.gmra.mxu0 %v2870
        %v2923 = vpop.f32.mrf.mxu0
        %v2924 = vadd.f32 0.0, %v2923
        %v2925 = vpop.f32.mrf.mxu0
        %v2926 = vadd.f32 0.0, %v2925
        %2927 = vmatmul.bf16.gmra.mxu0 %v2871
        %v2928 = vpop.f32.mrf.mxu0
        %v2929 = vadd.f32 0.0, %v2928
        %v2930 = vpop.f32.mrf.mxu0
        %v2931 = vadd.f32 0.0, %v2930
        %2932 = vmatmul.bf16.gmra.mxu0 %v2872
        %v2933 = vpop.f32.mrf.mxu0
        %v2934 = vadd.f32 0.0, %v2933
        %v2935 = vpop.f32.mrf.mxu0
        %v2936 = vadd.f32 0.0, %v2935
        %2937 = vmatmul.bf16.gmra.mxu0 %v2873
        %v2938 = vpop.f32.mrf.mxu0
        %v2939 = vadd.f32 0.0, %v2938
        %v2940 = vpop.f32.mrf.mxu0
        %v2941 = vadd.f32 0.0, %v2940
        %2942 = vmatmul.bf16.gmra.mxu0 %v2874
        %v2943 = vpop.f32.mrf.mxu0
        %v2944 = vadd.f32 0.0, %v2943
        %v2945 = vpop.f32.mrf.mxu0
        %v2946 = vadd.f32 0.0, %v2945
        %2947 = vdwg.mxu0
        %2964 = vrot.lane.b32.xlu0 %v2909, 64
        %v2965 = vpop.permute.xlu0 %2964
        %2966 = vrot.lane.b32.xlu0 %v2911, 64
        %v2967 = vpop.permute.xlu0 %2966
        %2968 = vrot.lane.b32.xlu0 %v2914, 64
        %v2969 = vpop.permute.xlu0 %2968
        %2970 = vrot.lane.b32.xlu0 %v2916, 64
        %v2971 = vpop.permute.xlu0 %2970
        %2972 = vrot.lane.b32.xlu0 %v2919, 64
        %v2973 = vpop.permute.xlu0 %2972
        %2974 = vrot.lane.b32.xlu0 %v2921, 64
        %v2975 = vpop.permute.xlu0 %2974
        %2976 = vrot.lane.b32.xlu0 %v2924, 64
        %v2977 = vpop.permute.xlu0 %2976
        %2978 = vrot.lane.b32.xlu0 %v2926, 64
        %v2979 = vpop.permute.xlu0 %2978
        %2980 = vrot.lane.b32.xlu0 %v2929, 64
        %v2981 = vpop.permute.xlu0 %2980
        %2982 = vrot.lane.b32.xlu0 %v2931, 64
        %v2983 = vpop.permute.xlu0 %2982
        %2984 = vrot.lane.b32.xlu0 %v2934, 64
        %v2985 = vpop.permute.xlu0 %2984
        %2986 = vrot.lane.b32.xlu0 %v2936, 64
        %v2987 = vpop.permute.xlu0 %2986
        %2988 = vrot.lane.b32.xlu0 %v2939, 64
        %v2989 = vpop.permute.xlu0 %2988
        %2990 = vrot.lane.b32.xlu0 %v2941, 64
        %v2991 = vpop.permute.xlu0 %2990
        %2992 = vrot.lane.b32.xlu0 %v2944, 64
        %v2993 = vpop.permute.xlu0 %2992
        %2994 = vrot.lane.b32.xlu0 %v2946, 64
        %v2995 = vpop.permute.xlu0 %2994
        %v3012 = vsel %vm1538, %v2251, %v2965
        %v3013 = vsel %vm1538, %v2253, %v2967
        %v3014 = vsel %vm1538, %v2256, %v2969
        %v3015 = vsel %vm1538, %v2258, %v2971
        %v3016 = vsel %vm1538, %v2261, %v2973
        %v3017 = vsel %vm1538, %v2263, %v2975
        %v3018 = vsel %vm1538, %v2266, %v2977
        %v3019 = vsel %vm1538, %v2268, %v2979
        %v3020 = vsel %vm1538, %v2271, %v2981
        %v3021 = vsel %vm1538, %v2273, %v2983
        %v3022 = vsel %vm1538, %v2276, %v2985
        %v3023 = vsel %vm1538, %v2278, %v2987
        %v3024 = vsel %vm1538, %v2281, %v2989
        %v3025 = vsel %vm1538, %v2283, %v2991
        %v3026 = vsel %vm1538, %v2286, %v2993
        %v3027 = vsel %vm1538, %v2288, %v2995
        %v3028 = vpack.c.bf16 %v3012, %v3012
        %v3029 = vpack.c.bf16 %v3013, %v3013
        %v3030 = vpack.c.bf16 %v3014, %v3014
        %v3031 = vpack.c.bf16 %v3015, %v3015
        %v3032 = vpack.c.bf16 %v3016, %v3016
        %v3033 = vpack.c.bf16 %v3017, %v3017
        %v3034 = vpack.c.bf16 %v3018, %v3018
        %v3035 = vpack.c.bf16 %v3019, %v3019
        %v3036 = vpack.c.bf16 %v3020, %v3020
        %v3037 = vpack.c.bf16 %v3021, %v3021
        %v3038 = vpack.c.bf16 %v3022, %v3022
        %v3039 = vpack.c.bf16 %v3023, %v3023
        %v3040 = vpack.c.bf16 %v3024, %v3024
        %v3041 = vpack.c.bf16 %v3025, %v3025
        %v3042 = vpack.c.bf16 %v3026, %v3026
        %v3043 = vpack.c.bf16 %v3027, %v3027
        %3044 = vst [vmem:[%s915] sm:$0xf] %v3028
        %3045 = vst [vmem:[%s915 + $0x4] sm:$0xf] %v3029
        %3046 = vst [vmem:[%s915 + $0x8] sm:$0xf] %v3030
        %3047 = vst [vmem:[%s915 + $0xc] sm:$0xf] %v3031
        %3048 = vst [vmem:[%s915 + $0x10] sm:$0xf] %v3032
        %3049 = vst [vmem:[%s915 + $0x14] sm:$0xf] %v3033
        %3050 = vst [vmem:[%s915 + $0x18] sm:$0xf] %v3034
        %3051 = vst [vmem:[%s915 + $0x1c] sm:$0xf] %v3035
        %3052 = vst [vmem:[%s915 + $0x20] sm:$0xf] %v3036
        %3053 = vst [vmem:[%s915 + $0x24] sm:$0xf] %v3037
        %3054 = vst [vmem:[%s915 + $0x28] sm:$0xf] %v3038
        %3055 = vst [vmem:[%s915 + $0x2c] sm:$0xf] %v3039
        %3056 = vst [vmem:[%s915 + $0x30] sm:$0xf] %v3040
        %3057 = vst [vmem:[%s915 + $0x34] sm:$0xf] %v3041
        %3058 = vst [vmem:[%s915 + $0x38] sm:$0xf] %v3042
        %3059 = vst [vmem:[%s915 + $0x3c] sm:$0xf] %v3043
        %s3060 = sand.u32 %s259, 1
        %s3061 = sand.u32 %s259, 1
        %s3062 = smul.addr %s3061, 64
        %s3063 = scalar_lea.vmem [#allocation6], %s3062
        // Predicated region
        $region217: #{self_attention_forward.4} parent=199 // pred_check
          %p3064 = pneg %p269
        $region218: #{self_attention_forward.4} parent=199 // pred_check_branch
          %3066 = sbr.rel (%p3064) target = $region220
        $region219: #{self_attention_forward.4} parent=199 // pred_region
          %s3067 = smul.addr %s23, 32
          %s3068 = sadd.s32 %s24, %s3067
          %s3069 = smul.addr %s3068, 4
          %s3070 = scalar_lea.vmem %s8, %s3069
          // Predicated region
          $region221: #{self_attention_forward.4} parent=219 // pred_check
            _
          $region222: #{self_attention_forward.4} parent=219 // pred_check_branch
            %3072 = sbr.rel (0) target = $region224
          $region223: #{self_attention_forward.4} parent=219 // pred_region
            // Predicated region
            $region225: #{self_attention_forward.4} parent=223 // pred_check
              _
            $region226: #{self_attention_forward.4} parent=223 // pred_check_branch
              %3074 = sbr.rel target = $region228
            $region227: #{self_attention_forward.4} parent=223 // pred_region
              // Predicated region
              $region240: #{self_attention_forward.4} parent=227 // pred_check
                _
              $region241: #{self_attention_forward.4} parent=227 // pred_check_branch
                %3120 = sbr.rel (0) target = $region243
              $region242: #{self_attention_forward.4} parent=227 // pred_region
                loop: start=0, step=1, limit=1
                $region244: #{self_attention_forward.4} parent=242 // loop_pre_header
                  _
                $region245: #{self_attention_forward.4} parent=242 // loop_header
                  %s3122 = sphi 0, %s3126
                  %p3123 = scmp.ge.s32.totalorder %s3122, 1
                  %s3127 = sphi %s3063, %s3063
                  %s3128 = sphi %s3070, %s3070
                $region246: #{self_attention_forward.4} parent=242 // loop_header_branch
                  %3125 = sbr.rel (%p3123) target = $region250
                $region247: #{self_attention_forward.4} parent=242 // loop_body
                  _
                $region248: #{self_attention_forward.4} parent=242 // loop_footer
                  %s3126 = sadd.s32 1, %s3122
                $region249: #{self_attention_forward.4} parent=242 // loop_footer_branch
                  %3121 = sbr.rel target = $region245
                $region250: #{self_attention_forward.4} parent=242 // loop_exit
                  _
                %s3130 = ssub.s32 16, 1
                loop: start=0, step=1, limit=1
                $region251: #{self_attention_forward.4} parent=242 // loop_pre_header
                  _
                $region252: #{self_attention_forward.4} parent=242 // loop_header
                  %s3132 = sphi 0, %s3136
                  %p3133 = scmp.ge.s32.totalorder %s3132, 1
                  %s3137 = sphi %s3063, %s3063
                  %s3138 = sphi %s3070, %s3070
                $region253: #{self_attention_forward.4} parent=242 // loop_header_branch
                  %3135 = sbr.rel (%p3133) target = $region257
                $region254: #{self_attention_forward.4} parent=242 // loop_body
                  %v3139 = vld [vmem:[%s3137] sm:%s3130]
                  %3140 = vst [vmem:[%s3138] sm:%s3130] %v3139
                  %v3141 = vld [vmem:[%s3137 + $0x4] sm:%s3130]
                  %3142 = vst [vmem:[%s3138 + $0x8] sm:%s3130] %v3141
                  %v3143 = vld [vmem:[%s3137 + $0x8] sm:%s3130]
                  %3144 = vst [vmem:[%s3138 + $0x10] sm:%s3130] %v3143
                  %v3145 = vld [vmem:[%s3137 + $0xc] sm:%s3130]
                  %3146 = vst [vmem:[%s3138 + $0x18] sm:%s3130] %v3145
                  %v3147 = vld [vmem:[%s3137 + $0x10] sm:%s3130]
                  %3148 = vst [vmem:[%s3138 + $0x20] sm:%s3130] %v3147
                  %v3149 = vld [vmem:[%s3137 + $0x14] sm:%s3130]
                  %3150 = vst [vmem:[%s3138 + $0x28] sm:%s3130] %v3149
                  %v3151 = vld [vmem:[%s3137 + $0x18] sm:%s3130]
                  %3152 = vst [vmem:[%s3138 + $0x30] sm:%s3130] %v3151
                  %v3153 = vld [vmem:[%s3137 + $0x1c] sm:%s3130]
                  %3154 = vst [vmem:[%s3138 + $0x38] sm:%s3130] %v3153
                  %v3155 = vld [vmem:[%s3137 + $0x20] sm:%s3130]
                  %3156 = vst [vmem:[%s3138 + $0x40] sm:%s3130] %v3155
                  %v3157 = vld [vmem:[%s3137 + $0x24] sm:%s3130]
                  %3158 = vst [vmem:[%s3138 + $0x48] sm:%s3130] %v3157
                  %v3159 = vld [vmem:[%s3137 + $0x28] sm:%s3130]
                  %3160 = vst [vmem:[%s3138 + $0x50] sm:%s3130] %v3159
                  %v3161 = vld [vmem:[%s3137 + $0x2c] sm:%s3130]
                  %3162 = vst [vmem:[%s3138 + $0x58] sm:%s3130] %v3161
                  %v3163 = vld [vmem:[%s3137 + $0x30] sm:%s3130]
                  %3164 = vst [vmem:[%s3138 + $0x60] sm:%s3130] %v3163
                  %v3165 = vld [vmem:[%s3137 + $0x34] sm:%s3130]
                  %3166 = vst [vmem:[%s3138 + $0x68] sm:%s3130] %v3165
                  %v3167 = vld [vmem:[%s3137 + $0x38] sm:%s3130]
                  %3168 = vst [vmem:[%s3138 + $0x70] sm:%s3130] %v3167
                  %v3169 = vld [vmem:[%s3137 + $0x3c] sm:%s3130]
                  %3170 = vst [vmem:[%s3138 + $0x78] sm:%s3130] %v3169
                $region255: #{self_attention_forward.4} parent=242 // loop_footer
                  %s3136 = sadd.s32 1, %s3132
                $region256: #{self_attention_forward.4} parent=242 // loop_footer_branch
                  %3131 = sbr.rel target = $region252
                $region257: #{self_attention_forward.4} parent=242 // loop_exit
                  _
              $region243: #{self_attention_forward.4} parent=227 // pred_fallthru
                _
            $region228: #{self_attention_forward.4} parent=223 // pred_fallthru
              _
            // Predicated region
            $region229: #{self_attention_forward.4} parent=223 // pred_check
              _
            $region230: #{self_attention_forward.4} parent=223 // pred_check_branch
              %3076 = sbr.rel (0) target = $region232
            $region231: #{self_attention_forward.4} parent=223 // pred_region
              %s3078 = ssub.s32 16, 1
              loop: start=0, step=1, limit=1
              $region233: #{self_attention_forward.4} parent=231 // loop_pre_header
                _
              $region234: #{self_attention_forward.4} parent=231 // loop_header
                %s3080 = sphi 0, %s3084
                %p3081 = scmp.ge.s32.totalorder %s3080, 1
                %s3085 = sphi %s3063, %s3063
                %s3086 = sphi %s3070, %s3070
              $region235: #{self_attention_forward.4} parent=231 // loop_header_branch
                %3083 = sbr.rel (%p3081) target = $region239
              $region236: #{self_attention_forward.4} parent=231 // loop_body
                %v3087 = vld [vmem:[%s3085] sm:%s3078]
                %3088 = vst [vmem:[%s3086] sm:%s3078] %v3087
                %v3089 = vld [vmem:[%s3085 + $0x4] sm:%s3078]
                %3090 = vst [vmem:[%s3086 + $0x8] sm:%s3078] %v3089
                %v3091 = vld [vmem:[%s3085 + $0x8] sm:%s3078]
                %3092 = vst [vmem:[%s3086 + $0x10] sm:%s3078] %v3091
                %v3093 = vld [vmem:[%s3085 + $0xc] sm:%s3078]
                %3094 = vst [vmem:[%s3086 + $0x18] sm:%s3078] %v3093
                %v3095 = vld [vmem:[%s3085 + $0x10] sm:%s3078]
                %3096 = vst [vmem:[%s3086 + $0x20] sm:%s3078] %v3095
                %v3097 = vld [vmem:[%s3085 + $0x14] sm:%s3078]
                %3098 = vst [vmem:[%s3086 + $0x28] sm:%s3078] %v3097
                %v3099 = vld [vmem:[%s3085 + $0x18] sm:%s3078]
                %3100 = vst [vmem:[%s3086 + $0x30] sm:%s3078] %v3099
                %v3101 = vld [vmem:[%s3085 + $0x1c] sm:%s3078]
                %3102 = vst [vmem:[%s3086 + $0x38] sm:%s3078] %v3101
                %v3103 = vld [vmem:[%s3085 + $0x20] sm:%s3078]
                %3104 = vst [vmem:[%s3086 + $0x40] sm:%s3078] %v3103
                %v3105 = vld [vmem:[%s3085 + $0x24] sm:%s3078]
                %3106 = vst [vmem:[%s3086 + $0x48] sm:%s3078] %v3105
                %v3107 = vld [vmem:[%s3085 + $0x28] sm:%s3078]
                %3108 = vst [vmem:[%s3086 + $0x50] sm:%s3078] %v3107
                %v3109 = vld [vmem:[%s3085 + $0x2c] sm:%s3078]
                %3110 = vst [vmem:[%s3086 + $0x58] sm:%s3078] %v3109
                %v3111 = vld [vmem:[%s3085 + $0x30] sm:%s3078]
                %3112 = vst [vmem:[%s3086 + $0x60] sm:%s3078] %v3111
                %v3113 = vld [vmem:[%s3085 + $0x34] sm:%s3078]
                %3114 = vst [vmem:[%s3086 + $0x68] sm:%s3078] %v3113
                %v3115 = vld [vmem:[%s3085 + $0x38] sm:%s3078]
                %3116 = vst [vmem:[%s3086 + $0x70] sm:%s3078] %v3115
                %v3117 = vld [vmem:[%s3085 + $0x3c] sm:%s3078]
                %3118 = vst [vmem:[%s3086 + $0x78] sm:%s3078] %v3117
              $region237: #{self_attention_forward.4} parent=231 // loop_footer
                %s3084 = sadd.s32 1, %s3080
              $region238: #{self_attention_forward.4} parent=231 // loop_footer_branch
                %3079 = sbr.rel target = $region234
              $region239: #{self_attention_forward.4} parent=231 // loop_exit
                _
            $region232: #{self_attention_forward.4} parent=223 // pred_fallthru
              _
          $region224: #{self_attention_forward.4} parent=219 // pred_fallthru
            _
          %3171 = vnop
        $region220: #{self_attention_forward.4} parent=199 // pred_fallthru
          _
      $region200: #{self_attention_forward.4} parent=5 // pred_fallthru
        _
      %p3172 = scmp.le.s32.totalorder 2, %s14
      // Predicated region
      $region258: #{self_attention_forward.4} parent=5 // pred_check
        %p3173 = pneg %p3172
      $region259: #{self_attention_forward.4} parent=5 // pred_check_branch
        %3175 = sbr.rel (%p3173) target = $region261
      $region260: #{self_attention_forward.4} parent=5 // pred_region
        %s3176 = ssub.s32 %s14, 2
        // Predicated region
        $region262: #{self_attention_forward.4} parent=260 // pred_check
          %p3177 = pneg %p275
        $region263: #{self_attention_forward.4} parent=260 // pred_check_branch
          %3179 = sbr.rel (%p3177) target = $region265
        $region264: #{self_attention_forward.4} parent=260 // pred_region
          %s3180 = sand.u32 %s260, 1
          %s3181 = sand.u32 %s260, 1
          %s3182 = smul.addr %s3181, 64
          %s3183 = scalar_lea.vmem [#allocation6], %s3182
        $region265: #{self_attention_forward.4} parent=260 // pred_fallthru
          _
      $region261: #{self_attention_forward.4} parent=5 // pred_fallthru
        _
    $region6: #{self_attention_forward.4} parent=1 // loop_footer
      %s18 = sadd.s32 1, %s14
    $region7: #{self_attention_forward.4} parent=1 // loop_footer_branch
      %13 = sbr.rel target = $region3
    $region8: #{self_attention_forward.4} parent=1 // loop_exit
      _

</llo_original>
